<compile_context>
chip_gen: v5e
topology: v5e:2x2
jax: 0.10.0
libtpu: 0.0.40
codegen_flags: <defaults>
</compile_context>

<pallas_src>
import functools

import jax
import jax.numpy as jnp
from jax import lax
from jax.experimental import pallas as pl
from jax.experimental.pallas import tpu as pltpu

# ----------------------------- config ---------------------------------------
VOCAB = 256
D_MODEL = 64
D_PAD = 128                        # lane-dense padded residual width
N_LAYER = 4
ATTN_LAYERS = (1, 3)               # transformer layers; others are Mamba layers
N_HEADS = 4
N_KV_HEADS = 2
N_REP = N_HEADS // N_KV_HEADS
HEAD_DIM = D_MODEL // N_HEADS      # 16
D_INNER = D_MODEL                  # matches q_proj rows in the kqvo init
D_XB = N_KV_HEADS * HEAD_DIM       # matches k/v_proj rows (32)
D_STATE = HEAD_DIM                 # SSM state size per head
D_CONV = 4
D_FFN = 128
CONV_DIM = 2 * D_XB + D_INNER      # conv runs over concat(x, B, C) = 128
D_IN_PROJ = 2 * D_INNER + 2 * D_XB + N_HEADS   # 196
D_IN_PROJ_PAD = 256                # pad in_proj output to a lane-dense width
EPS = 1e-6
NEG_INF = -1e30
SCALE = 1.0 / float(HEAD_DIM) ** 0.5

_ATTN_KEYS = ('ln1', 'wqkv_t', 'wo3_t', 'ln2', 'wgu_t', 'wd_t')
_MAMBA_KEYS = ('ln1', 'in_proj_t', 'conv_w', 'conv_b', 'dt_bias', 'A', 'D',
               'out_proj3_t', 'ln2', 'wgu_t', 'wd_t')


# ----------------------------- in-kernel helpers -----------------------------
def _rms(x, w):
    # x is D_PAD wide with zero padding beyond D_MODEL -> normalize over D_MODEL
    var = jnp.sum(x * x, axis=-1, keepdims=True) * (1.0 / D_MODEL)
    return x * lax.rsqrt(var + EPS) * w


def _silu(x):
    return x * jax.nn.sigmoid(x)


def _softplus(x):
    return jnp.maximum(x, 0.0) + jnp.log(1.0 + jnp.exp(-jnp.abs(x)))


def _dot(a, b):
    return jnp.dot(a, b, preferred_element_type=jnp.float32)


def _rope3(t, cos3, sin3):
    # llama rotate-half applied to the packed (H, L, head_dim) tensor in one shot
    half = HEAD_DIM // 2
    t1, t2 = t[..., :half], t[..., half:]
    return jnp.concatenate([t1 * cos3 - t2 * sin3, t2 * cos3 + t1 * sin3], axis=-1)


def _mlp(h, ln, wgu, wd):
    bf16 = jnp.bfloat16
    x = _rms(h, ln)
    gu = _dot(x.astype(bf16), wgu)                        # (L, 2*D_FFN), split at 128
    g, u = gu[:, :D_FFN], gu[:, D_FFN:]
    return _dot((_silu(g) * u).astype(bf16), wd)          # (L, D_PAD)


# ----------------------------- attention layer body --------------------------
def _attn_block(h, cos3, sin3, bias, ln1, wqkv, wo3, ln2, wgu, wd):
    bf16 = jnp.bfloat16
    dh = HEAD_DIM
    x = _rms(h, ln1)
    qkv = _dot(x.astype(bf16), wqkv)                      # (L, 128) = [q | k | v]

    # head-batched (H, L, dh) tensors; GQA replication at stack time (no jnp.repeat)
    q3 = jnp.stack([qkv[:, hd * dh:(hd + 1) * dh] for hd in range(N_HEADS)], 0)
    k3 = jnp.stack([qkv[:, D_MODEL + (hd // N_REP) * dh:
                        D_MODEL + (hd // N_REP + 1) * dh] for hd in range(N_HEADS)], 0)
    v3 = jnp.stack([qkv[:, D_MODEL + D_XB + (hd // N_REP) * dh:
                        D_MODEL + D_XB + (hd // N_REP + 1) * dh]
                    for hd in range(N_HEADS)], 0)
    q3 = _rope3(q3, cos3, sin3)
    k3 = _rope3(k3, cos3, sin3)

    s = jnp.einsum('hld,hmd->hlm', q3.astype(bf16), k3.astype(bf16),
                   preferred_element_type=jnp.float32) * SCALE + bias[None]
    s = s - jnp.max(s, axis=-1, keepdims=True)
    p = jnp.exp(s)
    p = p * pl.reciprocal(jnp.sum(p, axis=-1, keepdims=True), approx=True)
    o3 = jnp.einsum('hlm,hmd->hld', p.astype(bf16), v3.astype(bf16),
                    preferred_element_type=jnp.float32)   # (H, L, dh)

    # o_proj folded into a per-head batched matmul + head-sum (no lane re-pack)
    part = jnp.einsum('hld,hde->hle', o3.astype(bf16), wo3,
                      preferred_element_type=jnp.float32)  # (H, L, D_PAD)
    h1 = h + jnp.sum(part, axis=0)
    return h1 + _mlp(h1, ln2, wgu, wd)


# ----------------------------- Mamba layer body -------------------------------
def _mamba_block(h, tril, shifts, ln1, win, convw, convb, dtb, a_row, d_row,
                 wout3, ln2, wgu, wd):
    bf16 = jnp.bfloat16
    x = _rms(h, ln1)
    # in_proj columns pre-reordered to [xBC(128) | z(64) | dt(H) | pad]
    zxbcdt = _dot(x.astype(bf16), win)                    # (L, 256)
    xBC = zxbcdt[:, :CONV_DIM]
    z = zxbcdt[:, CONV_DIM:CONV_DIM + D_INNER]
    dtr = zxbcdt[:, CONV_DIM + D_INNER:CONV_DIM + D_INNER + N_HEADS]

    # depthwise causal conv1d: out[t] = b + sum_j w_rev[j] * x[t-j], expressed with
    # one-hot shift matrices on the MXU (no misaligned sublane slices, no roll).
    acc = convb
    for j in range(D_CONV):
        acc = acc + _dot(shifts[j], xBC) * convw[j:j + 1, :]
    xBC = _silu(acc)                                      # (L, CONV_DIM)

    xv = xBC[:, :D_XB]                                    # v-like
    Bk = xBC[:, D_XB:2 * D_XB]                            # B (k-like)
    Cq = xBC[:, 2 * D_XB:]                                # C (q-like)

    dt = _softplus(dtr + dtb)                             # (L, H)
    cum = _dot(tril, dt * a_row)                          # inclusive cumsum of dt*A (<=0)
    dec_p = jnp.exp(cum)                                  # exp(cum[t])  <= 1
    dec_n = dt * jnp.exp(-cum)                            # dt[s]*exp(-cum[s])
    # TODO(synk): exp(-cum) is only bounded for single-chunk lengths; production-length
    # sequences would need chunked SSD.

    cs, bs, xs, sk, zs = [], [], [], [], []
    for hd in range(N_HEADS):
        g = hd // N_REP                                   # GQA: heads share kv columns
        c_h = Cq[:, hd * D_STATE:(hd + 1) * D_STATE]
        b_h = Bk[:, g * D_STATE:(g + 1) * D_STATE]
        x_h = xv[:, g * HEAD_DIM:(g + 1) * HEAD_DIM]
        cs.append(c_h * dec_p[:, hd:hd + 1])
        bs.append(b_h)
        xs.append(x_h * dec_n[:, hd:hd + 1])
        sk.append(x_h * d_row[:, hd:hd + 1])
        zs.append(z[:, hd * HEAD_DIM:(hd + 1) * HEAD_DIM])
    c3 = jnp.stack(cs, 0)                                 # (H, L, N)
    b3 = jnp.stack(bs, 0)
    x3 = jnp.stack(xs, 0)                                 # (H, L, P)
    k3 = jnp.stack(sk, 0)
    z3 = jnp.stack(zs, 0)

    # single-chunk SSD: y[t] = sum_{s<=t} exp(cum[t]-cum[s]) (C[t].B[s]) dt[s] x[s] + D x[t]
    g3 = jnp.einsum('hln,hmn->hlm', c3, b3,
                    preferred_element_type=jnp.float32) * tril[None]
    y3 = jnp.einsum('hlm,hmp->hlp', g3, x3,
                    preferred_element_type=jnp.float32) + k3

    # TODO(synk): some Mamba2 hybrid mixers use a gated RMSNorm(y, z) before out_proj;
    # this keeps the plain y * SiLU(z) gating of the reference implementation.
    y3 = y3 * _silu(z3)
    part = jnp.einsum('hlp,hpe->hle', y3.astype(bf16), wout3,
                      preferred_element_type=jnp.float32)  # (H, L, D_PAD)
    h1 = h + jnp.sum(part, axis=0)
    return h1 + _mlp(h1, ln2, wgu, wd)


# ----------------------------- fused whole-forward kernel ---------------------
def _forward_kernel(rope_ref, h_ref, *refs):
    logits_ref = refs[-1]
    wit = iter(refs[:-1])

    h = h_ref[...]                                        # (L, D_PAD) f32
    L = h.shape[0]
    half = HEAD_DIM // 2
    rope = rope_ref[...]                                  # (L, 128) = [cos | sin | 0]
    cos3 = rope[:, :half][None]                           # (1, L, half)
    sin3 = rope[:, half:2 * half][None]

    # causal structures built in-kernel from iota (no mask DMA)
    r = lax.broadcasted_iota(jnp.int32, (L, L), 0)
    c = lax.broadcasted_iota(jnp.int32, (L, L), 1)
    tril = (c <= r).astype(jnp.float32)                   # inclusive lower triangle
    causal_bias = jnp.where(c <= r, 0.0, NEG_INF)         # additive softmax bias
    shifts = [(r - c == j).astype(jnp.float32) for j in range(D_CONV)]

    for i in range(N_LAYER):
        if i in ATTN_LAYERS:
            ln1, wqkv, wo3, ln2, wgu, wd = (next(wit)[...] for _ in range(6))
            h = _attn_block(h, cos3, sin3, causal_bias,
                            ln1, wqkv, wo3, ln2, wgu, wd)
        else:
            (ln1, win, convw, convb, dtb, a_row, d_row,
             wout3, ln2, wgu, wd) = (next(wit)[...] for _ in range(11))
            h = _mamba_block(h, tril, shifts, ln1, win, convw, convb, dtb,
                             a_row, d_row, wout3, ln2, wgu, wd)

    fnorm = next(wit)[...]
    wlm = next(wit)[...]
    x = _rms(h, fnorm)
    logits_ref[...] = _dot(x.astype(jnp.bfloat16), wlm)   # (L, VOCAB) lane-dense


# ----------------------------- wrapper ---------------------------------------
def _flat_weights(params):
    ws = []
    for i in range(N_LAYER):
        keys = _ATTN_KEYS if i in ATTN_LAYERS else _MAMBA_KEYS
        ws.extend(params['layers'][i][k] for k in keys)
    ws.append(params['final_norm'])
    ws.append(params['lm_head_t'])
    return ws


def _const_index_map(ndim, b):
    return (0,) * ndim


@jax.jit
def hybrid_forward(params, input_ids):
    B, L = input_ids.shape
    h0 = params['embed'][input_ids]                       # (B, L, D_PAD) gather (XLA)

    # lane-dense packed RoPE table: columns [cos(half) | sin(half) | zeros]
    half = HEAD_DIM // 2
    pos = jnp.arange(L, dtype=jnp.float32)
    inv_freq = 1.0 / (10000.0 ** (jnp.arange(half, dtype=jnp.float32) / half))
    ang = pos[:, None] * inv_freq[None, :]
    rope_tab = jnp.concatenate(
        [jnp.cos(ang), jnp.sin(ang), jnp.zeros((L, 128 - 2 * half), jnp.float32)],
        axis=1)

    ws = _flat_weights(params)
    in_specs = [pl.BlockSpec((L, 128), lambda b: (0, 0)),            # rope table
                pl.BlockSpec((None, L, D_PAD), lambda b: (b, 0, 0))]  # residual block
    in_specs += [pl.BlockSpec(w.shape, functools.partial(_const_index_map, w.ndim))
                 for w in ws]

    logits = pl.pallas_call(
        _forward_kernel,
        grid=(B,),
        in_specs=in_specs,
        out_specs=pl.BlockSpec((None, L, VOCAB), lambda b: (b, 0, 0)),
        out_shape=jax.ShapeDtypeStruct((B, L, VOCAB), jnp.float32),
        compiler_params=pltpu.CompilerParams(
            dimension_semantics=("parallel",)),    # v7x: batch split across both TCs
    )(rope_tab, h0, *ws)
    return logits


# ----------------------------- parameter init --------------------------------
def init_params(key):
    """Raw parameters in the torch (nn.Linear / depthwise Conv1d) layout."""
    keys = iter(jax.random.split(key, 256))

    def nrm(shape, scale=0.02):
        return scale * jax.random.normal(next(keys), shape, jnp.float32)

    params = {
        'embed': nrm((VOCAB, D_MODEL)),
        'final_norm': jnp.ones((D_MODEL,), jnp.float32),
        'lm_head': nrm((VOCAB, D_MODEL)),
        'layers': [],
    }
    for i in range(N_LAYER):
        lp = {
            'ln1': jnp.ones((D_MODEL,), jnp.float32),
            'ln2': jnp.ones((D_MODEL,), jnp.float32),
            'wg': nrm((D_FFN, D_MODEL)),
            'wu': nrm((D_FFN, D_MODEL)),
            'wd': nrm((D_MODEL, D_FFN)),
        }
        if i in ATTN_LAYERS:
            lp.update({
                'wq': nrm((D_MODEL, D_MODEL)),
                'wk': nrm((D_XB, D_MODEL)),
                'wv': nrm((D_XB, D_MODEL)),
                'wo': nrm((D_MODEL, D_MODEL)),
            })
        else:
            lp.update({
                'in_proj': nrm((D_IN_PROJ, D_MODEL)),     # rows [z | x | B | C | dt]
                'out_proj': nrm((D_MODEL, D_INNER)),
                'conv_w': nrm((D_CONV, CONV_DIM), 0.1),   # torch Conv1d (C,1,K) transposed
                'conv_b': jnp.zeros((CONV_DIM,), jnp.float32),
                'A_log': jnp.log(jnp.arange(1, N_HEADS + 1, dtype=jnp.float32)),
                'D': jnp.ones((N_HEADS,), jnp.float32),
                'dt_bias': jnp.full((N_HEADS,), -1.0, jnp.float32),
            })
        params['layers'].append(lp)
    return params


def prepare_params(raw):
    """Pre-transpose / fuse / zero-pad / bf16-cast weights once for the fused kernel."""
    bf16 = jnp.bfloat16

    def row_pad(v):
        r = v.reshape(1, -1).astype(jnp.float32)
        return jnp.pad(r, ((0, 0), (0, D_PAD - r.shape[1])))

    def pad2(w, rows, cols):
        return jnp.pad(w, ((0, rows - w.shape[0]), (0, cols - w.shape[1])))

    out = {
        'embed': jnp.pad(raw['embed'], ((0, 0), (0, D_PAD - D_MODEL))),   # (V, 128)
        'final_norm': row_pad(raw['final_norm']),
        'lm_head_t': pad2(raw['lm_head'].T, D_PAD, VOCAB).astype(bf16),   # (128, 256)
        'layers': [],
    }
    for i, lp in enumerate(raw['layers']):
        new = {
            'ln1': row_pad(lp['ln1']),
            'ln2': row_pad(lp['ln2']),
            'wgu_t': pad2(jnp.concatenate([lp['wg'], lp['wu']], 0).T,
                          D_PAD, 2 * D_FFN).astype(bf16),                 # (128, 256)
            'wd_t': pad2(lp['wd'].T, D_FFN, D_PAD).astype(bf16),          # (128, 128)
        }
        if i in ATTN_LAYERS:
            new['wqkv_t'] = pad2(jnp.concatenate([lp['wq'], lp['wk'], lp['wv']], 0).T,
                                 D_PAD, D_MODEL + 2 * D_XB).astype(bf16)  # (128, 128)
            wo3 = lp['wo'].T.reshape(N_HEADS, HEAD_DIM, D_MODEL)
            new['wo3_t'] = jnp.pad(
                wo3, ((0, 0), (0, 0), (0, D_PAD - D_MODEL))).astype(bf16)  # (H,16,128)
        else:
            W = lp['in_proj']                                             # (196, 64)
            z_r = W[:D_INNER]
            x_r = W[D_INNER:D_INNER + D_XB]
            B_r = W[D_INNER + D_XB:D_INNER + 2 * D_XB]
            C_r = W[D_INNER + 2 * D_XB:2 * D_INNER + 2 * D_XB]
            dt_r = W[2 * D_INNER + 2 * D_XB:]
            Wt = jnp.concatenate([x_r, B_r, C_r, z_r, dt_r], 0).T         # [xBC|z|dt]
            new['in_proj_t'] = pad2(Wt, D_PAD, D_IN_PROJ_PAD).astype(bf16)  # (128, 256)
            wout3 = lp['out_proj'].T.reshape(N_HEADS, HEAD_DIM, D_MODEL)
            new['out_proj3_t'] = jnp.pad(
                wout3, ((0, 0), (0, 0), (0, D_PAD - D_MODEL))).astype(bf16)  # (H,16,128)
            # flip taps so kernel tap j multiplies x[t-j]
            new['conv_w'] = jnp.flip(lp['conv_w'], axis=0).astype(jnp.float32)
            new['conv_b'] = lp['conv_b'].reshape(1, CONV_DIM).astype(jnp.float32)
            new['dt_bias'] = lp['dt_bias'].reshape(1, -1).astype(jnp.float32)
            new['A'] = (-jnp.exp(lp['A_log'])).reshape(1, -1).astype(jnp.float32)
            new['D'] = lp['D'].reshape(1, -1).astype(jnp.float32)
        out['layers'].append(new)
    return out


# TODO(synk): checkpoint loading (torch.load / safetensors / deepspeed ZeRO gather)
# and HF AutoModel construction from __init__ have no Pallas equivalent; parameters
# are synthesized deterministically instead.

if __name__ == "__main__":
    key = jax.random.PRNGKey(0)
    pkey, ikey = jax.random.split(key)
    params = prepare_params(init_params(pkey))
    input_ids = jax.random.randint(ikey, (2, 16), 0, VOCAB, dtype=jnp.int32)

    logits = hybrid_forward(params, input_ids)
    logits = jax.block_until_ready(logits)
    assert logits.shape == (2, 16, VOCAB)
    assert bool(jnp.all(jnp.isfinite(logits)))
    print("KERNEL_OK")
</pallas_src>

<mosaic_0001>
module attributes {stable_mosaic.version = 11 : i64} {
  func.func @_forward_kernel(%arg0: i32, %arg1: memref<16x128xf32, #tpu.memory_space<vmem>>, %arg2: memref<1x16x128xf32, #tpu.memory_space<vmem>>, %arg3: memref<1x128xf32, #tpu.memory_space<vmem>>, %arg4: memref<128x256xbf16, #tpu.memory_space<vmem>>, %arg5: memref<4x128xf32, #tpu.memory_space<vmem>>, %arg6: memref<1x128xf32, #tpu.memory_space<vmem>>, %arg7: memref<1x4xf32, #tpu.memory_space<vmem>>, %arg8: memref<1x4xf32, #tpu.memory_space<vmem>>, %arg9: memref<1x4xf32, #tpu.memory_space<vmem>>, %arg10: memref<4x16x128xbf16, #tpu.memory_space<vmem>>, %arg11: memref<1x128xf32, #tpu.memory_space<vmem>>, %arg12: memref<128x256xbf16, #tpu.memory_space<vmem>>, %arg13: memref<128x128xbf16, #tpu.memory_space<vmem>>, %arg14: memref<1x128xf32, #tpu.memory_space<vmem>>, %arg15: memref<128x128xbf16, #tpu.memory_space<vmem>>, %arg16: memref<4x16x128xbf16, #tpu.memory_space<vmem>>, %arg17: memref<1x128xf32, #tpu.memory_space<vmem>>, %arg18: memref<128x256xbf16, #tpu.memory_space<vmem>>, %arg19: memref<128x128xbf16, #tpu.memory_space<vmem>>, %arg20: memref<1x128xf32, #tpu.memory_space<vmem>>, %arg21: memref<128x256xbf16, #tpu.memory_space<vmem>>, %arg22: memref<4x128xf32, #tpu.memory_space<vmem>>, %arg23: memref<1x128xf32, #tpu.memory_space<vmem>>, %arg24: memref<1x4xf32, #tpu.memory_space<vmem>>, %arg25: memref<1x4xf32, #tpu.memory_space<vmem>>, %arg26: memref<1x4xf32, #tpu.memory_space<vmem>>, %arg27: memref<4x16x128xbf16, #tpu.memory_space<vmem>>, %arg28: memref<1x128xf32, #tpu.memory_space<vmem>>, %arg29: memref<128x256xbf16, #tpu.memory_space<vmem>>, %arg30: memref<128x128xbf16, #tpu.memory_space<vmem>>, %arg31: memref<1x128xf32, #tpu.memory_space<vmem>>, %arg32: memref<128x128xbf16, #tpu.memory_space<vmem>>, %arg33: memref<4x16x128xbf16, #tpu.memory_space<vmem>>, %arg34: memref<1x128xf32, #tpu.memory_space<vmem>>, %arg35: memref<128x256xbf16, #tpu.memory_space<vmem>>, %arg36: memref<128x128xbf16, #tpu.memory_space<vmem>>, %arg37: memref<1x128xf32, #tpu.memory_space<vmem>>, %arg38: memref<128x256xbf16, #tpu.memory_space<vmem>>, %arg39: memref<1x16x256xf32, #tpu.memory_space<vmem>>) attributes {dimension_semantics = [#tpu.dimension_semantics<parallel>], iteration_bounds = array<i64: 2>, scalar_prefetch = 0 : i64, scratch_operands = 0 : i64, tpu.core_type = #tpu.core_type<tc>, window_params = [{pipeline_mode = #tpu.pipeline_mode<synchronous>, transform_indices = @transform_0, window_bounds = array<i64: 16, 128>}, {transform_indices = @transform_1, window_bounds = array<i64: 1, 16, 128>}, {pipeline_mode = #tpu.pipeline_mode<synchronous>, transform_indices = @transform_2, window_bounds = array<i64: 1, 128>}, {pipeline_mode = #tpu.pipeline_mode<synchronous>, transform_indices = @transform_3, window_bounds = array<i64: 128, 256>}, {pipeline_mode = #tpu.pipeline_mode<synchronous>, transform_indices = @transform_4, window_bounds = array<i64: 4, 128>}, {pipeline_mode = #tpu.pipeline_mode<synchronous>, transform_indices = @transform_5, window_bounds = array<i64: 1, 128>}, {pipeline_mode = #tpu.pipeline_mode<synchronous>, transform_indices = @transform_6, window_bounds = array<i64: 1, 4>}, {pipeline_mode = #tpu.pipeline_mode<synchronous>, transform_indices = @transform_7, window_bounds = array<i64: 1, 4>}, {pipeline_mode = #tpu.pipeline_mode<synchronous>, transform_indices = @transform_8, window_bounds = array<i64: 1, 4>}, {pipeline_mode = #tpu.pipeline_mode<synchronous>, transform_indices = @transform_9, window_bounds = array<i64: 4, 16, 128>}, {pipeline_mode = #tpu.pipeline_mode<synchronous>, transform_indices = @transform_10, window_bounds = array<i64: 1, 128>}, {pipeline_mode = #tpu.pipeline_mode<synchronous>, transform_indices = @transform_11, window_bounds = array<i64: 128, 256>}, {pipeline_mode = #tpu.pipeline_mode<synchronous>, transform_indices = @transform_12, window_bounds = array<i64: 128, 128>}, {pipeline_mode = #tpu.pipeline_mode<synchronous>, transform_indices = @transform_13, window_bounds = array<i64: 1, 128>}, {pipeline_mode = #tpu.pipeline_mode<synchronous>, transform_indices = @transform_14, window_bounds = array<i64: 128, 128>}, {pipeline_mode = #tpu.pipeline_mode<synchronous>, transform_indices = @transform_15, window_bounds = array<i64: 4, 16, 128>}, {pipeline_mode = #tpu.pipeline_mode<synchronous>, transform_indices = @transform_16, window_bounds = array<i64: 1, 128>}, {pipeline_mode = #tpu.pipeline_mode<synchronous>, transform_indices = @transform_17, window_bounds = array<i64: 128, 256>}, {pipeline_mode = #tpu.pipeline_mode<synchronous>, transform_indices = @transform_18, window_bounds = array<i64: 128, 128>}, {pipeline_mode = #tpu.pipeline_mode<synchronous>, transform_indices = @transform_19, window_bounds = array<i64: 1, 128>}, {pipeline_mode = #tpu.pipeline_mode<synchronous>, transform_indices = @transform_20, window_bounds = array<i64: 128, 256>}, {pipeline_mode = #tpu.pipeline_mode<synchronous>, transform_indices = @transform_21, window_bounds = array<i64: 4, 128>}, {pipeline_mode = #tpu.pipeline_mode<synchronous>, transform_indices = @transform_22, window_bounds = array<i64: 1, 128>}, {pipeline_mode = #tpu.pipeline_mode<synchronous>, transform_indices = @transform_23, window_bounds = array<i64: 1, 4>}, {pipeline_mode = #tpu.pipeline_mode<synchronous>, transform_indices = @transform_24, window_bounds = array<i64: 1, 4>}, {pipeline_mode = #tpu.pipeline_mode<synchronous>, transform_indices = @transform_25, window_bounds = array<i64: 1, 4>}, {pipeline_mode = #tpu.pipeline_mode<synchronous>, transform_indices = @transform_26, window_bounds = array<i64: 4, 16, 128>}, {pipeline_mode = #tpu.pipeline_mode<synchronous>, transform_indices = @transform_27, window_bounds = array<i64: 1, 128>}, {pipeline_mode = #tpu.pipeline_mode<synchronous>, transform_indices = @transform_28, window_bounds = array<i64: 128, 256>}, {pipeline_mode = #tpu.pipeline_mode<synchronous>, transform_indices = @transform_29, window_bounds = array<i64: 128, 128>}, {pipeline_mode = #tpu.pipeline_mode<synchronous>, transform_indices = @transform_30, window_bounds = array<i64: 1, 128>}, {pipeline_mode = #tpu.pipeline_mode<synchronous>, transform_indices = @transform_31, window_bounds = array<i64: 128, 128>}, {pipeline_mode = #tpu.pipeline_mode<synchronous>, transform_indices = @transform_32, window_bounds = array<i64: 4, 16, 128>}, {pipeline_mode = #tpu.pipeline_mode<synchronous>, transform_indices = @transform_33, window_bounds = array<i64: 1, 128>}, {pipeline_mode = #tpu.pipeline_mode<synchronous>, transform_indices = @transform_34, window_bounds = array<i64: 128, 256>}, {pipeline_mode = #tpu.pipeline_mode<synchronous>, transform_indices = @transform_35, window_bounds = array<i64: 128, 128>}, {pipeline_mode = #tpu.pipeline_mode<synchronous>, transform_indices = @transform_36, window_bounds = array<i64: 1, 128>}, {pipeline_mode = #tpu.pipeline_mode<synchronous>, transform_indices = @transform_37, window_bounds = array<i64: 128, 256>}, {transform_indices = @transform_38, window_bounds = array<i64: 1, 16, 256>}]} {
    %c0 = arith.constant 0 : index
    %c0_0 = arith.constant 0 : index
    %c0_1 = arith.constant 0 : index
    %0 = vector.load %arg2[%c0, %c0_0, %c0_1] : memref<1x16x128xf32, #tpu.memory_space<vmem>>, vector<1x16x128xf32>
    %1 = vector.shape_cast %0 : vector<1x16x128xf32> to vector<16x128xf32>
    %c0_2 = arith.constant 0 : index
    %c0_3 = arith.constant 0 : index
    %2 = vector.load %arg1[%c0_2, %c0_3] : memref<16x128xf32, #tpu.memory_space<vmem>>, vector<16x128xf32>
    %3 = vector.extract_strided_slice %2 {offsets = [0, 0], sizes = [16, 8], strides = [1, 1]} : vector<16x128xf32> to vector<16x8xf32>
    %4 = vector.shape_cast %3 : vector<16x8xf32> to vector<1x16x8xf32>
    %5 = vector.extract_strided_slice %2 {offsets = [0, 8], sizes = [16, 8], strides = [1, 1]} : vector<16x128xf32> to vector<16x8xf32>
    %6 = vector.shape_cast %5 : vector<16x8xf32> to vector<1x16x8xf32>
    %7 = tpu.iota {dimensions = array<i32: 0>} : vector<16x16xi32>
    %8 = tpu.iota {dimensions = array<i32: 1>} : vector<16x16xi32>
    %9 = arith.cmpi sle, %8, %7 : vector<16x16xi32>
    %10 = arith.extui %9 : vector<16x16xi1> to vector<16x16xi32>
    %11 = arith.sitofp %10 : vector<16x16xi32> to vector<16x16xf32>
    %12 = arith.cmpi sle, %8, %7 : vector<16x16xi32>
    %cst = arith.constant 0.000000e+00 : f32
    %cst_4 = arith.constant -1.000000e+30 : f32
    %13 = vector.broadcast %cst : f32 to vector<16x16xf32>
    %14 = vector.broadcast %cst_4 : f32 to vector<16x16xf32>
    %15 = arith.select %12, %13, %14 : vector<16x16xi1>, vector<16x16xf32>
    %16 = arith.subi %7, %8 : vector<16x16xi32>
    %c0_i32 = arith.constant 0 : i32
    %17 = vector.broadcast %c0_i32 : i32 to vector<16x16xi32>
    %18 = arith.cmpi eq, %16, %17 : vector<16x16xi32>
    %19 = arith.extui %18 : vector<16x16xi1> to vector<16x16xi32>
    %20 = arith.sitofp %19 : vector<16x16xi32> to vector<16x16xf32>
    %21 = arith.subi %7, %8 : vector<16x16xi32>
    %c1_i32 = arith.constant 1 : i32
    %22 = vector.broadcast %c1_i32 : i32 to vector<16x16xi32>
    %23 = arith.cmpi eq, %21, %22 : vector<16x16xi32>
    %24 = arith.extui %23 : vector<16x16xi1> to vector<16x16xi32>
    %25 = arith.sitofp %24 : vector<16x16xi32> to vector<16x16xf32>
    %26 = arith.subi %7, %8 : vector<16x16xi32>
    %c2_i32 = arith.constant 2 : i32
    %27 = vector.broadcast %c2_i32 : i32 to vector<16x16xi32>
    %28 = arith.cmpi eq, %26, %27 : vector<16x16xi32>
    %29 = arith.extui %28 : vector<16x16xi1> to vector<16x16xi32>
    %30 = arith.sitofp %29 : vector<16x16xi32> to vector<16x16xf32>
    %31 = arith.subi %7, %8 : vector<16x16xi32>
    %c3_i32 = arith.constant 3 : i32
    %32 = vector.broadcast %c3_i32 : i32 to vector<16x16xi32>
    %33 = arith.cmpi eq, %31, %32 : vector<16x16xi32>
    %34 = arith.extui %33 : vector<16x16xi1> to vector<16x16xi32>
    %35 = arith.sitofp %34 : vector<16x16xi32> to vector<16x16xf32>
    %c0_5 = arith.constant 0 : index
    %c0_6 = arith.constant 0 : index
    %36 = vector.load %arg3[%c0_5, %c0_6] : memref<1x128xf32, #tpu.memory_space<vmem>>, vector<1x128xf32>
    %c0_7 = arith.constant 0 : index
    %c0_8 = arith.constant 0 : index
    %37 = vector.load %arg4[%c0_7, %c0_8] : memref<128x256xbf16, #tpu.memory_space<vmem>>, vector<128x256xbf16>
    %c0_9 = arith.constant 0 : index
    %c0_10 = arith.constant 0 : index
    %38 = vector.load %arg5[%c0_9, %c0_10] : memref<4x128xf32, #tpu.memory_space<vmem>>, vector<4x128xf32>
    %c0_11 = arith.constant 0 : index
    %c0_12 = arith.constant 0 : index
    %39 = vector.load %arg6[%c0_11, %c0_12] : memref<1x128xf32, #tpu.memory_space<vmem>>, vector<1x128xf32>
    %c0_13 = arith.constant 0 : index
    %c0_14 = arith.constant 0 : index
    %40 = vector.load %arg7[%c0_13, %c0_14] : memref<1x4xf32, #tpu.memory_space<vmem>>, vector<1x4xf32>
    %c0_15 = arith.constant 0 : index
    %c0_16 = arith.constant 0 : index
    %41 = vector.load %arg8[%c0_15, %c0_16] : memref<1x4xf32, #tpu.memory_space<vmem>>, vector<1x4xf32>
    %c0_17 = arith.constant 0 : index
    %c0_18 = arith.constant 0 : index
    %42 = vector.load %arg9[%c0_17, %c0_18] : memref<1x4xf32, #tpu.memory_space<vmem>>, vector<1x4xf32>
    %c0_19 = arith.constant 0 : index
    %c0_20 = arith.constant 0 : index
    %c0_21 = arith.constant 0 : index
    %43 = vector.load %arg10[%c0_19, %c0_20, %c0_21] : memref<4x16x128xbf16, #tpu.memory_space<vmem>>, vector<4x16x128xbf16>
    %c0_22 = arith.constant 0 : index
    %c0_23 = arith.constant 0 : index
    %44 = vector.load %arg11[%c0_22, %c0_23] : memref<1x128xf32, #tpu.memory_space<vmem>>, vector<1x128xf32>
    %c0_24 = arith.constant 0 : index
    %c0_25 = arith.constant 0 : index
    %45 = vector.load %arg12[%c0_24, %c0_25] : memref<128x256xbf16, #tpu.memory_space<vmem>>, vector<128x256xbf16>
    %c0_26 = arith.constant 0 : index
    %c0_27 = arith.constant 0 : index
    %46 = vector.load %arg13[%c0_26, %c0_27] : memref<128x128xbf16, #tpu.memory_space<vmem>>, vector<128x128xbf16>
    %47 = arith.mulf %1, %1 : vector<16x128xf32>
    %cst_28 = arith.constant dense<0.000000e+00> : vector<16xf32>
    %48 = vector.multi_reduction <add>, %47, %cst_28 [1] : vector<16x128xf32> to vector<16xf32>
    %49 = vector.shape_cast %48 : vector<16xf32> to vector<16x1xf32>
    %cst_29 = arith.constant 1.562500e-02 : f32
    %50 = vector.broadcast %cst_29 : f32 to vector<16x1xf32>
    %51 = arith.mulf %49, %50 : vector<16x1xf32>
    %cst_30 = arith.constant 9.99999997E-7 : f32
    %52 = vector.broadcast %cst_30 : f32 to vector<16x1xf32>
    %53 = arith.addf %51, %52 : vector<16x1xf32>
    %54 = math.rsqrt %53 : vector<16x1xf32>
    %55 = vector.broadcast %54 : vector<16x1xf32> to vector<16x128xf32>
    %56 = arith.mulf %1, %55 : vector<16x128xf32>
    %57 = vector.broadcast %36 : vector<1x128xf32> to vector<16x128xf32>
    %58 = arith.mulf %56, %57 : vector<16x128xf32>
    %59 = arith.truncf %58 : vector<16x128xf32> to vector<16x128xbf16>
    %cst_31 = arith.constant dense<0.000000e+00> : vector<16x256xf32>
    %60 = tpu.matmul %59, %37, %cst_31 {dimension_numbers = #tpu.dot_dimension_numbers<[1], [0], [0], [1], [0, 0, 1, 1], [], []>} : vector<16x128xbf16>, vector<128x256xbf16>, vector<16x256xf32> -> vector<16x256xf32>
    %61 = vector.extract_strided_slice %60 {offsets = [0, 0], sizes = [16, 128], strides = [1, 1]} : vector<16x256xf32> to vector<16x128xf32>
    %62 = vector.extract_strided_slice %60 {offsets = [0, 128], sizes = [16, 64], strides = [1, 1]} : vector<16x256xf32> to vector<16x64xf32>
    %63 = vector.extract_strided_slice %60 {offsets = [0, 192], sizes = [16, 4], strides = [1, 1]} : vector<16x256xf32> to vector<16x4xf32>
    %cst_32 = arith.constant dense<0.000000e+00> : vector<16x128xf32>
    %64 = tpu.matmul %20, %61, %cst_32 {dimension_numbers = #tpu.dot_dimension_numbers<[1], [0], [0], [1], [0, 0, 1, 1], [], []>} : vector<16x16xf32>, vector<16x128xf32>, vector<16x128xf32> -> vector<16x128xf32>
    %65 = vector.extract_strided_slice %38 {offsets = [0, 0], sizes = [1, 128], strides = [1, 1]} : vector<4x128xf32> to vector<1x128xf32>
    %66 = vector.broadcast %65 : vector<1x128xf32> to vector<16x128xf32>
    %67 = arith.mulf %64, %66 : vector<16x128xf32>
    %68 = vector.broadcast %39 : vector<1x128xf32> to vector<16x128xf32>
    %69 = arith.addf %68, %67 : vector<16x128xf32>
    %cst_33 = arith.constant dense<0.000000e+00> : vector<16x128xf32>
    %70 = tpu.matmul %25, %61, %cst_33 {dimension_numbers = #tpu.dot_dimension_numbers<[1], [0], [0], [1], [0, 0, 1, 1], [], []>} : vector<16x16xf32>, vector<16x128xf32>, vector<16x128xf32> -> vector<16x128xf32>
    %71 = vector.extract_strided_slice %38 {offsets = [1, 0], sizes = [1, 128], strides = [1, 1]} : vector<4x128xf32> to vector<1x128xf32>
    %72 = vector.broadcast %71 : vector<1x128xf32> to vector<16x128xf32>
    %73 = arith.mulf %70, %72 : vector<16x128xf32>
    %74 = arith.addf %69, %73 : vector<16x128xf32>
    %cst_34 = arith.constant dense<0.000000e+00> : vector<16x128xf32>
    %75 = tpu.matmul %30, %61, %cst_34 {dimension_numbers = #tpu.dot_dimension_numbers<[1], [0], [0], [1], [0, 0, 1, 1], [], []>} : vector<16x16xf32>, vector<16x128xf32>, vector<16x128xf32> -> vector<16x128xf32>
    %76 = vector.extract_strided_slice %38 {offsets = [2, 0], sizes = [1, 128], strides = [1, 1]} : vector<4x128xf32> to vector<1x128xf32>
    %77 = vector.broadcast %76 : vector<1x128xf32> to vector<16x128xf32>
    %78 = arith.mulf %75, %77 : vector<16x128xf32>
    %79 = arith.addf %74, %78 : vector<16x128xf32>
    %cst_35 = arith.constant dense<0.000000e+00> : vector<16x128xf32>
    %80 = tpu.matmul %35, %61, %cst_35 {dimension_numbers = #tpu.dot_dimension_numbers<[1], [0], [0], [1], [0, 0, 1, 1], [], []>} : vector<16x16xf32>, vector<16x128xf32>, vector<16x128xf32> -> vector<16x128xf32>
    %81 = vector.extract_strided_slice %38 {offsets = [3, 0], sizes = [1, 128], strides = [1, 1]} : vector<4x128xf32> to vector<1x128xf32>
    %82 = vector.broadcast %81 : vector<1x128xf32> to vector<16x128xf32>
    %83 = arith.mulf %80, %82 : vector<16x128xf32>
    %84 = arith.addf %79, %83 : vector<16x128xf32>
    %85 = arith.negf %84 : vector<16x128xf32>
    %86 = math.exp %85 : vector<16x128xf32>
    %cst_36 = arith.constant 1.000000e+00 : f32
    %87 = vector.broadcast %cst_36 : f32 to vector<16x128xf32>
    %88 = arith.addf %87, %86 : vector<16x128xf32>
    %89 = arith.divf %87, %88 : vector<16x128xf32>
    %90 = arith.mulf %84, %89 : vector<16x128xf32>
    %91 = vector.extract_strided_slice %90 {offsets = [0, 0], sizes = [16, 32], strides = [1, 1]} : vector<16x128xf32> to vector<16x32xf32>
    %92 = vector.extract_strided_slice %90 {offsets = [0, 32], sizes = [16, 32], strides = [1, 1]} : vector<16x128xf32> to vector<16x32xf32>
    %93 = vector.extract_strided_slice %90 {offsets = [0, 64], sizes = [16, 64], strides = [1, 1]} : vector<16x128xf32> to vector<16x64xf32>
    %94 = vector.broadcast %40 : vector<1x4xf32> to vector<16x4xf32>
    %95 = arith.addf %63, %94 : vector<16x4xf32>
    %cst_37 = arith.constant 0.000000e+00 : f32
    %96 = vector.broadcast %cst_37 : f32 to vector<16x4xf32>
    %97 = arith.maximumf %95, %96 : vector<16x4xf32>
    %98 = math.absf %95 : vector<16x4xf32>
    %cst_38 = arith.constant 0.000000e+00 : f32
    %99 = vector.broadcast %cst_38 : f32 to vector<16x4xf32>
    %100 = arith.subf %99, %98 : vector<16x4xf32>
    %101 = math.exp %100 : vector<16x4xf32>
    %cst_39 = arith.constant 1.000000e+00 : f32
    %102 = vector.broadcast %cst_39 : f32 to vector<16x4xf32>
    %103 = arith.addf %102, %101 : vector<16x4xf32>
    %104 = math.log %103 : vector<16x4xf32>
    %105 = arith.addf %97, %104 : vector<16x4xf32>
    %106 = vector.broadcast %41 : vector<1x4xf32> to vector<16x4xf32>
    %107 = arith.mulf %105, %106 : vector<16x4xf32>
    %cst_40 = arith.constant dense<0.000000e+00> : vector<16x4xf32>
    %108 = tpu.matmul %11, %107, %cst_40 {dimension_numbers = #tpu.dot_dimension_numbers<[1], [0], [0], [1], [0, 0, 1, 1], [], []>} : vector<16x16xf32>, vector<16x4xf32>, vector<16x4xf32> -> vector<16x4xf32>
    %109 = math.exp %108 : vector<16x4xf32>
    %cst_41 = arith.constant 0.000000e+00 : f32
    %110 = vector.broadcast %cst_41 : f32 to vector<16x4xf32>
    %111 = arith.subf %110, %108 : vector<16x4xf32>
    %112 = math.exp %111 : vector<16x4xf32>
    %113 = arith.mulf %105, %112 : vector<16x4xf32>
    %114 = vector.extract_strided_slice %93 {offsets = [0, 0], sizes = [16, 16], strides = [1, 1]} : vector<16x64xf32> to vector<16x16xf32>
    %115 = vector.extract_strided_slice %92 {offsets = [0, 0], sizes = [16, 16], strides = [1, 1]} : vector<16x32xf32> to vector<16x16xf32>
    %116 = vector.extract_strided_slice %91 {offsets = [0, 0], sizes = [16, 16], strides = [1, 1]} : vector<16x32xf32> to vector<16x16xf32>
    %117 = vector.extract_strided_slice %109 {offsets = [0, 0], sizes = [16, 1], strides = [1, 1]} : vector<16x4xf32> to vector<16x1xf32>
    %118 = vector.broadcast %117 : vector<16x1xf32> to vector<16x16xf32>
    %119 = arith.mulf %114, %118 : vector<16x16xf32>
    %120 = vector.extract_strided_slice %113 {offsets = [0, 0], sizes = [16, 1], strides = [1, 1]} : vector<16x4xf32> to vector<16x1xf32>
    %121 = vector.broadcast %120 : vector<16x1xf32> to vector<16x16xf32>
    %122 = arith.mulf %116, %121 : vector<16x16xf32>
    %123 = vector.extract_strided_slice %42 {offsets = [0, 0], sizes = [1, 1], strides = [1, 1]} : vector<1x4xf32> to vector<1x1xf32>
    %124 = vector.broadcast %123 : vector<1x1xf32> to vector<16x16xf32>
    %125 = arith.mulf %116, %124 : vector<16x16xf32>
    %126 = vector.extract_strided_slice %62 {offsets = [0, 0], sizes = [16, 16], strides = [1, 1]} : vector<16x64xf32> to vector<16x16xf32>
    %127 = vector.extract_strided_slice %93 {offsets = [0, 16], sizes = [16, 16], strides = [1, 1]} : vector<16x64xf32> to vector<16x16xf32>
    %128 = vector.extract_strided_slice %92 {offsets = [0, 0], sizes = [16, 16], strides = [1, 1]} : vector<16x32xf32> to vector<16x16xf32>
    %129 = vector.extract_strided_slice %91 {offsets = [0, 0], sizes = [16, 16], strides = [1, 1]} : vector<16x32xf32> to vector<16x16xf32>
    %130 = vector.extract_strided_slice %109 {offsets = [0, 1], sizes = [16, 1], strides = [1, 1]} : vector<16x4xf32> to vector<16x1xf32>
    %131 = vector.broadcast %130 : vector<16x1xf32> to vector<16x16xf32>
    %132 = arith.mulf %127, %131 : vector<16x16xf32>
    %133 = vector.extract_strided_slice %113 {offsets = [0, 1], sizes = [16, 1], strides = [1, 1]} : vector<16x4xf32> to vector<16x1xf32>
    %134 = vector.broadcast %133 : vector<16x1xf32> to vector<16x16xf32>
    %135 = arith.mulf %129, %134 : vector<16x16xf32>
    %136 = vector.extract_strided_slice %42 {offsets = [0, 1], sizes = [1, 1], strides = [1, 1]} : vector<1x4xf32> to vector<1x1xf32>
    %137 = vector.broadcast %136 : vector<1x1xf32> to vector<16x16xf32>
    %138 = arith.mulf %129, %137 : vector<16x16xf32>
    %139 = vector.extract_strided_slice %62 {offsets = [0, 16], sizes = [16, 16], strides = [1, 1]} : vector<16x64xf32> to vector<16x16xf32>
    %140 = vector.extract_strided_slice %93 {offsets = [0, 32], sizes = [16, 16], strides = [1, 1]} : vector<16x64xf32> to vector<16x16xf32>
    %141 = vector.extract_strided_slice %92 {offsets = [0, 16], sizes = [16, 16], strides = [1, 1]} : vector<16x32xf32> to vector<16x16xf32>
    %142 = vector.extract_strided_slice %91 {offsets = [0, 16], sizes = [16, 16], strides = [1, 1]} : vector<16x32xf32> to vector<16x16xf32>
    %143 = vector.extract_strided_slice %109 {offsets = [0, 2], sizes = [16, 1], strides = [1, 1]} : vector<16x4xf32> to vector<16x1xf32>
    %144 = vector.broadcast %143 : vector<16x1xf32> to vector<16x16xf32>
    %145 = arith.mulf %140, %144 : vector<16x16xf32>
    %146 = vector.extract_strided_slice %113 {offsets = [0, 2], sizes = [16, 1], strides = [1, 1]} : vector<16x4xf32> to vector<16x1xf32>
    %147 = vector.broadcast %146 : vector<16x1xf32> to vector<16x16xf32>
    %148 = arith.mulf %142, %147 : vector<16x16xf32>
    %149 = vector.extract_strided_slice %42 {offsets = [0, 2], sizes = [1, 1], strides = [1, 1]} : vector<1x4xf32> to vector<1x1xf32>
    %150 = vector.broadcast %149 : vector<1x1xf32> to vector<16x16xf32>
    %151 = arith.mulf %142, %150 : vector<16x16xf32>
    %152 = vector.extract_strided_slice %62 {offsets = [0, 32], sizes = [16, 16], strides = [1, 1]} : vector<16x64xf32> to vector<16x16xf32>
    %153 = vector.extract_strided_slice %93 {offsets = [0, 48], sizes = [16, 16], strides = [1, 1]} : vector<16x64xf32> to vector<16x16xf32>
    %154 = vector.extract_strided_slice %92 {offsets = [0, 16], sizes = [16, 16], strides = [1, 1]} : vector<16x32xf32> to vector<16x16xf32>
    %155 = vector.extract_strided_slice %91 {offsets = [0, 16], sizes = [16, 16], strides = [1, 1]} : vector<16x32xf32> to vector<16x16xf32>
    %156 = vector.extract_strided_slice %109 {offsets = [0, 3], sizes = [16, 1], strides = [1, 1]} : vector<16x4xf32> to vector<16x1xf32>
    %157 = vector.broadcast %156 : vector<16x1xf32> to vector<16x16xf32>
    %158 = arith.mulf %153, %157 : vector<16x16xf32>
    %159 = vector.extract_strided_slice %113 {offsets = [0, 3], sizes = [16, 1], strides = [1, 1]} : vector<16x4xf32> to vector<16x1xf32>
    %160 = vector.broadcast %159 : vector<16x1xf32> to vector<16x16xf32>
    %161 = arith.mulf %155, %160 : vector<16x16xf32>
    %162 = vector.extract_strided_slice %42 {offsets = [0, 3], sizes = [1, 1], strides = [1, 1]} : vector<1x4xf32> to vector<1x1xf32>
    %163 = vector.broadcast %162 : vector<1x1xf32> to vector<16x16xf32>
    %164 = arith.mulf %155, %163 : vector<16x16xf32>
    %165 = vector.extract_strided_slice %62 {offsets = [0, 48], sizes = [16, 16], strides = [1, 1]} : vector<16x64xf32> to vector<16x16xf32>
    %166 = vector.shape_cast %119 : vector<16x16xf32> to vector<1x16x16xf32>
    %167 = vector.shape_cast %132 : vector<16x16xf32> to vector<1x16x16xf32>
    %168 = vector.shape_cast %145 : vector<16x16xf32> to vector<1x16x16xf32>
    %169 = vector.shape_cast %158 : vector<16x16xf32> to vector<1x16x16xf32>
    %170 = tpu.concatenate %166, %167, %168, %169 in 0 : vector<1x16x16xf32>, vector<1x16x16xf32>, vector<1x16x16xf32>, vector<1x16x16xf32> -> vector<4x16x16xf32>
    %171 = vector.shape_cast %115 : vector<16x16xf32> to vector<1x16x16xf32>
    %172 = vector.shape_cast %128 : vector<16x16xf32> to vector<1x16x16xf32>
    %173 = vector.shape_cast %141 : vector<16x16xf32> to vector<1x16x16xf32>
    %174 = vector.shape_cast %154 : vector<16x16xf32> to vector<1x16x16xf32>
    %175 = tpu.concatenate %171, %172, %173, %174 in 0 : vector<1x16x16xf32>, vector<1x16x16xf32>, vector<1x16x16xf32>, vector<1x16x16xf32> -> vector<4x16x16xf32>
    %176 = vector.shape_cast %122 : vector<16x16xf32> to vector<1x16x16xf32>
    %177 = vector.shape_cast %135 : vector<16x16xf32> to vector<1x16x16xf32>
    %178 = vector.shape_cast %148 : vector<16x16xf32> to vector<1x16x16xf32>
    %179 = vector.shape_cast %161 : vector<16x16xf32> to vector<1x16x16xf32>
    %180 = tpu.concatenate %176, %177, %178, %179 in 0 : vector<1x16x16xf32>, vector<1x16x16xf32>, vector<1x16x16xf32>, vector<1x16x16xf32> -> vector<4x16x16xf32>
    %181 = vector.shape_cast %125 : vector<16x16xf32> to vector<1x16x16xf32>
    %182 = vector.shape_cast %138 : vector<16x16xf32> to vector<1x16x16xf32>
    %183 = vector.shape_cast %151 : vector<16x16xf32> to vector<1x16x16xf32>
    %184 = vector.shape_cast %164 : vector<16x16xf32> to vector<1x16x16xf32>
    %185 = tpu.concatenate %181, %182, %183, %184 in 0 : vector<1x16x16xf32>, vector<1x16x16xf32>, vector<1x16x16xf32>, vector<1x16x16xf32> -> vector<4x16x16xf32>
    %186 = vector.shape_cast %126 : vector<16x16xf32> to vector<1x16x16xf32>
    %187 = vector.shape_cast %139 : vector<16x16xf32> to vector<1x16x16xf32>
    %188 = vector.shape_cast %152 : vector<16x16xf32> to vector<1x16x16xf32>
    %189 = vector.shape_cast %165 : vector<16x16xf32> to vector<1x16x16xf32>
    %190 = tpu.concatenate %186, %187, %188, %189 in 0 : vector<1x16x16xf32>, vector<1x16x16xf32>, vector<1x16x16xf32>, vector<1x16x16xf32> -> vector<4x16x16xf32>
    "tpu.trace_start"() <{level = 10 : i32, message = "hln,hmn->hlm"}> : () -> ()
    %cst_42 = arith.constant dense<0.000000e+00> : vector<4x16x16xf32>
    %191 = tpu.matmul %170, %175, %cst_42 {dimension_numbers = #tpu.dot_dimension_numbers<[2], [2], [1], [1], [0, 0, 0, 1, 1, 1], [0], [0]>} : vector<4x16x16xf32>, vector<4x16x16xf32>, vector<4x16x16xf32> -> vector<4x16x16xf32>
    "tpu.trace_stop"() : () -> ()
    %192 = vector.shape_cast %11 : vector<16x16xf32> to vector<1x16x16xf32>
    %193 = vector.broadcast %192 : vector<1x16x16xf32> to vector<4x16x16xf32>
    %194 = arith.mulf %191, %193 : vector<4x16x16xf32>
    "tpu.trace_start"() <{level = 10 : i32, message = "hlm,hmp->hlp"}> : () -> ()
    %cst_43 = arith.constant dense<0.000000e+00> : vector<4x16x16xf32>
    %195 = tpu.matmul %194, %180, %cst_43 {dimension_numbers = #tpu.dot_dimension_numbers<[2], [1], [1], [2], [0, 0, 0, 1, 1, 2], [0], [0]>} : vector<4x16x16xf32>, vector<4x16x16xf32>, vector<4x16x16xf32> -> vector<4x16x16xf32>
    "tpu.trace_stop"() : () -> ()
    %196 = arith.addf %195, %185 : vector<4x16x16xf32>
    %197 = arith.negf %190 : vector<4x16x16xf32>
    %198 = math.exp %197 : vector<4x16x16xf32>
    %cst_44 = arith.constant 1.000000e+00 : f32
    %199 = vector.broadcast %cst_44 : f32 to vector<4x16x16xf32>
    %200 = arith.addf %199, %198 : vector<4x16x16xf32>
    %201 = arith.divf %199, %200 : vector<4x16x16xf32>
    %202 = arith.mulf %190, %201 : vector<4x16x16xf32>
    %203 = arith.mulf %196, %202 : vector<4x16x16xf32>
    %204 = arith.truncf %203 : vector<4x16x16xf32> to vector<4x16x16xbf16>
    "tpu.trace_start"() <{level = 10 : i32, message = "hlp,hpe->hle"}> : () -> ()
    %cst_45 = arith.constant dense<0.000000e+00> : vector<4x16x128xf32>
    %205 = tpu.matmul %204, %43, %cst_45 {dimension_numbers = #tpu.dot_dimension_numbers<[2], [1], [1], [2], [0, 0, 0, 1, 1, 2], [0], [0]>} : vector<4x16x16xbf16>, vector<4x16x128xbf16>, vector<4x16x128xf32> -> vector<4x16x128xf32>
    "tpu.trace_stop"() : () -> ()
    %cst_46 = arith.constant dense<0.000000e+00> : vector<16x128xf32>
    %206 = vector.multi_reduction <add>, %205, %cst_46 [0] : vector<4x16x128xf32> to vector<16x128xf32>
    %207 = arith.addf %1, %206 : vector<16x128xf32>
    %208 = arith.mulf %207, %207 : vector<16x128xf32>
    %cst_47 = arith.constant dense<0.000000e+00> : vector<16xf32>
    %209 = vector.multi_reduction <add>, %208, %cst_47 [1] : vector<16x128xf32> to vector<16xf32>
    %210 = vector.shape_cast %209 : vector<16xf32> to vector<16x1xf32>
    %cst_48 = arith.constant 1.562500e-02 : f32
    %211 = vector.broadcast %cst_48 : f32 to vector<16x1xf32>
    %212 = arith.mulf %210, %211 : vector<16x1xf32>
    %cst_49 = arith.constant 9.99999997E-7 : f32
    %213 = vector.broadcast %cst_49 : f32 to vector<16x1xf32>
    %214 = arith.addf %212, %213 : vector<16x1xf32>
    %215 = math.rsqrt %214 : vector<16x1xf32>
    %216 = vector.broadcast %215 : vector<16x1xf32> to vector<16x128xf32>
    %217 = arith.mulf %207, %216 : vector<16x128xf32>
    %218 = vector.broadcast %44 : vector<1x128xf32> to vector<16x128xf32>
    %219 = arith.mulf %217, %218 : vector<16x128xf32>
    %220 = arith.truncf %219 : vector<16x128xf32> to vector<16x128xbf16>
    %cst_50 = arith.constant dense<0.000000e+00> : vector<16x256xf32>
    %221 = tpu.matmul %220, %45, %cst_50 {dimension_numbers = #tpu.dot_dimension_numbers<[1], [0], [0], [1], [0, 0, 1, 1], [], []>} : vector<16x128xbf16>, vector<128x256xbf16>, vector<16x256xf32> -> vector<16x256xf32>
    %222 = vector.extract_strided_slice %221 {offsets = [0, 0], sizes = [16, 128], strides = [1, 1]} : vector<16x256xf32> to vector<16x128xf32>
    %223 = vector.extract_strided_slice %221 {offsets = [0, 128], sizes = [16, 128], strides = [1, 1]} : vector<16x256xf32> to vector<16x128xf32>
    %224 = arith.negf %222 : vector<16x128xf32>
    %225 = math.exp %224 : vector<16x128xf32>
    %cst_51 = arith.constant 1.000000e+00 : f32
    %226 = vector.broadcast %cst_51 : f32 to vector<16x128xf32>
    %227 = arith.addf %226, %225 : vector<16x128xf32>
    %228 = arith.divf %226, %227 : vector<16x128xf32>
    %229 = arith.mulf %222, %228 : vector<16x128xf32>
    %230 = arith.mulf %229, %223 : vector<16x128xf32>
    %231 = arith.truncf %230 : vector<16x128xf32> to vector<16x128xbf16>
    %cst_52 = arith.constant dense<0.000000e+00> : vector<16x128xf32>
    %232 = tpu.matmul %231, %46, %cst_52 {dimension_numbers = #tpu.dot_dimension_numbers<[1], [0], [0], [1], [0, 0, 1, 1], [], []>} : vector<16x128xbf16>, vector<128x128xbf16>, vector<16x128xf32> -> vector<16x128xf32>
    %233 = arith.addf %207, %232 : vector<16x128xf32>
    %c0_53 = arith.constant 0 : index
    %c0_54 = arith.constant 0 : index
    %234 = vector.load %arg14[%c0_53, %c0_54] : memref<1x128xf32, #tpu.memory_space<vmem>>, vector<1x128xf32>
    %c0_55 = arith.constant 0 : index
    %c0_56 = arith.constant 0 : index
    %235 = vector.load %arg15[%c0_55, %c0_56] : memref<128x128xbf16, #tpu.memory_space<vmem>>, vector<128x128xbf16>
    %c0_57 = arith.constant 0 : index
    %c0_58 = arith.constant 0 : index
    %c0_59 = arith.constant 0 : index
    %236 = vector.load %arg16[%c0_57, %c0_58, %c0_59] : memref<4x16x128xbf16, #tpu.memory_space<vmem>>, vector<4x16x128xbf16>
    %c0_60 = arith.constant 0 : index
    %c0_61 = arith.constant 0 : index
    %237 = vector.load %arg17[%c0_60, %c0_61] : memref<1x128xf32, #tpu.memory_space<vmem>>, vector<1x128xf32>
    %c0_62 = arith.constant 0 : index
    %c0_63 = arith.constant 0 : index
    %238 = vector.load %arg18[%c0_62, %c0_63] : memref<128x256xbf16, #tpu.memory_space<vmem>>, vector<128x256xbf16>
    %c0_64 = arith.constant 0 : index
    %c0_65 = arith.constant 0 : index
    %239 = vector.load %arg19[%c0_64, %c0_65] : memref<128x128xbf16, #tpu.memory_space<vmem>>, vector<128x128xbf16>
    %240 = arith.mulf %233, %233 : vector<16x128xf32>
    %cst_66 = arith.constant dense<0.000000e+00> : vector<16xf32>
    %241 = vector.multi_reduction <add>, %240, %cst_66 [1] : vector<16x128xf32> to vector<16xf32>
    %242 = vector.shape_cast %241 : vector<16xf32> to vector<16x1xf32>
    %cst_67 = arith.constant 1.562500e-02 : f32
    %243 = vector.broadcast %cst_67 : f32 to vector<16x1xf32>
    %244 = arith.mulf %242, %243 : vector<16x1xf32>
    %cst_68 = arith.constant 9.99999997E-7 : f32
    %245 = vector.broadcast %cst_68 : f32 to vector<16x1xf32>
    %246 = arith.addf %244, %245 : vector<16x1xf32>
    %247 = math.rsqrt %246 : vector<16x1xf32>
    %248 = vector.broadcast %247 : vector<16x1xf32> to vector<16x128xf32>
    %249 = arith.mulf %233, %248 : vector<16x128xf32>
    %250 = vector.broadcast %234 : vector<1x128xf32> to vector<16x128xf32>
    %251 = arith.mulf %249, %250 : vector<16x128xf32>
    %252 = arith.truncf %251 : vector<16x128xf32> to vector<16x128xbf16>
    %cst_69 = arith.constant dense<0.000000e+00> : vector<16x128xf32>
    %253 = tpu.matmul %252, %235, %cst_69 {dimension_numbers = #tpu.dot_dimension_numbers<[1], [0], [0], [1], [0, 0, 1, 1], [], []>} : vector<16x128xbf16>, vector<128x128xbf16>, vector<16x128xf32> -> vector<16x128xf32>
    %254 = vector.extract_strided_slice %253 {offsets = [0, 0], sizes = [16, 16], strides = [1, 1]} : vector<16x128xf32> to vector<16x16xf32>
    %255 = vector.extract_strided_slice %253 {offsets = [0, 16], sizes = [16, 16], strides = [1, 1]} : vector<16x128xf32> to vector<16x16xf32>
    %256 = vector.extract_strided_slice %253 {offsets = [0, 32], sizes = [16, 16], strides = [1, 1]} : vector<16x128xf32> to vector<16x16xf32>
    %257 = vector.extract_strided_slice %253 {offsets = [0, 48], sizes = [16, 16], strides = [1, 1]} : vector<16x128xf32> to vector<16x16xf32>
    %258 = vector.shape_cast %254 : vector<16x16xf32> to vector<1x16x16xf32>
    %259 = vector.shape_cast %255 : vector<16x16xf32> to vector<1x16x16xf32>
    %260 = vector.shape_cast %256 : vector<16x16xf32> to vector<1x16x16xf32>
    %261 = vector.shape_cast %257 : vector<16x16xf32> to vector<1x16x16xf32>
    %262 = tpu.concatenate %258, %259, %260, %261 in 0 : vector<1x16x16xf32>, vector<1x16x16xf32>, vector<1x16x16xf32>, vector<1x16x16xf32> -> vector<4x16x16xf32>
    %263 = vector.extract_strided_slice %253 {offsets = [0, 64], sizes = [16, 16], strides = [1, 1]} : vector<16x128xf32> to vector<16x16xf32>
    %264 = vector.extract_strided_slice %253 {offsets = [0, 64], sizes = [16, 16], strides = [1, 1]} : vector<16x128xf32> to vector<16x16xf32>
    %265 = vector.extract_strided_slice %253 {offsets = [0, 80], sizes = [16, 16], strides = [1, 1]} : vector<16x128xf32> to vector<16x16xf32>
    %266 = vector.extract_strided_slice %253 {offsets = [0, 80], sizes = [16, 16], strides = [1, 1]} : vector<16x128xf32> to vector<16x16xf32>
    %267 = vector.shape_cast %263 : vector<16x16xf32> to vector<1x16x16xf32>
    %268 = vector.shape_cast %264 : vector<16x16xf32> to vector<1x16x16xf32>
    %269 = vector.shape_cast %265 : vector<16x16xf32> to vector<1x16x16xf32>
    %270 = vector.shape_cast %266 : vector<16x16xf32> to vector<1x16x16xf32>
    %271 = tpu.concatenate %267, %268, %269, %270 in 0 : vector<1x16x16xf32>, vector<1x16x16xf32>, vector<1x16x16xf32>, vector<1x16x16xf32> -> vector<4x16x16xf32>
    %272 = vector.extract_strided_slice %253 {offsets = [0, 96], sizes = [16, 16], strides = [1, 1]} : vector<16x128xf32> to vector<16x16xf32>
    %273 = vector.extract_strided_slice %253 {offsets = [0, 96], sizes = [16, 16], strides = [1, 1]} : vector<16x128xf32> to vector<16x16xf32>
    %274 = vector.extract_strided_slice %253 {offsets = [0, 112], sizes = [16, 16], strides = [1, 1]} : vector<16x128xf32> to vector<16x16xf32>
    %275 = vector.extract_strided_slice %253 {offsets = [0, 112], sizes = [16, 16], strides = [1, 1]} : vector<16x128xf32> to vector<16x16xf32>
    %276 = vector.shape_cast %272 : vector<16x16xf32> to vector<1x16x16xf32>
    %277 = vector.shape_cast %273 : vector<16x16xf32> to vector<1x16x16xf32>
    %278 = vector.shape_cast %274 : vector<16x16xf32> to vector<1x16x16xf32>
    %279 = vector.shape_cast %275 : vector<16x16xf32> to vector<1x16x16xf32>
    %280 = tpu.concatenate %276, %277, %278, %279 in 0 : vector<1x16x16xf32>, vector<1x16x16xf32>, vector<1x16x16xf32>, vector<1x16x16xf32> -> vector<4x16x16xf32>
    %281 = vector.extract_strided_slice %262 {offsets = [0, 0, 0], sizes = [4, 16, 8], strides = [1, 1, 1]} : vector<4x16x16xf32> to vector<4x16x8xf32>
    %282 = vector.extract_strided_slice %262 {offsets = [0, 0, 8], sizes = [4, 16, 8], strides = [1, 1, 1]} : vector<4x16x16xf32> to vector<4x16x8xf32>
    %283 = vector.broadcast %4 : vector<1x16x8xf32> to vector<4x16x8xf32>
    %284 = arith.mulf %281, %283 : vector<4x16x8xf32>
    %285 = vector.broadcast %6 : vector<1x16x8xf32> to vector<4x16x8xf32>
    %286 = arith.mulf %282, %285 : vector<4x16x8xf32>
    %287 = arith.subf %284, %286 : vector<4x16x8xf32>
    %288 = vector.broadcast %4 : vector<1x16x8xf32> to vector<4x16x8xf32>
    %289 = arith.mulf %282, %288 : vector<4x16x8xf32>
    %290 = vector.broadcast %6 : vector<1x16x8xf32> to vector<4x16x8xf32>
    %291 = arith.mulf %281, %290 : vector<4x16x8xf32>
    %292 = arith.addf %289, %291 : vector<4x16x8xf32>
    %293 = tpu.concatenate %287, %292 in 2 : vector<4x16x8xf32>, vector<4x16x8xf32> -> vector<4x16x16xf32>
    %294 = vector.extract_strided_slice %271 {offsets = [0, 0, 0], sizes = [4, 16, 8], strides = [1, 1, 1]} : vector<4x16x16xf32> to vector<4x16x8xf32>
    %295 = vector.extract_strided_slice %271 {offsets = [0, 0, 8], sizes = [4, 16, 8], strides = [1, 1, 1]} : vector<4x16x16xf32> to vector<4x16x8xf32>
    %296 = vector.broadcast %4 : vector<1x16x8xf32> to vector<4x16x8xf32>
    %297 = arith.mulf %294, %296 : vector<4x16x8xf32>
    %298 = vector.broadcast %6 : vector<1x16x8xf32> to vector<4x16x8xf32>
    %299 = arith.mulf %295, %298 : vector<4x16x8xf32>
    %300 = arith.subf %297, %299 : vector<4x16x8xf32>
    %301 = vector.broadcast %4 : vector<1x16x8xf32> to vector<4x16x8xf32>
    %302 = arith.mulf %295, %301 : vector<4x16x8xf32>
    %303 = vector.broadcast %6 : vector<1x16x8xf32> to vector<4x16x8xf32>
    %304 = arith.mulf %294, %303 : vector<4x16x8xf32>
    %305 = arith.addf %302, %304 : vector<4x16x8xf32>
    %306 = tpu.concatenate %300, %305 in 2 : vector<4x16x8xf32>, vector<4x16x8xf32> -> vector<4x16x16xf32>
    %307 = arith.truncf %293 : vector<4x16x16xf32> to vector<4x16x16xbf16>
    %308 = arith.truncf %306 : vector<4x16x16xf32> to vector<4x16x16xbf16>
    "tpu.trace_start"() <{level = 10 : i32, message = "hld,hmd->hlm"}> : () -> ()
    %cst_70 = arith.constant dense<0.000000e+00> : vector<4x16x16xf32>
    %309 = tpu.matmul %307, %308, %cst_70 {dimension_numbers = #tpu.dot_dimension_numbers<[2], [2], [1], [1], [0, 0, 0, 1, 1, 1], [0], [0]>} : vector<4x16x16xbf16>, vector<4x16x16xbf16>, vector<4x16x16xf32> -> vector<4x16x16xf32>
    "tpu.trace_stop"() : () -> ()
    %cst_71 = arith.constant 2.500000e-01 : f32
    %310 = vector.broadcast %cst_71 : f32 to vector<4x16x16xf32>
    %311 = arith.mulf %309, %310 : vector<4x16x16xf32>
    %312 = vector.shape_cast %15 : vector<16x16xf32> to vector<1x16x16xf32>
    %313 = vector.broadcast %312 : vector<1x16x16xf32> to vector<4x16x16xf32>
    %314 = arith.addf %311, %313 : vector<4x16x16xf32>
    %cst_72 = arith.constant dense<0xFF800000> : vector<4x16xf32>
    %315 = vector.multi_reduction <maximumf>, %314, %cst_72 [2] : vector<4x16x16xf32> to vector<4x16xf32>
    %316 = vector.shape_cast %315 : vector<4x16xf32> to vector<4x16x1xf32>
    %317 = vector.broadcast %316 : vector<4x16x1xf32> to vector<4x16x16xf32>
    %318 = arith.subf %314, %317 : vector<4x16x16xf32>
    %319 = math.exp %318 : vector<4x16x16xf32>
    %cst_73 = arith.constant dense<0.000000e+00> : vector<4x16xf32>
    %320 = vector.multi_reduction <add>, %319, %cst_73 [2] : vector<4x16x16xf32> to vector<4x16xf32>
    %321 = vector.shape_cast %320 : vector<4x16xf32> to vector<4x16x1xf32>
    %322 = tpu.reciprocal %321 {approx = true} : vector<4x16x1xf32> -> vector<4x16x1xf32>
    %323 = vector.broadcast %322 : vector<4x16x1xf32> to vector<4x16x16xf32>
    %324 = arith.mulf %319, %323 : vector<4x16x16xf32>
    %325 = arith.truncf %324 : vector<4x16x16xf32> to vector<4x16x16xbf16>
    %326 = arith.truncf %280 : vector<4x16x16xf32> to vector<4x16x16xbf16>
    "tpu.trace_start"() <{level = 10 : i32, message = "hlm,hmd->hld"}> : () -> ()
    %cst_74 = arith.constant dense<0.000000e+00> : vector<4x16x16xf32>
    %327 = tpu.matmul %325, %326, %cst_74 {dimension_numbers = #tpu.dot_dimension_numbers<[2], [1], [1], [2], [0, 0, 0, 1, 1, 2], [0], [0]>} : vector<4x16x16xbf16>, vector<4x16x16xbf16>, vector<4x16x16xf32> -> vector<4x16x16xf32>
    "tpu.trace_stop"() : () -> ()
    %328 = arith.truncf %327 : vector<4x16x16xf32> to vector<4x16x16xbf16>
    "tpu.trace_start"() <{level = 10 : i32, message = "hld,hde->hle"}> : () -> ()
    %cst_75 = arith.constant dense<0.000000e+00> : vector<4x16x128xf32>
    %329 = tpu.matmul %328, %236, %cst_75 {dimension_numbers = #tpu.dot_dimension_numbers<[2], [1], [1], [2], [0, 0, 0, 1, 1, 2], [0], [0]>} : vector<4x16x16xbf16>, vector<4x16x128xbf16>, vector<4x16x128xf32> -> vector<4x16x128xf32>
    "tpu.trace_stop"() : () -> ()
    %cst_76 = arith.constant dense<0.000000e+00> : vector<16x128xf32>
    %330 = vector.multi_reduction <add>, %329, %cst_76 [0] : vector<4x16x128xf32> to vector<16x128xf32>
    %331 = arith.addf %233, %330 : vector<16x128xf32>
    %332 = arith.mulf %331, %331 : vector<16x128xf32>
    %cst_77 = arith.constant dense<0.000000e+00> : vector<16xf32>
    %333 = vector.multi_reduction <add>, %332, %cst_77 [1] : vector<16x128xf32> to vector<16xf32>
    %334 = vector.shape_cast %333 : vector<16xf32> to vector<16x1xf32>
    %cst_78 = arith.constant 1.562500e-02 : f32
    %335 = vector.broadcast %cst_78 : f32 to vector<16x1xf32>
    %336 = arith.mulf %334, %335 : vector<16x1xf32>
    %cst_79 = arith.constant 9.99999997E-7 : f32
    %337 = vector.broadcast %cst_79 : f32 to vector<16x1xf32>
    %338 = arith.addf %336, %337 : vector<16x1xf32>
    %339 = math.rsqrt %338 : vector<16x1xf32>
    %340 = vector.broadcast %339 : vector<16x1xf32> to vector<16x128xf32>
    %341 = arith.mulf %331, %340 : vector<16x128xf32>
    %342 = vector.broadcast %237 : vector<1x128xf32> to vector<16x128xf32>
    %343 = arith.mulf %341, %342 : vector<16x128xf32>
    %344 = arith.truncf %343 : vector<16x128xf32> to vector<16x128xbf16>
    %cst_80 = arith.constant dense<0.000000e+00> : vector<16x256xf32>
    %345 = tpu.matmul %344, %238, %cst_80 {dimension_numbers = #tpu.dot_dimension_numbers<[1], [0], [0], [1], [0, 0, 1, 1], [], []>} : vector<16x128xbf16>, vector<128x256xbf16>, vector<16x256xf32> -> vector<16x256xf32>
    %346 = vector.extract_strided_slice %345 {offsets = [0, 0], sizes = [16, 128], strides = [1, 1]} : vector<16x256xf32> to vector<16x128xf32>
    %347 = vector.extract_strided_slice %345 {offsets = [0, 128], sizes = [16, 128], strides = [1, 1]} : vector<16x256xf32> to vector<16x128xf32>
    %348 = arith.negf %346 : vector<16x128xf32>
    %349 = math.exp %348 : vector<16x128xf32>
    %cst_81 = arith.constant 1.000000e+00 : f32
    %350 = vector.broadcast %cst_81 : f32 to vector<16x128xf32>
    %351 = arith.addf %350, %349 : vector<16x128xf32>
    %352 = arith.divf %350, %351 : vector<16x128xf32>
    %353 = arith.mulf %346, %352 : vector<16x128xf32>
    %354 = arith.mulf %353, %347 : vector<16x128xf32>
    %355 = arith.truncf %354 : vector<16x128xf32> to vector<16x128xbf16>
    %cst_82 = arith.constant dense<0.000000e+00> : vector<16x128xf32>
    %356 = tpu.matmul %355, %239, %cst_82 {dimension_numbers = #tpu.dot_dimension_numbers<[1], [0], [0], [1], [0, 0, 1, 1], [], []>} : vector<16x128xbf16>, vector<128x128xbf16>, vector<16x128xf32> -> vector<16x128xf32>
    %357 = arith.addf %331, %356 : vector<16x128xf32>
    %c0_83 = arith.constant 0 : index
    %c0_84 = arith.constant 0 : index
    %358 = vector.load %arg20[%c0_83, %c0_84] : memref<1x128xf32, #tpu.memory_space<vmem>>, vector<1x128xf32>
    %c0_85 = arith.constant 0 : index
    %c0_86 = arith.constant 0 : index
    %359 = vector.load %arg21[%c0_85, %c0_86] : memref<128x256xbf16, #tpu.memory_space<vmem>>, vector<128x256xbf16>
    %c0_87 = arith.constant 0 : index
    %c0_88 = arith.constant 0 : index
    %360 = vector.load %arg22[%c0_87, %c0_88] : memref<4x128xf32, #tpu.memory_space<vmem>>, vector<4x128xf32>
    %c0_89 = arith.constant 0 : index
    %c0_90 = arith.constant 0 : index
    %361 = vector.load %arg23[%c0_89, %c0_90] : memref<1x128xf32, #tpu.memory_space<vmem>>, vector<1x128xf32>
    %c0_91 = arith.constant 0 : index
    %c0_92 = arith.constant 0 : index
    %362 = vector.load %arg24[%c0_91, %c0_92] : memref<1x4xf32, #tpu.memory_space<vmem>>, vector<1x4xf32>
    %c0_93 = arith.constant 0 : index
    %c0_94 = arith.constant 0 : index
    %363 = vector.load %arg25[%c0_93, %c0_94] : memref<1x4xf32, #tpu.memory_space<vmem>>, vector<1x4xf32>
    %c0_95 = arith.constant 0 : index
    %c0_96 = arith.constant 0 : index
    %364 = vector.load %arg26[%c0_95, %c0_96] : memref<1x4xf32, #tpu.memory_space<vmem>>, vector<1x4xf32>
    %c0_97 = arith.constant 0 : index
    %c0_98 = arith.constant 0 : index
    %c0_99 = arith.constant 0 : index
    %365 = vector.load %arg27[%c0_97, %c0_98, %c0_99] : memref<4x16x128xbf16, #tpu.memory_space<vmem>>, vector<4x16x128xbf16>
    %c0_100 = arith.constant 0 : index
    %c0_101 = arith.constant 0 : index
    %366 = vector.load %arg28[%c0_100, %c0_101] : memref<1x128xf32, #tpu.memory_space<vmem>>, vector<1x128xf32>
    %c0_102 = arith.constant 0 : index
    %c0_103 = arith.constant 0 : index
    %367 = vector.load %arg29[%c0_102, %c0_103] : memref<128x256xbf16, #tpu.memory_space<vmem>>, vector<128x256xbf16>
    %c0_104 = arith.constant 0 : index
    %c0_105 = arith.constant 0 : index
    %368 = vector.load %arg30[%c0_104, %c0_105] : memref<128x128xbf16, #tpu.memory_space<vmem>>, vector<128x128xbf16>
    %369 = arith.mulf %357, %357 : vector<16x128xf32>
    %cst_106 = arith.constant dense<0.000000e+00> : vector<16xf32>
    %370 = vector.multi_reduction <add>, %369, %cst_106 [1] : vector<16x128xf32> to vector<16xf32>
    %371 = vector.shape_cast %370 : vector<16xf32> to vector<16x1xf32>
    %cst_107 = arith.constant 1.562500e-02 : f32
    %372 = vector.broadcast %cst_107 : f32 to vector<16x1xf32>
    %373 = arith.mulf %371, %372 : vector<16x1xf32>
    %cst_108 = arith.constant 9.99999997E-7 : f32
    %374 = vector.broadcast %cst_108 : f32 to vector<16x1xf32>
    %375 = arith.addf %373, %374 : vector<16x1xf32>
    %376 = math.rsqrt %375 : vector<16x1xf32>
    %377 = vector.broadcast %376 : vector<16x1xf32> to vector<16x128xf32>
    %378 = arith.mulf %357, %377 : vector<16x128xf32>
    %379 = vector.broadcast %358 : vector<1x128xf32> to vector<16x128xf32>
    %380 = arith.mulf %378, %379 : vector<16x128xf32>
    %381 = arith.truncf %380 : vector<16x128xf32> to vector<16x128xbf16>
    %cst_109 = arith.constant dense<0.000000e+00> : vector<16x256xf32>
    %382 = tpu.matmul %381, %359, %cst_109 {dimension_numbers = #tpu.dot_dimension_numbers<[1], [0], [0], [1], [0, 0, 1, 1], [], []>} : vector<16x128xbf16>, vector<128x256xbf16>, vector<16x256xf32> -> vector<16x256xf32>
    %383 = vector.extract_strided_slice %382 {offsets = [0, 0], sizes = [16, 128], strides = [1, 1]} : vector<16x256xf32> to vector<16x128xf32>
    %384 = vector.extract_strided_slice %382 {offsets = [0, 128], sizes = [16, 64], strides = [1, 1]} : vector<16x256xf32> to vector<16x64xf32>
    %385 = vector.extract_strided_slice %382 {offsets = [0, 192], sizes = [16, 4], strides = [1, 1]} : vector<16x256xf32> to vector<16x4xf32>
    %cst_110 = arith.constant dense<0.000000e+00> : vector<16x128xf32>
    %386 = tpu.matmul %20, %383, %cst_110 {dimension_numbers = #tpu.dot_dimension_numbers<[1], [0], [0], [1], [0, 0, 1, 1], [], []>} : vector<16x16xf32>, vector<16x128xf32>, vector<16x128xf32> -> vector<16x128xf32>
    %387 = vector.extract_strided_slice %360 {offsets = [0, 0], sizes = [1, 128], strides = [1, 1]} : vector<4x128xf32> to vector<1x128xf32>
    %388 = vector.broadcast %387 : vector<1x128xf32> to vector<16x128xf32>
    %389 = arith.mulf %386, %388 : vector<16x128xf32>
    %390 = vector.broadcast %361 : vector<1x128xf32> to vector<16x128xf32>
    %391 = arith.addf %390, %389 : vector<16x128xf32>
    %cst_111 = arith.constant dense<0.000000e+00> : vector<16x128xf32>
    %392 = tpu.matmul %25, %383, %cst_111 {dimension_numbers = #tpu.dot_dimension_numbers<[1], [0], [0], [1], [0, 0, 1, 1], [], []>} : vector<16x16xf32>, vector<16x128xf32>, vector<16x128xf32> -> vector<16x128xf32>
    %393 = vector.extract_strided_slice %360 {offsets = [1, 0], sizes = [1, 128], strides = [1, 1]} : vector<4x128xf32> to vector<1x128xf32>
    %394 = vector.broadcast %393 : vector<1x128xf32> to vector<16x128xf32>
    %395 = arith.mulf %392, %394 : vector<16x128xf32>
    %396 = arith.addf %391, %395 : vector<16x128xf32>
    %cst_112 = arith.constant dense<0.000000e+00> : vector<16x128xf32>
    %397 = tpu.matmul %30, %383, %cst_112 {dimension_numbers = #tpu.dot_dimension_numbers<[1], [0], [0], [1], [0, 0, 1, 1], [], []>} : vector<16x16xf32>, vector<16x128xf32>, vector<16x128xf32> -> vector<16x128xf32>
    %398 = vector.extract_strided_slice %360 {offsets = [2, 0], sizes = [1, 128], strides = [1, 1]} : vector<4x128xf32> to vector<1x128xf32>
    %399 = vector.broadcast %398 : vector<1x128xf32> to vector<16x128xf32>
    %400 = arith.mulf %397, %399 : vector<16x128xf32>
    %401 = arith.addf %396, %400 : vector<16x128xf32>
    %cst_113 = arith.constant dense<0.000000e+00> : vector<16x128xf32>
    %402 = tpu.matmul %35, %383, %cst_113 {dimension_numbers = #tpu.dot_dimension_numbers<[1], [0], [0], [1], [0, 0, 1, 1], [], []>} : vector<16x16xf32>, vector<16x128xf32>, vector<16x128xf32> -> vector<16x128xf32>
    %403 = vector.extract_strided_slice %360 {offsets = [3, 0], sizes = [1, 128], strides = [1, 1]} : vector<4x128xf32> to vector<1x128xf32>
    %404 = vector.broadcast %403 : vector<1x128xf32> to vector<16x128xf32>
    %405 = arith.mulf %402, %404 : vector<16x128xf32>
    %406 = arith.addf %401, %405 : vector<16x128xf32>
    %407 = arith.negf %406 : vector<16x128xf32>
    %408 = math.exp %407 : vector<16x128xf32>
    %cst_114 = arith.constant 1.000000e+00 : f32
    %409 = vector.broadcast %cst_114 : f32 to vector<16x128xf32>
    %410 = arith.addf %409, %408 : vector<16x128xf32>
    %411 = arith.divf %409, %410 : vector<16x128xf32>
    %412 = arith.mulf %406, %411 : vector<16x128xf32>
    %413 = vector.extract_strided_slice %412 {offsets = [0, 0], sizes = [16, 32], strides = [1, 1]} : vector<16x128xf32> to vector<16x32xf32>
    %414 = vector.extract_strided_slice %412 {offsets = [0, 32], sizes = [16, 32], strides = [1, 1]} : vector<16x128xf32> to vector<16x32xf32>
    %415 = vector.extract_strided_slice %412 {offsets = [0, 64], sizes = [16, 64], strides = [1, 1]} : vector<16x128xf32> to vector<16x64xf32>
    %416 = vector.broadcast %362 : vector<1x4xf32> to vector<16x4xf32>
    %417 = arith.addf %385, %416 : vector<16x4xf32>
    %cst_115 = arith.constant 0.000000e+00 : f32
    %418 = vector.broadcast %cst_115 : f32 to vector<16x4xf32>
    %419 = arith.maximumf %417, %418 : vector<16x4xf32>
    %420 = math.absf %417 : vector<16x4xf32>
    %cst_116 = arith.constant 0.000000e+00 : f32
    %421 = vector.broadcast %cst_116 : f32 to vector<16x4xf32>
    %422 = arith.subf %421, %420 : vector<16x4xf32>
    %423 = math.exp %422 : vector<16x4xf32>
    %cst_117 = arith.constant 1.000000e+00 : f32
    %424 = vector.broadcast %cst_117 : f32 to vector<16x4xf32>
    %425 = arith.addf %424, %423 : vector<16x4xf32>
    %426 = math.log %425 : vector<16x4xf32>
    %427 = arith.addf %419, %426 : vector<16x4xf32>
    %428 = vector.broadcast %363 : vector<1x4xf32> to vector<16x4xf32>
    %429 = arith.mulf %427, %428 : vector<16x4xf32>
    %cst_118 = arith.constant dense<0.000000e+00> : vector<16x4xf32>
    %430 = tpu.matmul %11, %429, %cst_118 {dimension_numbers = #tpu.dot_dimension_numbers<[1], [0], [0], [1], [0, 0, 1, 1], [], []>} : vector<16x16xf32>, vector<16x4xf32>, vector<16x4xf32> -> vector<16x4xf32>
    %431 = math.exp %430 : vector<16x4xf32>
    %cst_119 = arith.constant 0.000000e+00 : f32
    %432 = vector.broadcast %cst_119 : f32 to vector<16x4xf32>
    %433 = arith.subf %432, %430 : vector<16x4xf32>
    %434 = math.exp %433 : vector<16x4xf32>
    %435 = arith.mulf %427, %434 : vector<16x4xf32>
    %436 = vector.extract_strided_slice %415 {offsets = [0, 0], sizes = [16, 16], strides = [1, 1]} : vector<16x64xf32> to vector<16x16xf32>
    %437 = vector.extract_strided_slice %414 {offsets = [0, 0], sizes = [16, 16], strides = [1, 1]} : vector<16x32xf32> to vector<16x16xf32>
    %438 = vector.extract_strided_slice %413 {offsets = [0, 0], sizes = [16, 16], strides = [1, 1]} : vector<16x32xf32> to vector<16x16xf32>
    %439 = vector.extract_strided_slice %431 {offsets = [0, 0], sizes = [16, 1], strides = [1, 1]} : vector<16x4xf32> to vector<16x1xf32>
    %440 = vector.broadcast %439 : vector<16x1xf32> to vector<16x16xf32>
    %441 = arith.mulf %436, %440 : vector<16x16xf32>
    %442 = vector.extract_strided_slice %435 {offsets = [0, 0], sizes = [16, 1], strides = [1, 1]} : vector<16x4xf32> to vector<16x1xf32>
    %443 = vector.broadcast %442 : vector<16x1xf32> to vector<16x16xf32>
    %444 = arith.mulf %438, %443 : vector<16x16xf32>
    %445 = vector.extract_strided_slice %364 {offsets = [0, 0], sizes = [1, 1], strides = [1, 1]} : vector<1x4xf32> to vector<1x1xf32>
    %446 = vector.broadcast %445 : vector<1x1xf32> to vector<16x16xf32>
    %447 = arith.mulf %438, %446 : vector<16x16xf32>
    %448 = vector.extract_strided_slice %384 {offsets = [0, 0], sizes = [16, 16], strides = [1, 1]} : vector<16x64xf32> to vector<16x16xf32>
    %449 = vector.extract_strided_slice %415 {offsets = [0, 16], sizes = [16, 16], strides = [1, 1]} : vector<16x64xf32> to vector<16x16xf32>
    %450 = vector.extract_strided_slice %414 {offsets = [0, 0], sizes = [16, 16], strides = [1, 1]} : vector<16x32xf32> to vector<16x16xf32>
    %451 = vector.extract_strided_slice %413 {offsets = [0, 0], sizes = [16, 16], strides = [1, 1]} : vector<16x32xf32> to vector<16x16xf32>
    %452 = vector.extract_strided_slice %431 {offsets = [0, 1], sizes = [16, 1], strides = [1, 1]} : vector<16x4xf32> to vector<16x1xf32>
    %453 = vector.broadcast %452 : vector<16x1xf32> to vector<16x16xf32>
    %454 = arith.mulf %449, %453 : vector<16x16xf32>
    %455 = vector.extract_strided_slice %435 {offsets = [0, 1], sizes = [16, 1], strides = [1, 1]} : vector<16x4xf32> to vector<16x1xf32>
    %456 = vector.broadcast %455 : vector<16x1xf32> to vector<16x16xf32>
    %457 = arith.mulf %451, %456 : vector<16x16xf32>
    %458 = vector.extract_strided_slice %364 {offsets = [0, 1], sizes = [1, 1], strides = [1, 1]} : vector<1x4xf32> to vector<1x1xf32>
    %459 = vector.broadcast %458 : vector<1x1xf32> to vector<16x16xf32>
    %460 = arith.mulf %451, %459 : vector<16x16xf32>
    %461 = vector.extract_strided_slice %384 {offsets = [0, 16], sizes = [16, 16], strides = [1, 1]} : vector<16x64xf32> to vector<16x16xf32>
    %462 = vector.extract_strided_slice %415 {offsets = [0, 32], sizes = [16, 16], strides = [1, 1]} : vector<16x64xf32> to vector<16x16xf32>
    %463 = vector.extract_strided_slice %414 {offsets = [0, 16], sizes = [16, 16], strides = [1, 1]} : vector<16x32xf32> to vector<16x16xf32>
    %464 = vector.extract_strided_slice %413 {offsets = [0, 16], sizes = [16, 16], strides = [1, 1]} : vector<16x32xf32> to vector<16x16xf32>
    %465 = vector.extract_strided_slice %431 {offsets = [0, 2], sizes = [16, 1], strides = [1, 1]} : vector<16x4xf32> to vector<16x1xf32>
    %466 = vector.broadcast %465 : vector<16x1xf32> to vector<16x16xf32>
    %467 = arith.mulf %462, %466 : vector<16x16xf32>
    %468 = vector.extract_strided_slice %435 {offsets = [0, 2], sizes = [16, 1], strides = [1, 1]} : vector<16x4xf32> to vector<16x1xf32>
    %469 = vector.broadcast %468 : vector<16x1xf32> to vector<16x16xf32>
    %470 = arith.mulf %464, %469 : vector<16x16xf32>
    %471 = vector.extract_strided_slice %364 {offsets = [0, 2], sizes = [1, 1], strides = [1, 1]} : vector<1x4xf32> to vector<1x1xf32>
    %472 = vector.broadcast %471 : vector<1x1xf32> to vector<16x16xf32>
    %473 = arith.mulf %464, %472 : vector<16x16xf32>
    %474 = vector.extract_strided_slice %384 {offsets = [0, 32], sizes = [16, 16], strides = [1, 1]} : vector<16x64xf32> to vector<16x16xf32>
    %475 = vector.extract_strided_slice %415 {offsets = [0, 48], sizes = [16, 16], strides = [1, 1]} : vector<16x64xf32> to vector<16x16xf32>
    %476 = vector.extract_strided_slice %414 {offsets = [0, 16], sizes = [16, 16], strides = [1, 1]} : vector<16x32xf32> to vector<16x16xf32>
    %477 = vector.extract_strided_slice %413 {offsets = [0, 16], sizes = [16, 16], strides = [1, 1]} : vector<16x32xf32> to vector<16x16xf32>
    %478 = vector.extract_strided_slice %431 {offsets = [0, 3], sizes = [16, 1], strides = [1, 1]} : vector<16x4xf32> to vector<16x1xf32>
    %479 = vector.broadcast %478 : vector<16x1xf32> to vector<16x16xf32>
    %480 = arith.mulf %475, %479 : vector<16x16xf32>
    %481 = vector.extract_strided_slice %435 {offsets = [0, 3], sizes = [16, 1], strides = [1, 1]} : vector<16x4xf32> to vector<16x1xf32>
    %482 = vector.broadcast %481 : vector<16x1xf32> to vector<16x16xf32>
    %483 = arith.mulf %477, %482 : vector<16x16xf32>
    %484 = vector.extract_strided_slice %364 {offsets = [0, 3], sizes = [1, 1], strides = [1, 1]} : vector<1x4xf32> to vector<1x1xf32>
    %485 = vector.broadcast %484 : vector<1x1xf32> to vector<16x16xf32>
    %486 = arith.mulf %477, %485 : vector<16x16xf32>
    %487 = vector.extract_strided_slice %384 {offsets = [0, 48], sizes = [16, 16], strides = [1, 1]} : vector<16x64xf32> to vector<16x16xf32>
    %488 = vector.shape_cast %441 : vector<16x16xf32> to vector<1x16x16xf32>
    %489 = vector.shape_cast %454 : vector<16x16xf32> to vector<1x16x16xf32>
    %490 = vector.shape_cast %467 : vector<16x16xf32> to vector<1x16x16xf32>
    %491 = vector.shape_cast %480 : vector<16x16xf32> to vector<1x16x16xf32>
    %492 = tpu.concatenate %488, %489, %490, %491 in 0 : vector<1x16x16xf32>, vector<1x16x16xf32>, vector<1x16x16xf32>, vector<1x16x16xf32> -> vector<4x16x16xf32>
    %493 = vector.shape_cast %437 : vector<16x16xf32> to vector<1x16x16xf32>
    %494 = vector.shape_cast %450 : vector<16x16xf32> to vector<1x16x16xf32>
    %495 = vector.shape_cast %463 : vector<16x16xf32> to vector<1x16x16xf32>
    %496 = vector.shape_cast %476 : vector<16x16xf32> to vector<1x16x16xf32>
    %497 = tpu.concatenate %493, %494, %495, %496 in 0 : vector<1x16x16xf32>, vector<1x16x16xf32>, vector<1x16x16xf32>, vector<1x16x16xf32> -> vector<4x16x16xf32>
    %498 = vector.shape_cast %444 : vector<16x16xf32> to vector<1x16x16xf32>
    %499 = vector.shape_cast %457 : vector<16x16xf32> to vector<1x16x16xf32>
    %500 = vector.shape_cast %470 : vector<16x16xf32> to vector<1x16x16xf32>
    %501 = vector.shape_cast %483 : vector<16x16xf32> to vector<1x16x16xf32>
    %502 = tpu.concatenate %498, %499, %500, %501 in 0 : vector<1x16x16xf32>, vector<1x16x16xf32>, vector<1x16x16xf32>, vector<1x16x16xf32> -> vector<4x16x16xf32>
    %503 = vector.shape_cast %447 : vector<16x16xf32> to vector<1x16x16xf32>
    %504 = vector.shape_cast %460 : vector<16x16xf32> to vector<1x16x16xf32>
    %505 = vector.shape_cast %473 : vector<16x16xf32> to vector<1x16x16xf32>
    %506 = vector.shape_cast %486 : vector<16x16xf32> to vector<1x16x16xf32>
    %507 = tpu.concatenate %503, %504, %505, %506 in 0 : vector<1x16x16xf32>, vector<1x16x16xf32>, vector<1x16x16xf32>, vector<1x16x16xf32> -> vector<4x16x16xf32>
    %508 = vector.shape_cast %448 : vector<16x16xf32> to vector<1x16x16xf32>
    %509 = vector.shape_cast %461 : vector<16x16xf32> to vector<1x16x16xf32>
    %510 = vector.shape_cast %474 : vector<16x16xf32> to vector<1x16x16xf32>
    %511 = vector.shape_cast %487 : vector<16x16xf32> to vector<1x16x16xf32>
    %512 = tpu.concatenate %508, %509, %510, %511 in 0 : vector<1x16x16xf32>, vector<1x16x16xf32>, vector<1x16x16xf32>, vector<1x16x16xf32> -> vector<4x16x16xf32>
    "tpu.trace_start"() <{level = 10 : i32, message = "hln,hmn->hlm"}> : () -> ()
    %cst_120 = arith.constant dense<0.000000e+00> : vector<4x16x16xf32>
    %513 = tpu.matmul %492, %497, %cst_120 {dimension_numbers = #tpu.dot_dimension_numbers<[2], [2], [1], [1], [0, 0, 0, 1, 1, 1], [0], [0]>} : vector<4x16x16xf32>, vector<4x16x16xf32>, vector<4x16x16xf32> -> vector<4x16x16xf32>
    "tpu.trace_stop"() : () -> ()
    %514 = vector.shape_cast %11 : vector<16x16xf32> to vector<1x16x16xf32>
    %515 = vector.broadcast %514 : vector<1x16x16xf32> to vector<4x16x16xf32>
    %516 = arith.mulf %513, %515 : vector<4x16x16xf32>
    "tpu.trace_start"() <{level = 10 : i32, message = "hlm,hmp->hlp"}> : () -> ()
    %cst_121 = arith.constant dense<0.000000e+00> : vector<4x16x16xf32>
    %517 = tpu.matmul %516, %502, %cst_121 {dimension_numbers = #tpu.dot_dimension_numbers<[2], [1], [1], [2], [0, 0, 0, 1, 1, 2], [0], [0]>} : vector<4x16x16xf32>, vector<4x16x16xf32>, vector<4x16x16xf32> -> vector<4x16x16xf32>
    "tpu.trace_stop"() : () -> ()
    %518 = arith.addf %517, %507 : vector<4x16x16xf32>
    %519 = arith.negf %512 : vector<4x16x16xf32>
    %520 = math.exp %519 : vector<4x16x16xf32>
    %cst_122 = arith.constant 1.000000e+00 : f32
    %521 = vector.broadcast %cst_122 : f32 to vector<4x16x16xf32>
    %522 = arith.addf %521, %520 : vector<4x16x16xf32>
    %523 = arith.divf %521, %522 : vector<4x16x16xf32>
    %524 = arith.mulf %512, %523 : vector<4x16x16xf32>
    %525 = arith.mulf %518, %524 : vector<4x16x16xf32>
    %526 = arith.truncf %525 : vector<4x16x16xf32> to vector<4x16x16xbf16>
    "tpu.trace_start"() <{level = 10 : i32, message = "hlp,hpe->hle"}> : () -> ()
    %cst_123 = arith.constant dense<0.000000e+00> : vector<4x16x128xf32>
    %527 = tpu.matmul %526, %365, %cst_123 {dimension_numbers = #tpu.dot_dimension_numbers<[2], [1], [1], [2], [0, 0, 0, 1, 1, 2], [0], [0]>} : vector<4x16x16xbf16>, vector<4x16x128xbf16>, vector<4x16x128xf32> -> vector<4x16x128xf32>
    "tpu.trace_stop"() : () -> ()
    %cst_124 = arith.constant dense<0.000000e+00> : vector<16x128xf32>
    %528 = vector.multi_reduction <add>, %527, %cst_124 [0] : vector<4x16x128xf32> to vector<16x128xf32>
    %529 = arith.addf %357, %528 : vector<16x128xf32>
    %530 = arith.mulf %529, %529 : vector<16x128xf32>
    %cst_125 = arith.constant dense<0.000000e+00> : vector<16xf32>
    %531 = vector.multi_reduction <add>, %530, %cst_125 [1] : vector<16x128xf32> to vector<16xf32>
    %532 = vector.shape_cast %531 : vector<16xf32> to vector<16x1xf32>
    %cst_126 = arith.constant 1.562500e-02 : f32
    %533 = vector.broadcast %cst_126 : f32 to vector<16x1xf32>
    %534 = arith.mulf %532, %533 : vector<16x1xf32>
    %cst_127 = arith.constant 9.99999997E-7 : f32
    %535 = vector.broadcast %cst_127 : f32 to vector<16x1xf32>
    %536 = arith.addf %534, %535 : vector<16x1xf32>
    %537 = math.rsqrt %536 : vector<16x1xf32>
    %538 = vector.broadcast %537 : vector<16x1xf32> to vector<16x128xf32>
    %539 = arith.mulf %529, %538 : vector<16x128xf32>
    %540 = vector.broadcast %366 : vector<1x128xf32> to vector<16x128xf32>
    %541 = arith.mulf %539, %540 : vector<16x128xf32>
    %542 = arith.truncf %541 : vector<16x128xf32> to vector<16x128xbf16>
    %cst_128 = arith.constant dense<0.000000e+00> : vector<16x256xf32>
    %543 = tpu.matmul %542, %367, %cst_128 {dimension_numbers = #tpu.dot_dimension_numbers<[1], [0], [0], [1], [0, 0, 1, 1], [], []>} : vector<16x128xbf16>, vector<128x256xbf16>, vector<16x256xf32> -> vector<16x256xf32>
    %544 = vector.extract_strided_slice %543 {offsets = [0, 0], sizes = [16, 128], strides = [1, 1]} : vector<16x256xf32> to vector<16x128xf32>
    %545 = vector.extract_strided_slice %543 {offsets = [0, 128], sizes = [16, 128], strides = [1, 1]} : vector<16x256xf32> to vector<16x128xf32>
    %546 = arith.negf %544 : vector<16x128xf32>
    %547 = math.exp %546 : vector<16x128xf32>
    %cst_129 = arith.constant 1.000000e+00 : f32
    %548 = vector.broadcast %cst_129 : f32 to vector<16x128xf32>
    %549 = arith.addf %548, %547 : vector<16x128xf32>
    %550 = arith.divf %548, %549 : vector<16x128xf32>
    %551 = arith.mulf %544, %550 : vector<16x128xf32>
    %552 = arith.mulf %551, %545 : vector<16x128xf32>
    %553 = arith.truncf %552 : vector<16x128xf32> to vector<16x128xbf16>
    %cst_130 = arith.constant dense<0.000000e+00> : vector<16x128xf32>
    %554 = tpu.matmul %553, %368, %cst_130 {dimension_numbers = #tpu.dot_dimension_numbers<[1], [0], [0], [1], [0, 0, 1, 1], [], []>} : vector<16x128xbf16>, vector<128x128xbf16>, vector<16x128xf32> -> vector<16x128xf32>
    %555 = arith.addf %529, %554 : vector<16x128xf32>
    %c0_131 = arith.constant 0 : index
    %c0_132 = arith.constant 0 : index
    %556 = vector.load %arg31[%c0_131, %c0_132] : memref<1x128xf32, #tpu.memory_space<vmem>>, vector<1x128xf32>
    %c0_133 = arith.constant 0 : index
    %c0_134 = arith.constant 0 : index
    %557 = vector.load %arg32[%c0_133, %c0_134] : memref<128x128xbf16, #tpu.memory_space<vmem>>, vector<128x128xbf16>
    %c0_135 = arith.constant 0 : index
    %c0_136 = arith.constant 0 : index
    %c0_137 = arith.constant 0 : index
    %558 = vector.load %arg33[%c0_135, %c0_136, %c0_137] : memref<4x16x128xbf16, #tpu.memory_space<vmem>>, vector<4x16x128xbf16>
    %c0_138 = arith.constant 0 : index
    %c0_139 = arith.constant 0 : index
    %559 = vector.load %arg34[%c0_138, %c0_139] : memref<1x128xf32, #tpu.memory_space<vmem>>, vector<1x128xf32>
    %c0_140 = arith.constant 0 : index
    %c0_141 = arith.constant 0 : index
    %560 = vector.load %arg35[%c0_140, %c0_141] : memref<128x256xbf16, #tpu.memory_space<vmem>>, vector<128x256xbf16>
    %c0_142 = arith.constant 0 : index
    %c0_143 = arith.constant 0 : index
    %561 = vector.load %arg36[%c0_142, %c0_143] : memref<128x128xbf16, #tpu.memory_space<vmem>>, vector<128x128xbf16>
    %562 = arith.mulf %555, %555 : vector<16x128xf32>
    %cst_144 = arith.constant dense<0.000000e+00> : vector<16xf32>
    %563 = vector.multi_reduction <add>, %562, %cst_144 [1] : vector<16x128xf32> to vector<16xf32>
    %564 = vector.shape_cast %563 : vector<16xf32> to vector<16x1xf32>
    %cst_145 = arith.constant 1.562500e-02 : f32
    %565 = vector.broadcast %cst_145 : f32 to vector<16x1xf32>
    %566 = arith.mulf %564, %565 : vector<16x1xf32>
    %cst_146 = arith.constant 9.99999997E-7 : f32
    %567 = vector.broadcast %cst_146 : f32 to vector<16x1xf32>
    %568 = arith.addf %566, %567 : vector<16x1xf32>
    %569 = math.rsqrt %568 : vector<16x1xf32>
    %570 = vector.broadcast %569 : vector<16x1xf32> to vector<16x128xf32>
    %571 = arith.mulf %555, %570 : vector<16x128xf32>
    %572 = vector.broadcast %556 : vector<1x128xf32> to vector<16x128xf32>
    %573 = arith.mulf %571, %572 : vector<16x128xf32>
    %574 = arith.truncf %573 : vector<16x128xf32> to vector<16x128xbf16>
    %cst_147 = arith.constant dense<0.000000e+00> : vector<16x128xf32>
    %575 = tpu.matmul %574, %557, %cst_147 {dimension_numbers = #tpu.dot_dimension_numbers<[1], [0], [0], [1], [0, 0, 1, 1], [], []>} : vector<16x128xbf16>, vector<128x128xbf16>, vector<16x128xf32> -> vector<16x128xf32>
    %576 = vector.extract_strided_slice %575 {offsets = [0, 0], sizes = [16, 16], strides = [1, 1]} : vector<16x128xf32> to vector<16x16xf32>
    %577 = vector.extract_strided_slice %575 {offsets = [0, 16], sizes = [16, 16], strides = [1, 1]} : vector<16x128xf32> to vector<16x16xf32>
    %578 = vector.extract_strided_slice %575 {offsets = [0, 32], sizes = [16, 16], strides = [1, 1]} : vector<16x128xf32> to vector<16x16xf32>
    %579 = vector.extract_strided_slice %575 {offsets = [0, 48], sizes = [16, 16], strides = [1, 1]} : vector<16x128xf32> to vector<16x16xf32>
    %580 = vector.shape_cast %576 : vector<16x16xf32> to vector<1x16x16xf32>
    %581 = vector.shape_cast %577 : vector<16x16xf32> to vector<1x16x16xf32>
    %582 = vector.shape_cast %578 : vector<16x16xf32> to vector<1x16x16xf32>
    %583 = vector.shape_cast %579 : vector<16x16xf32> to vector<1x16x16xf32>
    %584 = tpu.concatenate %580, %581, %582, %583 in 0 : vector<1x16x16xf32>, vector<1x16x16xf32>, vector<1x16x16xf32>, vector<1x16x16xf32> -> vector<4x16x16xf32>
    %585 = vector.extract_strided_slice %575 {offsets = [0, 64], sizes = [16, 16], strides = [1, 1]} : vector<16x128xf32> to vector<16x16xf32>
    %586 = vector.extract_strided_slice %575 {offsets = [0, 64], sizes = [16, 16], strides = [1, 1]} : vector<16x128xf32> to vector<16x16xf32>
    %587 = vector.extract_strided_slice %575 {offsets = [0, 80], sizes = [16, 16], strides = [1, 1]} : vector<16x128xf32> to vector<16x16xf32>
    %588 = vector.extract_strided_slice %575 {offsets = [0, 80], sizes = [16, 16], strides = [1, 1]} : vector<16x128xf32> to vector<16x16xf32>
    %589 = vector.shape_cast %585 : vector<16x16xf32> to vector<1x16x16xf32>
    %590 = vector.shape_cast %586 : vector<16x16xf32> to vector<1x16x16xf32>
    %591 = vector.shape_cast %587 : vector<16x16xf32> to vector<1x16x16xf32>
    %592 = vector.shape_cast %588 : vector<16x16xf32> to vector<1x16x16xf32>
    %593 = tpu.concatenate %589, %590, %591, %592 in 0 : vector<1x16x16xf32>, vector<1x16x16xf32>, vector<1x16x16xf32>, vector<1x16x16xf32> -> vector<4x16x16xf32>
    %594 = vector.extract_strided_slice %575 {offsets = [0, 96], sizes = [16, 16], strides = [1, 1]} : vector<16x128xf32> to vector<16x16xf32>
    %595 = vector.extract_strided_slice %575 {offsets = [0, 96], sizes = [16, 16], strides = [1, 1]} : vector<16x128xf32> to vector<16x16xf32>
    %596 = vector.extract_strided_slice %575 {offsets = [0, 112], sizes = [16, 16], strides = [1, 1]} : vector<16x128xf32> to vector<16x16xf32>
    %597 = vector.extract_strided_slice %575 {offsets = [0, 112], sizes = [16, 16], strides = [1, 1]} : vector<16x128xf32> to vector<16x16xf32>
    %598 = vector.shape_cast %594 : vector<16x16xf32> to vector<1x16x16xf32>
    %599 = vector.shape_cast %595 : vector<16x16xf32> to vector<1x16x16xf32>
    %600 = vector.shape_cast %596 : vector<16x16xf32> to vector<1x16x16xf32>
    %601 = vector.shape_cast %597 : vector<16x16xf32> to vector<1x16x16xf32>
    %602 = tpu.concatenate %598, %599, %600, %601 in 0 : vector<1x16x16xf32>, vector<1x16x16xf32>, vector<1x16x16xf32>, vector<1x16x16xf32> -> vector<4x16x16xf32>
    %603 = vector.extract_strided_slice %584 {offsets = [0, 0, 0], sizes = [4, 16, 8], strides = [1, 1, 1]} : vector<4x16x16xf32> to vector<4x16x8xf32>
    %604 = vector.extract_strided_slice %584 {offsets = [0, 0, 8], sizes = [4, 16, 8], strides = [1, 1, 1]} : vector<4x16x16xf32> to vector<4x16x8xf32>
    %605 = vector.broadcast %4 : vector<1x16x8xf32> to vector<4x16x8xf32>
    %606 = arith.mulf %603, %605 : vector<4x16x8xf32>
    %607 = vector.broadcast %6 : vector<1x16x8xf32> to vector<4x16x8xf32>
    %608 = arith.mulf %604, %607 : vector<4x16x8xf32>
    %609 = arith.subf %606, %608 : vector<4x16x8xf32>
    %610 = vector.broadcast %4 : vector<1x16x8xf32> to vector<4x16x8xf32>
    %611 = arith.mulf %604, %610 : vector<4x16x8xf32>
    %612 = vector.broadcast %6 : vector<1x16x8xf32> to vector<4x16x8xf32>
    %613 = arith.mulf %603, %612 : vector<4x16x8xf32>
    %614 = arith.addf %611, %613 : vector<4x16x8xf32>
    %615 = tpu.concatenate %609, %614 in 2 : vector<4x16x8xf32>, vector<4x16x8xf32> -> vector<4x16x16xf32>
    %616 = vector.extract_strided_slice %593 {offsets = [0, 0, 0], sizes = [4, 16, 8], strides = [1, 1, 1]} : vector<4x16x16xf32> to vector<4x16x8xf32>
    %617 = vector.extract_strided_slice %593 {offsets = [0, 0, 8], sizes = [4, 16, 8], strides = [1, 1, 1]} : vector<4x16x16xf32> to vector<4x16x8xf32>
    %618 = vector.broadcast %4 : vector<1x16x8xf32> to vector<4x16x8xf32>
    %619 = arith.mulf %616, %618 : vector<4x16x8xf32>
    %620 = vector.broadcast %6 : vector<1x16x8xf32> to vector<4x16x8xf32>
    %621 = arith.mulf %617, %620 : vector<4x16x8xf32>
    %622 = arith.subf %619, %621 : vector<4x16x8xf32>
    %623 = vector.broadcast %4 : vector<1x16x8xf32> to vector<4x16x8xf32>
    %624 = arith.mulf %617, %623 : vector<4x16x8xf32>
    %625 = vector.broadcast %6 : vector<1x16x8xf32> to vector<4x16x8xf32>
    %626 = arith.mulf %616, %625 : vector<4x16x8xf32>
    %627 = arith.addf %624, %626 : vector<4x16x8xf32>
    %628 = tpu.concatenate %622, %627 in 2 : vector<4x16x8xf32>, vector<4x16x8xf32> -> vector<4x16x16xf32>
    %629 = arith.truncf %615 : vector<4x16x16xf32> to vector<4x16x16xbf16>
    %630 = arith.truncf %628 : vector<4x16x16xf32> to vector<4x16x16xbf16>
    "tpu.trace_start"() <{level = 10 : i32, message = "hld,hmd->hlm"}> : () -> ()
    %cst_148 = arith.constant dense<0.000000e+00> : vector<4x16x16xf32>
    %631 = tpu.matmul %629, %630, %cst_148 {dimension_numbers = #tpu.dot_dimension_numbers<[2], [2], [1], [1], [0, 0, 0, 1, 1, 1], [0], [0]>} : vector<4x16x16xbf16>, vector<4x16x16xbf16>, vector<4x16x16xf32> -> vector<4x16x16xf32>
    "tpu.trace_stop"() : () -> ()
    %cst_149 = arith.constant 2.500000e-01 : f32
    %632 = vector.broadcast %cst_149 : f32 to vector<4x16x16xf32>
    %633 = arith.mulf %631, %632 : vector<4x16x16xf32>
    %634 = vector.shape_cast %15 : vector<16x16xf32> to vector<1x16x16xf32>
    %635 = vector.broadcast %634 : vector<1x16x16xf32> to vector<4x16x16xf32>
    %636 = arith.addf %633, %635 : vector<4x16x16xf32>
    %cst_150 = arith.constant dense<0xFF800000> : vector<4x16xf32>
    %637 = vector.multi_reduction <maximumf>, %636, %cst_150 [2] : vector<4x16x16xf32> to vector<4x16xf32>
    %638 = vector.shape_cast %637 : vector<4x16xf32> to vector<4x16x1xf32>
    %639 = vector.broadcast %638 : vector<4x16x1xf32> to vector<4x16x16xf32>
    %640 = arith.subf %636, %639 : vector<4x16x16xf32>
    %641 = math.exp %640 : vector<4x16x16xf32>
    %cst_151 = arith.constant dense<0.000000e+00> : vector<4x16xf32>
    %642 = vector.multi_reduction <add>, %641, %cst_151 [2] : vector<4x16x16xf32> to vector<4x16xf32>
    %643 = vector.shape_cast %642 : vector<4x16xf32> to vector<4x16x1xf32>
    %644 = tpu.reciprocal %643 {approx = true} : vector<4x16x1xf32> -> vector<4x16x1xf32>
    %645 = vector.broadcast %644 : vector<4x16x1xf32> to vector<4x16x16xf32>
    %646 = arith.mulf %641, %645 : vector<4x16x16xf32>
    %647 = arith.truncf %646 : vector<4x16x16xf32> to vector<4x16x16xbf16>
    %648 = arith.truncf %602 : vector<4x16x16xf32> to vector<4x16x16xbf16>
    "tpu.trace_start"() <{level = 10 : i32, message = "hlm,hmd->hld"}> : () -> ()
    %cst_152 = arith.constant dense<0.000000e+00> : vector<4x16x16xf32>
    %649 = tpu.matmul %647, %648, %cst_152 {dimension_numbers = #tpu.dot_dimension_numbers<[2], [1], [1], [2], [0, 0, 0, 1, 1, 2], [0], [0]>} : vector<4x16x16xbf16>, vector<4x16x16xbf16>, vector<4x16x16xf32> -> vector<4x16x16xf32>
    "tpu.trace_stop"() : () -> ()
    %650 = arith.truncf %649 : vector<4x16x16xf32> to vector<4x16x16xbf16>
    "tpu.trace_start"() <{level = 10 : i32, message = "hld,hde->hle"}> : () -> ()
    %cst_153 = arith.constant dense<0.000000e+00> : vector<4x16x128xf32>
    %651 = tpu.matmul %650, %558, %cst_153 {dimension_numbers = #tpu.dot_dimension_numbers<[2], [1], [1], [2], [0, 0, 0, 1, 1, 2], [0], [0]>} : vector<4x16x16xbf16>, vector<4x16x128xbf16>, vector<4x16x128xf32> -> vector<4x16x128xf32>
    "tpu.trace_stop"() : () -> ()
    %cst_154 = arith.constant dense<0.000000e+00> : vector<16x128xf32>
    %652 = vector.multi_reduction <add>, %651, %cst_154 [0] : vector<4x16x128xf32> to vector<16x128xf32>
    %653 = arith.addf %555, %652 : vector<16x128xf32>
    %654 = arith.mulf %653, %653 : vector<16x128xf32>
    %cst_155 = arith.constant dense<0.000000e+00> : vector<16xf32>
    %655 = vector.multi_reduction <add>, %654, %cst_155 [1] : vector<16x128xf32> to vector<16xf32>
    %656 = vector.shape_cast %655 : vector<16xf32> to vector<16x1xf32>
    %cst_156 = arith.constant 1.562500e-02 : f32
    %657 = vector.broadcast %cst_156 : f32 to vector<16x1xf32>
    %658 = arith.mulf %656, %657 : vector<16x1xf32>
    %cst_157 = arith.constant 9.99999997E-7 : f32
    %659 = vector.broadcast %cst_157 : f32 to vector<16x1xf32>
    %660 = arith.addf %658, %659 : vector<16x1xf32>
    %661 = math.rsqrt %660 : vector<16x1xf32>
    %662 = vector.broadcast %661 : vector<16x1xf32> to vector<16x128xf32>
    %663 = arith.mulf %653, %662 : vector<16x128xf32>
    %664 = vector.broadcast %559 : vector<1x128xf32> to vector<16x128xf32>
    %665 = arith.mulf %663, %664 : vector<16x128xf32>
    %666 = arith.truncf %665 : vector<16x128xf32> to vector<16x128xbf16>
    %cst_158 = arith.constant dense<0.000000e+00> : vector<16x256xf32>
    %667 = tpu.matmul %666, %560, %cst_158 {dimension_numbers = #tpu.dot_dimension_numbers<[1], [0], [0], [1], [0, 0, 1, 1], [], []>} : vector<16x128xbf16>, vector<128x256xbf16>, vector<16x256xf32> -> vector<16x256xf32>
    %668 = vector.extract_strided_slice %667 {offsets = [0, 0], sizes = [16, 128], strides = [1, 1]} : vector<16x256xf32> to vector<16x128xf32>
    %669 = vector.extract_strided_slice %667 {offsets = [0, 128], sizes = [16, 128], strides = [1, 1]} : vector<16x256xf32> to vector<16x128xf32>
    %670 = arith.negf %668 : vector<16x128xf32>
    %671 = math.exp %670 : vector<16x128xf32>
    %cst_159 = arith.constant 1.000000e+00 : f32
    %672 = vector.broadcast %cst_159 : f32 to vector<16x128xf32>
    %673 = arith.addf %672, %671 : vector<16x128xf32>
    %674 = arith.divf %672, %673 : vector<16x128xf32>
    %675 = arith.mulf %668, %674 : vector<16x128xf32>
    %676 = arith.mulf %675, %669 : vector<16x128xf32>
    %677 = arith.truncf %676 : vector<16x128xf32> to vector<16x128xbf16>
    %cst_160 = arith.constant dense<0.000000e+00> : vector<16x128xf32>
    %678 = tpu.matmul %677, %561, %cst_160 {dimension_numbers = #tpu.dot_dimension_numbers<[1], [0], [0], [1], [0, 0, 1, 1], [], []>} : vector<16x128xbf16>, vector<128x128xbf16>, vector<16x128xf32> -> vector<16x128xf32>
    %679 = arith.addf %653, %678 : vector<16x128xf32>
    %c0_161 = arith.constant 0 : index
    %c0_162 = arith.constant 0 : index
    %680 = vector.load %arg37[%c0_161, %c0_162] : memref<1x128xf32, #tpu.memory_space<vmem>>, vector<1x128xf32>
    %c0_163 = arith.constant 0 : index
    %c0_164 = arith.constant 0 : index
    %681 = vector.load %arg38[%c0_163, %c0_164] : memref<128x256xbf16, #tpu.memory_space<vmem>>, vector<128x256xbf16>
    %682 = arith.mulf %679, %679 : vector<16x128xf32>
    %cst_165 = arith.constant dense<0.000000e+00> : vector<16xf32>
    %683 = vector.multi_reduction <add>, %682, %cst_165 [1] : vector<16x128xf32> to vector<16xf32>
    %684 = vector.shape_cast %683 : vector<16xf32> to vector<16x1xf32>
    %cst_166 = arith.constant 1.562500e-02 : f32
    %685 = vector.broadcast %cst_166 : f32 to vector<16x1xf32>
    %686 = arith.mulf %684, %685 : vector<16x1xf32>
    %cst_167 = arith.constant 9.99999997E-7 : f32
    %687 = vector.broadcast %cst_167 : f32 to vector<16x1xf32>
    %688 = arith.addf %686, %687 : vector<16x1xf32>
    %689 = math.rsqrt %688 : vector<16x1xf32>
    %690 = vector.broadcast %689 : vector<16x1xf32> to vector<16x128xf32>
    %691 = arith.mulf %679, %690 : vector<16x128xf32>
    %692 = vector.broadcast %680 : vector<1x128xf32> to vector<16x128xf32>
    %693 = arith.mulf %691, %692 : vector<16x128xf32>
    %694 = arith.truncf %693 : vector<16x128xf32> to vector<16x128xbf16>
    %cst_168 = arith.constant dense<0.000000e+00> : vector<16x256xf32>
    %695 = tpu.matmul %694, %681, %cst_168 {dimension_numbers = #tpu.dot_dimension_numbers<[1], [0], [0], [1], [0, 0, 1, 1], [], []>} : vector<16x128xbf16>, vector<128x256xbf16>, vector<16x256xf32> -> vector<16x256xf32>
    %c0_169 = arith.constant 0 : index
    %c0_170 = arith.constant 0 : index
    %c0_171 = arith.constant 0 : index
    %696 = vector.load %arg39[%c0_169, %c0_170, %c0_171] : memref<1x16x256xf32, #tpu.memory_space<vmem>>, vector<1x16x256xf32>
    %697 = vector.shape_cast %696 : vector<1x16x256xf32> to vector<16x256xf32>
    %698 = vector.shape_cast %695 : vector<16x256xf32> to vector<1x16x256xf32>
    tpu.vector_store %arg39[%c0_169, %c0_170, %c0_171], %698 {strides = array<i32>} : memref<1x16x256xf32, #tpu.memory_space<vmem>>, vector<1x16x256xf32>,
    return
  }
  func.func @transform_0(%arg0: i32) -> (i32, i32) {
    %c0_i32 = arith.constant 0 : i32
    %c0_i32_0 = arith.constant 0 : i32
    %c0_i32_1 = arith.constant 0 : i32
    return %c0_i32, %c0_i32_0 : i32, i32
  }
  func.func @transform_1(%arg0: i32) -> (i32, i32, i32) {
    %c0_i32 = arith.constant 0 : i32
    %c0_i32_0 = arith.constant 0 : i32
    %c0_i32_1 = arith.constant 0 : i32
    return %arg0, %c0_i32, %c0_i32_0 : i32, i32, i32
  }
  func.func @transform_2(%arg0: i32) -> (i32, i32) {
    %c0_i32 = arith.constant 0 : i32
    %c0_i32_0 = arith.constant 0 : i32
    %c0_i32_1 = arith.constant 0 : i32
    return %c0_i32, %c0_i32_0 : i32, i32
  }
  func.func @transform_3(%arg0: i32) -> (i32, i32) {
    %c0_i32 = arith.constant 0 : i32
    %c0_i32_0 = arith.constant 0 : i32
    %c0_i32_1 = arith.constant 0 : i32
    return %c0_i32, %c0_i32_0 : i32, i32
  }
  func.func @transform_4(%arg0: i32) -> (i32, i32) {
    %c0_i32 = arith.constant 0 : i32
    %c0_i32_0 = arith.constant 0 : i32
    %c0_i32_1 = arith.constant 0 : i32
    return %c0_i32, %c0_i32_0 : i32, i32
  }
  func.func @transform_5(%arg0: i32) -> (i32, i32) {
    %c0_i32 = arith.constant 0 : i32
    %c0_i32_0 = arith.constant 0 : i32
    %c0_i32_1 = arith.constant 0 : i32
    return %c0_i32, %c0_i32_0 : i32, i32
  }
  func.func @transform_6(%arg0: i32) -> (i32, i32) {
    %c0_i32 = arith.constant 0 : i32
    %c0_i32_0 = arith.constant 0 : i32
    %c0_i32_1 = arith.constant 0 : i32
    return %c0_i32, %c0_i32_0 : i32, i32
  }
  func.func @transform_7(%arg0: i32) -> (i32, i32) {
    %c0_i32 = arith.constant 0 : i32
    %c0_i32_0 = arith.constant 0 : i32
    %c0_i32_1 = arith.constant 0 : i32
    return %c0_i32, %c0_i32_0 : i32, i32
  }
  func.func @transform_8(%arg0: i32) -> (i32, i32) {
    %c0_i32 = arith.constant 0 : i32
    %c0_i32_0 = arith.constant 0 : i32
    %c0_i32_1 = arith.constant 0 : i32
    return %c0_i32, %c0_i32_0 : i32, i32
  }
  func.func @transform_9(%arg0: i32) -> (i32, i32, i32) {
    %c0_i32 = arith.constant 0 : i32
    %c0_i32_0 = arith.constant 0 : i32
    %c0_i32_1 = arith.constant 0 : i32
    %c0_i32_2 = arith.constant 0 : i32
    return %c0_i32, %c0_i32_0, %c0_i32_1 : i32, i32, i32
  }
  func.func @transform_10(%arg0: i32) -> (i32, i32) {
    %c0_i32 = arith.constant 0 : i32
    %c0_i32_0 = arith.constant 0 : i32
    %c0_i32_1 = arith.constant 0 : i32
    return %c0_i32, %c0_i32_0 : i32, i32
  }
  func.func @transform_11(%arg0: i32) -> (i32, i32) {
    %c0_i32 = arith.constant 0 : i32
    %c0_i32_0 = arith.constant 0 : i32
    %c0_i32_1 = arith.constant 0 : i32
    return %c0_i32, %c0_i32_0 : i32, i32
  }
  func.func @transform_12(%arg0: i32) -> (i32, i32) {
    %c0_i32 = arith.constant 0 : i32
    %c0_i32_0 = arith.constant 0 : i32
    %c0_i32_1 = arith.constant 0 : i32
    return %c0_i32, %c0_i32_0 : i32, i32
  }
  func.func @transform_13(%arg0: i32) -> (i32, i32) {
    %c0_i32 = arith.constant 0 : i32
    %c0_i32_0 = arith.constant 0 : i32
    %c0_i32_1 = arith.constant 0 : i32
    return %c0_i32, %c0_i32_0 : i32, i32
  }
  func.func @transform_14(%arg0: i32) -> (i32, i32) {
    %c0_i32 = arith.constant 0 : i32
    %c0_i32_0 = arith.constant 0 : i32
    %c0_i32_1 = arith.constant 0 : i32
    return %c0_i32, %c0_i32_0 : i32, i32
  }
  func.func @transform_15(%arg0: i32) -> (i32, i32, i32) {
    %c0_i32 = arith.constant 0 : i32
    %c0_i32_0 = arith.constant 0 : i32
    %c0_i32_1 = arith.constant 0 : i32
    %c0_i32_2 = arith.constant 0 : i32
    return %c0_i32, %c0_i32_0, %c0_i32_1 : i32, i32, i32
  }
  func.func @transform_16(%arg0: i32) -> (i32, i32) {
    %c0_i32 = arith.constant 0 : i32
    %c0_i32_0 = arith.constant 0 : i32
    %c0_i32_1 = arith.constant 0 : i32
    return %c0_i32, %c0_i32_0 : i32, i32
  }
  func.func @transform_17(%arg0: i32) -> (i32, i32) {
    %c0_i32 = arith.constant 0 : i32
    %c0_i32_0 = arith.constant 0 : i32
    %c0_i32_1 = arith.constant 0 : i32
    return %c0_i32, %c0_i32_0 : i32, i32
  }
  func.func @transform_18(%arg0: i32) -> (i32, i32) {
    %c0_i32 = arith.constant 0 : i32
    %c0_i32_0 = arith.constant 0 : i32
    %c0_i32_1 = arith.constant 0 : i32
    return %c0_i32, %c0_i32_0 : i32, i32
  }
  func.func @transform_19(%arg0: i32) -> (i32, i32) {
    %c0_i32 = arith.constant 0 : i32
    %c0_i32_0 = arith.constant 0 : i32
    %c0_i32_1 = arith.constant 0 : i32
    return %c0_i32, %c0_i32_0 : i32, i32
  }
  func.func @transform_20(%arg0: i32) -> (i32, i32) {
    %c0_i32 = arith.constant 0 : i32
    %c0_i32_0 = arith.constant 0 : i32
    %c0_i32_1 = arith.constant 0 : i32
    return %c0_i32, %c0_i32_0 : i32, i32
  }
  func.func @transform_21(%arg0: i32) -> (i32, i32) {
    %c0_i32 = arith.constant 0 : i32
    %c0_i32_0 = arith.constant 0 : i32
    %c0_i32_1 = arith.constant 0 : i32
    return %c0_i32, %c0_i32_0 : i32, i32
  }
  func.func @transform_22(%arg0: i32) -> (i32, i32) {
    %c0_i32 = arith.constant 0 : i32
    %c0_i32_0 = arith.constant 0 : i32
    %c0_i32_1 = arith.constant 0 : i32
    return %c0_i32, %c0_i32_0 : i32, i32
  }
  func.func @transform_23(%arg0: i32) -> (i32, i32) {
    %c0_i32 = arith.constant 0 : i32
    %c0_i32_0 = arith.constant 0 : i32
    %c0_i32_1 = arith.constant 0 : i32
    return %c0_i32, %c0_i32_0 : i32, i32
  }
  func.func @transform_24(%arg0: i32) -> (i32, i32) {
    %c0_i32 = arith.constant 0 : i32
    %c0_i32_0 = arith.constant 0 : i32
    %c0_i32_1 = arith.constant 0 : i32
    return %c0_i32, %c0_i32_0 : i32, i32
  }
  func.func @transform_25(%arg0: i32) -> (i32, i32) {
    %c0_i32 = arith.constant 0 : i32
    %c0_i32_0 = arith.constant 0 : i32
    %c0_i32_1 = arith.constant 0 : i32
    return %c0_i32, %c0_i32_0 : i32, i32
  }
  func.func @transform_26(%arg0: i32) -> (i32, i32, i32) {
    %c0_i32 = arith.constant 0 : i32
    %c0_i32_0 = arith.constant 0 : i32
    %c0_i32_1 = arith.constant 0 : i32
    %c0_i32_2 = arith.constant 0 : i32
    return %c0_i32, %c0_i32_0, %c0_i32_1 : i32, i32, i32
  }
  func.func @transform_27(%arg0: i32) -> (i32, i32) {
    %c0_i32 = arith.constant 0 : i32
    %c0_i32_0 = arith.constant 0 : i32
    %c0_i32_1 = arith.constant 0 : i32
    return %c0_i32, %c0_i32_0 : i32, i32
  }
  func.func @transform_28(%arg0: i32) -> (i32, i32) {
    %c0_i32 = arith.constant 0 : i32
    %c0_i32_0 = arith.constant 0 : i32
    %c0_i32_1 = arith.constant 0 : i32
    return %c0_i32, %c0_i32_0 : i32, i32
  }
  func.func @transform_29(%arg0: i32) -> (i32, i32) {
    %c0_i32 = arith.constant 0 : i32
    %c0_i32_0 = arith.constant 0 : i32
    %c0_i32_1 = arith.constant 0 : i32
    return %c0_i32, %c0_i32_0 : i32, i32
  }
  func.func @transform_30(%arg0: i32) -> (i32, i32) {
    %c0_i32 = arith.constant 0 : i32
    %c0_i32_0 = arith.constant 0 : i32
    %c0_i32_1 = arith.constant 0 : i32
    return %c0_i32, %c0_i32_0 : i32, i32
  }
  func.func @transform_31(%arg0: i32) -> (i32, i32) {
    %c0_i32 = arith.constant 0 : i32
    %c0_i32_0 = arith.constant 0 : i32
    %c0_i32_1 = arith.constant 0 : i32
    return %c0_i32, %c0_i32_0 : i32, i32
  }
  func.func @transform_32(%arg0: i32) -> (i32, i32, i32) {
    %c0_i32 = arith.constant 0 : i32
    %c0_i32_0 = arith.constant 0 : i32
    %c0_i32_1 = arith.constant 0 : i32
    %c0_i32_2 = arith.constant 0 : i32
    return %c0_i32, %c0_i32_0, %c0_i32_1 : i32, i32, i32
  }
  func.func @transform_33(%arg0: i32) -> (i32, i32) {
    %c0_i32 = arith.constant 0 : i32
    %c0_i32_0 = arith.constant 0 : i32
    %c0_i32_1 = arith.constant 0 : i32
    return %c0_i32, %c0_i32_0 : i32, i32
  }
  func.func @transform_34(%arg0: i32) -> (i32, i32) {
    %c0_i32 = arith.constant 0 : i32
    %c0_i32_0 = arith.constant 0 : i32
    %c0_i32_1 = arith.constant 0 : i32
    return %c0_i32, %c0_i32_0 : i32, i32
  }
  func.func @transform_35(%arg0: i32) -> (i32, i32) {
    %c0_i32 = arith.constant 0 : i32
    %c0_i32_0 = arith.constant 0 : i32
    %c0_i32_1 = arith.constant 0 : i32
    return %c0_i32, %c0_i32_0 : i32, i32
  }
  func.func @transform_36(%arg0: i32) -> (i32, i32) {
    %c0_i32 = arith.constant 0 : i32
    %c0_i32_0 = arith.constant 0 : i32
    %c0_i32_1 = arith.constant 0 : i32
    return %c0_i32, %c0_i32_0 : i32, i32
  }
  func.func @transform_37(%arg0: i32) -> (i32, i32) {
    %c0_i32 = arith.constant 0 : i32
    %c0_i32_0 = arith.constant 0 : i32
    %c0_i32_1 = arith.constant 0 : i32
    return %c0_i32, %c0_i32_0 : i32, i32
  }
  func.func @transform_38(%arg0: i32) -> (i32, i32, i32) {
    %c0_i32 = arith.constant 0 : i32
    %c0_i32_0 = arith.constant 0 : i32
    %c0_i32_1 = arith.constant 0 : i32
    return %arg0, %c0_i32, %c0_i32_0 : i32, i32, i32
  }
}

</mosaic_0001>

<llo_original>
// kernel: hybrid_forward.1
$region0: #{hybrid_forward.1}
  #allocation0 [shape = 'u32[]', space=smem, size = 0x4, offset = 0x4, fixed_abs, tag = 'smem constant byte address 0x4 - core index']
  #allocation1 [shape = 'u32[72,128]{1,0:T(1,128)}', space=vmem, size = 0x9000, scoped, tag = 'internal scratch']
  %s0 = inlined_call_operand.smem [shape: u32[39], index: -1, kind: input, shape index: {}]
  %s1 = sld [smem:[%s0]]
  %s2 = scalar_lea.smem %s0, 1
  %s3 = sld [smem:[%s2]]
  %s4 = scalar_lea.smem %s0, 2
  %s5 = sld [smem:[%s4]]
  %s6 = scalar_lea.smem %s0, 3
  %s7 = sld [smem:[%s6]]
  %s8 = scalar_lea.smem %s0, 4
  %s9 = sld [smem:[%s8]]
  %s10 = scalar_lea.smem %s0, 5
  %s11 = sld [smem:[%s10]]
  %s12 = scalar_lea.smem %s0, 6
  %s13 = sld [smem:[%s12]]
  %s14 = scalar_lea.smem %s0, 7
  %s15 = sld [smem:[%s14]]
  %s16 = scalar_lea.smem %s0, 8
  %s17 = sld [smem:[%s16]]
  %s18 = scalar_lea.smem %s0, 9
  %s19 = sld [smem:[%s18]]
  %s20 = scalar_lea.smem %s0, 10
  %s21 = sld [smem:[%s20]]
  %s22 = scalar_lea.smem %s0, 11
  %s23 = sld [smem:[%s22]]
  %s24 = scalar_lea.smem %s0, 12
  %s25 = sld [smem:[%s24]]
  %s26 = scalar_lea.smem %s0, 13
  %s27 = sld [smem:[%s26]]
  %s28 = scalar_lea.smem %s0, 14
  %s29 = sld [smem:[%s28]]
  %s30 = scalar_lea.smem %s0, 15
  %s31 = sld [smem:[%s30]]
  %s32 = scalar_lea.smem %s0, 16
  %s33 = sld [smem:[%s32]]
  %s34 = scalar_lea.smem %s0, 17
  %s35 = sld [smem:[%s34]]
  %s36 = scalar_lea.smem %s0, 18
  %s37 = sld [smem:[%s36]]
  %s38 = scalar_lea.smem %s0, 19
  %s39 = sld [smem:[%s38]]
  %s40 = scalar_lea.smem %s0, 20
  %s41 = sld [smem:[%s40]]
  %s42 = scalar_lea.smem %s0, 21
  %s43 = sld [smem:[%s42]]
  %s44 = scalar_lea.smem %s0, 22
  %s45 = sld [smem:[%s44]]
  %s46 = scalar_lea.smem %s0, 23
  %s47 = sld [smem:[%s46]]
  %s48 = scalar_lea.smem %s0, 24
  %s49 = sld [smem:[%s48]]
  %s50 = scalar_lea.smem %s0, 25
  %s51 = sld [smem:[%s50]]
  %s52 = scalar_lea.smem %s0, 26
  %s53 = sld [smem:[%s52]]
  %s54 = scalar_lea.smem %s0, 27
  %s55 = sld [smem:[%s54]]
  %s56 = scalar_lea.smem %s0, 28
  %s57 = sld [smem:[%s56]]
  %s58 = scalar_lea.smem %s0, 29
  %s59 = sld [smem:[%s58]]
  %s60 = scalar_lea.smem %s0, 30
  %s61 = sld [smem:[%s60]]
  %s62 = scalar_lea.smem %s0, 31
  %s63 = sld [smem:[%s62]]
  %s64 = scalar_lea.smem %s0, 32
  %s65 = sld [smem:[%s64]]
  %s66 = scalar_lea.smem %s0, 33
  %s67 = sld [smem:[%s66]]
  %s68 = scalar_lea.smem %s0, 34
  %s69 = sld [smem:[%s68]]
  %s70 = scalar_lea.smem %s0, 35
  %s71 = sld [smem:[%s70]]
  %s72 = scalar_lea.smem %s0, 36
  %s73 = sld [smem:[%s72]]
  %s74 = scalar_lea.smem %s0, 37
  %s75 = sld [smem:[%s74]]
  %s76 = scalar_lea.smem %s0, 38
  %s77 = sld [smem:[%s76]]
  %s78 = sld [smem:[#allocation0]]
  $region297: #{hybrid_forward.1} parent=0
    _
  %s80 = ssub.s32 1, %s78
  %s81 = scalar_select 0, %s80, %s78
  $region1: #{hybrid_forward.1} parent=0
    #allocation2 [shape = 'u8[512]{0}', space=vmem, size = 0x400, scoped, tag = 'input window, operand 6, single buffered']
    #allocation3 [shape = 's32[2]{0}', space=sflag, size = 0x8, scoped, tag = 'scoped memory for hybrid_forward.1']
    #allocation4 [shape = 's32[2]{0}', space=sflag, size = 0x8, scoped, tag = 'scoped memory for hybrid_forward.1']
    #allocation5 [shape = 'u8[512]{0}', space=vmem, size = 0x400, scoped, tag = 'input window, operand 8, single buffered']
    #allocation6 [shape = 's32[1]{0}', space=sflag, size = 0x4, scoped, tag = 'scoped memory for hybrid_forward.1']
    #allocation7 [shape = 'u8[16384]{0}', space=vmem, size = 0x4000, scoped, tag = 'input window, operand 9, single buffered']
    #allocation8 [shape = 'u8[512]{0}', space=vmem, size = 0x400, scoped, tag = 'input window, operand 10, single buffered']
    #allocation9 [shape = 's32[1]{0}', space=sflag, size = 0x4, scoped, tag = 'scoped memory for hybrid_forward.1']
    #allocation10 [shape = 'u8[32768]{0}', space=vmem, size = 0x8000, scoped, tag = 'input window, operand 12, single buffered']
    #allocation11 [shape = 'u8[512]{0}', space=vmem, size = 0x400, scoped, tag = 'input window, operand 13, single buffered']
    #allocation12 [shape = 's32[1]{0}', space=sflag, size = 0x4, scoped, tag = 'scoped memory for hybrid_forward.1']
    #allocation13 [shape = 'u8[32768]{0}', space=vmem, size = 0x8000, scoped, tag = 'input window, operand 14, single buffered']
    #allocation14 [shape = 'u8[16384]{0}', space=vmem, size = 0x4000, scoped, tag = 'input window, operand 15, single buffered']
    #allocation15 [shape = 's32[1]{0}', space=sflag, size = 0x4, scoped, tag = 'scoped memory for hybrid_forward.1']
    #allocation16 [shape = 'u8[512]{0}', space=vmem, size = 0x400, scoped, tag = 'input window, operand 16, single buffered']
    #allocation17 [shape = 'u8[32768]{0}', space=vmem, size = 0x8000, scoped, tag = 'input window, operand 18, single buffered']
    #allocation18 [shape = 's32[1]{0}', space=sflag, size = 0x4, scoped, tag = 'scoped memory for hybrid_forward.1']
    #allocation19 [shape = 'u8[512]{0}', space=vmem, size = 0x400, scoped, tag = 'input window, operand 19, single buffered']
    #allocation20 [shape = 'u8[65536]{0}', space=vmem, size = 0x10000, scoped, tag = 'input window, operand 20, single buffered']
    #allocation21 [shape = 's32[1]{0}', space=sflag, size = 0x4, scoped, tag = 'scoped memory for hybrid_forward.1']
    #allocation22 [shape = 'u8[2048]{0}', space=vmem, size = 0x800, scoped, tag = 'input window, operand 21, single buffered']
    #allocation23 [shape = 'u8[512]{0}', space=vmem, size = 0x400, scoped, tag = 'input window, operand 22, single buffered']
    #allocation24 [shape = 's32[1]{0}', space=sflag, size = 0x4, scoped, tag = 'scoped memory for hybrid_forward.1']
    #allocation25 [shape = 'u8[512]{0}', space=vmem, size = 0x400, scoped, tag = 'input window, operand 23, single buffered']
    #allocation26 [shape = 'u8[512]{0}', space=vmem, size = 0x400, scoped, tag = 'input window, operand 24, single buffered']
    #allocation27 [shape = 's32[1]{0}', space=sflag, size = 0x4, scoped, tag = 'scoped memory for hybrid_forward.1']
    #allocation28 [shape = 'u8[512]{0}', space=vmem, size = 0x400, scoped, tag = 'input window, operand 25, single buffered']
    #allocation29 [shape = 'u8[16384]{0}', space=vmem, size = 0x4000, scoped, tag = 'input window, operand 26, single buffered']
    #allocation30 [shape = 's32[1]{0}', space=sflag, size = 0x4, scoped, tag = 'scoped memory for hybrid_forward.1']
    #allocation31 [shape = 'u8[512]{0}', space=vmem, size = 0x400, scoped, tag = 'input window, operand 27, single buffered']
    #allocation32 [shape = 'u8[65536]{0}', space=vmem, size = 0x10000, scoped, tag = 'input window, operand 28, single buffered']
    #allocation33 [shape = 's32[1]{0}', space=sflag, size = 0x4, scoped, tag = 'scoped memory for hybrid_forward.1']
    #allocation34 [shape = 'u8[32768]{0}', space=vmem, size = 0x8000, scoped, tag = 'input window, operand 29, single buffered']
    #allocation35 [shape = 'u8[512]{0}', space=vmem, size = 0x400, scoped, tag = 'input window, operand 30, single buffered']
    #allocation36 [shape = 's32[1]{0}', space=sflag, size = 0x4, scoped, tag = 'scoped memory for hybrid_forward.1']
    #allocation37 [shape = 'u8[32768]{0}', space=vmem, size = 0x8000, scoped, tag = 'input window, operand 31, single buffered']
    #allocation38 [shape = 'u8[512]{0}', space=vmem, size = 0x400, scoped, tag = 'input window, operand 33, single buffered']
    #allocation39 [shape = 's32[1]{0}', space=sflag, size = 0x4, scoped, tag = 'scoped memory for hybrid_forward.1']
    #allocation40 [shape = 'u8[65536]{0}', space=vmem, size = 0x10000, scoped, tag = 'input window, operand 34, single buffered']
    #allocation41 [shape = 'u8[32768]{0}', space=vmem, size = 0x8000, scoped, tag = 'input window, operand 35, single buffered']
    #allocation42 [shape = 's32[1]{0}', space=sflag, size = 0x4, scoped, tag = 'scoped memory for hybrid_forward.1']
    #allocation43 [shape = 'u8[512]{0}', space=vmem, size = 0x400, scoped, tag = 'input window, operand 36, single buffered']
    #allocation44 [shape = 'u8[65536]{0}', space=vmem, size = 0x10000, scoped, tag = 'input window, operand 37, single buffered']
    #allocation45 [shape = 's32[1]{0}', space=sflag, size = 0x4, scoped, tag = 'scoped memory for hybrid_forward.1']
    #allocation46 [shape = 'u8[32768]{0}', space=vmem, size = 0x8000, scoped, tag = 'output window, operand 0']
    %82 = vsyncpa [#allocation3], 0
    %83 = vsyncpa [#allocation6], 0
    %84 = vsyncpa [#allocation9], 0
    %85 = vsyncpa [#allocation12], 0
    %86 = vsyncpa [#allocation15], 0
    %87 = vsyncpa [#allocation18], 0
    %88 = vsyncpa [#allocation21], 0
    %89 = vsyncpa [#allocation24], 0
    %90 = vsyncpa [#allocation27], 0
    %91 = vsyncpa [#allocation30], 0
    %92 = vsyncpa [#allocation33], 0
    %93 = vsyncpa [#allocation36], 0
    %94 = vsyncpa [#allocation39], 0
    %95 = vsyncpa [#allocation42], 0
    %96 = vsyncpa [#allocation45], 0
    %97 = vsyncpa [#allocation4], 0
    %s98 = scalar_lea.sflag [#allocation4], 1
    %99 = vsyncpa %s98, 0
    loop: start=0, step=1, limit=4
    $region2: #{hybrid_forward.1} parent=1 // loop_pre_header
      _
    $region3: #{hybrid_forward.1} parent=1 // loop_header
      %s101 = sphi 0, %s105
      %p102 = scmp.ge.s32.totalorder %s101, 4
      %s109 = sphi 0, %s109
      %s111 = sphi 0, %s109
      %s112 = sphi 0, %s111
      %s126 = sphi 0, %s112
      %s132 = sphi 0, %s134
      %s135 = sphi 0, %s132
      %s136 = sphi 0, %s135
      %s152 = sphi 0, %s136
      %s156 = sphi 0, %s156
      %s158 = sphi 0, %s156
      %s159 = sphi 0, %s158
      %s173 = sphi 0, %s159
      %s177 = sphi 0, %s177
      %s179 = sphi 0, %s177
      %s180 = sphi 0, %s179
      %s194 = sphi 0, %s180
      %s198 = sphi 0, %s198
      %s200 = sphi 0, %s198
      %s201 = sphi 0, %s200
      %s215 = sphi 0, %s201
      %s219 = sphi 0, %s219
      %s221 = sphi 0, %s219
      %s222 = sphi 0, %s221
      %s236 = sphi 0, %s222
      %s240 = sphi 0, %s240
      %s242 = sphi 0, %s240
      %s243 = sphi 0, %s242
      %s257 = sphi 0, %s243
      %s261 = sphi 0, %s261
      %s263 = sphi 0, %s261
      %s264 = sphi 0, %s263
      %s278 = sphi 0, %s264
      %s282 = sphi 0, %s282
      %s284 = sphi 0, %s282
      %s285 = sphi 0, %s284
      %s299 = sphi 0, %s285
      %s303 = sphi 0, %s303
      %s305 = sphi 0, %s303
      %s306 = sphi 0, %s305
      %s320 = sphi 0, %s306
      %s324 = sphi 0, %s324
      %s326 = sphi 0, %s324
      %s327 = sphi 0, %s326
      %s341 = sphi 0, %s327
      %s345 = sphi 0, %s345
      %s347 = sphi 0, %s345
      %s348 = sphi 0, %s347
      %s362 = sphi 0, %s348
      %s366 = sphi 0, %s366
      %s368 = sphi 0, %s366
      %s369 = sphi 0, %s368
      %s383 = sphi 0, %s369
      %s387 = sphi 0, %s387
      %s389 = sphi 0, %s387
      %s390 = sphi 0, %s389
      %s404 = sphi 0, %s390
      %s408 = sphi 0, %s408
      %s410 = sphi 0, %s408
      %s411 = sphi 0, %s410
      %s425 = sphi 0, %s411
      %s429 = sphi 0, %s429
      %s431 = sphi 0, %s429
      %s432 = sphi 0, %s431
      %s446 = sphi 0, %s432
      %s450 = sphi 0, %s450
      %s452 = sphi 0, %s450
      %s453 = sphi 0, %s452
      %s467 = sphi 0, %s453
      %s471 = sphi 0, %s471
      %s473 = sphi 0, %s471
      %s474 = sphi 0, %s473
      %s488 = sphi 0, %s474
      %s492 = sphi 0, %s492
      %s494 = sphi 0, %s492
      %s495 = sphi 0, %s494
      %s509 = sphi 0, %s495
      %s513 = sphi 0, %s513
      %s515 = sphi 0, %s513
      %s516 = sphi 0, %s515
      %s530 = sphi 0, %s516
      %s534 = sphi 0, %s534
      %s536 = sphi 0, %s534
      %s537 = sphi 0, %s536
      %s551 = sphi 0, %s537
      %s555 = sphi 0, %s555
      %s557 = sphi 0, %s555
      %s558 = sphi 0, %s557
      %s572 = sphi 0, %s558
      %s576 = sphi 0, %s576
      %s578 = sphi 0, %s576
      %s579 = sphi 0, %s578
      %s593 = sphi 0, %s579
      %s597 = sphi 0, %s597
      %s599 = sphi 0, %s597
      %s600 = sphi 0, %s599
      %s614 = sphi 0, %s600
      %s618 = sphi 0, %s618
      %s620 = sphi 0, %s618
      %s621 = sphi 0, %s620
      %s635 = sphi 0, %s621
      %s639 = sphi 0, %s639
      %s641 = sphi 0, %s639
      %s642 = sphi 0, %s641
      %s656 = sphi 0, %s642
      %s660 = sphi 0, %s660
      %s662 = sphi 0, %s660
      %s663 = sphi 0, %s662
      %s677 = sphi 0, %s663
      %s681 = sphi 0, %s681
      %s683 = sphi 0, %s681
      %s684 = sphi 0, %s683
      %s698 = sphi 0, %s684
      %s702 = sphi 0, %s702
      %s704 = sphi 0, %s702
      %s705 = sphi 0, %s704
      %s719 = sphi 0, %s705
      %s723 = sphi 0, %s723
      %s725 = sphi 0, %s723
      %s726 = sphi 0, %s725
      %s740 = sphi 0, %s726
      %s744 = sphi 0, %s744
      %s746 = sphi 0, %s744
      %s747 = sphi 0, %s746
      %s761 = sphi 0, %s747
      %s765 = sphi 0, %s765
      %s767 = sphi 0, %s765
      %s768 = sphi 0, %s767
      %s782 = sphi 0, %s768
      %s786 = sphi 0, %s786
      %s788 = sphi 0, %s786
      %s789 = sphi 0, %s788
      %s803 = sphi 0, %s789
      %s807 = sphi 0, %s807
      %s809 = sphi 0, %s807
      %s810 = sphi 0, %s809
      %s824 = sphi 0, %s810
      %s828 = sphi 0, %s828
      %s830 = sphi 0, %s828
      %s831 = sphi 0, %s830
      %s845 = sphi 0, %s831
      %s849 = sphi 0, %s849
      %s851 = sphi 0, %s849
      %s852 = sphi 0, %s851
      %s866 = sphi 0, %s852
      %s870 = sphi 0, %s870
      %s872 = sphi 0, %s870
      %s873 = sphi 0, %s872
      %s887 = sphi 0, %s873
      %s891 = sphi 0, %s891
      %s893 = sphi 0, %s891
      %s894 = sphi 0, %s893
      %s908 = sphi 0, %s894
      %s914 = sphi 0, %s916
      %s917 = sphi 0, %s914
      %s918 = sphi 0, %s917
      %s934 = sphi 0, %s918
    $region4: #{hybrid_forward.1} parent=1 // loop_header_branch
      %104 = sbr.rel (%p102) target = $region8
    $region5: #{hybrid_forward.1} parent=1 // loop_body
      %s106 = ssub.s32 %s101, 1
      %s107 = ssub.s32 %s101, 2
      %s108 = sadd.s32 %s101, 1
      %s110 = sadd.s32 %s109, 1
      %p113 = scmp.eq.s32.totalorder %s101, 1
      %p114 = scmp.ne.s32.totalorder %s109, %s111
      %p115 = scmp.eq.s32.totalorder %s101, 0
      %p116 = por %p114, %p115
      %p117 = scmp.ne.s32.totalorder %s109, %s111
      %p118 = scmp.eq.s32.totalorder %s106, 1
      %p119 = por %p117, %p118
      %p120 = scmp.ne.s32.totalorder %s111, %s112
      %p121 = scmp.eq.s32.totalorder %s106, 0
      %p122 = por %p120, %p121
      %p123 = scmp.ne.s32.totalorder %s111, %s112
      %p124 = scmp.eq.s32.totalorder %s107, 1
      %p125 = por %p123, %p124
      %p127 = scmp.ne.s32.totalorder %s112, %s126
      %p128 = scmp.eq.s32.totalorder %s107, 0
      %p129 = por %p127, %p128
      %s130 = ssub.s32 %s101, %s108
      %p131 = scmp.eq.s32.totalorder %s130, 0
      %s133 = sadd.s32 %s132, 1
      %s134 = scalar_select %p131, %s132, %s133
      %p137 = pneg %p131
      %p138 = scmp.eq.s32.totalorder %s101, 1
      %p139 = por %p137, %p138
      %p140 = scmp.ne.s32.totalorder %s132, %s135
      %p141 = scmp.eq.s32.totalorder %s101, 0
      %p142 = por %p140, %p141
      %p143 = scmp.ne.s32.totalorder %s132, %s135
      %p144 = scmp.eq.s32.totalorder %s106, 1
      %p145 = por %p143, %p144
      %p146 = scmp.ne.s32.totalorder %s135, %s136
      %p147 = scmp.eq.s32.totalorder %s106, 0
      %p148 = por %p146, %p147
      %p149 = scmp.ne.s32.totalorder %s135, %s136
      %p150 = scmp.eq.s32.totalorder %s107, 1
      %p151 = por %p149, %p150
      %p153 = scmp.ne.s32.totalorder %s136, %s152
      %p154 = scmp.eq.s32.totalorder %s107, 0
      %p155 = por %p153, %p154
      %s157 = sadd.s32 %s156, 1
      %p160 = scmp.eq.s32.totalorder %s101, 1
      %p161 = scmp.ne.s32.totalorder %s156, %s158
      %p162 = scmp.eq.s32.totalorder %s101, 0
      %p163 = por %p161, %p162
      %p164 = scmp.ne.s32.totalorder %s156, %s158
      %p165 = scmp.eq.s32.totalorder %s106, 1
      %p166 = por %p164, %p165
      %p167 = scmp.ne.s32.totalorder %s158, %s159
      %p168 = scmp.eq.s32.totalorder %s106, 0
      %p169 = por %p167, %p168
      %p170 = scmp.ne.s32.totalorder %s158, %s159
      %p171 = scmp.eq.s32.totalorder %s107, 1
      %p172 = por %p170, %p171
      %p174 = scmp.ne.s32.totalorder %s159, %s173
      %p175 = scmp.eq.s32.totalorder %s107, 0
      %p176 = por %p174, %p175
      %s178 = sadd.s32 %s177, 1
      %p181 = scmp.eq.s32.totalorder %s101, 1
      %p182 = scmp.ne.s32.totalorder %s177, %s179
      %p183 = scmp.eq.s32.totalorder %s101, 0
      %p184 = por %p182, %p183
      %p185 = scmp.ne.s32.totalorder %s177, %s179
      %p186 = scmp.eq.s32.totalorder %s106, 1
      %p187 = por %p185, %p186
      %p188 = scmp.ne.s32.totalorder %s179, %s180
      %p189 = scmp.eq.s32.totalorder %s106, 0
      %p190 = por %p188, %p189
      %p191 = scmp.ne.s32.totalorder %s179, %s180
      %p192 = scmp.eq.s32.totalorder %s107, 1
      %p193 = por %p191, %p192
      %p195 = scmp.ne.s32.totalorder %s180, %s194
      %p196 = scmp.eq.s32.totalorder %s107, 0
      %p197 = por %p195, %p196
      %s199 = sadd.s32 %s198, 1
      %p202 = scmp.eq.s32.totalorder %s101, 1
      %p203 = scmp.ne.s32.totalorder %s198, %s200
      %p204 = scmp.eq.s32.totalorder %s101, 0
      %p205 = por %p203, %p204
      %p206 = scmp.ne.s32.totalorder %s198, %s200
      %p207 = scmp.eq.s32.totalorder %s106, 1
      %p208 = por %p206, %p207
      %p209 = scmp.ne.s32.totalorder %s200, %s201
      %p210 = scmp.eq.s32.totalorder %s106, 0
      %p211 = por %p209, %p210
      %p212 = scmp.ne.s32.totalorder %s200, %s201
      %p213 = scmp.eq.s32.totalorder %s107, 1
      %p214 = por %p212, %p213
      %p216 = scmp.ne.s32.totalorder %s201, %s215
      %p217 = scmp.eq.s32.totalorder %s107, 0
      %p218 = por %p216, %p217
      %s220 = sadd.s32 %s219, 1
      %p223 = scmp.eq.s32.totalorder %s101, 1
      %p224 = scmp.ne.s32.totalorder %s219, %s221
      %p225 = scmp.eq.s32.totalorder %s101, 0
      %p226 = por %p224, %p225
      %p227 = scmp.ne.s32.totalorder %s219, %s221
      %p228 = scmp.eq.s32.totalorder %s106, 1
      %p229 = por %p227, %p228
      %p230 = scmp.ne.s32.totalorder %s221, %s222
      %p231 = scmp.eq.s32.totalorder %s106, 0
      %p232 = por %p230, %p231
      %p233 = scmp.ne.s32.totalorder %s221, %s222
      %p234 = scmp.eq.s32.totalorder %s107, 1
      %p235 = por %p233, %p234
      %p237 = scmp.ne.s32.totalorder %s222, %s236
      %p238 = scmp.eq.s32.totalorder %s107, 0
      %p239 = por %p237, %p238
      %s241 = sadd.s32 %s240, 1
      %p244 = scmp.eq.s32.totalorder %s101, 1
      %p245 = scmp.ne.s32.totalorder %s240, %s242
      %p246 = scmp.eq.s32.totalorder %s101, 0
      %p247 = por %p245, %p246
      %p248 = scmp.ne.s32.totalorder %s240, %s242
      %p249 = scmp.eq.s32.totalorder %s106, 1
      %p250 = por %p248, %p249
      %p251 = scmp.ne.s32.totalorder %s242, %s243
      %p252 = scmp.eq.s32.totalorder %s106, 0
      %p253 = por %p251, %p252
      %p254 = scmp.ne.s32.totalorder %s242, %s243
      %p255 = scmp.eq.s32.totalorder %s107, 1
      %p256 = por %p254, %p255
      %p258 = scmp.ne.s32.totalorder %s243, %s257
      %p259 = scmp.eq.s32.totalorder %s107, 0
      %p260 = por %p258, %p259
      %s262 = sadd.s32 %s261, 1
      %p265 = scmp.eq.s32.totalorder %s101, 1
      %p266 = scmp.ne.s32.totalorder %s261, %s263
      %p267 = scmp.eq.s32.totalorder %s101, 0
      %p268 = por %p266, %p267
      %p269 = scmp.ne.s32.totalorder %s261, %s263
      %p270 = scmp.eq.s32.totalorder %s106, 1
      %p271 = por %p269, %p270
      %p272 = scmp.ne.s32.totalorder %s263, %s264
      %p273 = scmp.eq.s32.totalorder %s106, 0
      %p274 = por %p272, %p273
      %p275 = scmp.ne.s32.totalorder %s263, %s264
      %p276 = scmp.eq.s32.totalorder %s107, 1
      %p277 = por %p275, %p276
      %p279 = scmp.ne.s32.totalorder %s264, %s278
      %p280 = scmp.eq.s32.totalorder %s107, 0
      %p281 = por %p279, %p280
      %s283 = sadd.s32 %s282, 1
      %p286 = scmp.eq.s32.totalorder %s101, 1
      %p287 = scmp.ne.s32.totalorder %s282, %s284
      %p288 = scmp.eq.s32.totalorder %s101, 0
      %p289 = por %p287, %p288
      %p290 = scmp.ne.s32.totalorder %s282, %s284
      %p291 = scmp.eq.s32.totalorder %s106, 1
      %p292 = por %p290, %p291
      %p293 = scmp.ne.s32.totalorder %s284, %s285
      %p294 = scmp.eq.s32.totalorder %s106, 0
      %p295 = por %p293, %p294
      %p296 = scmp.ne.s32.totalorder %s284, %s285
      %p297 = scmp.eq.s32.totalorder %s107, 1
      %p298 = por %p296, %p297
      %p300 = scmp.ne.s32.totalorder %s285, %s299
      %p301 = scmp.eq.s32.totalorder %s107, 0
      %p302 = por %p300, %p301
      %s304 = sadd.s32 %s303, 1
      %p307 = scmp.eq.s32.totalorder %s101, 1
      %p308 = scmp.ne.s32.totalorder %s303, %s305
      %p309 = scmp.eq.s32.totalorder %s101, 0
      %p310 = por %p308, %p309
      %p311 = scmp.ne.s32.totalorder %s303, %s305
      %p312 = scmp.eq.s32.totalorder %s106, 1
      %p313 = por %p311, %p312
      %p314 = scmp.ne.s32.totalorder %s305, %s306
      %p315 = scmp.eq.s32.totalorder %s106, 0
      %p316 = por %p314, %p315
      %p317 = scmp.ne.s32.totalorder %s305, %s306
      %p318 = scmp.eq.s32.totalorder %s107, 1
      %p319 = por %p317, %p318
      %p321 = scmp.ne.s32.totalorder %s306, %s320
      %p322 = scmp.eq.s32.totalorder %s107, 0
      %p323 = por %p321, %p322
      %s325 = sadd.s32 %s324, 1
      %p328 = scmp.eq.s32.totalorder %s101, 1
      %p329 = scmp.ne.s32.totalorder %s324, %s326
      %p330 = scmp.eq.s32.totalorder %s101, 0
      %p331 = por %p329, %p330
      %p332 = scmp.ne.s32.totalorder %s324, %s326
      %p333 = scmp.eq.s32.totalorder %s106, 1
      %p334 = por %p332, %p333
      %p335 = scmp.ne.s32.totalorder %s326, %s327
      %p336 = scmp.eq.s32.totalorder %s106, 0
      %p337 = por %p335, %p336
      %p338 = scmp.ne.s32.totalorder %s326, %s327
      %p339 = scmp.eq.s32.totalorder %s107, 1
      %p340 = por %p338, %p339
      %p342 = scmp.ne.s32.totalorder %s327, %s341
      %p343 = scmp.eq.s32.totalorder %s107, 0
      %p344 = por %p342, %p343
      %s346 = sadd.s32 %s345, 1
      %p349 = scmp.eq.s32.totalorder %s101, 1
      %p350 = scmp.ne.s32.totalorder %s345, %s347
      %p351 = scmp.eq.s32.totalorder %s101, 0
      %p352 = por %p350, %p351
      %p353 = scmp.ne.s32.totalorder %s345, %s347
      %p354 = scmp.eq.s32.totalorder %s106, 1
      %p355 = por %p353, %p354
      %p356 = scmp.ne.s32.totalorder %s347, %s348
      %p357 = scmp.eq.s32.totalorder %s106, 0
      %p358 = por %p356, %p357
      %p359 = scmp.ne.s32.totalorder %s347, %s348
      %p360 = scmp.eq.s32.totalorder %s107, 1
      %p361 = por %p359, %p360
      %p363 = scmp.ne.s32.totalorder %s348, %s362
      %p364 = scmp.eq.s32.totalorder %s107, 0
      %p365 = por %p363, %p364
      %s367 = sadd.s32 %s366, 1
      %p370 = scmp.eq.s32.totalorder %s101, 1
      %p371 = scmp.ne.s32.totalorder %s366, %s368
      %p372 = scmp.eq.s32.totalorder %s101, 0
      %p373 = por %p371, %p372
      %p374 = scmp.ne.s32.totalorder %s366, %s368
      %p375 = scmp.eq.s32.totalorder %s106, 1
      %p376 = por %p374, %p375
      %p377 = scmp.ne.s32.totalorder %s368, %s369
      %p378 = scmp.eq.s32.totalorder %s106, 0
      %p379 = por %p377, %p378
      %p380 = scmp.ne.s32.totalorder %s368, %s369
      %p381 = scmp.eq.s32.totalorder %s107, 1
      %p382 = por %p380, %p381
      %p384 = scmp.ne.s32.totalorder %s369, %s383
      %p385 = scmp.eq.s32.totalorder %s107, 0
      %p386 = por %p384, %p385
      %s388 = sadd.s32 %s387, 1
      %p391 = scmp.eq.s32.totalorder %s101, 1
      %p392 = scmp.ne.s32.totalorder %s387, %s389
      %p393 = scmp.eq.s32.totalorder %s101, 0
      %p394 = por %p392, %p393
      %p395 = scmp.ne.s32.totalorder %s387, %s389
      %p396 = scmp.eq.s32.totalorder %s106, 1
      %p397 = por %p395, %p396
      %p398 = scmp.ne.s32.totalorder %s389, %s390
      %p399 = scmp.eq.s32.totalorder %s106, 0
      %p400 = por %p398, %p399
      %p401 = scmp.ne.s32.totalorder %s389, %s390
      %p402 = scmp.eq.s32.totalorder %s107, 1
      %p403 = por %p401, %p402
      %p405 = scmp.ne.s32.totalorder %s390, %s404
      %p406 = scmp.eq.s32.totalorder %s107, 0
      %p407 = por %p405, %p406
      %s409 = sadd.s32 %s408, 1
      %p412 = scmp.eq.s32.totalorder %s101, 1
      %p413 = scmp.ne.s32.totalorder %s408, %s410
      %p414 = scmp.eq.s32.totalorder %s101, 0
      %p415 = por %p413, %p414
      %p416 = scmp.ne.s32.totalorder %s408, %s410
      %p417 = scmp.eq.s32.totalorder %s106, 1
      %p418 = por %p416, %p417
      %p419 = scmp.ne.s32.totalorder %s410, %s411
      %p420 = scmp.eq.s32.totalorder %s106, 0
      %p421 = por %p419, %p420
      %p422 = scmp.ne.s32.totalorder %s410, %s411
      %p423 = scmp.eq.s32.totalorder %s107, 1
      %p424 = por %p422, %p423
      %p426 = scmp.ne.s32.totalorder %s411, %s425
      %p427 = scmp.eq.s32.totalorder %s107, 0
      %p428 = por %p426, %p427
      %s430 = sadd.s32 %s429, 1
      %p433 = scmp.eq.s32.totalorder %s101, 1
      %p434 = scmp.ne.s32.totalorder %s429, %s431
      %p435 = scmp.eq.s32.totalorder %s101, 0
      %p436 = por %p434, %p435
      %p437 = scmp.ne.s32.totalorder %s429, %s431
      %p438 = scmp.eq.s32.totalorder %s106, 1
      %p439 = por %p437, %p438
      %p440 = scmp.ne.s32.totalorder %s431, %s432
      %p441 = scmp.eq.s32.totalorder %s106, 0
      %p442 = por %p440, %p441
      %p443 = scmp.ne.s32.totalorder %s431, %s432
      %p444 = scmp.eq.s32.totalorder %s107, 1
      %p445 = por %p443, %p444
      %p447 = scmp.ne.s32.totalorder %s432, %s446
      %p448 = scmp.eq.s32.totalorder %s107, 0
      %p449 = por %p447, %p448
      %s451 = sadd.s32 %s450, 1
      %p454 = scmp.eq.s32.totalorder %s101, 1
      %p455 = scmp.ne.s32.totalorder %s450, %s452
      %p456 = scmp.eq.s32.totalorder %s101, 0
      %p457 = por %p455, %p456
      %p458 = scmp.ne.s32.totalorder %s450, %s452
      %p459 = scmp.eq.s32.totalorder %s106, 1
      %p460 = por %p458, %p459
      %p461 = scmp.ne.s32.totalorder %s452, %s453
      %p462 = scmp.eq.s32.totalorder %s106, 0
      %p463 = por %p461, %p462
      %p464 = scmp.ne.s32.totalorder %s452, %s453
      %p465 = scmp.eq.s32.totalorder %s107, 1
      %p466 = por %p464, %p465
      %p468 = scmp.ne.s32.totalorder %s453, %s467
      %p469 = scmp.eq.s32.totalorder %s107, 0
      %p470 = por %p468, %p469
      %s472 = sadd.s32 %s471, 1
      %p475 = scmp.eq.s32.totalorder %s101, 1
      %p476 = scmp.ne.s32.totalorder %s471, %s473
      %p477 = scmp.eq.s32.totalorder %s101, 0
      %p478 = por %p476, %p477
      %p479 = scmp.ne.s32.totalorder %s471, %s473
      %p480 = scmp.eq.s32.totalorder %s106, 1
      %p481 = por %p479, %p480
      %p482 = scmp.ne.s32.totalorder %s473, %s474
      %p483 = scmp.eq.s32.totalorder %s106, 0
      %p484 = por %p482, %p483
      %p485 = scmp.ne.s32.totalorder %s473, %s474
      %p486 = scmp.eq.s32.totalorder %s107, 1
      %p487 = por %p485, %p486
      %p489 = scmp.ne.s32.totalorder %s474, %s488
      %p490 = scmp.eq.s32.totalorder %s107, 0
      %p491 = por %p489, %p490
      %s493 = sadd.s32 %s492, 1
      %p496 = scmp.eq.s32.totalorder %s101, 1
      %p497 = scmp.ne.s32.totalorder %s492, %s494
      %p498 = scmp.eq.s32.totalorder %s101, 0
      %p499 = por %p497, %p498
      %p500 = scmp.ne.s32.totalorder %s492, %s494
      %p501 = scmp.eq.s32.totalorder %s106, 1
      %p502 = por %p500, %p501
      %p503 = scmp.ne.s32.totalorder %s494, %s495
      %p504 = scmp.eq.s32.totalorder %s106, 0
      %p505 = por %p503, %p504
      %p506 = scmp.ne.s32.totalorder %s494, %s495
      %p507 = scmp.eq.s32.totalorder %s107, 1
      %p508 = por %p506, %p507
      %p510 = scmp.ne.s32.totalorder %s495, %s509
      %p511 = scmp.eq.s32.totalorder %s107, 0
      %p512 = por %p510, %p511
      %s514 = sadd.s32 %s513, 1
      %p517 = scmp.eq.s32.totalorder %s101, 1
      %p518 = scmp.ne.s32.totalorder %s513, %s515
      %p519 = scmp.eq.s32.totalorder %s101, 0
      %p520 = por %p518, %p519
      %p521 = scmp.ne.s32.totalorder %s513, %s515
      %p522 = scmp.eq.s32.totalorder %s106, 1
      %p523 = por %p521, %p522
      %p524 = scmp.ne.s32.totalorder %s515, %s516
      %p525 = scmp.eq.s32.totalorder %s106, 0
      %p526 = por %p524, %p525
      %p527 = scmp.ne.s32.totalorder %s515, %s516
      %p528 = scmp.eq.s32.totalorder %s107, 1
      %p529 = por %p527, %p528
      %p531 = scmp.ne.s32.totalorder %s516, %s530
      %p532 = scmp.eq.s32.totalorder %s107, 0
      %p533 = por %p531, %p532
      %s535 = sadd.s32 %s534, 1
      %p538 = scmp.eq.s32.totalorder %s101, 1
      %p539 = scmp.ne.s32.totalorder %s534, %s536
      %p540 = scmp.eq.s32.totalorder %s101, 0
      %p541 = por %p539, %p540
      %p542 = scmp.ne.s32.totalorder %s534, %s536
      %p543 = scmp.eq.s32.totalorder %s106, 1
      %p544 = por %p542, %p543
      %p545 = scmp.ne.s32.totalorder %s536, %s537
      %p546 = scmp.eq.s32.totalorder %s106, 0
      %p547 = por %p545, %p546
      %p548 = scmp.ne.s32.totalorder %s536, %s537
      %p549 = scmp.eq.s32.totalorder %s107, 1
      %p550 = por %p548, %p549
      %p552 = scmp.ne.s32.totalorder %s537, %s551
      %p553 = scmp.eq.s32.totalorder %s107, 0
      %p554 = por %p552, %p553
      %s556 = sadd.s32 %s555, 1
      %p559 = scmp.eq.s32.totalorder %s101, 1
      %p560 = scmp.ne.s32.totalorder %s555, %s557
      %p561 = scmp.eq.s32.totalorder %s101, 0
      %p562 = por %p560, %p561
      %p563 = scmp.ne.s32.totalorder %s555, %s557
      %p564 = scmp.eq.s32.totalorder %s106, 1
      %p565 = por %p563, %p564
      %p566 = scmp.ne.s32.totalorder %s557, %s558
      %p567 = scmp.eq.s32.totalorder %s106, 0
      %p568 = por %p566, %p567
      %p569 = scmp.ne.s32.totalorder %s557, %s558
      %p570 = scmp.eq.s32.totalorder %s107, 1
      %p571 = por %p569, %p570
      %p573 = scmp.ne.s32.totalorder %s558, %s572
      %p574 = scmp.eq.s32.totalorder %s107, 0
      %p575 = por %p573, %p574
      %s577 = sadd.s32 %s576, 1
      %p580 = scmp.eq.s32.totalorder %s101, 1
      %p581 = scmp.ne.s32.totalorder %s576, %s578
      %p582 = scmp.eq.s32.totalorder %s101, 0
      %p583 = por %p581, %p582
      %p584 = scmp.ne.s32.totalorder %s576, %s578
      %p585 = scmp.eq.s32.totalorder %s106, 1
      %p586 = por %p584, %p585
      %p587 = scmp.ne.s32.totalorder %s578, %s579
      %p588 = scmp.eq.s32.totalorder %s106, 0
      %p589 = por %p587, %p588
      %p590 = scmp.ne.s32.totalorder %s578, %s579
      %p591 = scmp.eq.s32.totalorder %s107, 1
      %p592 = por %p590, %p591
      %p594 = scmp.ne.s32.totalorder %s579, %s593
      %p595 = scmp.eq.s32.totalorder %s107, 0
      %p596 = por %p594, %p595
      %s598 = sadd.s32 %s597, 1
      %p601 = scmp.eq.s32.totalorder %s101, 1
      %p602 = scmp.ne.s32.totalorder %s597, %s599
      %p603 = scmp.eq.s32.totalorder %s101, 0
      %p604 = por %p602, %p603
      %p605 = scmp.ne.s32.totalorder %s597, %s599
      %p606 = scmp.eq.s32.totalorder %s106, 1
      %p607 = por %p605, %p606
      %p608 = scmp.ne.s32.totalorder %s599, %s600
      %p609 = scmp.eq.s32.totalorder %s106, 0
      %p610 = por %p608, %p609
      %p611 = scmp.ne.s32.totalorder %s599, %s600
      %p612 = scmp.eq.s32.totalorder %s107, 1
      %p613 = por %p611, %p612
      %p615 = scmp.ne.s32.totalorder %s600, %s614
      %p616 = scmp.eq.s32.totalorder %s107, 0
      %p617 = por %p615, %p616
      %s619 = sadd.s32 %s618, 1
      %p622 = scmp.eq.s32.totalorder %s101, 1
      %p623 = scmp.ne.s32.totalorder %s618, %s620
      %p624 = scmp.eq.s32.totalorder %s101, 0
      %p625 = por %p623, %p624
      %p626 = scmp.ne.s32.totalorder %s618, %s620
      %p627 = scmp.eq.s32.totalorder %s106, 1
      %p628 = por %p626, %p627
      %p629 = scmp.ne.s32.totalorder %s620, %s621
      %p630 = scmp.eq.s32.totalorder %s106, 0
      %p631 = por %p629, %p630
      %p632 = scmp.ne.s32.totalorder %s620, %s621
      %p633 = scmp.eq.s32.totalorder %s107, 1
      %p634 = por %p632, %p633
      %p636 = scmp.ne.s32.totalorder %s621, %s635
      %p637 = scmp.eq.s32.totalorder %s107, 0
      %p638 = por %p636, %p637
      %s640 = sadd.s32 %s639, 1
      %p643 = scmp.eq.s32.totalorder %s101, 1
      %p644 = scmp.ne.s32.totalorder %s639, %s641
      %p645 = scmp.eq.s32.totalorder %s101, 0
      %p646 = por %p644, %p645
      %p647 = scmp.ne.s32.totalorder %s639, %s641
      %p648 = scmp.eq.s32.totalorder %s106, 1
      %p649 = por %p647, %p648
      %p650 = scmp.ne.s32.totalorder %s641, %s642
      %p651 = scmp.eq.s32.totalorder %s106, 0
      %p652 = por %p650, %p651
      %p653 = scmp.ne.s32.totalorder %s641, %s642
      %p654 = scmp.eq.s32.totalorder %s107, 1
      %p655 = por %p653, %p654
      %p657 = scmp.ne.s32.totalorder %s642, %s656
      %p658 = scmp.eq.s32.totalorder %s107, 0
      %p659 = por %p657, %p658
      %s661 = sadd.s32 %s660, 1
      %p664 = scmp.eq.s32.totalorder %s101, 1
      %p665 = scmp.ne.s32.totalorder %s660, %s662
      %p666 = scmp.eq.s32.totalorder %s101, 0
      %p667 = por %p665, %p666
      %p668 = scmp.ne.s32.totalorder %s660, %s662
      %p669 = scmp.eq.s32.totalorder %s106, 1
      %p670 = por %p668, %p669
      %p671 = scmp.ne.s32.totalorder %s662, %s663
      %p672 = scmp.eq.s32.totalorder %s106, 0
      %p673 = por %p671, %p672
      %p674 = scmp.ne.s32.totalorder %s662, %s663
      %p675 = scmp.eq.s32.totalorder %s107, 1
      %p676 = por %p674, %p675
      %p678 = scmp.ne.s32.totalorder %s663, %s677
      %p679 = scmp.eq.s32.totalorder %s107, 0
      %p680 = por %p678, %p679
      %s682 = sadd.s32 %s681, 1
      %p685 = scmp.eq.s32.totalorder %s101, 1
      %p686 = scmp.ne.s32.totalorder %s681, %s683
      %p687 = scmp.eq.s32.totalorder %s101, 0
      %p688 = por %p686, %p687
      %p689 = scmp.ne.s32.totalorder %s681, %s683
      %p690 = scmp.eq.s32.totalorder %s106, 1
      %p691 = por %p689, %p690
      %p692 = scmp.ne.s32.totalorder %s683, %s684
      %p693 = scmp.eq.s32.totalorder %s106, 0
      %p694 = por %p692, %p693
      %p695 = scmp.ne.s32.totalorder %s683, %s684
      %p696 = scmp.eq.s32.totalorder %s107, 1
      %p697 = por %p695, %p696
      %p699 = scmp.ne.s32.totalorder %s684, %s698
      %p700 = scmp.eq.s32.totalorder %s107, 0
      %p701 = por %p699, %p700
      %s703 = sadd.s32 %s702, 1
      %p706 = scmp.eq.s32.totalorder %s101, 1
      %p707 = scmp.ne.s32.totalorder %s702, %s704
      %p708 = scmp.eq.s32.totalorder %s101, 0
      %p709 = por %p707, %p708
      %p710 = scmp.ne.s32.totalorder %s702, %s704
      %p711 = scmp.eq.s32.totalorder %s106, 1
      %p712 = por %p710, %p711
      %p713 = scmp.ne.s32.totalorder %s704, %s705
      %p714 = scmp.eq.s32.totalorder %s106, 0
      %p715 = por %p713, %p714
      %p716 = scmp.ne.s32.totalorder %s704, %s705
      %p717 = scmp.eq.s32.totalorder %s107, 1
      %p718 = por %p716, %p717
      %p720 = scmp.ne.s32.totalorder %s705, %s719
      %p721 = scmp.eq.s32.totalorder %s107, 0
      %p722 = por %p720, %p721
      %s724 = sadd.s32 %s723, 1
      %p727 = scmp.eq.s32.totalorder %s101, 1
      %p728 = scmp.ne.s32.totalorder %s723, %s725
      %p729 = scmp.eq.s32.totalorder %s101, 0
      %p730 = por %p728, %p729
      %p731 = scmp.ne.s32.totalorder %s723, %s725
      %p732 = scmp.eq.s32.totalorder %s106, 1
      %p733 = por %p731, %p732
      %p734 = scmp.ne.s32.totalorder %s725, %s726
      %p735 = scmp.eq.s32.totalorder %s106, 0
      %p736 = por %p734, %p735
      %p737 = scmp.ne.s32.totalorder %s725, %s726
      %p738 = scmp.eq.s32.totalorder %s107, 1
      %p739 = por %p737, %p738
      %p741 = scmp.ne.s32.totalorder %s726, %s740
      %p742 = scmp.eq.s32.totalorder %s107, 0
      %p743 = por %p741, %p742
      %s745 = sadd.s32 %s744, 1
      %p748 = scmp.eq.s32.totalorder %s101, 1
      %p749 = scmp.ne.s32.totalorder %s744, %s746
      %p750 = scmp.eq.s32.totalorder %s101, 0
      %p751 = por %p749, %p750
      %p752 = scmp.ne.s32.totalorder %s744, %s746
      %p753 = scmp.eq.s32.totalorder %s106, 1
      %p754 = por %p752, %p753
      %p755 = scmp.ne.s32.totalorder %s746, %s747
      %p756 = scmp.eq.s32.totalorder %s106, 0
      %p757 = por %p755, %p756
      %p758 = scmp.ne.s32.totalorder %s746, %s747
      %p759 = scmp.eq.s32.totalorder %s107, 1
      %p760 = por %p758, %p759
      %p762 = scmp.ne.s32.totalorder %s747, %s761
      %p763 = scmp.eq.s32.totalorder %s107, 0
      %p764 = por %p762, %p763
      %s766 = sadd.s32 %s765, 1
      %p769 = scmp.eq.s32.totalorder %s101, 1
      %p770 = scmp.ne.s32.totalorder %s765, %s767
      %p771 = scmp.eq.s32.totalorder %s101, 0
      %p772 = por %p770, %p771
      %p773 = scmp.ne.s32.totalorder %s765, %s767
      %p774 = scmp.eq.s32.totalorder %s106, 1
      %p775 = por %p773, %p774
      %p776 = scmp.ne.s32.totalorder %s767, %s768
      %p777 = scmp.eq.s32.totalorder %s106, 0
      %p778 = por %p776, %p777
      %p779 = scmp.ne.s32.totalorder %s767, %s768
      %p780 = scmp.eq.s32.totalorder %s107, 1
      %p781 = por %p779, %p780
      %p783 = scmp.ne.s32.totalorder %s768, %s782
      %p784 = scmp.eq.s32.totalorder %s107, 0
      %p785 = por %p783, %p784
      %s787 = sadd.s32 %s786, 1
      %p790 = scmp.eq.s32.totalorder %s101, 1
      %p791 = scmp.ne.s32.totalorder %s786, %s788
      %p792 = scmp.eq.s32.totalorder %s101, 0
      %p793 = por %p791, %p792
      %p794 = scmp.ne.s32.totalorder %s786, %s788
      %p795 = scmp.eq.s32.totalorder %s106, 1
      %p796 = por %p794, %p795
      %p797 = scmp.ne.s32.totalorder %s788, %s789
      %p798 = scmp.eq.s32.totalorder %s106, 0
      %p799 = por %p797, %p798
      %p800 = scmp.ne.s32.totalorder %s788, %s789
      %p801 = scmp.eq.s32.totalorder %s107, 1
      %p802 = por %p800, %p801
      %p804 = scmp.ne.s32.totalorder %s789, %s803
      %p805 = scmp.eq.s32.totalorder %s107, 0
      %p806 = por %p804, %p805
      %s808 = sadd.s32 %s807, 1
      %p811 = scmp.eq.s32.totalorder %s101, 1
      %p812 = scmp.ne.s32.totalorder %s807, %s809
      %p813 = scmp.eq.s32.totalorder %s101, 0
      %p814 = por %p812, %p813
      %p815 = scmp.ne.s32.totalorder %s807, %s809
      %p816 = scmp.eq.s32.totalorder %s106, 1
      %p817 = por %p815, %p816
      %p818 = scmp.ne.s32.totalorder %s809, %s810
      %p819 = scmp.eq.s32.totalorder %s106, 0
      %p820 = por %p818, %p819
      %p821 = scmp.ne.s32.totalorder %s809, %s810
      %p822 = scmp.eq.s32.totalorder %s107, 1
      %p823 = por %p821, %p822
      %p825 = scmp.ne.s32.totalorder %s810, %s824
      %p826 = scmp.eq.s32.totalorder %s107, 0
      %p827 = por %p825, %p826
      %s829 = sadd.s32 %s828, 1
      %p832 = scmp.eq.s32.totalorder %s101, 1
      %p833 = scmp.ne.s32.totalorder %s828, %s830
      %p834 = scmp.eq.s32.totalorder %s101, 0
      %p835 = por %p833, %p834
      %p836 = scmp.ne.s32.totalorder %s828, %s830
      %p837 = scmp.eq.s32.totalorder %s106, 1
      %p838 = por %p836, %p837
      %p839 = scmp.ne.s32.totalorder %s830, %s831
      %p840 = scmp.eq.s32.totalorder %s106, 0
      %p841 = por %p839, %p840
      %p842 = scmp.ne.s32.totalorder %s830, %s831
      %p843 = scmp.eq.s32.totalorder %s107, 1
      %p844 = por %p842, %p843
      %p846 = scmp.ne.s32.totalorder %s831, %s845
      %p847 = scmp.eq.s32.totalorder %s107, 0
      %p848 = por %p846, %p847
      %s850 = sadd.s32 %s849, 1
      %p853 = scmp.eq.s32.totalorder %s101, 1
      %p854 = scmp.ne.s32.totalorder %s849, %s851
      %p855 = scmp.eq.s32.totalorder %s101, 0
      %p856 = por %p854, %p855
      %p857 = scmp.ne.s32.totalorder %s849, %s851
      %p858 = scmp.eq.s32.totalorder %s106, 1
      %p859 = por %p857, %p858
      %p860 = scmp.ne.s32.totalorder %s851, %s852
      %p861 = scmp.eq.s32.totalorder %s106, 0
      %p862 = por %p860, %p861
      %p863 = scmp.ne.s32.totalorder %s851, %s852
      %p864 = scmp.eq.s32.totalorder %s107, 1
      %p865 = por %p863, %p864
      %p867 = scmp.ne.s32.totalorder %s852, %s866
      %p868 = scmp.eq.s32.totalorder %s107, 0
      %p869 = por %p867, %p868
      %s871 = sadd.s32 %s870, 1
      %p874 = scmp.eq.s32.totalorder %s101, 1
      %p875 = scmp.ne.s32.totalorder %s870, %s872
      %p876 = scmp.eq.s32.totalorder %s101, 0
      %p877 = por %p875, %p876
      %p878 = scmp.ne.s32.totalorder %s870, %s872
      %p879 = scmp.eq.s32.totalorder %s106, 1
      %p880 = por %p878, %p879
      %p881 = scmp.ne.s32.totalorder %s872, %s873
      %p882 = scmp.eq.s32.totalorder %s106, 0
      %p883 = por %p881, %p882
      %p884 = scmp.ne.s32.totalorder %s872, %s873
      %p885 = scmp.eq.s32.totalorder %s107, 1
      %p886 = por %p884, %p885
      %p888 = scmp.ne.s32.totalorder %s873, %s887
      %p889 = scmp.eq.s32.totalorder %s107, 0
      %p890 = por %p888, %p889
      %s892 = sadd.s32 %s891, 1
      %p895 = scmp.eq.s32.totalorder %s101, 1
      %p896 = scmp.ne.s32.totalorder %s891, %s893
      %p897 = scmp.eq.s32.totalorder %s101, 0
      %p898 = por %p896, %p897
      %p899 = scmp.ne.s32.totalorder %s891, %s893
      %p900 = scmp.eq.s32.totalorder %s106, 1
      %p901 = por %p899, %p900
      %p902 = scmp.ne.s32.totalorder %s893, %s894
      %p903 = scmp.eq.s32.totalorder %s106, 0
      %p904 = por %p902, %p903
      %p905 = scmp.ne.s32.totalorder %s893, %s894
      %p906 = scmp.eq.s32.totalorder %s107, 1
      %p907 = por %p905, %p906
      %p909 = scmp.ne.s32.totalorder %s894, %s908
      %p910 = scmp.eq.s32.totalorder %s107, 0
      %p911 = por %p909, %p910
      %s912 = ssub.s32 %s101, %s108
      %p913 = scmp.eq.s32.totalorder %s912, 0
      %s915 = sadd.s32 %s914, 1
      %s916 = scalar_select %p913, %s914, %s915
      %p919 = pneg %p913
      %p920 = scmp.eq.s32.totalorder %s101, 1
      %p921 = por %p919, %p920
      %p922 = scmp.ne.s32.totalorder %s914, %s917
      %p923 = scmp.eq.s32.totalorder %s101, 0
      %p924 = por %p922, %p923
      %p925 = scmp.ne.s32.totalorder %s914, %s917
      %p926 = scmp.eq.s32.totalorder %s106, 1
      %p927 = por %p925, %p926
      %p928 = scmp.ne.s32.totalorder %s917, %s918
      %p929 = scmp.eq.s32.totalorder %s106, 0
      %p930 = por %p928, %p929
      %p931 = scmp.ne.s32.totalorder %s917, %s918
      %p932 = scmp.eq.s32.totalorder %s107, 1
      %p933 = por %p931, %p932
      %p935 = scmp.ne.s32.totalorder %s918, %s934
      %p936 = scmp.eq.s32.totalorder %s107, 0
      %p937 = por %p935, %p936
      %p938 = scmp.le.s32.totalorder 1, %s101
      %p939 = scmp.lt.s32.totalorder %s101, 3
      %p940 = pnand %p938, %p939
      %p941 = pneg %p940
      // Predicated region
      $region9: #{hybrid_forward.1} parent=5 // pred_check
        _
      $region10: #{hybrid_forward.1} parent=5 // pred_check_branch
        %943 = sbr.rel (%p940) target = $region12
      $region11: #{hybrid_forward.1} parent=5 // pred_region
        %s944 = ssub.s32 %s101, 1
        // Predicated region
        $region13: #{hybrid_forward.1} parent=11 // pred_check
          %p945 = pneg %p122
        $region14: #{hybrid_forward.1} parent=11 // pred_check_branch
          %947 = sbr.rel (%p945) target = $region16
        $region15: #{hybrid_forward.1} parent=11 // pred_region
          _
        $region16: #{hybrid_forward.1} parent=11 // pred_fallthru
          _
        // Predicated region
        $region17: #{hybrid_forward.1} parent=11 // pred_check
          %p948 = pneg %p169
        $region18: #{hybrid_forward.1} parent=11 // pred_check_branch
          %950 = sbr.rel (%p948) target = $region20
        $region19: #{hybrid_forward.1} parent=11 // pred_region
          _
        $region20: #{hybrid_forward.1} parent=11 // pred_fallthru
          _
        // Predicated region
        $region21: #{hybrid_forward.1} parent=11 // pred_check
          %p951 = pneg %p190
        $region22: #{hybrid_forward.1} parent=11 // pred_check_branch
          %953 = sbr.rel (%p951) target = $region24
        $region23: #{hybrid_forward.1} parent=11 // pred_region
          _
        $region24: #{hybrid_forward.1} parent=11 // pred_fallthru
          _
        // Predicated region
        $region25: #{hybrid_forward.1} parent=11 // pred_check
          %p954 = pneg %p211
        $region26: #{hybrid_forward.1} parent=11 // pred_check_branch
          %956 = sbr.rel (%p954) target = $region28
        $region27: #{hybrid_forward.1} parent=11 // pred_region
          _
        $region28: #{hybrid_forward.1} parent=11 // pred_fallthru
          _
        // Predicated region
        $region29: #{hybrid_forward.1} parent=11 // pred_check
          %p957 = pneg %p232
        $region30: #{hybrid_forward.1} parent=11 // pred_check_branch
          %959 = sbr.rel (%p957) target = $region32
        $region31: #{hybrid_forward.1} parent=11 // pred_region
          _
        $region32: #{hybrid_forward.1} parent=11 // pred_fallthru
          _
        // Predicated region
        $region33: #{hybrid_forward.1} parent=11 // pred_check
          %p960 = pneg %p253
        $region34: #{hybrid_forward.1} parent=11 // pred_check_branch
          %962 = sbr.rel (%p960) target = $region36
        $region35: #{hybrid_forward.1} parent=11 // pred_region
          %964 = vsyncadd [#allocation3], 0
          %s966 = sshll.u32 %s13, 4
          %s967 = int_to_ptr.hbm [resolvable:$true] %s966
          %s968 = sshll.u32 [#allocation2], 4
          %s969 = int_to_ptr.vmem [resolvable:$true] %s968
          %971 = dma.hbm_to_vmem [thread:$0]  %s967, 16, %s969, [#allocation3]
        $region36: #{hybrid_forward.1} parent=11 // pred_fallthru
          _
        // Predicated region
        $region37: #{hybrid_forward.1} parent=11 // pred_check
          %p972 = pneg %p274
        $region38: #{hybrid_forward.1} parent=11 // pred_check_branch
          %974 = sbr.rel (%p972) target = $region40
        $region39: #{hybrid_forward.1} parent=11 // pred_region
          _
        $region40: #{hybrid_forward.1} parent=11 // pred_fallthru
          _
        // Predicated region
        $region41: #{hybrid_forward.1} parent=11 // pred_check
          %p975 = pneg %p295
        $region42: #{hybrid_forward.1} parent=11 // pred_check_branch
          %977 = sbr.rel (%p975) target = $region44
        $region43: #{hybrid_forward.1} parent=11 // pred_region
          %979 = vsyncadd [#allocation6], 0
          %s981 = sshll.u32 %s17, 4
          %s982 = int_to_ptr.hbm [resolvable:$true] %s981
          %s983 = sshll.u32 [#allocation5], 4
          %s984 = int_to_ptr.vmem [resolvable:$true] %s983
          %986 = dma.hbm_to_vmem [thread:$0]  %s982, 16, %s984, [#allocation6]
        $region44: #{hybrid_forward.1} parent=11 // pred_fallthru
          _
        // Predicated region
        $region45: #{hybrid_forward.1} parent=11 // pred_check
          %p987 = pneg %p316
        $region46: #{hybrid_forward.1} parent=11 // pred_check_branch
          %989 = sbr.rel (%p987) target = $region48
        $region47: #{hybrid_forward.1} parent=11 // pred_region
          %991 = vsyncadd [#allocation6], 0
          %s992 = sshll.u32 %s19, 4
          %s993 = int_to_ptr.hbm [resolvable:$true] %s992
          %s994 = sshll.u32 [#allocation7], 4
          %s995 = int_to_ptr.vmem [resolvable:$true] %s994
          %1000 = dma.hbm_to_vmem [thread:$0]  %s993, 512, %s995, [#allocation6], 64, 64, 4
        $region48: #{hybrid_forward.1} parent=11 // pred_fallthru
          _
        // Predicated region
        $region49: #{hybrid_forward.1} parent=11 // pred_check
          %p1001 = pneg %p337
        $region50: #{hybrid_forward.1} parent=11 // pred_check_branch
          %1003 = sbr.rel (%p1001) target = $region52
        $region51: #{hybrid_forward.1} parent=11 // pred_region
          %1005 = vsyncadd [#allocation9], 0
          %s1007 = sshll.u32 %s21, 4
          %s1008 = int_to_ptr.hbm [resolvable:$true] %s1007
          %s1009 = sshll.u32 [#allocation8], 4
          %s1010 = int_to_ptr.vmem [resolvable:$true] %s1009
          %1012 = dma.hbm_to_vmem [thread:$0]  %s1008, 16, %s1010, [#allocation9]
        $region52: #{hybrid_forward.1} parent=11 // pred_fallthru
          _
        // Predicated region
        $region53: #{hybrid_forward.1} parent=11 // pred_check
          %p1013 = pneg %p358
        $region54: #{hybrid_forward.1} parent=11 // pred_check_branch
          %1015 = sbr.rel (%p1013) target = $region56
        $region55: #{hybrid_forward.1} parent=11 // pred_region
          _
        $region56: #{hybrid_forward.1} parent=11 // pred_fallthru
          _
        // Predicated region
        $region57: #{hybrid_forward.1} parent=11 // pred_check
          %p1016 = pneg %p379
        $region58: #{hybrid_forward.1} parent=11 // pred_check_branch
          %1018 = sbr.rel (%p1016) target = $region60
        $region59: #{hybrid_forward.1} parent=11 // pred_region
          %1020 = vsyncadd [#allocation9], 0
          %s1021 = sshll.u32 %s25, 4
          %s1022 = int_to_ptr.hbm [resolvable:$true] %s1021
          %s1023 = sshll.u32 [#allocation10], 4
          %s1024 = int_to_ptr.vmem [resolvable:$true] %s1023
          %1029 = dma.hbm_to_vmem [thread:$0]  %s1022, 1024, %s1024, [#allocation9], 64, 64, 4
        $region60: #{hybrid_forward.1} parent=11 // pred_fallthru
          _
        // Predicated region
        $region61: #{hybrid_forward.1} parent=11 // pred_check
          %p1030 = pneg %p400
        $region62: #{hybrid_forward.1} parent=11 // pred_check_branch
          %1032 = sbr.rel (%p1030) target = $region64
        $region63: #{hybrid_forward.1} parent=11 // pred_region
          %1034 = vsyncadd [#allocation12], 0
          %s1036 = sshll.u32 %s27, 4
          %s1037 = int_to_ptr.hbm [resolvable:$true] %s1036
          %s1038 = sshll.u32 [#allocation11], 4
          %s1039 = int_to_ptr.vmem [resolvable:$true] %s1038
          %1041 = dma.hbm_to_vmem [thread:$0]  %s1037, 16, %s1039, [#allocation12]
        $region64: #{hybrid_forward.1} parent=11 // pred_fallthru
          _
        // Predicated region
        $region65: #{hybrid_forward.1} parent=11 // pred_check
          %p1042 = pneg %p421
        $region66: #{hybrid_forward.1} parent=11 // pred_check_branch
          %1044 = sbr.rel (%p1042) target = $region68
        $region67: #{hybrid_forward.1} parent=11 // pred_region
          %1046 = vsyncadd [#allocation12], 0
          %s1047 = sshll.u32 %s29, 4
          %s1048 = int_to_ptr.hbm [resolvable:$true] %s1047
          %s1049 = sshll.u32 [#allocation13], 4
          %s1050 = int_to_ptr.vmem [resolvable:$true] %s1049
          %1055 = dma.hbm_to_vmem [thread:$0]  %s1048, 1024, %s1050, [#allocation12], 64, 64, 4
        $region68: #{hybrid_forward.1} parent=11 // pred_fallthru
          _
        // Predicated region
        $region69: #{hybrid_forward.1} parent=11 // pred_check
          %p1056 = pneg %p442
        $region70: #{hybrid_forward.1} parent=11 // pred_check_branch
          %1058 = sbr.rel (%p1056) target = $region72
        $region71: #{hybrid_forward.1} parent=11 // pred_region
          %1060 = vsyncadd [#allocation15], 0
          %s1061 = sshll.u32 %s31, 4
          %s1062 = int_to_ptr.hbm [resolvable:$true] %s1061
          %s1063 = sshll.u32 [#allocation14], 4
          %s1064 = int_to_ptr.vmem [resolvable:$true] %s1063
          %1069 = dma.hbm_to_vmem [thread:$0]  %s1062, 512, %s1064, [#allocation15], 64, 64, 4
        $region72: #{hybrid_forward.1} parent=11 // pred_fallthru
          _
        // Predicated region
        $region73: #{hybrid_forward.1} parent=11 // pred_check
          %p1070 = pneg %p463
        $region74: #{hybrid_forward.1} parent=11 // pred_check_branch
          %1072 = sbr.rel (%p1070) target = $region76
        $region75: #{hybrid_forward.1} parent=11 // pred_region
          %1074 = vsyncadd [#allocation15], 0
          %s1076 = sshll.u32 %s33, 4
          %s1077 = int_to_ptr.hbm [resolvable:$true] %s1076
          %s1078 = sshll.u32 [#allocation16], 4
          %s1079 = int_to_ptr.vmem [resolvable:$true] %s1078
          %1081 = dma.hbm_to_vmem [thread:$0]  %s1077, 16, %s1079, [#allocation15]
        $region76: #{hybrid_forward.1} parent=11 // pred_fallthru
          _
        // Predicated region
        $region77: #{hybrid_forward.1} parent=11 // pred_check
          %p1082 = pneg %p484
        $region78: #{hybrid_forward.1} parent=11 // pred_check_branch
          %1084 = sbr.rel (%p1082) target = $region80
        $region79: #{hybrid_forward.1} parent=11 // pred_region
          _
        $region80: #{hybrid_forward.1} parent=11 // pred_fallthru
          _
        // Predicated region
        $region81: #{hybrid_forward.1} parent=11 // pred_check
          %p1085 = pneg %p505
        $region82: #{hybrid_forward.1} parent=11 // pred_check_branch
          %1087 = sbr.rel (%p1085) target = $region84
        $region83: #{hybrid_forward.1} parent=11 // pred_region
          %1089 = vsyncadd [#allocation18], 0
          %s1090 = sshll.u32 %s37, 4
          %s1091 = int_to_ptr.hbm [resolvable:$true] %s1090
          %s1092 = sshll.u32 [#allocation17], 4
          %s1093 = int_to_ptr.vmem [resolvable:$true] %s1092
          %1098 = dma.hbm_to_vmem [thread:$0]  %s1091, 1024, %s1093, [#allocation18], 64, 64, 4
        $region84: #{hybrid_forward.1} parent=11 // pred_fallthru
          _
        // Predicated region
        $region85: #{hybrid_forward.1} parent=11 // pred_check
          %p1099 = pneg %p526
        $region86: #{hybrid_forward.1} parent=11 // pred_check_branch
          %1101 = sbr.rel (%p1099) target = $region88
        $region87: #{hybrid_forward.1} parent=11 // pred_region
          %1103 = vsyncadd [#allocation18], 0
          %s1105 = sshll.u32 %s39, 4
          %s1106 = int_to_ptr.hbm [resolvable:$true] %s1105
          %s1107 = sshll.u32 [#allocation19], 4
          %s1108 = int_to_ptr.vmem [resolvable:$true] %s1107
          %1110 = dma.hbm_to_vmem [thread:$0]  %s1106, 16, %s1108, [#allocation18]
        $region88: #{hybrid_forward.1} parent=11 // pred_fallthru
          _
        // Predicated region
        $region89: #{hybrid_forward.1} parent=11 // pred_check
          %p1111 = pneg %p547
        $region90: #{hybrid_forward.1} parent=11 // pred_check_branch
          %1113 = sbr.rel (%p1111) target = $region92
        $region91: #{hybrid_forward.1} parent=11 // pred_region
          %1115 = vsyncadd [#allocation21], 0
          %s1116 = sshll.u32 %s41, 4
          %s1117 = int_to_ptr.hbm [resolvable:$true] %s1116
          %s1118 = sshll.u32 [#allocation20], 4
          %s1119 = int_to_ptr.vmem [resolvable:$true] %s1118
          %1124 = dma.hbm_to_vmem [thread:$0]  %s1117, 2048, %s1119, [#allocation21], 128, 128, 8
        $region92: #{hybrid_forward.1} parent=11 // pred_fallthru
          _
        // Predicated region
        $region93: #{hybrid_forward.1} parent=11 // pred_check
          %p1125 = pneg %p568
        $region94: #{hybrid_forward.1} parent=11 // pred_check_branch
          %1127 = sbr.rel (%p1125) target = $region96
        $region95: #{hybrid_forward.1} parent=11 // pred_region
          %1129 = vsyncadd [#allocation21], 0
          %s1131 = sshll.u32 %s43, 4
          %s1132 = int_to_ptr.hbm [resolvable:$true] %s1131
          %s1133 = sshll.u32 [#allocation22], 4
          %s1134 = int_to_ptr.vmem [resolvable:$true] %s1133
          %1136 = dma.hbm_to_vmem [thread:$0]  %s1132, 64, %s1134, [#allocation21]
        $region96: #{hybrid_forward.1} parent=11 // pred_fallthru
          _
        // Predicated region
        $region97: #{hybrid_forward.1} parent=11 // pred_check
          %p1137 = pneg %p589
        $region98: #{hybrid_forward.1} parent=11 // pred_check_branch
          %1139 = sbr.rel (%p1137) target = $region100
        $region99: #{hybrid_forward.1} parent=11 // pred_region
          %1141 = vsyncadd [#allocation24], 0
          %s1143 = sshll.u32 %s45, 4
          %s1144 = int_to_ptr.hbm [resolvable:$true] %s1143
          %s1145 = sshll.u32 [#allocation23], 4
          %s1146 = int_to_ptr.vmem [resolvable:$true] %s1145
          %1148 = dma.hbm_to_vmem [thread:$0]  %s1144, 16, %s1146, [#allocation24]
        $region100: #{hybrid_forward.1} parent=11 // pred_fallthru
          _
        // Predicated region
        $region101: #{hybrid_forward.1} parent=11 // pred_check
          %p1149 = pneg %p610
        $region102: #{hybrid_forward.1} parent=11 // pred_check_branch
          %1151 = sbr.rel (%p1149) target = $region104
        $region103: #{hybrid_forward.1} parent=11 // pred_region
          %1153 = vsyncadd [#allocation24], 0
          %s1155 = sshll.u32 %s47, 4
          %s1156 = int_to_ptr.hbm [resolvable:$true] %s1155
          %s1157 = sshll.u32 [#allocation25], 4
          %s1158 = int_to_ptr.vmem [resolvable:$true] %s1157
          %1160 = dma.hbm_to_vmem [thread:$0]  %s1156, 16, %s1158, [#allocation24]
        $region104: #{hybrid_forward.1} parent=11 // pred_fallthru
          _
        // Predicated region
        $region105: #{hybrid_forward.1} parent=11 // pred_check
          %p1161 = pneg %p631
        $region106: #{hybrid_forward.1} parent=11 // pred_check_branch
          %1163 = sbr.rel (%p1161) target = $region108
        $region107: #{hybrid_forward.1} parent=11 // pred_region
          %1165 = vsyncadd [#allocation27], 0
          %s1167 = sshll.u32 %s49, 4
          %s1168 = int_to_ptr.hbm [resolvable:$true] %s1167
          %s1169 = sshll.u32 [#allocation26], 4
          %s1170 = int_to_ptr.vmem [resolvable:$true] %s1169
          %1172 = dma.hbm_to_vmem [thread:$0]  %s1168, 16, %s1170, [#allocation27]
        $region108: #{hybrid_forward.1} parent=11 // pred_fallthru
          _
        // Predicated region
        $region109: #{hybrid_forward.1} parent=11 // pred_check
          %p1173 = pneg %p652
        $region110: #{hybrid_forward.1} parent=11 // pred_check_branch
          %1175 = sbr.rel (%p1173) target = $region112
        $region111: #{hybrid_forward.1} parent=11 // pred_region
          %1177 = vsyncadd [#allocation27], 0
          %s1179 = sshll.u32 %s51, 4
          %s1180 = int_to_ptr.hbm [resolvable:$true] %s1179
          %s1181 = sshll.u32 [#allocation28], 4
          %s1182 = int_to_ptr.vmem [resolvable:$true] %s1181
          %1184 = dma.hbm_to_vmem [thread:$0]  %s1180, 16, %s1182, [#allocation27]
        $region112: #{hybrid_forward.1} parent=11 // pred_fallthru
          _
        // Predicated region
        $region113: #{hybrid_forward.1} parent=11 // pred_check
          %p1185 = pneg %p673
        $region114: #{hybrid_forward.1} parent=11 // pred_check_branch
          %1187 = sbr.rel (%p1185) target = $region116
        $region115: #{hybrid_forward.1} parent=11 // pred_region
          %1189 = vsyncadd [#allocation30], 0
          %s1190 = sshll.u32 %s53, 4
          %s1191 = int_to_ptr.hbm [resolvable:$true] %s1190
          %s1192 = sshll.u32 [#allocation29], 4
          %s1193 = int_to_ptr.vmem [resolvable:$true] %s1192
          %1198 = dma.hbm_to_vmem [thread:$0]  %s1191, 512, %s1193, [#allocation30], 64, 64, 4
        $region116: #{hybrid_forward.1} parent=11 // pred_fallthru
          _
        // Predicated region
        $region117: #{hybrid_forward.1} parent=11 // pred_check
          %p1199 = pneg %p694
        $region118: #{hybrid_forward.1} parent=11 // pred_check_branch
          %1201 = sbr.rel (%p1199) target = $region120
        $region119: #{hybrid_forward.1} parent=11 // pred_region
          %1203 = vsyncadd [#allocation30], 0
          %s1205 = sshll.u32 %s55, 4
          %s1206 = int_to_ptr.hbm [resolvable:$true] %s1205
          %s1207 = sshll.u32 [#allocation31], 4
          %s1208 = int_to_ptr.vmem [resolvable:$true] %s1207
          %1210 = dma.hbm_to_vmem [thread:$0]  %s1206, 16, %s1208, [#allocation30]
        $region120: #{hybrid_forward.1} parent=11 // pred_fallthru
          _
        // Predicated region
        $region121: #{hybrid_forward.1} parent=11 // pred_check
          %p1211 = pneg %p715
        $region122: #{hybrid_forward.1} parent=11 // pred_check_branch
          %1213 = sbr.rel (%p1211) target = $region124
        $region123: #{hybrid_forward.1} parent=11 // pred_region
          %1215 = vsyncadd [#allocation33], 0
          %s1216 = sshll.u32 %s57, 4
          %s1217 = int_to_ptr.hbm [resolvable:$true] %s1216
          %s1218 = sshll.u32 [#allocation32], 4
          %s1219 = int_to_ptr.vmem [resolvable:$true] %s1218
          %1224 = dma.hbm_to_vmem [thread:$0]  %s1217, 2048, %s1219, [#allocation33], 128, 128, 8
        $region124: #{hybrid_forward.1} parent=11 // pred_fallthru
          _
        // Predicated region
        $region125: #{hybrid_forward.1} parent=11 // pred_check
          %p1225 = pneg %p736
        $region126: #{hybrid_forward.1} parent=11 // pred_check_branch
          %1227 = sbr.rel (%p1225) target = $region128
        $region127: #{hybrid_forward.1} parent=11 // pred_region
          %1229 = vsyncadd [#allocation33], 0
          %s1230 = sshll.u32 %s59, 4
          %s1231 = int_to_ptr.hbm [resolvable:$true] %s1230
          %s1232 = sshll.u32 [#allocation34], 4
          %s1233 = int_to_ptr.vmem [resolvable:$true] %s1232
          %1238 = dma.hbm_to_vmem [thread:$0]  %s1231, 1024, %s1233, [#allocation33], 64, 64, 4
        $region128: #{hybrid_forward.1} parent=11 // pred_fallthru
          _
        // Predicated region
        $region129: #{hybrid_forward.1} parent=11 // pred_check
          %p1239 = pneg %p757
        $region130: #{hybrid_forward.1} parent=11 // pred_check_branch
          %1241 = sbr.rel (%p1239) target = $region132
        $region131: #{hybrid_forward.1} parent=11 // pred_region
          %1243 = vsyncadd [#allocation36], 0
          %s1245 = sshll.u32 %s61, 4
          %s1246 = int_to_ptr.hbm [resolvable:$true] %s1245
          %s1247 = sshll.u32 [#allocation35], 4
          %s1248 = int_to_ptr.vmem [resolvable:$true] %s1247
          %1250 = dma.hbm_to_vmem [thread:$0]  %s1246, 16, %s1248, [#allocation36]
        $region132: #{hybrid_forward.1} parent=11 // pred_fallthru
          _
        // Predicated region
        $region133: #{hybrid_forward.1} parent=11 // pred_check
          %p1251 = pneg %p778
        $region134: #{hybrid_forward.1} parent=11 // pred_check_branch
          %1253 = sbr.rel (%p1251) target = $region136
        $region135: #{hybrid_forward.1} parent=11 // pred_region
          %1255 = vsyncadd [#allocation36], 0
          %s1256 = sshll.u32 %s63, 4
          %s1257 = int_to_ptr.hbm [resolvable:$true] %s1256
          %s1258 = sshll.u32 [#allocation37], 4
          %s1259 = int_to_ptr.vmem [resolvable:$true] %s1258
          %1264 = dma.hbm_to_vmem [thread:$0]  %s1257, 1024, %s1259, [#allocation36], 64, 64, 4
        $region136: #{hybrid_forward.1} parent=11 // pred_fallthru
          _
        // Predicated region
        $region137: #{hybrid_forward.1} parent=11 // pred_check
          %p1265 = pneg %p799
        $region138: #{hybrid_forward.1} parent=11 // pred_check_branch
          %1267 = sbr.rel (%p1265) target = $region140
        $region139: #{hybrid_forward.1} parent=11 // pred_region
          _
        $region140: #{hybrid_forward.1} parent=11 // pred_fallthru
          _
        // Predicated region
        $region141: #{hybrid_forward.1} parent=11 // pred_check
          %p1268 = pneg %p820
        $region142: #{hybrid_forward.1} parent=11 // pred_check_branch
          %1270 = sbr.rel (%p1268) target = $region144
        $region143: #{hybrid_forward.1} parent=11 // pred_region
          %1272 = vsyncadd [#allocation39], 0
          %s1274 = sshll.u32 %s67, 4
          %s1275 = int_to_ptr.hbm [resolvable:$true] %s1274
          %s1276 = sshll.u32 [#allocation38], 4
          %s1277 = int_to_ptr.vmem [resolvable:$true] %s1276
          %1279 = dma.hbm_to_vmem [thread:$0]  %s1275, 16, %s1277, [#allocation39]
        $region144: #{hybrid_forward.1} parent=11 // pred_fallthru
          _
        // Predicated region
        $region145: #{hybrid_forward.1} parent=11 // pred_check
          %p1280 = pneg %p841
        $region146: #{hybrid_forward.1} parent=11 // pred_check_branch
          %1282 = sbr.rel (%p1280) target = $region148
        $region147: #{hybrid_forward.1} parent=11 // pred_region
          %1284 = vsyncadd [#allocation39], 0
          %s1285 = sshll.u32 %s69, 4
          %s1286 = int_to_ptr.hbm [resolvable:$true] %s1285
          %s1287 = sshll.u32 [#allocation40], 4
          %s1288 = int_to_ptr.vmem [resolvable:$true] %s1287
          %1293 = dma.hbm_to_vmem [thread:$0]  %s1286, 2048, %s1288, [#allocation39], 128, 128, 8
        $region148: #{hybrid_forward.1} parent=11 // pred_fallthru
          _
        // Predicated region
        $region149: #{hybrid_forward.1} parent=11 // pred_check
          %p1294 = pneg %p862
        $region150: #{hybrid_forward.1} parent=11 // pred_check_branch
          %1296 = sbr.rel (%p1294) target = $region152
        $region151: #{hybrid_forward.1} parent=11 // pred_region
          %1298 = vsyncadd [#allocation42], 0
          %s1299 = sshll.u32 %s71, 4
          %s1300 = int_to_ptr.hbm [resolvable:$true] %s1299
          %s1301 = sshll.u32 [#allocation41], 4
          %s1302 = int_to_ptr.vmem [resolvable:$true] %s1301
          %1307 = dma.hbm_to_vmem [thread:$0]  %s1300, 1024, %s1302, [#allocation42], 64, 64, 4
        $region152: #{hybrid_forward.1} parent=11 // pred_fallthru
          _
        // Predicated region
        $region153: #{hybrid_forward.1} parent=11 // pred_check
          %p1308 = pneg %p883
        $region154: #{hybrid_forward.1} parent=11 // pred_check_branch
          %1310 = sbr.rel (%p1308) target = $region156
        $region155: #{hybrid_forward.1} parent=11 // pred_region
          %1312 = vsyncadd [#allocation42], 0
          %s1314 = sshll.u32 %s73, 4
          %s1315 = int_to_ptr.hbm [resolvable:$true] %s1314
          %s1316 = sshll.u32 [#allocation43], 4
          %s1317 = int_to_ptr.vmem [resolvable:$true] %s1316
          %1319 = dma.hbm_to_vmem [thread:$0]  %s1315, 16, %s1317, [#allocation42]
        $region156: #{hybrid_forward.1} parent=11 // pred_fallthru
          _
        // Predicated region
        $region157: #{hybrid_forward.1} parent=11 // pred_check
          %p1320 = pneg %p904
        $region158: #{hybrid_forward.1} parent=11 // pred_check_branch
          %1322 = sbr.rel (%p1320) target = $region160
        $region159: #{hybrid_forward.1} parent=11 // pred_region
          %1324 = vsyncadd [#allocation45], 0
          %s1325 = sshll.u32 %s75, 4
          %s1326 = int_to_ptr.hbm [resolvable:$true] %s1325
          %s1327 = sshll.u32 [#allocation44], 4
          %s1328 = int_to_ptr.vmem [resolvable:$true] %s1327
          %1333 = dma.hbm_to_vmem [thread:$0]  %s1326, 2048, %s1328, [#allocation45], 128, 128, 8
        $region160: #{hybrid_forward.1} parent=11 // pred_fallthru
          _
      $region12: #{hybrid_forward.1} parent=5 // pred_fallthru
        _
      %p1334 = scmp.lt.s32.totalorder %s101, 2
      // Predicated region
      $region161: #{hybrid_forward.1} parent=5 // pred_check
        %p1335 = pneg %p1334
      $region162: #{hybrid_forward.1} parent=5 // pred_check_branch
        %1337 = sbr.rel (%p1335) target = $region164
      $region163: #{hybrid_forward.1} parent=5 // pred_region
        // Predicated region
        $region165: #{hybrid_forward.1} parent=163 // pred_check
          %p1338 = pneg %p142
        $region166: #{hybrid_forward.1} parent=163 // pred_check_branch
          %1340 = sbr.rel (%p1338) target = $region168
        $region167: #{hybrid_forward.1} parent=163 // pred_region
          %p1341 = scmp.lt.s32.totalorder %s101, 1
          %s1342 = scalar_select %p1341, %s101, 1
          %s1343 = smul.addr %s1342, 2
          %s1344 = smul.addr %s1343, 8
          %s1345 = scalar_lea.vmem %s3, %s1344
        $region168: #{hybrid_forward.1} parent=163 // pred_fallthru
          _
      $region164: #{hybrid_forward.1} parent=5 // pred_fallthru
        _
      %p1346 = scmp.le.s32.totalorder 1, %s101
      %p1347 = scmp.lt.s32.totalorder %s101, 3
      %p1348 = pnand %p1346, %p1347
      %p1349 = pneg %p1348
      // Predicated region
      $region169: #{hybrid_forward.1} parent=5 // pred_check
        _
      $region170: #{hybrid_forward.1} parent=5 // pred_check_branch
        %1351 = sbr.rel (%p1348) target = $region172
      $region171: #{hybrid_forward.1} parent=5 // pred_region
        %s1352 = ssub.s32 %s101, 1
        // Predicated region
        $region173: #{hybrid_forward.1} parent=171 // pred_check
          %p1353 = pneg %p253
        $region174: #{hybrid_forward.1} parent=171 // pred_check_branch
          %1355 = sbr.rel (%p1353) target = $region176
        $region175: #{hybrid_forward.1} parent=171 // pred_region
          %1357 = dma.done [#allocation3], 16
        $region176: #{hybrid_forward.1} parent=171 // pred_fallthru
          _
        // Predicated region
        $region177: #{hybrid_forward.1} parent=171 // pred_check
          %p1358 = pneg %p295
        $region178: #{hybrid_forward.1} parent=171 // pred_check_branch
          %1360 = sbr.rel (%p1358) target = $region180
        $region179: #{hybrid_forward.1} parent=171 // pred_region
          %1362 = dma.done [#allocation6], 16
        $region180: #{hybrid_forward.1} parent=171 // pred_fallthru
          _
        // Predicated region
        $region181: #{hybrid_forward.1} parent=171 // pred_check
          %p1363 = pneg %p316
        $region182: #{hybrid_forward.1} parent=171 // pred_check_branch
          %1365 = sbr.rel (%p1363) target = $region184
        $region183: #{hybrid_forward.1} parent=171 // pred_region
          %1367 = dma.done [#allocation6], 512
        $region184: #{hybrid_forward.1} parent=171 // pred_fallthru
          _
        // Predicated region
        $region185: #{hybrid_forward.1} parent=171 // pred_check
          %p1368 = pneg %p337
        $region186: #{hybrid_forward.1} parent=171 // pred_check_branch
          %1370 = sbr.rel (%p1368) target = $region188
        $region187: #{hybrid_forward.1} parent=171 // pred_region
          %1372 = dma.done [#allocation9], 16
        $region188: #{hybrid_forward.1} parent=171 // pred_fallthru
          _
        // Predicated region
        $region189: #{hybrid_forward.1} parent=171 // pred_check
          %p1373 = pneg %p379
        $region190: #{hybrid_forward.1} parent=171 // pred_check_branch
          %1375 = sbr.rel (%p1373) target = $region192
        $region191: #{hybrid_forward.1} parent=171 // pred_region
          %1377 = dma.done [#allocation9], 1024
        $region192: #{hybrid_forward.1} parent=171 // pred_fallthru
          _
        // Predicated region
        $region193: #{hybrid_forward.1} parent=171 // pred_check
          %p1378 = pneg %p400
        $region194: #{hybrid_forward.1} parent=171 // pred_check_branch
          %1380 = sbr.rel (%p1378) target = $region196
        $region195: #{hybrid_forward.1} parent=171 // pred_region
          %1382 = dma.done [#allocation12], 16
        $region196: #{hybrid_forward.1} parent=171 // pred_fallthru
          _
        // Predicated region
        $region197: #{hybrid_forward.1} parent=171 // pred_check
          %p1383 = pneg %p421
        $region198: #{hybrid_forward.1} parent=171 // pred_check_branch
          %1385 = sbr.rel (%p1383) target = $region200
        $region199: #{hybrid_forward.1} parent=171 // pred_region
          %1387 = dma.done [#allocation12], 1024
        $region200: #{hybrid_forward.1} parent=171 // pred_fallthru
          _
        // Predicated region
        $region201: #{hybrid_forward.1} parent=171 // pred_check
          %p1388 = pneg %p442
        $region202: #{hybrid_forward.1} parent=171 // pred_check_branch
          %1390 = sbr.rel (%p1388) target = $region204
        $region203: #{hybrid_forward.1} parent=171 // pred_region
          %1392 = dma.done [#allocation15], 512
        $region204: #{hybrid_forward.1} parent=171 // pred_fallthru
          _
        // Predicated region
        $region205: #{hybrid_forward.1} parent=171 // pred_check
          %p1393 = pneg %p463
        $region206: #{hybrid_forward.1} parent=171 // pred_check_branch
          %1395 = sbr.rel (%p1393) target = $region208
        $region207: #{hybrid_forward.1} parent=171 // pred_region
          %1397 = dma.done [#allocation15], 16
        $region208: #{hybrid_forward.1} parent=171 // pred_fallthru
          _
        // Predicated region
        $region209: #{hybrid_forward.1} parent=171 // pred_check
          %p1398 = pneg %p505
        $region210: #{hybrid_forward.1} parent=171 // pred_check_branch
          %1400 = sbr.rel (%p1398) target = $region212
        $region211: #{hybrid_forward.1} parent=171 // pred_region
          %1402 = dma.done [#allocation18], 1024
        $region212: #{hybrid_forward.1} parent=171 // pred_fallthru
          _
        // Predicated region
        $region213: #{hybrid_forward.1} parent=171 // pred_check
          %p1403 = pneg %p526
        $region214: #{hybrid_forward.1} parent=171 // pred_check_branch
          %1405 = sbr.rel (%p1403) target = $region216
        $region215: #{hybrid_forward.1} parent=171 // pred_region
          %1407 = dma.done [#allocation18], 16
        $region216: #{hybrid_forward.1} parent=171 // pred_fallthru
          _
        // Predicated region
        $region217: #{hybrid_forward.1} parent=171 // pred_check
          %p1408 = pneg %p547
        $region218: #{hybrid_forward.1} parent=171 // pred_check_branch
          %1410 = sbr.rel (%p1408) target = $region220
        $region219: #{hybrid_forward.1} parent=171 // pred_region
          %1412 = dma.done [#allocation21], 2048
        $region220: #{hybrid_forward.1} parent=171 // pred_fallthru
          _
        // Predicated region
        $region221: #{hybrid_forward.1} parent=171 // pred_check
          %p1413 = pneg %p568
        $region222: #{hybrid_forward.1} parent=171 // pred_check_branch
          %1415 = sbr.rel (%p1413) target = $region224
        $region223: #{hybrid_forward.1} parent=171 // pred_region
          %1417 = dma.done [#allocation21], 64
        $region224: #{hybrid_forward.1} parent=171 // pred_fallthru
          _
        // Predicated region
        $region225: #{hybrid_forward.1} parent=171 // pred_check
          %p1418 = pneg %p589
        $region226: #{hybrid_forward.1} parent=171 // pred_check_branch
          %1420 = sbr.rel (%p1418) target = $region228
        $region227: #{hybrid_forward.1} parent=171 // pred_region
          %1422 = dma.done [#allocation24], 16
        $region228: #{hybrid_forward.1} parent=171 // pred_fallthru
          _
        // Predicated region
        $region229: #{hybrid_forward.1} parent=171 // pred_check
          %p1423 = pneg %p610
        $region230: #{hybrid_forward.1} parent=171 // pred_check_branch
          %1425 = sbr.rel (%p1423) target = $region232
        $region231: #{hybrid_forward.1} parent=171 // pred_region
          %1427 = dma.done [#allocation24], 16
        $region232: #{hybrid_forward.1} parent=171 // pred_fallthru
          _
        // Predicated region
        $region233: #{hybrid_forward.1} parent=171 // pred_check
          %p1428 = pneg %p631
        $region234: #{hybrid_forward.1} parent=171 // pred_check_branch
          %1430 = sbr.rel (%p1428) target = $region236
        $region235: #{hybrid_forward.1} parent=171 // pred_region
          %1432 = dma.done [#allocation27], 16
        $region236: #{hybrid_forward.1} parent=171 // pred_fallthru
          _
        // Predicated region
        $region237: #{hybrid_forward.1} parent=171 // pred_check
          %p1433 = pneg %p652
        $region238: #{hybrid_forward.1} parent=171 // pred_check_branch
          %1435 = sbr.rel (%p1433) target = $region240
        $region239: #{hybrid_forward.1} parent=171 // pred_region
          %1437 = dma.done [#allocation27], 16
        $region240: #{hybrid_forward.1} parent=171 // pred_fallthru
          _
        // Predicated region
        $region241: #{hybrid_forward.1} parent=171 // pred_check
          %p1438 = pneg %p673
        $region242: #{hybrid_forward.1} parent=171 // pred_check_branch
          %1440 = sbr.rel (%p1438) target = $region244
        $region243: #{hybrid_forward.1} parent=171 // pred_region
          %1442 = dma.done [#allocation30], 512
        $region244: #{hybrid_forward.1} parent=171 // pred_fallthru
          _
        // Predicated region
        $region245: #{hybrid_forward.1} parent=171 // pred_check
          %p1443 = pneg %p694
        $region246: #{hybrid_forward.1} parent=171 // pred_check_branch
          %1445 = sbr.rel (%p1443) target = $region248
        $region247: #{hybrid_forward.1} parent=171 // pred_region
          %1447 = dma.done [#allocation30], 16
        $region248: #{hybrid_forward.1} parent=171 // pred_fallthru
          _
        // Predicated region
        $region249: #{hybrid_forward.1} parent=171 // pred_check
          %p1448 = pneg %p715
        $region250: #{hybrid_forward.1} parent=171 // pred_check_branch
          %1450 = sbr.rel (%p1448) target = $region252
        $region251: #{hybrid_forward.1} parent=171 // pred_region
          %1452 = dma.done [#allocation33], 2048
        $region252: #{hybrid_forward.1} parent=171 // pred_fallthru
          _
        // Predicated region
        $region253: #{hybrid_forward.1} parent=171 // pred_check
          %p1453 = pneg %p736
        $region254: #{hybrid_forward.1} parent=171 // pred_check_branch
          %1455 = sbr.rel (%p1453) target = $region256
        $region255: #{hybrid_forward.1} parent=171 // pred_region
          %1457 = dma.done [#allocation33], 1024
        $region256: #{hybrid_forward.1} parent=171 // pred_fallthru
          _
        // Predicated region
        $region257: #{hybrid_forward.1} parent=171 // pred_check
          %p1458 = pneg %p757
        $region258: #{hybrid_forward.1} parent=171 // pred_check_branch
          %1460 = sbr.rel (%p1458) target = $region260
        $region259: #{hybrid_forward.1} parent=171 // pred_region
          %1462 = dma.done [#allocation36], 16
        $region260: #{hybrid_forward.1} parent=171 // pred_fallthru
          _
        // Predicated region
        $region261: #{hybrid_forward.1} parent=171 // pred_check
          %p1463 = pneg %p778
        $region262: #{hybrid_forward.1} parent=171 // pred_check_branch
          %1465 = sbr.rel (%p1463) target = $region264
        $region263: #{hybrid_forward.1} parent=171 // pred_region
          %1467 = dma.done [#allocation36], 1024
        $region264: #{hybrid_forward.1} parent=171 // pred_fallthru
          _
        // Predicated region
        $region265: #{hybrid_forward.1} parent=171 // pred_check
          %p1468 = pneg %p820
        $region266: #{hybrid_forward.1} parent=171 // pred_check_branch
          %1470 = sbr.rel (%p1468) target = $region268
        $region267: #{hybrid_forward.1} parent=171 // pred_region
          %1472 = dma.done [#allocation39], 16
        $region268: #{hybrid_forward.1} parent=171 // pred_fallthru
          _
        // Predicated region
        $region269: #{hybrid_forward.1} parent=171 // pred_check
          %p1473 = pneg %p841
        $region270: #{hybrid_forward.1} parent=171 // pred_check_branch
          %1475 = sbr.rel (%p1473) target = $region272
        $region271: #{hybrid_forward.1} parent=171 // pred_region
          %1477 = dma.done [#allocation39], 2048
        $region272: #{hybrid_forward.1} parent=171 // pred_fallthru
          _
        // Predicated region
        $region273: #{hybrid_forward.1} parent=171 // pred_check
          %p1478 = pneg %p862
        $region274: #{hybrid_forward.1} parent=171 // pred_check_branch
          %1480 = sbr.rel (%p1478) target = $region276
        $region275: #{hybrid_forward.1} parent=171 // pred_region
          %1482 = dma.done [#allocation42], 1024
        $region276: #{hybrid_forward.1} parent=171 // pred_fallthru
          _
        // Predicated region
        $region277: #{hybrid_forward.1} parent=171 // pred_check
          %p1483 = pneg %p883
        $region278: #{hybrid_forward.1} parent=171 // pred_check_branch
          %1485 = sbr.rel (%p1483) target = $region280
        $region279: #{hybrid_forward.1} parent=171 // pred_region
          %1487 = dma.done [#allocation42], 16
        $region280: #{hybrid_forward.1} parent=171 // pred_fallthru
          _
        // Predicated region
        $region281: #{hybrid_forward.1} parent=171 // pred_check
          %p1488 = pneg %p904
        $region282: #{hybrid_forward.1} parent=171 // pred_check_branch
          %1490 = sbr.rel (%p1488) target = $region284
        $region283: #{hybrid_forward.1} parent=171 // pred_region
          %1492 = dma.done [#allocation45], 2048
        $region284: #{hybrid_forward.1} parent=171 // pred_fallthru
          _
        %p1493 = pneg %p122
        %p1494 = pneg %p119
        %p1495 = scmp.lt.s32.totalorder %s106, 1
        %s1496 = scalar_select %p1495, %s106, 1
        %s1497 = smul.addr %s1496, 2
        %s1498 = smul.addr %s1497, 8
        %s1499 = scalar_lea.vmem %s3, %s1498
        %p1500 = pneg %p148
        %p1501 = pneg %p145
        %p1502 = pneg %p169
        %p1503 = pneg %p166
        %p1504 = pneg %p190
        %p1505 = pneg %p187
        %p1506 = pneg %p211
        %p1507 = pneg %p208
        %p1508 = pneg %p232
        %p1509 = pneg %p229
        %p1510 = pneg %p253
        %p1511 = pneg %p250
        %p1512 = pneg %p274
        %p1513 = pneg %p271
        %p1514 = pneg %p295
        %p1515 = pneg %p292
        %p1516 = pneg %p316
        %p1517 = pneg %p313
        %p1518 = pneg %p337
        %p1519 = pneg %p334
        %p1520 = pneg %p358
        %p1521 = pneg %p355
        %p1522 = pneg %p379
        %p1523 = pneg %p376
        %p1524 = pneg %p400
        %p1525 = pneg %p397
        %p1526 = pneg %p421
        %p1527 = pneg %p418
        %p1528 = pneg %p442
        %p1529 = pneg %p439
        %p1530 = pneg %p463
        %p1531 = pneg %p460
        %p1532 = pneg %p484
        %p1533 = pneg %p481
        %p1534 = pneg %p505
        %p1535 = pneg %p502
        %p1536 = pneg %p526
        %p1537 = pneg %p523
        %p1538 = pneg %p547
        %p1539 = pneg %p544
        %p1540 = pneg %p568
        %p1541 = pneg %p565
        %p1542 = pneg %p589
        %p1543 = pneg %p586
        %p1544 = pneg %p610
        %p1545 = pneg %p607
        %p1546 = pneg %p631
        %p1547 = pneg %p628
        %p1548 = pneg %p652
        %p1549 = pneg %p649
        %p1550 = pneg %p673
        %p1551 = pneg %p670
        %p1552 = pneg %p694
        %p1553 = pneg %p691
        %p1554 = pneg %p715
        %p1555 = pneg %p712
        %p1556 = pneg %p736
        %p1557 = pneg %p733
        %p1558 = pneg %p757
        %p1559 = pneg %p754
        %p1560 = pneg %p778
        %p1561 = pneg %p775
        %p1562 = pneg %p799
        %p1563 = pneg %p796
        %p1564 = pneg %p820
        %p1565 = pneg %p817
        %p1566 = pneg %p841
        %p1567 = pneg %p838
        %p1568 = pneg %p862
        %p1569 = pneg %p859
        %p1570 = pneg %p883
        %p1571 = pneg %p880
        %p1572 = pneg %p904
        %p1573 = pneg %p901
        %p1574 = pneg %p930
        %p1575 = pneg %p927
        %s1576 = sand.u32 %s917, 1
        %s1577 = scalar_lea.sflag [#allocation4], %s1576
        %s1578 = sand.u32 %s917, 1
        %s1579 = smul.addr %s1578, 32
        %s1580 = scalar_lea.vmem [#allocation46], %s1579
        %p1581 = scmp.lt.s32.totalorder %s106, 1
        %s1582 = scalar_select %p1581, %s106, 1
        %s1583 = smul.addr %s1582, 2
        %s1584 = smul.addr %s1583, 8
        %s1585 = scalar_lea.vmem %s3, %s1584
        %v1587 = vld [vmem:[%s1585] sm:$0xff]
        %v1588 = vld [vmem:[%s1585 + $0x8] sm:$0xff]
        %v1589 = vld [vmem:[%s1] sm:$0xff]
        %v1590 = vld [vmem:[%s1 + $0x8] sm:$0xff]
        %v1591 = vlaneseq
        %v1592 = vshrl.u32 %v1591, 7
        %v1593 = vadd.s32 %v1592, 8
        %v1594 = vlaneseq
        %v1595 = vand.u32 %v1594, 127
        %vm1596 = vcmp.le.s32.totalorder %v1595, %v1592
        %vm1597 = vcmp.le.s32.totalorder %v1595, %v1593
        %v1598 = vsel %vm1596, 1, 0
        %v1599 = vsel %vm1597, 1, 0
        %v1600 = vcvt.s32.f32 %v1598
        %v1601 = vcvt.s32.f32 %v1599
        %v1602 = vsel %vm1596, 0.0, -1e+30
        %v1603 = vsel %vm1597, 0.0, -1e+30
        %v1604 = vsub.s32 %v1592, %v1595
        %v1605 = vsub.s32 %v1593, %v1595
        %vm1606 = vcmp.eq.s32.totalorder %v1604, 0
        %vm1607 = vcmp.eq.s32.totalorder %v1605, 0
        %v1608 = vsel %vm1606, 1, 0
        %v1609 = vsel %vm1607, 1, 0
        %v1610 = vcvt.s32.f32 %v1608
        %v1611 = vcvt.s32.f32 %v1609
        %vm1612 = vcmp.eq.s32.totalorder %v1604, 1
        %vm1613 = vcmp.eq.s32.totalorder %v1605, 1
        %v1614 = vsel %vm1612, 1, 0
        %v1615 = vsel %vm1613, 1, 0
        %v1616 = vcvt.s32.f32 %v1614
        %v1617 = vcvt.s32.f32 %v1615
        %vm1618 = vcmp.eq.s32.totalorder %v1604, 2
        %vm1619 = vcmp.eq.s32.totalorder %v1605, 2
        %v1620 = vsel %vm1618, 1, 0
        %v1621 = vsel %vm1619, 1, 0
        %v1622 = vcvt.s32.f32 %v1620
        %v1623 = vcvt.s32.f32 %v1621
        %vm1624 = vcmp.eq.s32.totalorder %v1604, 3
        %vm1625 = vcmp.eq.s32.totalorder %v1605, 3
        %v1626 = vsel %vm1624, 1, 0
        %v1627 = vsel %vm1625, 1, 0
        %v1628 = vcvt.s32.f32 %v1626
        %v1629 = vcvt.s32.f32 %v1627
        %v1630 = vld [vmem:[%s5] sm:$0x1]
        %v1631 = vld [vmem:[%s7] sm:$0xff]
        %v1632 = vld [vmem:[%s7 + $0x8] sm:$0xff]
        %v1633 = vld [vmem:[%s7 + $0x10] sm:$0xff]
        %v1634 = vld [vmem:[%s7 + $0x18] sm:$0xff]
        %v1635 = vld [vmem:[%s7 + $0x20] sm:$0xff]
        %v1636 = vld [vmem:[%s7 + $0x28] sm:$0xff]
        %v1637 = vld [vmem:[%s7 + $0x30] sm:$0xff]
        %v1638 = vld [vmem:[%s7 + $0x38] sm:$0xff]
        %v1639 = vld [vmem:[%s7 + $0x40] sm:$0xff]
        %v1640 = vld [vmem:[%s7 + $0x48] sm:$0xff]
        %v1641 = vld [vmem:[%s7 + $0x50] sm:$0xff]
        %v1642 = vld [vmem:[%s7 + $0x58] sm:$0xff]
        %v1643 = vld [vmem:[%s7 + $0x60] sm:$0xff]
        %v1644 = vld [vmem:[%s7 + $0x68] sm:$0xff]
        %v1645 = vld [vmem:[%s7 + $0x70] sm:$0xff]
        %v1646 = vld [vmem:[%s7 + $0x78] sm:$0xff]
        %v1647 = vld [vmem:[%s9] sm:$0xf]
        %v1648 = vld [vmem:[%s11] sm:$0x1]
        %v1649 = vld [vmem:[#allocation2] sm:$0x1]
        %v1650 = vld [vmem:[%s15] sm:$0x1]
        %v1651 = vld [vmem:[#allocation5] sm:$0x1]
        %v1652 = vld [vmem:[#allocation7] sm:$0xf]
        %v1653 = vld [vmem:[#allocation7 + $0x4] sm:$0xf]
        %v1654 = vld [vmem:[#allocation7 + $0x8] sm:$0xf]
        %v1655 = vld [vmem:[#allocation7 + $0xc] sm:$0xf]
        %v1656 = vld [vmem:[#allocation7 + $0x10] sm:$0xf]
        %v1657 = vld [vmem:[#allocation7 + $0x14] sm:$0xf]
        %v1658 = vld [vmem:[#allocation7 + $0x18] sm:$0xf]
        %v1659 = vld [vmem:[#allocation7 + $0x1c] sm:$0xf]
        %v1660 = vld [vmem:[#allocation8] sm:$0x1]
        %v1661 = vld [vmem:[%s23] sm:$0xff]
        %v1662 = vld [vmem:[%s23 + $0x8] sm:$0xff]
        %v1663 = vld [vmem:[%s23 + $0x10] sm:$0xff]
        %v1664 = vld [vmem:[%s23 + $0x18] sm:$0xff]
        %v1665 = vld [vmem:[%s23 + $0x20] sm:$0xff]
        %v1666 = vld [vmem:[%s23 + $0x28] sm:$0xff]
        %v1667 = vld [vmem:[%s23 + $0x30] sm:$0xff]
        %v1668 = vld [vmem:[%s23 + $0x38] sm:$0xff]
        %v1669 = vld [vmem:[%s23 + $0x40] sm:$0xff]
        %v1670 = vld [vmem:[%s23 + $0x48] sm:$0xff]
        %v1671 = vld [vmem:[%s23 + $0x50] sm:$0xff]
        %v1672 = vld [vmem:[%s23 + $0x58] sm:$0xff]
        %v1673 = vld [vmem:[%s23 + $0x60] sm:$0xff]
        %v1674 = vld [vmem:[%s23 + $0x68] sm:$0xff]
        %v1675 = vld [vmem:[%s23 + $0x70] sm:$0xff]
        %v1676 = vld [vmem:[%s23 + $0x78] sm:$0xff]
        %v1677 = vld [vmem:[#allocation10] sm:$0xf]
        %v1678 = vld [vmem:[#allocation10 + $0x4] sm:$0xf]
        %v1679 = vld [vmem:[#allocation10 + $0x8] sm:$0xf]
        %v1680 = vld [vmem:[#allocation10 + $0xc] sm:$0xf]
        %v1681 = vld [vmem:[#allocation10 + $0x10] sm:$0xf]
        %v1682 = vld [vmem:[#allocation10 + $0x14] sm:$0xf]
        %v1683 = vld [vmem:[#allocation10 + $0x18] sm:$0xf]
        %v1684 = vld [vmem:[#allocation10 + $0x1c] sm:$0xf]
        %v1685 = vld [vmem:[#allocation10 + $0x20] sm:$0xf]
        %v1686 = vld [vmem:[#allocation10 + $0x24] sm:$0xf]
        %v1687 = vld [vmem:[#allocation10 + $0x28] sm:$0xf]
        %v1688 = vld [vmem:[#allocation10 + $0x2c] sm:$0xf]
        %v1689 = vld [vmem:[#allocation10 + $0x30] sm:$0xf]
        %v1690 = vld [vmem:[#allocation10 + $0x34] sm:$0xf]
        %v1691 = vld [vmem:[#allocation10 + $0x38] sm:$0xf]
        %v1692 = vld [vmem:[#allocation10 + $0x3c] sm:$0xf]
        %v1693 = vmul.f32 %v1587, %v1587
        %v1694 = vmul.f32 %v1588, %v1588
        %1695 = vadd.xlane.f32.xlu0 %v1693
        %v1696 = vpop.xlane.xlu0 %1695
        %1697 = vadd.xlane.f32.xlu0 %v1694
        %v1698 = vpop.xlane.xlu0 %1697
        %v1699 = vmul.f32 %v1696, 0.015625
        %v1700 = vmul.f32 %v1698, 0.015625
        %v1701 = vadd.f32 %v1699, 1e-06
        %v1702 = vadd.f32 %v1700, 1e-06
        %v1703 = vrsqrt.pop %v1701
        %v1704 = vmul.f32 %v1703, %v1701
        %v1705 = vmul.f32 %v1704, %v1703
        %v1706 = vmul.f32 0.5, %v1705
        %v1707 = vsub.f32 1.5, %v1706
        %v1708 = vmul.f32 %v1703, %v1707
        %vm1709 = vweird.f32 %v1701
        %vm1710 = vweird.f32 %v1703
        %vm1711 = vmor %vm1709, %vm1710
        %v1712 = vsel %vm1711, %v1703, %v1708
        %v1713 = vrsqrt.pop %v1702
        %v1714 = vmul.f32 %v1713, %v1702
        %v1715 = vmul.f32 %v1714, %v1713
        %v1716 = vmul.f32 0.5, %v1715
        %v1717 = vsub.f32 1.5, %v1716
        %v1718 = vmul.f32 %v1713, %v1717
        %vm1719 = vweird.f32 %v1702
        %vm1720 = vweird.f32 %v1713
        %vm1721 = vmor %vm1719, %vm1720
        %v1722 = vsel %vm1721, %v1713, %v1718
        %v1723 = vmul.f32 %v1587, %v1712
        %v1724 = vmul.f32 %v1588, %v1722
        %v1726 = vperm.slane %v1630, 0
        %v1728 = vmul.f32 %v1723, %v1726
        %v1729 = vmul.f32 %v1724, %v1726
        %v1730 = vpack.c.bf16 %v1729, %v1728
        %v1747 = vunpack.c.l.b16 %v1631
        %v1748 = vunpack.c.h.b16 %v1631
        %v1749 = vunpack.c.l.b16 %v1632
        %v1750 = vunpack.c.h.b16 %v1632
        %v1751 = vunpack.c.l.b16 %v1633
        %v1752 = vunpack.c.h.b16 %v1633
        %v1753 = vunpack.c.l.b16 %v1634
        %v1754 = vunpack.c.h.b16 %v1634
        %v1755 = vunpack.c.l.b16 %v1635
        %v1756 = vunpack.c.h.b16 %v1635
        %v1757 = vunpack.c.l.b16 %v1636
        %v1758 = vunpack.c.h.b16 %v1636
        %v1759 = vunpack.c.l.b16 %v1637
        %v1760 = vunpack.c.h.b16 %v1637
        %v1761 = vunpack.c.l.b16 %v1638
        %v1762 = vunpack.c.h.b16 %v1638
        %v1763 = vunpack.c.l.b16 %v1639
        %v1764 = vunpack.c.h.b16 %v1639
        %v1765 = vunpack.c.l.b16 %v1640
        %v1766 = vunpack.c.h.b16 %v1640
        %v1767 = vunpack.c.l.b16 %v1641
        %v1768 = vunpack.c.h.b16 %v1641
        %v1769 = vunpack.c.l.b16 %v1642
        %v1770 = vunpack.c.h.b16 %v1642
        %v1771 = vunpack.c.l.b16 %v1643
        %v1772 = vunpack.c.h.b16 %v1643
        %v1773 = vunpack.c.l.b16 %v1644
        %v1774 = vunpack.c.h.b16 %v1644
        %v1775 = vunpack.c.l.b16 %v1645
        %v1776 = vunpack.c.h.b16 %v1645
        %v1777 = vunpack.c.l.b16 %v1646
        %v1778 = vunpack.c.h.b16 %v1646
        %v1779 = vpack.c.b16 %v1749, %v1747
        %v1780 = vpack.c.b16 %v1750, %v1748
        %v1781 = vpack.c.b16 %v1753, %v1751
        %v1782 = vpack.c.b16 %v1754, %v1752
        %v1783 = vpack.c.b16 %v1757, %v1755
        %v1784 = vpack.c.b16 %v1758, %v1756
        %v1785 = vpack.c.b16 %v1761, %v1759
        %v1786 = vpack.c.b16 %v1762, %v1760
        %v1787 = vpack.c.b16 %v1765, %v1763
        %v1788 = vpack.c.b16 %v1766, %v1764
        %v1789 = vpack.c.b16 %v1769, %v1767
        %v1790 = vpack.c.b16 %v1770, %v1768
        %v1791 = vpack.c.b16 %v1773, %v1771
        %v1792 = vpack.c.b16 %v1774, %v1772
        %v1793 = vpack.c.b16 %v1777, %v1775
        %v1794 = vpack.c.b16 %v1778, %v1776
        %1811 = vmatpush.bf16.msra.mxu0 %v1793
        %1812 = vmatpush.bf16.msra.mxu0 %v1791
        %1813 = vmatpush.bf16.msra.mxu0 %v1789
        %1814 = vmatpush.bf16.msra.mxu0 %v1787
        %1815 = vmatpush.bf16.msra.mxu0 %v1785
        %1816 = vmatpush.bf16.msra.mxu0 %v1783
        %1817 = vmatpush.bf16.msra.mxu0 %v1781
        %1818 = vmatpush.bf16.msra.mxu0 %v1779
        %1819 = vmatmul.bf16.gmra.mxu0 %v1730
        %v1820 = vpop.f32.mrf.mxu0
        %v1821 = vadd.f32 0.0, %v1820
        %v1822 = vpop.f32.mrf.mxu0
        %v1823 = vadd.f32 0.0, %v1822
        %1824 = vdwg.mxu0
        %1825 = vmatpush.bf16.msra.mxu0 %v1794
        %1826 = vmatpush.bf16.msra.mxu0 %v1792
        %1827 = vmatpush.bf16.msra.mxu0 %v1790
        %1828 = vmatpush.bf16.msra.mxu0 %v1788
        %1829 = vmatpush.bf16.msra.mxu0 %v1786
        %1830 = vmatpush.bf16.msra.mxu0 %v1784
        %1831 = vmatpush.bf16.msra.mxu0 %v1782
        %1832 = vmatpush.bf16.msra.mxu0 %v1780
        %1833 = vmatmul.bf16.gmra.mxu0 %v1730
        %v1834 = vpop.f32.mrf.mxu0
        %v1835 = vadd.f32 0.0, %v1834
        %v1836 = vpop.f32.mrf.mxu0
        %v1837 = vadd.f32 0.0, %v1836
        %1838 = vdwg.mxu0
        %vm1839 = vcmask 130048
        %v1841 = vsel %vm1839, %v1610, 0
        %v1844 = vsel %vm1839, %v1611, 0
        %1846 = vmatpush.msra.mxu0 0.0
        %1847 = vmatpush.msra.mxu0 0.0
        %1848 = vmatpush.msra.mxu0 0.0
        %1849 = vmatpush.msra.mxu0 0.0
        %1850 = vmatpush.msra.mxu0 0.0
        %1851 = vmatpush.msra.mxu0 0.0
        %1852 = vmatpush.msra.mxu0 0.0
        %1853 = vmatpush.msra.mxu0 0.0
        %1854 = vmatpush.msra.mxu0 0.0
        %1855 = vmatpush.msra.mxu0 0.0
        %1856 = vmatpush.msra.mxu0 0.0
        %1857 = vmatpush.msra.mxu0 0.0
        %1858 = vmatpush.msra.mxu0 0.0
        %1859 = vmatpush.msra.mxu0 0.0
        %1860 = vmatpush.msra.mxu0 %v1823
        %1861 = vmatpush.msra.mxu0 %v1821
        %1862 = vmatmul.f32.gmra.mxu0 %v1841
        %v1863 = vpop.f32.mrf.mxu0
        %v1864 = vadd.f32 0.0, %v1863
        %1865 = vmatmul.f32.gmra.mxu0 %v1844
        %v1866 = vpop.f32.mrf.mxu0
        %v1867 = vadd.f32 0.0, %v1866
        %1868 = vdwg.mxu0
        %v1869 = vperm.slane %v1647, 0
        %v1870 = vmul.f32 %v1864, %v1869
        %v1871 = vmul.f32 %v1867, %v1869
        %v1873 = vperm.slane %v1648, 0
        %v1875 = vadd.f32 %v1873, %v1870
        %v1876 = vadd.f32 %v1873, %v1871
        %v1878 = vsel %vm1839, %v1616, 0
        %v1881 = vsel %vm1839, %v1617, 0
        %1883 = vmatpush.msra.mxu0 0.0
        %1884 = vmatpush.msra.mxu0 0.0
        %1885 = vmatpush.msra.mxu0 0.0
        %1886 = vmatpush.msra.mxu0 0.0
        %1887 = vmatpush.msra.mxu0 0.0
        %1888 = vmatpush.msra.mxu0 0.0
        %1889 = vmatpush.msra.mxu0 0.0
        %1890 = vmatpush.msra.mxu0 0.0
        %1891 = vmatpush.msra.mxu0 0.0
        %1892 = vmatpush.msra.mxu0 0.0
        %1893 = vmatpush.msra.mxu0 0.0
        %1894 = vmatpush.msra.mxu0 0.0
        %1895 = vmatpush.msra.mxu0 0.0
        %1896 = vmatpush.msra.mxu0 0.0
        %1897 = vmatpush.msra.mxu0 %v1823
        %1898 = vmatpush.msra.mxu0 %v1821
        %1899 = vmatmul.f32.gmra.mxu0 %v1878
        %v1900 = vpop.f32.mrf.mxu0
        %v1901 = vadd.f32 0.0, %v1900
        %1902 = vmatmul.f32.gmra.mxu0 %v1881
        %v1903 = vpop.f32.mrf.mxu0
        %v1904 = vadd.f32 0.0, %v1903
        %1905 = vdwg.mxu0
        %v1906 = vperm.slane %v1647, 1
        %v1907 = vmul.f32 %v1901, %v1906
        %v1908 = vmul.f32 %v1904, %v1906
        %v1909 = vadd.f32 %v1875, %v1907
        %v1910 = vadd.f32 %v1876, %v1908
        %v1912 = vsel %vm1839, %v1622, 0
        %v1915 = vsel %vm1839, %v1623, 0
        %1917 = vmatpush.msra.mxu0 0.0
        %1918 = vmatpush.msra.mxu0 0.0
        %1919 = vmatpush.msra.mxu0 0.0
        %1920 = vmatpush.msra.mxu0 0.0
        %1921 = vmatpush.msra.mxu0 0.0
        %1922 = vmatpush.msra.mxu0 0.0
        %1923 = vmatpush.msra.mxu0 0.0
        %1924 = vmatpush.msra.mxu0 0.0
        %1925 = vmatpush.msra.mxu0 0.0
        %1926 = vmatpush.msra.mxu0 0.0
        %1927 = vmatpush.msra.mxu0 0.0
        %1928 = vmatpush.msra.mxu0 0.0
        %1929 = vmatpush.msra.mxu0 0.0
        %1930 = vmatpush.msra.mxu0 0.0
        %1931 = vmatpush.msra.mxu0 %v1823
        %1932 = vmatpush.msra.mxu0 %v1821
        %1933 = vmatmul.f32.gmra.mxu0 %v1912
        %v1934 = vpop.f32.mrf.mxu0
        %v1935 = vadd.f32 0.0, %v1934
        %1936 = vmatmul.f32.gmra.mxu0 %v1915
        %v1937 = vpop.f32.mrf.mxu0
        %v1938 = vadd.f32 0.0, %v1937
        %1939 = vdwg.mxu0
        %v1940 = vperm.slane %v1647, 2
        %v1941 = vmul.f32 %v1935, %v1940
        %v1942 = vmul.f32 %v1938, %v1940
        %v1943 = vadd.f32 %v1909, %v1941
        %v1944 = vadd.f32 %v1910, %v1942
        %v1946 = vsel %vm1839, %v1628, 0
        %v1949 = vsel %vm1839, %v1629, 0
        %1951 = vmatpush.msra.mxu0 0.0
        %1952 = vmatpush.msra.mxu0 0.0
        %1953 = vmatpush.msra.mxu0 0.0
        %1954 = vmatpush.msra.mxu0 0.0
        %1955 = vmatpush.msra.mxu0 0.0
        %1956 = vmatpush.msra.mxu0 0.0
        %1957 = vmatpush.msra.mxu0 0.0
        %1958 = vmatpush.msra.mxu0 0.0
        %1959 = vmatpush.msra.mxu0 0.0
        %1960 = vmatpush.msra.mxu0 0.0
        %1961 = vmatpush.msra.mxu0 0.0
        %1962 = vmatpush.msra.mxu0 0.0
        %1963 = vmatpush.msra.mxu0 0.0
        %1964 = vmatpush.msra.mxu0 0.0
        %1965 = vmatpush.msra.mxu0 %v1823
        %1966 = vmatpush.msra.mxu0 %v1821
        %1967 = vmatmul.f32.gmra.mxu0 %v1946
        %v1968 = vpop.f32.mrf.mxu0
        %v1969 = vadd.f32 0.0, %v1968
        %1970 = vmatmul.f32.gmra.mxu0 %v1949
        %v1971 = vpop.f32.mrf.mxu0
        %v1972 = vadd.f32 0.0, %v1971
        %1973 = vdwg.mxu0
        %v1974 = vperm.slane %v1647, 3
        %v1975 = vmul.f32 %v1969, %v1974
        %v1976 = vmul.f32 %v1972, %v1974
        %v1977 = vadd.f32 %v1943, %v1975
        %v1978 = vadd.f32 %v1944, %v1976
        %v1979 = vxor.u32 %v1977, 2147483648
        %v1980 = vxor.u32 %v1978, 2147483648
        %v1981 = vmul.f32 %v1979, 1.442695
        %v1982 = vpow.pop %v1981
        %v1983 = vmul.f32 %v1980, 1.442695
        %v1984 = vpow.pop %v1983
        %v1985 = vadd.f32 %v1982, 1.0
        %v1986 = vadd.f32 %v1984, 1.0
        %v1987 = vrcp.pop %v1985
        %v1988 = vmul.f32 %v1985, %v1987
        %v1989 = vsub.f32 1.0, %v1988
        %v1990 = vmul.f32 %v1987, %v1989
        %v1991 = vadd.f32 %v1987, %v1990
        %vm1992 = vweird.f32 %v1985
        %vm1993 = vweird.f32 %v1987
        %vm1994 = vmor %vm1992, %vm1993
        %v1995 = vsel %vm1994, %v1987, %v1991
        %v1996 = vand.u32 2147483647, %v1985
        %vm1997 = vcmp.eq.f32.partialorder %v1996, 8.507059e+37
        %v1998 = vand.u32 %v1985, 2147483648
        %v1999 = vor.u32 1.1754944e-38, %v1998
        %v2000 = vsel %vm1997, %v1999, %v1995
        %v2001 = vmul.f32 1.0, %v2000
        %v2002 = vrcp.pop %v1986
        %v2003 = vmul.f32 %v1986, %v2002
        %v2004 = vsub.f32 1.0, %v2003
        %v2005 = vmul.f32 %v2002, %v2004
        %v2006 = vadd.f32 %v2002, %v2005
        %vm2007 = vweird.f32 %v1986
        %vm2008 = vweird.f32 %v2002
        %vm2009 = vmor %vm2007, %vm2008
        %v2010 = vsel %vm2009, %v2002, %v2006
        %v2011 = vand.u32 2147483647, %v1986
        %vm2012 = vcmp.eq.f32.partialorder %v2011, 8.507059e+37
        %v2013 = vand.u32 %v1986, 2147483648
        %v2014 = vor.u32 1.1754944e-38, %v2013
        %v2015 = vsel %vm2012, %v2014, %v2010
        %v2016 = vmul.f32 1.0, %v2015
        %v2017 = vmul.f32 %v1977, %v2001
        %v2018 = vmul.f32 %v1978, %v2016
        %v2020 = vperm.slane %v1649, 0
        %2021 = vrot.lane.b32.xlu0 %v2020, 64
        %v2022 = vpop.permute.xlu0 %2021
        %v2024 = vadd.f32 %v1835, %v2022
        %v2025 = vadd.f32 %v1837, %v2022
        %v2026 = vmax.f32 %v2024, 0.0
        %v2027 = vmax.f32 %v2025, 0.0
        %v2028 = vand.u32 2147483647, %v2024
        %v2029 = vand.u32 2147483647, %v2025
        %v2030 = vsub.f32 0.0, %v2028
        %v2031 = vsub.f32 0.0, %v2029
        %v2032 = vmul.f32 %v2030, 1.442695
        %v2033 = vpow.pop %v2032
        %v2034 = vmul.f32 %v2031, 1.442695
        %v2035 = vpow.pop %v2034
        %v2036 = vadd.f32 %v2033, 1.0
        %v2037 = vadd.f32 %v2035, 1.0
        %v2038 = vlog2.pop %v2036
        %v2039 = vmul.f32 %v2038, 0.6931472
        %v2040 = vlog2.pop %v2037
        %v2041 = vmul.f32 %v2040, 0.6931472
        %v2042 = vadd.f32 %v2026, %v2039
        %v2043 = vadd.f32 %v2027, %v2041
        %v2045 = vperm.slane %v1650, 0
        %2046 = vrot.lane.b32.xlu0 %v2045, 64
        %v2047 = vpop.permute.xlu0 %2046
        %v2049 = vmul.f32 %v2042, %v2047
        %v2050 = vmul.f32 %v2043, %v2047
        %2053 = vrot.lane.b32.xlu0 %v2049, 64
        %v2054 = vpop.permute.xlu0 %2053
        %2055 = vrot.lane.b32.xlu0 %v2050, 64
        %v2056 = vpop.permute.xlu0 %2055
        %v2060 = vsel %vm1839, %v1600, 0
        %v2063 = vsel %vm1839, %v1601, 0
        %2065 = vmatpush.msra.mxu0 0.0
        %2066 = vmatpush.msra.mxu0 0.0
        %2067 = vmatpush.msra.mxu0 0.0
        %2068 = vmatpush.msra.mxu0 0.0
        %2069 = vmatpush.msra.mxu0 0.0
        %2070 = vmatpush.msra.mxu0 0.0
        %2071 = vmatpush.msra.mxu0 0.0
        %2072 = vmatpush.msra.mxu0 0.0
        %2073 = vmatpush.msra.mxu0 0.0
        %2074 = vmatpush.msra.mxu0 0.0
        %2075 = vmatpush.msra.mxu0 0.0
        %2076 = vmatpush.msra.mxu0 0.0
        %2077 = vmatpush.msra.mxu0 0.0
        %2078 = vmatpush.msra.mxu0 0.0
        %2079 = vmatpush.msra.mxu0 %v2056
        %2080 = vmatpush.msra.mxu0 %v2054
        %2081 = vmatmul.f32.gmra.mxu0 %v2060
        %v2082 = vpop.f32.mrf.mxu0
        %v2083 = vadd.f32 0.0, %v2082
        %2084 = vmatmul.f32.gmra.mxu0 %v2063
        %v2085 = vpop.f32.mrf.mxu0
        %v2086 = vadd.f32 0.0, %v2085
        %2087 = vdwg.mxu0
        %v2088 = vmul.f32 %v2083, 1.442695
        %v2089 = vpow.pop %v2088
        %v2090 = vmul.f32 %v2086, 1.442695
        %v2091 = vpow.pop %v2090
        %v2092 = vsub.f32 0.0, %v2083
        %v2093 = vsub.f32 0.0, %v2086
        %v2094 = vmul.f32 %v2092, 1.442695
        %v2095 = vpow.pop %v2094
        %v2096 = vmul.f32 %v2093, 1.442695
        %v2097 = vpow.pop %v2096
        %2100 = vrot.lane.b32.xlu0 %v2095, 64
        %v2101 = vpop.permute.xlu0 %2100
        %2102 = vrot.lane.b32.xlu0 %v2097, 64
        %v2103 = vpop.permute.xlu0 %2102
        %v2106 = vmul.f32 %v2042, %v2101
        %v2107 = vmul.f32 %v2043, %v2103
        %2109 = vset.pattern.permute.xlu0 0
        %2110 = vperm.xlu0 %2109, %v2089
        %v2111 = vpop.permute.xlu0 %2110
        %2114 = vset.pattern.permute.xlu0 0
        %2115 = vperm.xlu0 %2114, %v2091
        %v2116 = vpop.permute.xlu0 %2115
        %v2118 = vmul.f32 %v2017, %v2111
        %v2119 = vmul.f32 %v2018, %v2116
        %2121 = vset.pattern.permute.xlu0 64
        %2122 = vperm.xlu0 %2121, %v2106
        %v2123 = vpop.permute.xlu0 %2122
        %2126 = vset.pattern.permute.xlu0 64
        %2127 = vperm.xlu0 %2126, %v2107
        %v2128 = vpop.permute.xlu0 %2127
        %v2130 = vmul.f32 %v2017, %v2123
        %v2131 = vmul.f32 %v2018, %v2128
        %v2133 = vperm.slane %v1651, 0
        %2134 = vset.pattern.permute.xlu0 0
        %2135 = vperm.xlu0 %2134, %v2133
        %v2136 = vpop.permute.xlu0 %2135
        %v2138 = vmul.f32 %v2017, %v2136
        %v2139 = vmul.f32 %v2018, %v2136
        %2140 = vset.pattern.permute.xlu0 1
        %2141 = vperm.xlu0 %2140, %v2089
        %v2142 = vpop.permute.xlu0 %2141
        %2144 = vset.pattern.permute.xlu0 1
        %2145 = vperm.xlu0 %2144, %v2091
        %v2146 = vpop.permute.xlu0 %2145
        %v2148 = vmul.f32 %v2017, %v2142
        %v2149 = vmul.f32 %v2018, %v2146
        %2150 = vset.pattern.permute.xlu0 65
        %2151 = vperm.xlu0 %2150, %v2106
        %v2152 = vpop.permute.xlu0 %2151
        %2154 = vset.pattern.permute.xlu0 65
        %2155 = vperm.xlu0 %2154, %v2107
        %v2156 = vpop.permute.xlu0 %2155
        %v2158 = vmul.f32 %v2017, %v2152
        %v2159 = vmul.f32 %v2018, %v2156
        %2160 = vset.pattern.permute.xlu0 1
        %2161 = vperm.xlu0 %2160, %v2133
        %v2162 = vpop.permute.xlu0 %2161
        %v2164 = vmul.f32 %v2017, %v2162
        %v2165 = vmul.f32 %v2018, %v2162
        %2166 = vset.pattern.permute.xlu0 2
        %2167 = vperm.xlu0 %2166, %v2089
        %v2168 = vpop.permute.xlu0 %2167
        %2170 = vset.pattern.permute.xlu0 2
        %2171 = vperm.xlu0 %2170, %v2091
        %v2172 = vpop.permute.xlu0 %2171
        %v2174 = vmul.f32 %v2017, %v2168
        %v2175 = vmul.f32 %v2018, %v2172
        %2176 = vset.pattern.permute.xlu0 66
        %2177 = vperm.xlu0 %2176, %v2106
        %v2178 = vpop.permute.xlu0 %2177
        %2180 = vset.pattern.permute.xlu0 66
        %2181 = vperm.xlu0 %2180, %v2107
        %v2182 = vpop.permute.xlu0 %2181
        %v2184 = vmul.f32 %v2017, %v2178
        %v2185 = vmul.f32 %v2018, %v2182
        %2186 = vset.pattern.permute.xlu0 2
        %2187 = vperm.xlu0 %2186, %v2133
        %v2188 = vpop.permute.xlu0 %2187
        %v2190 = vmul.f32 %v2017, %v2188
        %v2191 = vmul.f32 %v2018, %v2188
        %2192 = vset.pattern.permute.xlu0 3
        %2193 = vperm.xlu0 %2192, %v2089
        %v2194 = vpop.permute.xlu0 %2193
        %2196 = vset.pattern.permute.xlu0 3
        %2197 = vperm.xlu0 %2196, %v2091
        %v2198 = vpop.permute.xlu0 %2197
        %v2200 = vmul.f32 %v2017, %v2194
        %v2201 = vmul.f32 %v2018, %v2198
        %2202 = vset.pattern.permute.xlu0 67
        %2203 = vperm.xlu0 %2202, %v2106
        %v2204 = vpop.permute.xlu0 %2203
        %2206 = vset.pattern.permute.xlu0 67
        %2207 = vperm.xlu0 %2206, %v2107
        %v2208 = vpop.permute.xlu0 %2207
        %v2210 = vmul.f32 %v2017, %v2204
        %v2211 = vmul.f32 %v2018, %v2208
        %2212 = vset.pattern.permute.xlu0 3
        %2213 = vperm.xlu0 %2212, %v2133
        %v2214 = vpop.permute.xlu0 %2213
        %v2216 = vmul.f32 %v2017, %v2214
        %v2217 = vmul.f32 %v2018, %v2214
        %2220 = vrot.lane.b32.xlu0 %v2148, 112
        %v2221 = vpop.permute.xlu0 %2220
        %2222 = vrot.lane.b32.xlu0 %v2149, 112
        %v2223 = vpop.permute.xlu0 %2222
        %2226 = vrot.lane.b32.xlu0 %v2174, 96
        %v2227 = vpop.permute.xlu0 %2226
        %2228 = vrot.lane.b32.xlu0 %v2175, 96
        %v2229 = vpop.permute.xlu0 %2228
        %2232 = vrot.lane.b32.xlu0 %v2200, 80
        %v2233 = vpop.permute.xlu0 %2232
        %2234 = vrot.lane.b32.xlu0 %v2201, 80
        %v2235 = vpop.permute.xlu0 %2234
        %2238 = vrot.lane.b32.xlu0 %v2017, 112
        %v2239 = vpop.permute.xlu0 %2238
        %2240 = vrot.lane.b32.xlu0 %v2018, 112
        %v2241 = vpop.permute.xlu0 %2240
        %2244 = vrot.lane.b32.xlu0 %v2184, 112
        %v2245 = vpop.permute.xlu0 %2244
        %2246 = vrot.lane.b32.xlu0 %v2185, 112
        %v2247 = vpop.permute.xlu0 %2246
        %2252 = vrot.lane.b32.xlu0 %v2210, 112
        %v2253 = vpop.permute.xlu0 %2252
        %2254 = vrot.lane.b32.xlu0 %v2211, 112
        %v2255 = vpop.permute.xlu0 %2254
        %2260 = vrot.lane.b32.xlu0 %v2190, 112
        %v2261 = vpop.permute.xlu0 %2260
        %2262 = vrot.lane.b32.xlu0 %v2191, 112
        %v2263 = vpop.permute.xlu0 %2262
        %2268 = vrot.lane.b32.xlu0 %v2216, 112
        %v2269 = vpop.permute.xlu0 %2268
        %2270 = vrot.lane.b32.xlu0 %v2217, 112
        %v2271 = vpop.permute.xlu0 %2270
        %2276 = vrot.lane.b32.xlu0 %v1835, 112
        %v2277 = vpop.permute.xlu0 %2276
        %2278 = vrot.lane.b32.xlu0 %v1837, 112
        %v2279 = vpop.permute.xlu0 %2278
        %2282 = vrot.lane.b32.xlu0 %v1835, 96
        %v2283 = vpop.permute.xlu0 %2282
        %2284 = vrot.lane.b32.xlu0 %v1837, 96
        %v2285 = vpop.permute.xlu0 %2284
        %2288 = vrot.lane.b32.xlu0 %v1835, 80
        %v2289 = vpop.permute.xlu0 %2288
        %2290 = vrot.lane.b32.xlu0 %v1837, 80
        %v2291 = vpop.permute.xlu0 %2290
        %2296 = vrot.lane.b32.xlu0 %v2118, 64
        %v2297 = vpop.permute.xlu0 %2296
        %2298 = vrot.lane.b32.xlu0 %v2119, 64
        %v2299 = vpop.permute.xlu0 %2298
        %2300 = vrot.lane.b32.xlu0 %v2017, 96
        %v2301 = vpop.permute.xlu0 %2300
        %2302 = vrot.lane.b32.xlu0 %v2018, 96
        %v2303 = vpop.permute.xlu0 %2302
        %v2304 = vsel %vm1839, %v2297, 0
        %v2306 = vsel %vm1839, %v2299, 0
        %v2308 = vsel %vm1839, %v2301, 0
        %v2310 = vsel %vm1839, %v2303, 0
        %2312 = vmatpush.xpose.msra.mxu0 0.0
        %2313 = vmatpush.xpose.msra.mxu0 0.0
        %2314 = vmatpush.xpose.msra.mxu0 0.0
        %2315 = vmatpush.xpose.msra.mxu0 0.0
        %2316 = vmatpush.xpose.msra.mxu0 0.0
        %2317 = vmatpush.xpose.msra.mxu0 0.0
        %2318 = vmatpush.xpose.msra.mxu0 0.0
        %2319 = vmatpush.xpose.msra.mxu0 0.0
        %2320 = vmatpush.xpose.msra.mxu0 0.0
        %2321 = vmatpush.xpose.msra.mxu0 0.0
        %2322 = vmatpush.xpose.msra.mxu0 0.0
        %2323 = vmatpush.xpose.msra.mxu0 0.0
        %2324 = vmatpush.xpose.msra.mxu0 0.0
        %2325 = vmatpush.xpose.msra.mxu0 0.0
        %2326 = vmatpush.xpose.msra.mxu0 %v2310
        %2327 = vmatpush.xpose.msra.mxu0 %v2308
        %2328 = vmatmul.f32.gmra.mxu0 %v2304
        %v2329 = vpop.f32.mrf.mxu0
        %v2330 = vadd.f32 0.0, %v2329
        %2331 = vmatmul.f32.gmra.mxu0 %v2306
        %v2332 = vpop.f32.mrf.mxu0
        %v2333 = vadd.f32 0.0, %v2332
        %2334 = vdwg.mxu0
        %2335 = vrot.lane.b32.xlu0 %v2221, 64
        %v2336 = vpop.permute.xlu0 %2335
        %2337 = vrot.lane.b32.xlu0 %v2223, 64
        %v2338 = vpop.permute.xlu0 %2337
        %v2339 = vsel %vm1839, %v2336, 0
        %v2341 = vsel %vm1839, %v2338, 0
        %2343 = vmatpush.xpose.msra.mxu0 0.0
        %2344 = vmatpush.xpose.msra.mxu0 0.0
        %2345 = vmatpush.xpose.msra.mxu0 0.0
        %2346 = vmatpush.xpose.msra.mxu0 0.0
        %2347 = vmatpush.xpose.msra.mxu0 0.0
        %2348 = vmatpush.xpose.msra.mxu0 0.0
        %2349 = vmatpush.xpose.msra.mxu0 0.0
        %2350 = vmatpush.xpose.msra.mxu0 0.0
        %2351 = vmatpush.xpose.msra.mxu0 0.0
        %2352 = vmatpush.xpose.msra.mxu0 0.0
        %2353 = vmatpush.xpose.msra.mxu0 0.0
        %2354 = vmatpush.xpose.msra.mxu0 0.0
        %2355 = vmatpush.xpose.msra.mxu0 0.0
        %2356 = vmatpush.xpose.msra.mxu0 0.0
        %2357 = vmatpush.xpose.msra.mxu0 %v2310
        %2358 = vmatpush.xpose.msra.mxu0 %v2308
        %2359 = vmatmul.f32.gmra.mxu0 %v2339
        %v2360 = vpop.f32.mrf.mxu0
        %v2361 = vadd.f32 0.0, %v2360
        %2362 = vmatmul.f32.gmra.mxu0 %v2341
        %v2363 = vpop.f32.mrf.mxu0
        %v2364 = vadd.f32 0.0, %v2363
        %2365 = vdwg.mxu0
        %2366 = vrot.lane.b32.xlu0 %v2227, 64
        %v2367 = vpop.permute.xlu0 %2366
        %2368 = vrot.lane.b32.xlu0 %v2229, 64
        %v2369 = vpop.permute.xlu0 %2368
        %2370 = vrot.lane.b32.xlu0 %v2239, 96
        %v2371 = vpop.permute.xlu0 %2370
        %2372 = vrot.lane.b32.xlu0 %v2241, 96
        %v2373 = vpop.permute.xlu0 %2372
        %v2374 = vsel %vm1839, %v2367, 0
        %v2376 = vsel %vm1839, %v2369, 0
        %v2378 = vsel %vm1839, %v2371, 0
        %v2380 = vsel %vm1839, %v2373, 0
        %2382 = vmatpush.xpose.msra.mxu0 0.0
        %2383 = vmatpush.xpose.msra.mxu0 0.0
        %2384 = vmatpush.xpose.msra.mxu0 0.0
        %2385 = vmatpush.xpose.msra.mxu0 0.0
        %2386 = vmatpush.xpose.msra.mxu0 0.0
        %2387 = vmatpush.xpose.msra.mxu0 0.0
        %2388 = vmatpush.xpose.msra.mxu0 0.0
        %2389 = vmatpush.xpose.msra.mxu0 0.0
        %2390 = vmatpush.xpose.msra.mxu0 0.0
        %2391 = vmatpush.xpose.msra.mxu0 0.0
        %2392 = vmatpush.xpose.msra.mxu0 0.0
        %2393 = vmatpush.xpose.msra.mxu0 0.0
        %2394 = vmatpush.xpose.msra.mxu0 0.0
        %2395 = vmatpush.xpose.msra.mxu0 0.0
        %2396 = vmatpush.xpose.msra.mxu0 %v2380
        %2397 = vmatpush.xpose.msra.mxu0 %v2378
        %2398 = vmatmul.f32.gmra.mxu0 %v2374
        %v2399 = vpop.f32.mrf.mxu0
        %v2400 = vadd.f32 0.0, %v2399
        %2401 = vmatmul.f32.gmra.mxu0 %v2376
        %v2402 = vpop.f32.mrf.mxu0
        %v2403 = vadd.f32 0.0, %v2402
        %2404 = vdwg.mxu0
        %2405 = vrot.lane.b32.xlu0 %v2233, 64
        %v2406 = vpop.permute.xlu0 %2405
        %2407 = vrot.lane.b32.xlu0 %v2235, 64
        %v2408 = vpop.permute.xlu0 %2407
        %v2409 = vsel %vm1839, %v2406, 0
        %v2411 = vsel %vm1839, %v2408, 0
        %2413 = vmatpush.xpose.msra.mxu0 0.0
        %2414 = vmatpush.xpose.msra.mxu0 0.0
        %2415 = vmatpush.xpose.msra.mxu0 0.0
        %2416 = vmatpush.xpose.msra.mxu0 0.0
        %2417 = vmatpush.xpose.msra.mxu0 0.0
        %2418 = vmatpush.xpose.msra.mxu0 0.0
        %2419 = vmatpush.xpose.msra.mxu0 0.0
        %2420 = vmatpush.xpose.msra.mxu0 0.0
        %2421 = vmatpush.xpose.msra.mxu0 0.0
        %2422 = vmatpush.xpose.msra.mxu0 0.0
        %2423 = vmatpush.xpose.msra.mxu0 0.0
        %2424 = vmatpush.xpose.msra.mxu0 0.0
        %2425 = vmatpush.xpose.msra.mxu0 0.0
        %2426 = vmatpush.xpose.msra.mxu0 0.0
        %2427 = vmatpush.xpose.msra.mxu0 %v2380
        %2428 = vmatpush.xpose.msra.mxu0 %v2378
        %2429 = vmatmul.f32.gmra.mxu0 %v2409
        %v2430 = vpop.f32.mrf.mxu0
        %v2431 = vadd.f32 0.0, %v2430
        %2432 = vmatmul.f32.gmra.mxu0 %v2411
        %v2433 = vpop.f32.mrf.mxu0
        %v2434 = vadd.f32 0.0, %v2433
        %2435 = vdwg.mxu0
        %v2436 = vmul.f32 %v2330, %v1600
        %v2437 = vmul.f32 %v2333, %v1601
        %v2438 = vmul.f32 %v2361, %v1600
        %v2439 = vmul.f32 %v2364, %v1601
        %v2440 = vmul.f32 %v2400, %v1600
        %v2441 = vmul.f32 %v2403, %v1601
        %v2442 = vmul.f32 %v2431, %v1600
        %v2443 = vmul.f32 %v2434, %v1601
        %v2445 = vsel %vm1839, %v2436, 0
        %v2448 = vsel %vm1839, %v2437, 0
        %2450 = vmatpush.msra.mxu0 0.0
        %2451 = vmatpush.msra.mxu0 0.0
        %2452 = vmatpush.msra.mxu0 0.0
        %2453 = vmatpush.msra.mxu0 0.0
        %2454 = vmatpush.msra.mxu0 0.0
        %2455 = vmatpush.msra.mxu0 0.0
        %2456 = vmatpush.msra.mxu0 0.0
        %2457 = vmatpush.msra.mxu0 0.0
        %2458 = vmatpush.msra.mxu0 0.0
        %2459 = vmatpush.msra.mxu0 0.0
        %2460 = vmatpush.msra.mxu0 0.0
        %2461 = vmatpush.msra.mxu0 0.0
        %2462 = vmatpush.msra.mxu0 0.0
        %2463 = vmatpush.msra.mxu0 0.0
        %2464 = vmatpush.msra.mxu0 %v2131
        %2465 = vmatpush.msra.mxu0 %v2130
        %2466 = vmatmul.f32.gmra.mxu0 %v2445
        %v2467 = vpop.f32.mrf.mxu0
        %v2468 = vadd.f32 %v2138, %v2467
        %2469 = vmatmul.f32.gmra.mxu0 %v2448
        %v2470 = vpop.f32.mrf.mxu0
        %v2471 = vadd.f32 %v2139, %v2470
        %2472 = vdwg.mxu0
        %v2474 = vsel %vm1839, %v2438, 0
        %v2477 = vsel %vm1839, %v2439, 0
        %2479 = vmatpush.msra.mxu0 0.0
        %2480 = vmatpush.msra.mxu0 0.0
        %2481 = vmatpush.msra.mxu0 0.0
        %2482 = vmatpush.msra.mxu0 0.0
        %2483 = vmatpush.msra.mxu0 0.0
        %2484 = vmatpush.msra.mxu0 0.0
        %2485 = vmatpush.msra.mxu0 0.0
        %2486 = vmatpush.msra.mxu0 0.0
        %2487 = vmatpush.msra.mxu0 0.0
        %2488 = vmatpush.msra.mxu0 0.0
        %2489 = vmatpush.msra.mxu0 0.0
        %2490 = vmatpush.msra.mxu0 0.0
        %2491 = vmatpush.msra.mxu0 0.0
        %2492 = vmatpush.msra.mxu0 0.0
        %2493 = vmatpush.msra.mxu0 %v2159
        %2494 = vmatpush.msra.mxu0 %v2158
        %2495 = vmatmul.f32.gmra.mxu0 %v2474
        %v2496 = vpop.f32.mrf.mxu0
        %v2497 = vadd.f32 %v2164, %v2496
        %2498 = vmatmul.f32.gmra.mxu0 %v2477
        %v2499 = vpop.f32.mrf.mxu0
        %v2500 = vadd.f32 %v2165, %v2499
        %2501 = vdwg.mxu0
        %v2503 = vsel %vm1839, %v2440, 0
        %v2506 = vsel %vm1839, %v2441, 0
        %2508 = vmatpush.msra.mxu0 0.0
        %2509 = vmatpush.msra.mxu0 0.0
        %2510 = vmatpush.msra.mxu0 0.0
        %2511 = vmatpush.msra.mxu0 0.0
        %2512 = vmatpush.msra.mxu0 0.0
        %2513 = vmatpush.msra.mxu0 0.0
        %2514 = vmatpush.msra.mxu0 0.0
        %2515 = vmatpush.msra.mxu0 0.0
        %2516 = vmatpush.msra.mxu0 0.0
        %2517 = vmatpush.msra.mxu0 0.0
        %2518 = vmatpush.msra.mxu0 0.0
        %2519 = vmatpush.msra.mxu0 0.0
        %2520 = vmatpush.msra.mxu0 0.0
        %2521 = vmatpush.msra.mxu0 0.0
        %2522 = vmatpush.msra.mxu0 %v2247
        %2523 = vmatpush.msra.mxu0 %v2245
        %2524 = vmatmul.f32.gmra.mxu0 %v2503
        %v2525 = vpop.f32.mrf.mxu0
        %v2526 = vadd.f32 %v2261, %v2525
        %2527 = vmatmul.f32.gmra.mxu0 %v2506
        %v2528 = vpop.f32.mrf.mxu0
        %v2529 = vadd.f32 %v2263, %v2528
        %2530 = vdwg.mxu0
        %v2532 = vsel %vm1839, %v2442, 0
        %v2535 = vsel %vm1839, %v2443, 0
        %2537 = vmatpush.msra.mxu0 0.0
        %2538 = vmatpush.msra.mxu0 0.0
        %2539 = vmatpush.msra.mxu0 0.0
        %2540 = vmatpush.msra.mxu0 0.0
        %2541 = vmatpush.msra.mxu0 0.0
        %2542 = vmatpush.msra.mxu0 0.0
        %2543 = vmatpush.msra.mxu0 0.0
        %2544 = vmatpush.msra.mxu0 0.0
        %2545 = vmatpush.msra.mxu0 0.0
        %2546 = vmatpush.msra.mxu0 0.0
        %2547 = vmatpush.msra.mxu0 0.0
        %2548 = vmatpush.msra.mxu0 0.0
        %2549 = vmatpush.msra.mxu0 0.0
        %2550 = vmatpush.msra.mxu0 0.0
        %2551 = vmatpush.msra.mxu0 %v2255
        %2552 = vmatpush.msra.mxu0 %v2253
        %2553 = vmatmul.f32.gmra.mxu0 %v2532
        %v2554 = vpop.f32.mrf.mxu0
        %v2555 = vadd.f32 %v2269, %v2554
        %2556 = vmatmul.f32.gmra.mxu0 %v2535
        %v2557 = vpop.f32.mrf.mxu0
        %v2558 = vadd.f32 %v2271, %v2557
        %2559 = vdwg.mxu0
        %v2560 = vxor.u32 %v1835, 2147483648
        %v2561 = vxor.u32 %v1837, 2147483648
        %v2562 = vxor.u32 %v2277, 2147483648
        %v2563 = vxor.u32 %v2279, 2147483648
        %v2564 = vxor.u32 %v2283, 2147483648
        %v2565 = vxor.u32 %v2285, 2147483648
        %v2566 = vxor.u32 %v2289, 2147483648
        %v2567 = vxor.u32 %v2291, 2147483648
        %v2568 = vmul.f32 %v2560, 1.442695
        %v2569 = vpow.pop %v2568
        %v2570 = vmul.f32 %v2561, 1.442695
        %v2571 = vpow.pop %v2570
        %v2572 = vmul.f32 %v2562, 1.442695
        %v2573 = vpow.pop %v2572
        %v2574 = vmul.f32 %v2563, 1.442695
        %v2575 = vpow.pop %v2574
        %v2576 = vmul.f32 %v2564, 1.442695
        %v2577 = vpow.pop %v2576
        %v2578 = vmul.f32 %v2565, 1.442695
        %v2579 = vpow.pop %v2578
        %v2580 = vmul.f32 %v2566, 1.442695
        %v2581 = vpow.pop %v2580
        %v2582 = vmul.f32 %v2567, 1.442695
        %v2583 = vpow.pop %v2582
        %v2584 = vadd.f32 %v2569, 1.0
        %v2585 = vadd.f32 %v2571, 1.0
        %v2586 = vadd.f32 %v2573, 1.0
        %v2587 = vadd.f32 %v2575, 1.0
        %v2588 = vadd.f32 %v2577, 1.0
        %v2589 = vadd.f32 %v2579, 1.0
        %v2590 = vadd.f32 %v2581, 1.0
        %v2591 = vadd.f32 %v2583, 1.0
        %v2592 = vrcp.pop %v2584
        %v2593 = vmul.f32 %v2584, %v2592
        %v2594 = vsub.f32 1.0, %v2593
        %v2595 = vmul.f32 %v2592, %v2594
        %v2596 = vadd.f32 %v2592, %v2595
        %vm2597 = vweird.f32 %v2584
        %vm2598 = vweird.f32 %v2592
        %vm2599 = vmor %vm2597, %vm2598
        %v2600 = vsel %vm2599, %v2592, %v2596
        %v2601 = vand.u32 2147483647, %v2584
        %vm2602 = vcmp.eq.f32.partialorder %v2601, 8.507059e+37
        %v2603 = vand.u32 %v2584, 2147483648
        %v2604 = vor.u32 1.1754944e-38, %v2603
        %v2605 = vsel %vm2602, %v2604, %v2600
        %v2606 = vmul.f32 1.0, %v2605
        %v2607 = vrcp.pop %v2585
        %v2608 = vmul.f32 %v2585, %v2607
        %v2609 = vsub.f32 1.0, %v2608
        %v2610 = vmul.f32 %v2607, %v2609
        %v2611 = vadd.f32 %v2607, %v2610
        %vm2612 = vweird.f32 %v2585
        %vm2613 = vweird.f32 %v2607
        %vm2614 = vmor %vm2612, %vm2613
        %v2615 = vsel %vm2614, %v2607, %v2611
        %v2616 = vand.u32 2147483647, %v2585
        %vm2617 = vcmp.eq.f32.partialorder %v2616, 8.507059e+37
        %v2618 = vand.u32 %v2585, 2147483648
        %v2619 = vor.u32 1.1754944e-38, %v2618
        %v2620 = vsel %vm2617, %v2619, %v2615
        %v2621 = vmul.f32 1.0, %v2620
        %v2622 = vrcp.pop %v2586
        %v2623 = vmul.f32 %v2586, %v2622
        %v2624 = vsub.f32 1.0, %v2623
        %v2625 = vmul.f32 %v2622, %v2624
        %v2626 = vadd.f32 %v2622, %v2625
        %vm2627 = vweird.f32 %v2586
        %vm2628 = vweird.f32 %v2622
        %vm2629 = vmor %vm2627, %vm2628
        %v2630 = vsel %vm2629, %v2622, %v2626
        %v2631 = vand.u32 2147483647, %v2586
        %vm2632 = vcmp.eq.f32.partialorder %v2631, 8.507059e+37
        %v2633 = vand.u32 %v2586, 2147483648
        %v2634 = vor.u32 1.1754944e-38, %v2633
        %v2635 = vsel %vm2632, %v2634, %v2630
        %v2636 = vmul.f32 1.0, %v2635
        %v2637 = vrcp.pop %v2587
        %v2638 = vmul.f32 %v2587, %v2637
        %v2639 = vsub.f32 1.0, %v2638
        %v2640 = vmul.f32 %v2637, %v2639
        %v2641 = vadd.f32 %v2637, %v2640
        %vm2642 = vweird.f32 %v2587
        %vm2643 = vweird.f32 %v2637
        %vm2644 = vmor %vm2642, %vm2643
        %v2645 = vsel %vm2644, %v2637, %v2641
        %v2646 = vand.u32 2147483647, %v2587
        %vm2647 = vcmp.eq.f32.partialorder %v2646, 8.507059e+37
        %v2648 = vand.u32 %v2587, 2147483648
        %v2649 = vor.u32 1.1754944e-38, %v2648
        %v2650 = vsel %vm2647, %v2649, %v2645
        %v2651 = vmul.f32 1.0, %v2650
        %v2652 = vrcp.pop %v2588
        %v2653 = vmul.f32 %v2588, %v2652
        %v2654 = vsub.f32 1.0, %v2653
        %v2655 = vmul.f32 %v2652, %v2654
        %v2656 = vadd.f32 %v2652, %v2655
        %vm2657 = vweird.f32 %v2588
        %vm2658 = vweird.f32 %v2652
        %vm2659 = vmor %vm2657, %vm2658
        %v2660 = vsel %vm2659, %v2652, %v2656
        %v2661 = vand.u32 2147483647, %v2588
        %vm2662 = vcmp.eq.f32.partialorder %v2661, 8.507059e+37
        %v2663 = vand.u32 %v2588, 2147483648
        %v2664 = vor.u32 1.1754944e-38, %v2663
        %v2665 = vsel %vm2662, %v2664, %v2660
        %v2666 = vmul.f32 1.0, %v2665
        %v2667 = vrcp.pop %v2589
        %v2668 = vmul.f32 %v2589, %v2667
        %v2669 = vsub.f32 1.0, %v2668
        %v2670 = vmul.f32 %v2667, %v2669
        %v2671 = vadd.f32 %v2667, %v2670
        %vm2672 = vweird.f32 %v2589
        %vm2673 = vweird.f32 %v2667
        %vm2674 = vmor %vm2672, %vm2673
        %v2675 = vsel %vm2674, %v2667, %v2671
        %v2676 = vand.u32 2147483647, %v2589
        %vm2677 = vcmp.eq.f32.partialorder %v2676, 8.507059e+37
        %v2678 = vand.u32 %v2589, 2147483648
        %v2679 = vor.u32 1.1754944e-38, %v2678
        %v2680 = vsel %vm2677, %v2679, %v2675
        %v2681 = vmul.f32 1.0, %v2680
        %v2682 = vrcp.pop %v2590
        %v2683 = vmul.f32 %v2590, %v2682
        %v2684 = vsub.f32 1.0, %v2683
        %v2685 = vmul.f32 %v2682, %v2684
        %v2686 = vadd.f32 %v2682, %v2685
        %vm2687 = vweird.f32 %v2590
        %vm2688 = vweird.f32 %v2682
        %vm2689 = vmor %vm2687, %vm2688
        %v2690 = vsel %vm2689, %v2682, %v2686
        %v2691 = vand.u32 2147483647, %v2590
        %vm2692 = vcmp.eq.f32.partialorder %v2691, 8.507059e+37
        %v2693 = vand.u32 %v2590, 2147483648
        %v2694 = vor.u32 1.1754944e-38, %v2693
        %v2695 = vsel %vm2692, %v2694, %v2690
        %v2696 = vmul.f32 1.0, %v2695
        %v2697 = vrcp.pop %v2591
        %v2698 = vmul.f32 %v2591, %v2697
        %v2699 = vsub.f32 1.0, %v2698
        %v2700 = vmul.f32 %v2697, %v2699
        %v2701 = vadd.f32 %v2697, %v2700
        %vm2702 = vweird.f32 %v2591
        %vm2703 = vweird.f32 %v2697
        %vm2704 = vmor %vm2702, %vm2703
        %v2705 = vsel %vm2704, %v2697, %v2701
        %v2706 = vand.u32 2147483647, %v2591
        %vm2707 = vcmp.eq.f32.partialorder %v2706, 8.507059e+37
        %v2708 = vand.u32 %v2591, 2147483648
        %v2709 = vor.u32 1.1754944e-38, %v2708
        %v2710 = vsel %vm2707, %v2709, %v2705
        %v2711 = vmul.f32 1.0, %v2710
        %v2712 = vmul.f32 %v1835, %v2606
        %v2713 = vmul.f32 %v1837, %v2621
        %v2714 = vmul.f32 %v2277, %v2636
        %v2715 = vmul.f32 %v2279, %v2651
        %v2716 = vmul.f32 %v2283, %v2666
        %v2717 = vmul.f32 %v2285, %v2681
        %v2718 = vmul.f32 %v2289, %v2696
        %v2719 = vmul.f32 %v2291, %v2711
        %v2720 = vmul.f32 %v2468, %v2712
        %v2721 = vmul.f32 %v2471, %v2713
        %v2722 = vmul.f32 %v2497, %v2714
        %v2723 = vmul.f32 %v2500, %v2715
        %v2724 = vmul.f32 %v2526, %v2716
        %v2725 = vmul.f32 %v2529, %v2717
        %v2726 = vmul.f32 %v2555, %v2718
        %v2727 = vmul.f32 %v2558, %v2719
        %v2728 = vpack.c.bf16 %v2720, %v2720
        %v2729 = vpack.c.bf16 %v2721, %v2721
        %v2730 = vpack.c.bf16 %v2722, %v2722
        %v2731 = vpack.c.bf16 %v2723, %v2723
        %v2732 = vpack.c.bf16 %v2724, %v2724
        %v2733 = vpack.c.bf16 %v2725, %v2725
        %v2734 = vpack.c.bf16 %v2726, %v2726
        %v2735 = vpack.c.bf16 %v2727, %v2727
        %v2738 = vunpack.c.l.b16 %v2728
        %v2739 = vunpack.c.l.b16 %v2729
        %v2740 = vpack.c.b16 %v2739, %v2738
        %v2743 = vunpack.c.l.b16 %v1652
        %v2744 = vunpack.c.l.b16 %v1653
        %v2745 = vpack.c.b16 %v2744, %v2743
        %v2748 = vsel %vm1839, %v2740, 0
        %2750 = vmatpush.bf16.msra.mxu0 0
        %2751 = vmatpush.bf16.msra.mxu0 0
        %2752 = vmatpush.bf16.msra.mxu0 0
        %2753 = vmatpush.bf16.msra.mxu0 0
        %2754 = vmatpush.bf16.msra.mxu0 0
        %2755 = vmatpush.bf16.msra.mxu0 0
        %2756 = vmatpush.bf16.msra.mxu0 0
        %2757 = vmatpush.bf16.msra.mxu0 %v2745
        %2758 = vmatmul.bf16.gmra.mxu0 %v2748
        %v2759 = vpop.f32.mrf.mxu0
        %v2760 = vadd.f32 0.0, %v2759
        %v2761 = vpop.f32.mrf.mxu0
        %v2762 = vadd.f32 0.0, %v2761
        %2763 = vdwg.mxu0
        %v2766 = vunpack.c.l.b16 %v2730
        %v2767 = vunpack.c.l.b16 %v2731
        %v2768 = vpack.c.b16 %v2767, %v2766
        %v2771 = vunpack.c.l.b16 %v1654
        %v2772 = vunpack.c.l.b16 %v1655
        %v2773 = vpack.c.b16 %v2772, %v2771
        %v2776 = vsel %vm1839, %v2768, 0
        %2778 = vmatpush.bf16.msra.mxu0 0
        %2779 = vmatpush.bf16.msra.mxu0 0
        %2780 = vmatpush.bf16.msra.mxu0 0
        %2781 = vmatpush.bf16.msra.mxu0 0
        %2782 = vmatpush.bf16.msra.mxu0 0
        %2783 = vmatpush.bf16.msra.mxu0 0
        %2784 = vmatpush.bf16.msra.mxu0 0
        %2785 = vmatpush.bf16.msra.mxu0 %v2773
        %2786 = vmatmul.bf16.gmra.mxu0 %v2776
        %v2787 = vpop.f32.mrf.mxu0
        %v2788 = vadd.f32 0.0, %v2787
        %v2789 = vpop.f32.mrf.mxu0
        %v2790 = vadd.f32 0.0, %v2789
        %2791 = vdwg.mxu0
        %v2794 = vunpack.c.l.b16 %v2732
        %v2795 = vunpack.c.l.b16 %v2733
        %v2796 = vpack.c.b16 %v2795, %v2794
        %v2799 = vunpack.c.l.b16 %v1656
        %v2800 = vunpack.c.l.b16 %v1657
        %v2801 = vpack.c.b16 %v2800, %v2799
        %v2804 = vsel %vm1839, %v2796, 0
        %2806 = vmatpush.bf16.msra.mxu0 0
        %2807 = vmatpush.bf16.msra.mxu0 0
        %2808 = vmatpush.bf16.msra.mxu0 0
        %2809 = vmatpush.bf16.msra.mxu0 0
        %2810 = vmatpush.bf16.msra.mxu0 0
        %2811 = vmatpush.bf16.msra.mxu0 0
        %2812 = vmatpush.bf16.msra.mxu0 0
        %2813 = vmatpush.bf16.msra.mxu0 %v2801
        %2814 = vmatmul.bf16.gmra.mxu0 %v2804
        %v2815 = vpop.f32.mrf.mxu0
        %v2816 = vadd.f32 0.0, %v2815
        %v2817 = vpop.f32.mrf.mxu0
        %v2818 = vadd.f32 0.0, %v2817
        %2819 = vdwg.mxu0
        %v2822 = vunpack.c.l.b16 %v2734
        %v2823 = vunpack.c.l.b16 %v2735
        %v2824 = vpack.c.b16 %v2823, %v2822
        %v2827 = vunpack.c.l.b16 %v1658
        %v2828 = vunpack.c.l.b16 %v1659
        %v2829 = vpack.c.b16 %v2828, %v2827
        %v2832 = vsel %vm1839, %v2824, 0
        %2834 = vmatpush.bf16.msra.mxu0 0
        %2835 = vmatpush.bf16.msra.mxu0 0
        %2836 = vmatpush.bf16.msra.mxu0 0
        %2837 = vmatpush.bf16.msra.mxu0 0
        %2838 = vmatpush.bf16.msra.mxu0 0
        %2839 = vmatpush.bf16.msra.mxu0 0
        %2840 = vmatpush.bf16.msra.mxu0 0
        %2841 = vmatpush.bf16.msra.mxu0 %v2829
        %2842 = vmatmul.bf16.gmra.mxu0 %v2832
        %v2843 = vpop.f32.mrf.mxu0
        %v2844 = vadd.f32 0.0, %v2843
        %v2845 = vpop.f32.mrf.mxu0
        %v2846 = vadd.f32 0.0, %v2845
        %2847 = vdwg.mxu0
        %v2848 = vadd.f32 %v2760, %v2788
        %v2849 = vadd.f32 %v2848, %v2816
        %v2850 = vadd.f32 %v2849, %v2844
        %v2851 = vadd.f32 %v2762, %v2790
        %v2852 = vadd.f32 %v2851, %v2818
        %v2853 = vadd.f32 %v2852, %v2846
        %v2854 = vadd.f32 %v1587, %v2850
        %v2855 = vadd.f32 %v1588, %v2853
        %v2856 = vmul.f32 %v2854, %v2854
        %v2857 = vmul.f32 %v2855, %v2855
        %2858 = vadd.xlane.f32.xlu0 %v2856
        %v2859 = vpop.xlane.xlu0 %2858
        %2860 = vadd.xlane.f32.xlu0 %v2857
        %v2861 = vpop.xlane.xlu0 %2860
        %v2862 = vmul.f32 %v2859, 0.015625
        %v2863 = vmul.f32 %v2861, 0.015625
        %v2864 = vadd.f32 %v2862, 1e-06
        %v2865 = vadd.f32 %v2863, 1e-06
        %v2866 = vrsqrt.pop %v2864
        %v2867 = vmul.f32 %v2866, %v2864
        %v2868 = vmul.f32 %v2867, %v2866
        %v2869 = vmul.f32 0.5, %v2868
        %v2870 = vsub.f32 1.5, %v2869
        %v2871 = vmul.f32 %v2866, %v2870
        %vm2872 = vweird.f32 %v2864
        %vm2873 = vweird.f32 %v2866
        %vm2874 = vmor %vm2872, %vm2873
        %v2875 = vsel %vm2874, %v2866, %v2871
        %v2876 = vrsqrt.pop %v2865
        %v2877 = vmul.f32 %v2876, %v2865
        %v2878 = vmul.f32 %v2877, %v2876
        %v2879 = vmul.f32 0.5, %v2878
        %v2880 = vsub.f32 1.5, %v2879
        %v2881 = vmul.f32 %v2876, %v2880
        %vm2882 = vweird.f32 %v2865
        %vm2883 = vweird.f32 %v2876
        %vm2884 = vmor %vm2882, %vm2883
        %v2885 = vsel %vm2884, %v2876, %v2881
        %v2886 = vmul.f32 %v2854, %v2875
        %v2887 = vmul.f32 %v2855, %v2885
        %v2889 = vperm.slane %v1660, 0
        %v2891 = vmul.f32 %v2886, %v2889
        %v2892 = vmul.f32 %v2887, %v2889
        %v2893 = vpack.c.bf16 %v2892, %v2891
        %v2910 = vunpack.c.l.b16 %v1661
        %v2911 = vunpack.c.h.b16 %v1661
        %v2912 = vunpack.c.l.b16 %v1662
        %v2913 = vunpack.c.h.b16 %v1662
        %v2914 = vunpack.c.l.b16 %v1663
        %v2915 = vunpack.c.h.b16 %v1663
        %v2916 = vunpack.c.l.b16 %v1664
        %v2917 = vunpack.c.h.b16 %v1664
        %v2918 = vunpack.c.l.b16 %v1665
        %v2919 = vunpack.c.h.b16 %v1665
        %v2920 = vunpack.c.l.b16 %v1666
        %v2921 = vunpack.c.h.b16 %v1666
        %v2922 = vunpack.c.l.b16 %v1667
        %v2923 = vunpack.c.h.b16 %v1667
        %v2924 = vunpack.c.l.b16 %v1668
        %v2925 = vunpack.c.h.b16 %v1668
        %v2926 = vunpack.c.l.b16 %v1669
        %v2927 = vunpack.c.h.b16 %v1669
        %v2928 = vunpack.c.l.b16 %v1670
        %v2929 = vunpack.c.h.b16 %v1670
        %v2930 = vunpack.c.l.b16 %v1671
        %v2931 = vunpack.c.h.b16 %v1671
        %v2932 = vunpack.c.l.b16 %v1672
        %v2933 = vunpack.c.h.b16 %v1672
        %v2934 = vunpack.c.l.b16 %v1673
        %v2935 = vunpack.c.h.b16 %v1673
        %v2936 = vunpack.c.l.b16 %v1674
        %v2937 = vunpack.c.h.b16 %v1674
        %v2938 = vunpack.c.l.b16 %v1675
        %v2939 = vunpack.c.h.b16 %v1675
        %v2940 = vunpack.c.l.b16 %v1676
        %v2941 = vunpack.c.h.b16 %v1676
        %v2942 = vpack.c.b16 %v2912, %v2910
        %v2943 = vpack.c.b16 %v2913, %v2911
        %v2944 = vpack.c.b16 %v2916, %v2914
        %v2945 = vpack.c.b16 %v2917, %v2915
        %v2946 = vpack.c.b16 %v2920, %v2918
        %v2947 = vpack.c.b16 %v2921, %v2919
        %v2948 = vpack.c.b16 %v2924, %v2922
        %v2949 = vpack.c.b16 %v2925, %v2923
        %v2950 = vpack.c.b16 %v2928, %v2926
        %v2951 = vpack.c.b16 %v2929, %v2927
        %v2952 = vpack.c.b16 %v2932, %v2930
        %v2953 = vpack.c.b16 %v2933, %v2931
        %v2954 = vpack.c.b16 %v2936, %v2934
        %v2955 = vpack.c.b16 %v2937, %v2935
        %v2956 = vpack.c.b16 %v2940, %v2938
        %v2957 = vpack.c.b16 %v2941, %v2939
        %2974 = vmatpush.bf16.msra.mxu0 %v2956
        %2975 = vmatpush.bf16.msra.mxu0 %v2954
        %2976 = vmatpush.bf16.msra.mxu0 %v2952
        %2977 = vmatpush.bf16.msra.mxu0 %v2950
        %2978 = vmatpush.bf16.msra.mxu0 %v2948
        %2979 = vmatpush.bf16.msra.mxu0 %v2946
        %2980 = vmatpush.bf16.msra.mxu0 %v2944
        %2981 = vmatpush.bf16.msra.mxu0 %v2942
        %2982 = vmatmul.bf16.gmra.mxu0 %v2893
        %v2983 = vpop.f32.mrf.mxu0
        %v2984 = vadd.f32 0.0, %v2983
        %v2985 = vpop.f32.mrf.mxu0
        %v2986 = vadd.f32 0.0, %v2985
        %2987 = vdwg.mxu0
        %2988 = vmatpush.bf16.msra.mxu0 %v2957
        %2989 = vmatpush.bf16.msra.mxu0 %v2955
        %2990 = vmatpush.bf16.msra.mxu0 %v2953
        %2991 = vmatpush.bf16.msra.mxu0 %v2951
        %2992 = vmatpush.bf16.msra.mxu0 %v2949
        %2993 = vmatpush.bf16.msra.mxu0 %v2947
        %2994 = vmatpush.bf16.msra.mxu0 %v2945
        %2995 = vmatpush.bf16.msra.mxu0 %v2943
        %2996 = vmatmul.bf16.gmra.mxu0 %v2893
        %v2997 = vpop.f32.mrf.mxu0
        %v2998 = vadd.f32 0.0, %v2997
        %v2999 = vpop.f32.mrf.mxu0
        %v3000 = vadd.f32 0.0, %v2999
        %3001 = vdwg.mxu0
        %v3002 = vxor.u32 %v2984, 2147483648
        %v3003 = vxor.u32 %v2986, 2147483648
        %v3004 = vmul.f32 %v3002, 1.442695
        %v3005 = vpow.pop %v3004
        %v3006 = vmul.f32 %v3003, 1.442695
        %v3007 = vpow.pop %v3006
        %v3008 = vadd.f32 %v3005, 1.0
        %v3009 = vadd.f32 %v3007, 1.0
        %v3010 = vrcp.pop %v3008
        %v3011 = vmul.f32 %v3008, %v3010
        %v3012 = vsub.f32 1.0, %v3011
        %v3013 = vmul.f32 %v3010, %v3012
        %v3014 = vadd.f32 %v3010, %v3013
        %vm3015 = vweird.f32 %v3008
        %vm3016 = vweird.f32 %v3010
        %vm3017 = vmor %vm3015, %vm3016
        %v3018 = vsel %vm3017, %v3010, %v3014
        %v3019 = vand.u32 2147483647, %v3008
        %vm3020 = vcmp.eq.f32.partialorder %v3019, 8.507059e+37
        %v3021 = vand.u32 %v3008, 2147483648
        %v3022 = vor.u32 1.1754944e-38, %v3021
        %v3023 = vsel %vm3020, %v3022, %v3018
        %v3024 = vmul.f32 1.0, %v3023
        %v3025 = vrcp.pop %v3009
        %v3026 = vmul.f32 %v3009, %v3025
        %v3027 = vsub.f32 1.0, %v3026
        %v3028 = vmul.f32 %v3025, %v3027
        %v3029 = vadd.f32 %v3025, %v3028
        %vm3030 = vweird.f32 %v3009
        %vm3031 = vweird.f32 %v3025
        %vm3032 = vmor %vm3030, %vm3031
        %v3033 = vsel %vm3032, %v3025, %v3029
        %v3034 = vand.u32 2147483647, %v3009
        %vm3035 = vcmp.eq.f32.partialorder %v3034, 8.507059e+37
        %v3036 = vand.u32 %v3009, 2147483648
        %v3037 = vor.u32 1.1754944e-38, %v3036
        %v3038 = vsel %vm3035, %v3037, %v3033
        %v3039 = vmul.f32 1.0, %v3038
        %v3040 = vmul.f32 %v2984, %v3024
        %v3041 = vmul.f32 %v2986, %v3039
        %v3042 = vmul.f32 %v3040, %v2998
        %v3043 = vmul.f32 %v3041, %v3000
        %v3044 = vpack.c.bf16 %v3043, %v3042
        %v3061 = vunpack.c.l.b16 %v1677
        %v3062 = vunpack.c.l.b16 %v1678
        %v3063 = vunpack.c.l.b16 %v1679
        %v3064 = vunpack.c.l.b16 %v1680
        %v3065 = vunpack.c.l.b16 %v1681
        %v3066 = vunpack.c.l.b16 %v1682
        %v3067 = vunpack.c.l.b16 %v1683
        %v3068 = vunpack.c.l.b16 %v1684
        %v3069 = vunpack.c.l.b16 %v1685
        %v3070 = vunpack.c.l.b16 %v1686
        %v3071 = vunpack.c.l.b16 %v1687
        %v3072 = vunpack.c.l.b16 %v1688
        %v3073 = vunpack.c.l.b16 %v1689
        %v3074 = vunpack.c.l.b16 %v1690
        %v3075 = vunpack.c.l.b16 %v1691
        %v3076 = vunpack.c.l.b16 %v1692
        %v3077 = vpack.c.b16 %v3062, %v3061
        %v3078 = vpack.c.b16 %v3064, %v3063
        %v3079 = vpack.c.b16 %v3066, %v3065
        %v3080 = vpack.c.b16 %v3068, %v3067
        %v3081 = vpack.c.b16 %v3070, %v3069
        %v3082 = vpack.c.b16 %v3072, %v3071
        %v3083 = vpack.c.b16 %v3074, %v3073
        %v3084 = vpack.c.b16 %v3076, %v3075
        %3093 = vmatpush.bf16.msra.mxu0 %v3084
        %3094 = vmatpush.bf16.msra.mxu0 %v3083
        %3095 = vmatpush.bf16.msra.mxu0 %v3082
        %3096 = vmatpush.bf16.msra.mxu0 %v3081
        %3097 = vmatpush.bf16.msra.mxu0 %v3080
        %3098 = vmatpush.bf16.msra.mxu0 %v3079
        %3099 = vmatpush.bf16.msra.mxu0 %v3078
        %3100 = vmatpush.bf16.msra.mxu0 %v3077
        %3101 = vmatmul.bf16.gmra.mxu0 %v3044
        %v3102 = vpop.f32.mrf.mxu0
        %v3103 = vadd.f32 0.0, %v3102
        %v3104 = vpop.f32.mrf.mxu0
        %v3105 = vadd.f32 0.0, %v3104
        %3106 = vdwg.mxu0
        %v3107 = vadd.f32 %v2854, %v3103
        %v3108 = vadd.f32 %v2855, %v3105
        %v3109 = vld [vmem:[#allocation11] sm:$0x1]
        %v3110 = vld [vmem:[#allocation13] sm:$0xf]
        %v3111 = vld [vmem:[#allocation13 + $0x4] sm:$0xf]
        %v3112 = vld [vmem:[#allocation13 + $0x8] sm:$0xf]
        %v3113 = vld [vmem:[#allocation13 + $0xc] sm:$0xf]
        %v3114 = vld [vmem:[#allocation13 + $0x10] sm:$0xf]
        %v3115 = vld [vmem:[#allocation13 + $0x14] sm:$0xf]
        %v3116 = vld [vmem:[#allocation13 + $0x18] sm:$0xf]
        %v3117 = vld [vmem:[#allocation13 + $0x1c] sm:$0xf]
        %v3118 = vld [vmem:[#allocation13 + $0x20] sm:$0xf]
        %v3119 = vld [vmem:[#allocation13 + $0x24] sm:$0xf]
        %v3120 = vld [vmem:[#allocation13 + $0x28] sm:$0xf]
        %v3121 = vld [vmem:[#allocation13 + $0x2c] sm:$0xf]
        %v3122 = vld [vmem:[#allocation13 + $0x30] sm:$0xf]
        %v3123 = vld [vmem:[#allocation13 + $0x34] sm:$0xf]
        %v3124 = vld [vmem:[#allocation13 + $0x38] sm:$0xf]
        %v3125 = vld [vmem:[#allocation13 + $0x3c] sm:$0xf]
        %v3126 = vld [vmem:[#allocation14] sm:$0xf]
        %v3127 = vld [vmem:[#allocation14 + $0x4] sm:$0xf]
        %v3128 = vld [vmem:[#allocation14 + $0x8] sm:$0xf]
        %v3129 = vld [vmem:[#allocation14 + $0xc] sm:$0xf]
        %v3130 = vld [vmem:[#allocation14 + $0x10] sm:$0xf]
        %v3131 = vld [vmem:[#allocation14 + $0x14] sm:$0xf]
        %v3132 = vld [vmem:[#allocation14 + $0x18] sm:$0xf]
        %v3133 = vld [vmem:[#allocation14 + $0x1c] sm:$0xf]
        %v3134 = vld [vmem:[#allocation16] sm:$0x1]
        %v3135 = vld [vmem:[%s35] sm:$0xff]
        %v3136 = vld [vmem:[%s35 + $0x8] sm:$0xff]
        %v3137 = vld [vmem:[%s35 + $0x10] sm:$0xff]
        %v3138 = vld [vmem:[%s35 + $0x18] sm:$0xff]
        %v3139 = vld [vmem:[%s35 + $0x20] sm:$0xff]
        %v3140 = vld [vmem:[%s35 + $0x28] sm:$0xff]
        %v3141 = vld [vmem:[%s35 + $0x30] sm:$0xff]
        %v3142 = vld [vmem:[%s35 + $0x38] sm:$0xff]
        %v3143 = vld [vmem:[%s35 + $0x40] sm:$0xff]
        %v3144 = vld [vmem:[%s35 + $0x48] sm:$0xff]
        %v3145 = vld [vmem:[%s35 + $0x50] sm:$0xff]
        %v3146 = vld [vmem:[%s35 + $0x58] sm:$0xff]
        %v3147 = vld [vmem:[%s35 + $0x60] sm:$0xff]
        %v3148 = vld [vmem:[%s35 + $0x68] sm:$0xff]
        %v3149 = vld [vmem:[%s35 + $0x70] sm:$0xff]
        %v3150 = vld [vmem:[%s35 + $0x78] sm:$0xff]
        %v3151 = vld [vmem:[#allocation17] sm:$0xf]
        %v3152 = vld [vmem:[#allocation17 + $0x4] sm:$0xf]
        %v3153 = vld [vmem:[#allocation17 + $0x8] sm:$0xf]
        %v3154 = vld [vmem:[#allocation17 + $0xc] sm:$0xf]
        %v3155 = vld [vmem:[#allocation17 + $0x10] sm:$0xf]
        %v3156 = vld [vmem:[#allocation17 + $0x14] sm:$0xf]
        %v3157 = vld [vmem:[#allocation17 + $0x18] sm:$0xf]
        %v3158 = vld [vmem:[#allocation17 + $0x1c] sm:$0xf]
        %v3159 = vld [vmem:[#allocation17 + $0x20] sm:$0xf]
        %v3160 = vld [vmem:[#allocation17 + $0x24] sm:$0xf]
        %v3161 = vld [vmem:[#allocation17 + $0x28] sm:$0xf]
        %v3162 = vld [vmem:[#allocation17 + $0x2c] sm:$0xf]
        %v3163 = vld [vmem:[#allocation17 + $0x30] sm:$0xf]
        %v3164 = vld [vmem:[#allocation17 + $0x34] sm:$0xf]
        %v3165 = vld [vmem:[#allocation17 + $0x38] sm:$0xf]
        %v3166 = vld [vmem:[#allocation17 + $0x3c] sm:$0xf]
        %v3167 = vmul.f32 %v3107, %v3107
        %v3168 = vmul.f32 %v3108, %v3108
        %3169 = vadd.xlane.f32.xlu0 %v3167
        %v3170 = vpop.xlane.xlu0 %3169
        %3171 = vadd.xlane.f32.xlu0 %v3168
        %v3172 = vpop.xlane.xlu0 %3171
        %v3173 = vmul.f32 %v3170, 0.015625
        %v3174 = vmul.f32 %v3172, 0.015625
        %v3175 = vadd.f32 %v3173, 1e-06
        %v3176 = vadd.f32 %v3174, 1e-06
        %v3177 = vrsqrt.pop %v3175
        %v3178 = vmul.f32 %v3177, %v3175
        %v3179 = vmul.f32 %v3178, %v3177
        %v3180 = vmul.f32 0.5, %v3179
        %v3181 = vsub.f32 1.5, %v3180
        %v3182 = vmul.f32 %v3177, %v3181
        %vm3183 = vweird.f32 %v3175
        %vm3184 = vweird.f32 %v3177
        %vm3185 = vmor %vm3183, %vm3184
        %v3186 = vsel %vm3185, %v3177, %v3182
        %v3187 = vrsqrt.pop %v3176
        %v3188 = vmul.f32 %v3187, %v3176
        %v3189 = vmul.f32 %v3188, %v3187
        %v3190 = vmul.f32 0.5, %v3189
        %v3191 = vsub.f32 1.5, %v3190
        %v3192 = vmul.f32 %v3187, %v3191
        %vm3193 = vweird.f32 %v3176
        %vm3194 = vweird.f32 %v3187
        %vm3195 = vmor %vm3193, %vm3194
        %v3196 = vsel %vm3195, %v3187, %v3192
        %v3197 = vmul.f32 %v3107, %v3186
        %v3198 = vmul.f32 %v3108, %v3196
        %v3200 = vperm.slane %v3109, 0
        %v3202 = vmul.f32 %v3197, %v3200
        %v3203 = vmul.f32 %v3198, %v3200
        %v3204 = vpack.c.bf16 %v3203, %v3202
        %v3221 = vunpack.c.l.b16 %v3110
        %v3222 = vunpack.c.l.b16 %v3111
        %v3223 = vunpack.c.l.b16 %v3112
        %v3224 = vunpack.c.l.b16 %v3113
        %v3225 = vunpack.c.l.b16 %v3114
        %v3226 = vunpack.c.l.b16 %v3115
        %v3227 = vunpack.c.l.b16 %v3116
        %v3228 = vunpack.c.l.b16 %v3117
        %v3229 = vunpack.c.l.b16 %v3118
        %v3230 = vunpack.c.l.b16 %v3119
        %v3231 = vunpack.c.l.b16 %v3120
        %v3232 = vunpack.c.l.b16 %v3121
        %v3233 = vunpack.c.l.b16 %v3122
        %v3234 = vunpack.c.l.b16 %v3123
        %v3235 = vunpack.c.l.b16 %v3124
        %v3236 = vunpack.c.l.b16 %v3125
        %v3237 = vpack.c.b16 %v3222, %v3221
        %v3238 = vpack.c.b16 %v3224, %v3223
        %v3239 = vpack.c.b16 %v3226, %v3225
        %v3240 = vpack.c.b16 %v3228, %v3227
        %v3241 = vpack.c.b16 %v3230, %v3229
        %v3242 = vpack.c.b16 %v3232, %v3231
        %v3243 = vpack.c.b16 %v3234, %v3233
        %v3244 = vpack.c.b16 %v3236, %v3235
        %3253 = vmatpush.bf16.msra.mxu0 %v3244
        %3254 = vmatpush.bf16.msra.mxu0 %v3243
        %3255 = vmatpush.bf16.msra.mxu0 %v3242
        %3256 = vmatpush.bf16.msra.mxu0 %v3241
        %3257 = vmatpush.bf16.msra.mxu0 %v3240
        %3258 = vmatpush.bf16.msra.mxu0 %v3239
        %3259 = vmatpush.bf16.msra.mxu0 %v3238
        %3260 = vmatpush.bf16.msra.mxu0 %v3237
        %3261 = vmatmul.bf16.gmra.mxu0 %v3204
        %v3262 = vpop.f32.mrf.mxu0
        %v3263 = vadd.f32 0.0, %v3262
        %v3264 = vpop.f32.mrf.mxu0
        %v3265 = vadd.f32 0.0, %v3264
        %3266 = vdwg.mxu0
        %3269 = vrot.lane.b32.xlu0 %v3263, 112
        %v3270 = vpop.permute.xlu0 %3269
        %3271 = vrot.lane.b32.xlu0 %v3265, 112
        %v3272 = vpop.permute.xlu0 %3271
        %3275 = vrot.lane.b32.xlu0 %v3263, 96
        %v3276 = vpop.permute.xlu0 %3275
        %3277 = vrot.lane.b32.xlu0 %v3265, 96
        %v3278 = vpop.permute.xlu0 %3277
        %3281 = vrot.lane.b32.xlu0 %v3263, 80
        %v3282 = vpop.permute.xlu0 %3281
        %3283 = vrot.lane.b32.xlu0 %v3265, 80
        %v3284 = vpop.permute.xlu0 %3283
        %v3287 = vmul.f32 %v3263, %v1589
        %v3288 = vmul.f32 %v3265, %v1590
        %v3289 = vmul.f32 %v3270, %v1589
        %v3290 = vmul.f32 %v3272, %v1590
        %v3291 = vmul.f32 %v3276, %v1589
        %v3292 = vmul.f32 %v3278, %v1590
        %v3293 = vmul.f32 %v3282, %v1589
        %v3294 = vmul.f32 %v3284, %v1590
        %3303 = vrot.lane.b32.xlu0 %v3287, 120
        %v3304 = vpop.permute.xlu0 %3303
        %3305 = vrot.lane.b32.xlu0 %v3288, 120
        %v3306 = vpop.permute.xlu0 %3305
        %3307 = vrot.lane.b32.xlu0 %v3289, 120
        %v3308 = vpop.permute.xlu0 %3307
        %3309 = vrot.lane.b32.xlu0 %v3290, 120
        %v3310 = vpop.permute.xlu0 %3309
        %3311 = vrot.lane.b32.xlu0 %v3291, 120
        %v3312 = vpop.permute.xlu0 %3311
        %3313 = vrot.lane.b32.xlu0 %v3292, 120
        %v3314 = vpop.permute.xlu0 %3313
        %3315 = vrot.lane.b32.xlu0 %v3293, 120
        %v3316 = vpop.permute.xlu0 %3315
        %3317 = vrot.lane.b32.xlu0 %v3294, 120
        %v3318 = vpop.permute.xlu0 %3317
        %v3327 = vsub.f32 %v3287, %v3304
        %v3328 = vsub.f32 %v3288, %v3306
        %v3329 = vsub.f32 %v3289, %v3308
        %v3330 = vsub.f32 %v3290, %v3310
        %v3331 = vsub.f32 %v3291, %v3312
        %v3332 = vsub.f32 %v3292, %v3314
        %v3333 = vsub.f32 %v3293, %v3316
        %v3334 = vsub.f32 %v3294, %v3318
        %3337 = vrot.lane.b32.xlu0 %v1589, 8
        %v3338 = vpop.permute.xlu0 %3337
        %3339 = vrot.lane.b32.xlu0 %v1590, 8
        %v3340 = vpop.permute.xlu0 %3339
        %v3343 = vmul.f32 %v3263, %v3338
        %v3344 = vmul.f32 %v3265, %v3340
        %v3345 = vmul.f32 %v3270, %v3338
        %v3346 = vmul.f32 %v3272, %v3340
        %v3347 = vmul.f32 %v3276, %v3338
        %v3348 = vmul.f32 %v3278, %v3340
        %v3349 = vmul.f32 %v3282, %v3338
        %v3350 = vmul.f32 %v3284, %v3340
        %3351 = vrot.lane.b32.xlu0 %v1589, 120
        %v3352 = vpop.permute.xlu0 %3351
        %3353 = vrot.lane.b32.xlu0 %v1590, 120
        %v3354 = vpop.permute.xlu0 %3353
        %v3357 = vmul.f32 %v3263, %v3352
        %v3358 = vmul.f32 %v3265, %v3354
        %v3359 = vmul.f32 %v3270, %v3352
        %v3360 = vmul.f32 %v3272, %v3354
        %v3361 = vmul.f32 %v3276, %v3352
        %v3362 = vmul.f32 %v3278, %v3354
        %v3363 = vmul.f32 %v3282, %v3352
        %v3364 = vmul.f32 %v3284, %v3354
        %3373 = vrot.lane.b32.xlu0 %v3357, 8
        %v3374 = vpop.permute.xlu0 %3373
        %3375 = vrot.lane.b32.xlu0 %v3358, 8
        %v3376 = vpop.permute.xlu0 %3375
        %3377 = vrot.lane.b32.xlu0 %v3359, 8
        %v3378 = vpop.permute.xlu0 %3377
        %3379 = vrot.lane.b32.xlu0 %v3360, 8
        %v3380 = vpop.permute.xlu0 %3379
        %3381 = vrot.lane.b32.xlu0 %v3361, 8
        %v3382 = vpop.permute.xlu0 %3381
        %3383 = vrot.lane.b32.xlu0 %v3362, 8
        %v3384 = vpop.permute.xlu0 %3383
        %3385 = vrot.lane.b32.xlu0 %v3363, 8
        %v3386 = vpop.permute.xlu0 %3385
        %3387 = vrot.lane.b32.xlu0 %v3364, 8
        %v3388 = vpop.permute.xlu0 %3387
        %v3397 = vadd.f32 %v3343, %v3374
        %v3398 = vadd.f32 %v3344, %v3376
        %v3399 = vadd.f32 %v3345, %v3378
        %v3400 = vadd.f32 %v3346, %v3380
        %v3401 = vadd.f32 %v3347, %v3382
        %v3402 = vadd.f32 %v3348, %v3384
        %v3403 = vadd.f32 %v3349, %v3386
        %v3404 = vadd.f32 %v3350, %v3388
        %vm3405 = vcmask 64512
        %v3406 = vsel %vm3405, %v3327, %v3397
        %v3407 = vsel %vm3405, %v3328, %v3398
        %v3408 = vsel %vm3405, %v3329, %v3399
        %v3409 = vsel %vm3405, %v3330, %v3400
        %v3410 = vsel %vm3405, %v3331, %v3401
        %v3411 = vsel %vm3405, %v3332, %v3402
        %v3412 = vsel %vm3405, %v3333, %v3403
        %v3413 = vsel %vm3405, %v3334, %v3404
        %3414 = vrot.lane.b32.xlu0 %v1589, 64
        %v3415 = vpop.permute.xlu0 %3414
        %3416 = vrot.lane.b32.xlu0 %v1590, 64
        %v3417 = vpop.permute.xlu0 %3416
        %v3420 = vmul.f32 %v3263, %v3415
        %v3421 = vmul.f32 %v3265, %v3417
        %v3422 = vmul.f32 %v3270, %v3415
        %v3423 = vmul.f32 %v3272, %v3417
        %3428 = vrot.lane.b32.xlu0 %v3420, 120
        %v3429 = vpop.permute.xlu0 %3428
        %3430 = vrot.lane.b32.xlu0 %v3421, 120
        %v3431 = vpop.permute.xlu0 %3430
        %3432 = vrot.lane.b32.xlu0 %v3422, 120
        %v3433 = vpop.permute.xlu0 %3432
        %3434 = vrot.lane.b32.xlu0 %v3423, 120
        %v3435 = vpop.permute.xlu0 %3434
        %v3440 = vsub.f32 %v3420, %v3429
        %v3441 = vsub.f32 %v3421, %v3431
        %v3442 = vsub.f32 %v3422, %v3433
        %v3443 = vsub.f32 %v3423, %v3435
        %3444 = vrot.lane.b32.xlu0 %v1589, 72
        %v3445 = vpop.permute.xlu0 %3444
        %3446 = vrot.lane.b32.xlu0 %v1590, 72
        %v3447 = vpop.permute.xlu0 %3446
        %v3450 = vmul.f32 %v3263, %v3445
        %v3451 = vmul.f32 %v3265, %v3447
        %v3452 = vmul.f32 %v3270, %v3445
        %v3453 = vmul.f32 %v3272, %v3447
        %3454 = vrot.lane.b32.xlu0 %v1589, 56
        %v3455 = vpop.permute.xlu0 %3454
        %3456 = vrot.lane.b32.xlu0 %v1590, 56
        %v3457 = vpop.permute.xlu0 %3456
        %v3460 = vmul.f32 %v3263, %v3455
        %v3461 = vmul.f32 %v3265, %v3457
        %v3462 = vmul.f32 %v3270, %v3455
        %v3463 = vmul.f32 %v3272, %v3457
        %3468 = vrot.lane.b32.xlu0 %v3460, 8
        %v3469 = vpop.permute.xlu0 %3468
        %3470 = vrot.lane.b32.xlu0 %v3461, 8
        %v3471 = vpop.permute.xlu0 %3470
        %3472 = vrot.lane.b32.xlu0 %v3462, 8
        %v3473 = vpop.permute.xlu0 %3472
        %3474 = vrot.lane.b32.xlu0 %v3463, 8
        %v3475 = vpop.permute.xlu0 %3474
        %v3480 = vadd.f32 %v3450, %v3469
        %v3481 = vadd.f32 %v3451, %v3471
        %v3482 = vadd.f32 %v3452, %v3473
        %v3483 = vadd.f32 %v3453, %v3475
        %3488 = vrot.lane.b32.xlu0 %v3440, 64
        %v3489 = vpop.permute.xlu0 %3488
        %3490 = vrot.lane.b32.xlu0 %v3441, 64
        %v3491 = vpop.permute.xlu0 %3490
        %3492 = vrot.lane.b32.xlu0 %v3442, 64
        %v3493 = vpop.permute.xlu0 %3492
        %3494 = vrot.lane.b32.xlu0 %v3443, 64
        %v3495 = vpop.permute.xlu0 %3494
        %3504 = vrot.lane.b32.xlu0 %v3480, 64
        %v3505 = vpop.permute.xlu0 %3504
        %3506 = vrot.lane.b32.xlu0 %v3481, 64
        %v3507 = vpop.permute.xlu0 %3506
        %3508 = vrot.lane.b32.xlu0 %v3482, 64
        %v3509 = vpop.permute.xlu0 %3508
        %3510 = vrot.lane.b32.xlu0 %v3483, 64
        %v3511 = vpop.permute.xlu0 %3510
        %v3516 = vsel %vm3405, %v3489, %v3505
        %v3517 = vsel %vm3405, %v3491, %v3507
        %v3518 = vsel %vm3405, %v3493, %v3509
        %v3519 = vsel %vm3405, %v3495, %v3511
        %v3520 = vpack.c.bf16 %v3406, %v3406
        %v3521 = vpack.c.bf16 %v3407, %v3407
        %v3522 = vpack.c.bf16 %v3408, %v3408
        %v3523 = vpack.c.bf16 %v3409, %v3409
        %v3524 = vpack.c.bf16 %v3410, %v3410
        %v3525 = vpack.c.bf16 %v3411, %v3411
        %v3526 = vpack.c.bf16 %v3412, %v3412
        %v3527 = vpack.c.bf16 %v3413, %v3413
        %v3528 = vpack.c.bf16 %v3516, %v3516
        %v3529 = vpack.c.bf16 %v3517, %v3517
        %v3530 = vpack.c.bf16 %v3518, %v3518
        %v3531 = vpack.c.bf16 %v3519, %v3519
        %v3534 = vunpack.c.l.b16 %v3520
        %v3535 = vunpack.c.l.b16 %v3521
        %v3536 = vpack.c.b16 %v3535, %v3534
        %v3539 = vunpack.c.l.b16 %v3528
        %v3540 = vunpack.c.l.b16 %v3529
        %v3541 = vpack.c.b16 %v3540, %v3539
        %v3543 = vsel %vm1839, %v3536, 0
        %v3546 = vsel %vm1839, %v3541, 0
        %3548 = vmatpush.bf16.xpose.msra.mxu0 0
        %3549 = vmatpush.bf16.xpose.msra.mxu0 0
        %3550 = vmatpush.bf16.xpose.msra.mxu0 0
        %3551 = vmatpush.bf16.xpose.msra.mxu0 0
        %3552 = vmatpush.bf16.xpose.msra.mxu0 0
        %3553 = vmatpush.bf16.xpose.msra.mxu0 0
        %3554 = vmatpush.bf16.xpose.msra.mxu0 0
        %3555 = vmatpush.bf16.xpose.msra.mxu0 %v3546
        %3556 = vmatmul.bf16.gmra.mxu0 %v3543
        %v3557 = vpop.f32.mrf.mxu0
        %v3558 = vadd.f32 0.0, %v3557
        %v3559 = vpop.f32.mrf.mxu0
        %v3560 = vadd.f32 0.0, %v3559
        %3561 = vdwg.mxu0
        %v3564 = vunpack.c.l.b16 %v3522
        %v3565 = vunpack.c.l.b16 %v3523
        %v3566 = vpack.c.b16 %v3565, %v3564
        %v3568 = vsel %vm1839, %v3566, 0
        %3570 = vmatpush.bf16.xpose.msra.mxu0 0
        %3571 = vmatpush.bf16.xpose.msra.mxu0 0
        %3572 = vmatpush.bf16.xpose.msra.mxu0 0
        %3573 = vmatpush.bf16.xpose.msra.mxu0 0
        %3574 = vmatpush.bf16.xpose.msra.mxu0 0
        %3575 = vmatpush.bf16.xpose.msra.mxu0 0
        %3576 = vmatpush.bf16.xpose.msra.mxu0 0
        %3577 = vmatpush.bf16.xpose.msra.mxu0 %v3546
        %3578 = vmatmul.bf16.gmra.mxu0 %v3568
        %v3579 = vpop.f32.mrf.mxu0
        %v3580 = vadd.f32 0.0, %v3579
        %v3581 = vpop.f32.mrf.mxu0
        %v3582 = vadd.f32 0.0, %v3581
        %3583 = vdwg.mxu0
        %v3586 = vunpack.c.l.b16 %v3524
        %v3587 = vunpack.c.l.b16 %v3525
        %v3588 = vpack.c.b16 %v3587, %v3586
        %v3591 = vunpack.c.l.b16 %v3530
        %v3592 = vunpack.c.l.b16 %v3531
        %v3593 = vpack.c.b16 %v3592, %v3591
        %v3595 = vsel %vm1839, %v3588, 0
        %v3598 = vsel %vm1839, %v3593, 0
        %3600 = vmatpush.bf16.xpose.msra.mxu0 0
        %3601 = vmatpush.bf16.xpose.msra.mxu0 0
        %3602 = vmatpush.bf16.xpose.msra.mxu0 0
        %3603 = vmatpush.bf16.xpose.msra.mxu0 0
        %3604 = vmatpush.bf16.xpose.msra.mxu0 0
        %3605 = vmatpush.bf16.xpose.msra.mxu0 0
        %3606 = vmatpush.bf16.xpose.msra.mxu0 0
        %3607 = vmatpush.bf16.xpose.msra.mxu0 %v3598
        %3608 = vmatmul.bf16.gmra.mxu0 %v3595
        %v3609 = vpop.f32.mrf.mxu0
        %v3610 = vadd.f32 0.0, %v3609
        %v3611 = vpop.f32.mrf.mxu0
        %v3612 = vadd.f32 0.0, %v3611
        %3613 = vdwg.mxu0
        %v3616 = vunpack.c.l.b16 %v3526
        %v3617 = vunpack.c.l.b16 %v3527
        %v3618 = vpack.c.b16 %v3617, %v3616
        %v3620 = vsel %vm1839, %v3618, 0
        %3622 = vmatpush.bf16.xpose.msra.mxu0 0
        %3623 = vmatpush.bf16.xpose.msra.mxu0 0
        %3624 = vmatpush.bf16.xpose.msra.mxu0 0
        %3625 = vmatpush.bf16.xpose.msra.mxu0 0
        %3626 = vmatpush.bf16.xpose.msra.mxu0 0
        %3627 = vmatpush.bf16.xpose.msra.mxu0 0
        %3628 = vmatpush.bf16.xpose.msra.mxu0 0
        %3629 = vmatpush.bf16.xpose.msra.mxu0 %v3598
        %3630 = vmatmul.bf16.gmra.mxu0 %v3620
        %v3631 = vpop.f32.mrf.mxu0
        %v3632 = vadd.f32 0.0, %v3631
        %v3633 = vpop.f32.mrf.mxu0
        %v3634 = vadd.f32 0.0, %v3633
        %3635 = vdwg.mxu0
        %v3636 = vmul.f32 %v3558, 0.25
        %v3637 = vmul.f32 %v3560, 0.25
        %v3638 = vmul.f32 %v3580, 0.25
        %v3639 = vmul.f32 %v3582, 0.25
        %v3640 = vmul.f32 %v3610, 0.25
        %v3641 = vmul.f32 %v3612, 0.25
        %v3642 = vmul.f32 %v3632, 0.25
        %v3643 = vmul.f32 %v3634, 0.25
        %v3644 = vadd.f32 %v3636, %v1602
        %v3645 = vadd.f32 %v3637, %v1603
        %v3646 = vadd.f32 %v3638, %v1602
        %v3647 = vadd.f32 %v3639, %v1603
        %v3648 = vadd.f32 %v3640, %v1602
        %v3649 = vadd.f32 %v3641, %v1603
        %v3650 = vadd.f32 %v3642, %v1602
        %v3651 = vadd.f32 %v3643, %v1603
        %v3652 = vsel %vm1839, %v3644, -inf
        %3653 = vmax.xlane.f32.xlu0 %v3652
        %v3654 = vpop.xlane.xlu0 %3653
        %v3655 = vsel %vm1839, %v3645, -inf
        %3656 = vmax.xlane.f32.xlu0 %v3655
        %v3657 = vpop.xlane.xlu0 %3656
        %v3658 = vsel %vm1839, %v3646, -inf
        %3659 = vmax.xlane.f32.xlu0 %v3658
        %v3660 = vpop.xlane.xlu0 %3659
        %v3661 = vsel %vm1839, %v3647, -inf
        %3662 = vmax.xlane.f32.xlu0 %v3661
        %v3663 = vpop.xlane.xlu0 %3662
        %v3664 = vsel %vm1839, %v3648, -inf
        %3665 = vmax.xlane.f32.xlu0 %v3664
        %v3666 = vpop.xlane.xlu0 %3665
        %v3667 = vsel %vm1839, %v3649, -inf
        %3668 = vmax.xlane.f32.xlu0 %v3667
        %v3669 = vpop.xlane.xlu0 %3668
        %v3670 = vsel %vm1839, %v3650, -inf
        %3671 = vmax.xlane.f32.xlu0 %v3670
        %v3672 = vpop.xlane.xlu0 %3671
        %v3673 = vsel %vm1839, %v3651, -inf
        %3674 = vmax.xlane.f32.xlu0 %v3673
        %v3675 = vpop.xlane.xlu0 %3674
        %v3676 = vsub.f32 %v3644, %v3654
        %v3677 = vsub.f32 %v3645, %v3657
        %v3678 = vsub.f32 %v3646, %v3660
        %v3679 = vsub.f32 %v3647, %v3663
        %v3680 = vsub.f32 %v3648, %v3666
        %v3681 = vsub.f32 %v3649, %v3669
        %v3682 = vsub.f32 %v3650, %v3672
        %v3683 = vsub.f32 %v3651, %v3675
        %v3684 = vmul.f32 %v3676, 1.442695
        %v3685 = vpow.pop %v3684
        %v3686 = vmul.f32 %v3677, 1.442695
        %v3687 = vpow.pop %v3686
        %v3688 = vmul.f32 %v3678, 1.442695
        %v3689 = vpow.pop %v3688
        %v3690 = vmul.f32 %v3679, 1.442695
        %v3691 = vpow.pop %v3690
        %v3692 = vmul.f32 %v3680, 1.442695
        %v3693 = vpow.pop %v3692
        %v3694 = vmul.f32 %v3681, 1.442695
        %v3695 = vpow.pop %v3694
        %v3696 = vmul.f32 %v3682, 1.442695
        %v3697 = vpow.pop %v3696
        %v3698 = vmul.f32 %v3683, 1.442695
        %v3699 = vpow.pop %v3698
        %v3700 = vsel %vm1839, %v3685, 0.0
        %3701 = vadd.xlane.f32.xlu0 %v3700
        %v3702 = vpop.xlane.xlu0 %3701
        %v3703 = vsel %vm1839, %v3687, 0.0
        %3704 = vadd.xlane.f32.xlu0 %v3703
        %v3705 = vpop.xlane.xlu0 %3704
        %v3706 = vsel %vm1839, %v3689, 0.0
        %3707 = vadd.xlane.f32.xlu0 %v3706
        %v3708 = vpop.xlane.xlu0 %3707
        %v3709 = vsel %vm1839, %v3691, 0.0
        %3710 = vadd.xlane.f32.xlu0 %v3709
        %v3711 = vpop.xlane.xlu0 %3710
        %v3712 = vsel %vm1839, %v3693, 0.0
        %3713 = vadd.xlane.f32.xlu0 %v3712
        %v3714 = vpop.xlane.xlu0 %3713
        %v3715 = vsel %vm1839, %v3695, 0.0
        %3716 = vadd.xlane.f32.xlu0 %v3715
        %v3717 = vpop.xlane.xlu0 %3716
        %v3718 = vsel %vm1839, %v3697, 0.0
        %3719 = vadd.xlane.f32.xlu0 %v3718
        %v3720 = vpop.xlane.xlu0 %3719
        %v3721 = vsel %vm1839, %v3699, 0.0
        %3722 = vadd.xlane.f32.xlu0 %v3721
        %v3723 = vpop.xlane.xlu0 %3722
        %v3724 = vrcp.pop %v3702
        %v3725 = vrcp.pop %v3705
        %v3726 = vrcp.pop %v3708
        %v3727 = vrcp.pop %v3711
        %v3728 = vrcp.pop %v3714
        %v3729 = vrcp.pop %v3717
        %v3730 = vrcp.pop %v3720
        %v3731 = vrcp.pop %v3723
        %v3732 = vmul.f32 %v3685, %v3724
        %v3733 = vmul.f32 %v3687, %v3725
        %v3734 = vmul.f32 %v3689, %v3726
        %v3735 = vmul.f32 %v3691, %v3727
        %v3736 = vmul.f32 %v3693, %v3728
        %v3737 = vmul.f32 %v3695, %v3729
        %v3738 = vmul.f32 %v3697, %v3730
        %v3739 = vmul.f32 %v3699, %v3731
        %v3740 = vpack.c.bf16 %v3732, %v3732
        %v3741 = vpack.c.bf16 %v3733, %v3733
        %v3742 = vpack.c.bf16 %v3734, %v3734
        %v3743 = vpack.c.bf16 %v3735, %v3735
        %v3744 = vpack.c.bf16 %v3736, %v3736
        %v3745 = vpack.c.bf16 %v3737, %v3737
        %v3746 = vpack.c.bf16 %v3738, %v3738
        %v3747 = vpack.c.bf16 %v3739, %v3739
        %v3748 = vpack.c.bf16 %v3263, %v3263
        %v3749 = vpack.c.bf16 %v3265, %v3265
        %v3750 = vpack.c.bf16 %v3270, %v3270
        %v3751 = vpack.c.bf16 %v3272, %v3272
        %v3754 = vunpack.c.l.b16 %v3740
        %v3755 = vunpack.c.l.b16 %v3741
        %v3756 = vpack.c.b16 %v3755, %v3754
        %v3759 = vunpack.c.l.b16 %v3748
        %v3760 = vunpack.c.l.b16 %v3749
        %v3761 = vpack.c.b16 %v3760, %v3759
        %3762 = vrot.lane.b32.xlu0 %v3761, 32
        %v3763 = vpop.permute.xlu0 %3762
        %v3766 = vsel %vm1839, %v3756, 0
        %3768 = vmatpush.bf16.msra.mxu0 0
        %3769 = vmatpush.bf16.msra.mxu0 0
        %3770 = vmatpush.bf16.msra.mxu0 0
        %3771 = vmatpush.bf16.msra.mxu0 0
        %3772 = vmatpush.bf16.msra.mxu0 0
        %3773 = vmatpush.bf16.msra.mxu0 0
        %3774 = vmatpush.bf16.msra.mxu0 0
        %3775 = vmatpush.bf16.msra.mxu0 %v3763
        %3776 = vmatmul.bf16.gmra.mxu0 %v3766
        %v3777 = vpop.f32.mrf.mxu0
        %v3778 = vadd.f32 0.0, %v3777
        %v3779 = vpop.f32.mrf.mxu0
        %v3780 = vadd.f32 0.0, %v3779
        %3781 = vdwg.mxu0
        %v3784 = vunpack.c.l.b16 %v3742
        %v3785 = vunpack.c.l.b16 %v3743
        %v3786 = vpack.c.b16 %v3785, %v3784
        %v3788 = vsel %vm1839, %v3786, 0
        %3790 = vmatpush.bf16.msra.mxu0 0
        %3791 = vmatpush.bf16.msra.mxu0 0
        %3792 = vmatpush.bf16.msra.mxu0 0
        %3793 = vmatpush.bf16.msra.mxu0 0
        %3794 = vmatpush.bf16.msra.mxu0 0
        %3795 = vmatpush.bf16.msra.mxu0 0
        %3796 = vmatpush.bf16.msra.mxu0 0
        %3797 = vmatpush.bf16.msra.mxu0 %v3763
        %3798 = vmatmul.bf16.gmra.mxu0 %v3788
        %v3799 = vpop.f32.mrf.mxu0
        %v3800 = vadd.f32 0.0, %v3799
        %v3801 = vpop.f32.mrf.mxu0
        %v3802 = vadd.f32 0.0, %v3801
        %3803 = vdwg.mxu0
        %v3806 = vunpack.c.l.b16 %v3744
        %v3807 = vunpack.c.l.b16 %v3745
        %v3808 = vpack.c.b16 %v3807, %v3806
        %v3811 = vunpack.c.l.b16 %v3750
        %v3812 = vunpack.c.l.b16 %v3751
        %v3813 = vpack.c.b16 %v3812, %v3811
        %3814 = vrot.lane.b32.xlu0 %v3813, 32
        %v3815 = vpop.permute.xlu0 %3814
        %v3818 = vsel %vm1839, %v3808, 0
        %3820 = vmatpush.bf16.msra.mxu0 0
        %3821 = vmatpush.bf16.msra.mxu0 0
        %3822 = vmatpush.bf16.msra.mxu0 0
        %3823 = vmatpush.bf16.msra.mxu0 0
        %3824 = vmatpush.bf16.msra.mxu0 0
        %3825 = vmatpush.bf16.msra.mxu0 0
        %3826 = vmatpush.bf16.msra.mxu0 0
        %3827 = vmatpush.bf16.msra.mxu0 %v3815
        %3828 = vmatmul.bf16.gmra.mxu0 %v3818
        %v3829 = vpop.f32.mrf.mxu0
        %v3830 = vadd.f32 0.0, %v3829
        %v3831 = vpop.f32.mrf.mxu0
        %v3832 = vadd.f32 0.0, %v3831
        %3833 = vdwg.mxu0
        %v3836 = vunpack.c.l.b16 %v3746
        %v3837 = vunpack.c.l.b16 %v3747
        %v3838 = vpack.c.b16 %v3837, %v3836
        %v3840 = vsel %vm1839, %v3838, 0
        %3842 = vmatpush.bf16.msra.mxu0 0
        %3843 = vmatpush.bf16.msra.mxu0 0
        %3844 = vmatpush.bf16.msra.mxu0 0
        %3845 = vmatpush.bf16.msra.mxu0 0
        %3846 = vmatpush.bf16.msra.mxu0 0
        %3847 = vmatpush.bf16.msra.mxu0 0
        %3848 = vmatpush.bf16.msra.mxu0 0
        %3849 = vmatpush.bf16.msra.mxu0 %v3815
        %3850 = vmatmul.bf16.gmra.mxu0 %v3840
        %v3851 = vpop.f32.mrf.mxu0
        %v3852 = vadd.f32 0.0, %v3851
        %v3853 = vpop.f32.mrf.mxu0
        %v3854 = vadd.f32 0.0, %v3853
        %3855 = vdwg.mxu0
        %v3856 = vpack.c.bf16 %v3778, %v3778
        %v3857 = vpack.c.bf16 %v3780, %v3780
        %v3858 = vpack.c.bf16 %v3800, %v3800
        %v3859 = vpack.c.bf16 %v3802, %v3802
        %v3860 = vpack.c.bf16 %v3830, %v3830
        %v3861 = vpack.c.bf16 %v3832, %v3832
        %v3862 = vpack.c.bf16 %v3852, %v3852
        %v3863 = vpack.c.bf16 %v3854, %v3854
        %v3866 = vunpack.c.l.b16 %v3856
        %v3867 = vunpack.c.l.b16 %v3857
        %v3868 = vpack.c.b16 %v3867, %v3866
        %v3871 = vunpack.c.l.b16 %v3126
        %v3872 = vunpack.c.l.b16 %v3127
        %v3873 = vpack.c.b16 %v3872, %v3871
        %v3876 = vsel %vm1839, %v3868, 0
        %3878 = vmatpush.bf16.msra.mxu0 0
        %3879 = vmatpush.bf16.msra.mxu0 0
        %3880 = vmatpush.bf16.msra.mxu0 0
        %3881 = vmatpush.bf16.msra.mxu0 0
        %3882 = vmatpush.bf16.msra.mxu0 0
        %3883 = vmatpush.bf16.msra.mxu0 0
        %3884 = vmatpush.bf16.msra.mxu0 0
        %3885 = vmatpush.bf16.msra.mxu0 %v3873
        %3886 = vmatmul.bf16.gmra.mxu0 %v3876
        %v3887 = vpop.f32.mrf.mxu0
        %v3888 = vadd.f32 0.0, %v3887
        %v3889 = vpop.f32.mrf.mxu0
        %v3890 = vadd.f32 0.0, %v3889
        %3891 = vdwg.mxu0
        %v3894 = vunpack.c.l.b16 %v3858
        %v3895 = vunpack.c.l.b16 %v3859
        %v3896 = vpack.c.b16 %v3895, %v3894
        %v3899 = vunpack.c.l.b16 %v3128
        %v3900 = vunpack.c.l.b16 %v3129
        %v3901 = vpack.c.b16 %v3900, %v3899
        %v3904 = vsel %vm1839, %v3896, 0
        %3906 = vmatpush.bf16.msra.mxu0 0
        %3907 = vmatpush.bf16.msra.mxu0 0
        %3908 = vmatpush.bf16.msra.mxu0 0
        %3909 = vmatpush.bf16.msra.mxu0 0
        %3910 = vmatpush.bf16.msra.mxu0 0
        %3911 = vmatpush.bf16.msra.mxu0 0
        %3912 = vmatpush.bf16.msra.mxu0 0
        %3913 = vmatpush.bf16.msra.mxu0 %v3901
        %3914 = vmatmul.bf16.gmra.mxu0 %v3904
        %v3915 = vpop.f32.mrf.mxu0
        %v3916 = vadd.f32 0.0, %v3915
        %v3917 = vpop.f32.mrf.mxu0
        %v3918 = vadd.f32 0.0, %v3917
        %3919 = vdwg.mxu0
        %v3922 = vunpack.c.l.b16 %v3860
        %v3923 = vunpack.c.l.b16 %v3861
        %v3924 = vpack.c.b16 %v3923, %v3922
        %v3927 = vunpack.c.l.b16 %v3130
        %v3928 = vunpack.c.l.b16 %v3131
        %v3929 = vpack.c.b16 %v3928, %v3927
        %v3932 = vsel %vm1839, %v3924, 0
        %3934 = vmatpush.bf16.msra.mxu0 0
        %3935 = vmatpush.bf16.msra.mxu0 0
        %3936 = vmatpush.bf16.msra.mxu0 0
        %3937 = vmatpush.bf16.msra.mxu0 0
        %3938 = vmatpush.bf16.msra.mxu0 0
        %3939 = vmatpush.bf16.msra.mxu0 0
        %3940 = vmatpush.bf16.msra.mxu0 0
        %3941 = vmatpush.bf16.msra.mxu0 %v3929
        %3942 = vmatmul.bf16.gmra.mxu0 %v3932
        %v3943 = vpop.f32.mrf.mxu0
        %v3944 = vadd.f32 0.0, %v3943
        %v3945 = vpop.f32.mrf.mxu0
        %v3946 = vadd.f32 0.0, %v3945
        %3947 = vdwg.mxu0
        %v3950 = vunpack.c.l.b16 %v3862
        %v3951 = vunpack.c.l.b16 %v3863
        %v3952 = vpack.c.b16 %v3951, %v3950
        %v3955 = vunpack.c.l.b16 %v3132
        %v3956 = vunpack.c.l.b16 %v3133
        %v3957 = vpack.c.b16 %v3956, %v3955
        %v3960 = vsel %vm1839, %v3952, 0
        %3962 = vmatpush.bf16.msra.mxu0 0
        %3963 = vmatpush.bf16.msra.mxu0 0
        %3964 = vmatpush.bf16.msra.mxu0 0
        %3965 = vmatpush.bf16.msra.mxu0 0
        %3966 = vmatpush.bf16.msra.mxu0 0
        %3967 = vmatpush.bf16.msra.mxu0 0
        %3968 = vmatpush.bf16.msra.mxu0 0
        %3969 = vmatpush.bf16.msra.mxu0 %v3957
        %3970 = vmatmul.bf16.gmra.mxu0 %v3960
        %v3971 = vpop.f32.mrf.mxu0
        %v3972 = vadd.f32 0.0, %v3971
        %v3973 = vpop.f32.mrf.mxu0
        %v3974 = vadd.f32 0.0, %v3973
        %3975 = vdwg.mxu0
        %v3976 = vadd.f32 %v3888, %v3916
        %v3977 = vadd.f32 %v3976, %v3944
        %v3978 = vadd.f32 %v3977, %v3972
        %v3979 = vadd.f32 %v3890, %v3918
        %v3980 = vadd.f32 %v3979, %v3946
        %v3981 = vadd.f32 %v3980, %v3974
        %v3982 = vadd.f32 %v3107, %v3978
        %v3983 = vadd.f32 %v3108, %v3981
        %v3984 = vmul.f32 %v3982, %v3982
        %v3985 = vmul.f32 %v3983, %v3983
        %3986 = vadd.xlane.f32.xlu0 %v3984
        %v3987 = vpop.xlane.xlu0 %3986
        %3988 = vadd.xlane.f32.xlu0 %v3985
        %v3989 = vpop.xlane.xlu0 %3988
        %v3990 = vmul.f32 %v3987, 0.015625
        %v3991 = vmul.f32 %v3989, 0.015625
        %v3992 = vadd.f32 %v3990, 1e-06
        %v3993 = vadd.f32 %v3991, 1e-06
        %v3994 = vrsqrt.pop %v3992
        %v3995 = vmul.f32 %v3994, %v3992
        %v3996 = vmul.f32 %v3995, %v3994
        %v3997 = vmul.f32 0.5, %v3996
        %v3998 = vsub.f32 1.5, %v3997
        %v3999 = vmul.f32 %v3994, %v3998
        %vm4000 = vweird.f32 %v3992
        %vm4001 = vweird.f32 %v3994
        %vm4002 = vmor %vm4000, %vm4001
        %v4003 = vsel %vm4002, %v3994, %v3999
        %v4004 = vrsqrt.pop %v3993
        %v4005 = vmul.f32 %v4004, %v3993
        %v4006 = vmul.f32 %v4005, %v4004
        %v4007 = vmul.f32 0.5, %v4006
        %v4008 = vsub.f32 1.5, %v4007
        %v4009 = vmul.f32 %v4004, %v4008
        %vm4010 = vweird.f32 %v3993
        %vm4011 = vweird.f32 %v4004
        %vm4012 = vmor %vm4010, %vm4011
        %v4013 = vsel %vm4012, %v4004, %v4009
        %v4014 = vmul.f32 %v3982, %v4003
        %v4015 = vmul.f32 %v3983, %v4013
        %v4017 = vperm.slane %v3134, 0
        %v4019 = vmul.f32 %v4014, %v4017
        %v4020 = vmul.f32 %v4015, %v4017
        %v4021 = vpack.c.bf16 %v4020, %v4019
        %v4038 = vunpack.c.l.b16 %v3135
        %v4039 = vunpack.c.h.b16 %v3135
        %v4040 = vunpack.c.l.b16 %v3136
        %v4041 = vunpack.c.h.b16 %v3136
        %v4042 = vunpack.c.l.b16 %v3137
        %v4043 = vunpack.c.h.b16 %v3137
        %v4044 = vunpack.c.l.b16 %v3138
        %v4045 = vunpack.c.h.b16 %v3138
        %v4046 = vunpack.c.l.b16 %v3139
        %v4047 = vunpack.c.h.b16 %v3139
        %v4048 = vunpack.c.l.b16 %v3140
        %v4049 = vunpack.c.h.b16 %v3140
        %v4050 = vunpack.c.l.b16 %v3141
        %v4051 = vunpack.c.h.b16 %v3141
        %v4052 = vunpack.c.l.b16 %v3142
        %v4053 = vunpack.c.h.b16 %v3142
        %v4054 = vunpack.c.l.b16 %v3143
        %v4055 = vunpack.c.h.b16 %v3143
        %v4056 = vunpack.c.l.b16 %v3144
        %v4057 = vunpack.c.h.b16 %v3144
        %v4058 = vunpack.c.l.b16 %v3145
        %v4059 = vunpack.c.h.b16 %v3145
        %v4060 = vunpack.c.l.b16 %v3146
        %v4061 = vunpack.c.h.b16 %v3146
        %v4062 = vunpack.c.l.b16 %v3147
        %v4063 = vunpack.c.h.b16 %v3147
        %v4064 = vunpack.c.l.b16 %v3148
        %v4065 = vunpack.c.h.b16 %v3148
        %v4066 = vunpack.c.l.b16 %v3149
        %v4067 = vunpack.c.h.b16 %v3149
        %v4068 = vunpack.c.l.b16 %v3150
        %v4069 = vunpack.c.h.b16 %v3150
        %v4070 = vpack.c.b16 %v4040, %v4038
        %v4071 = vpack.c.b16 %v4041, %v4039
        %v4072 = vpack.c.b16 %v4044, %v4042
        %v4073 = vpack.c.b16 %v4045, %v4043
        %v4074 = vpack.c.b16 %v4048, %v4046
        %v4075 = vpack.c.b16 %v4049, %v4047
        %v4076 = vpack.c.b16 %v4052, %v4050
        %v4077 = vpack.c.b16 %v4053, %v4051
        %v4078 = vpack.c.b16 %v4056, %v4054
        %v4079 = vpack.c.b16 %v4057, %v4055
        %v4080 = vpack.c.b16 %v4060, %v4058
        %v4081 = vpack.c.b16 %v4061, %v4059
        %v4082 = vpack.c.b16 %v4064, %v4062
        %v4083 = vpack.c.b16 %v4065, %v4063
        %v4084 = vpack.c.b16 %v4068, %v4066
        %v4085 = vpack.c.b16 %v4069, %v4067
        %4102 = vmatpush.bf16.msra.mxu0 %v4084
        %4103 = vmatpush.bf16.msra.mxu0 %v4082
        %4104 = vmatpush.bf16.msra.mxu0 %v4080
        %4105 = vmatpush.bf16.msra.mxu0 %v4078
        %4106 = vmatpush.bf16.msra.mxu0 %v4076
        %4107 = vmatpush.bf16.msra.mxu0 %v4074
        %4108 = vmatpush.bf16.msra.mxu0 %v4072
        %4109 = vmatpush.bf16.msra.mxu0 %v4070
        %4110 = vmatmul.bf16.gmra.mxu0 %v4021
        %v4111 = vpop.f32.mrf.mxu0
        %v4112 = vadd.f32 0.0, %v4111
        %v4113 = vpop.f32.mrf.mxu0
        %v4114 = vadd.f32 0.0, %v4113
        %4115 = vdwg.mxu0
        %4116 = vmatpush.bf16.msra.mxu0 %v4085
        %4117 = vmatpush.bf16.msra.mxu0 %v4083
        %4118 = vmatpush.bf16.msra.mxu0 %v4081
        %4119 = vmatpush.bf16.msra.mxu0 %v4079
        %4120 = vmatpush.bf16.msra.mxu0 %v4077
        %4121 = vmatpush.bf16.msra.mxu0 %v4075
        %4122 = vmatpush.bf16.msra.mxu0 %v4073
        %4123 = vmatpush.bf16.msra.mxu0 %v4071
        %4124 = vmatmul.bf16.gmra.mxu0 %v4021
        %v4125 = vpop.f32.mrf.mxu0
        %v4126 = vadd.f32 0.0, %v4125
        %v4127 = vpop.f32.mrf.mxu0
        %v4128 = vadd.f32 0.0, %v4127
        %4129 = vdwg.mxu0
        %v4130 = vxor.u32 %v4112, 2147483648
        %v4131 = vxor.u32 %v4114, 2147483648
        %v4132 = vmul.f32 %v4130, 1.442695
        %v4133 = vpow.pop %v4132
        %v4134 = vmul.f32 %v4131, 1.442695
        %v4135 = vpow.pop %v4134
        %v4136 = vadd.f32 %v4133, 1.0
        %v4137 = vadd.f32 %v4135, 1.0
        %v4138 = vrcp.pop %v4136
        %v4139 = vmul.f32 %v4136, %v4138
        %v4140 = vsub.f32 1.0, %v4139
        %v4141 = vmul.f32 %v4138, %v4140
        %v4142 = vadd.f32 %v4138, %v4141
        %vm4143 = vweird.f32 %v4136
        %vm4144 = vweird.f32 %v4138
        %vm4145 = vmor %vm4143, %vm4144
        %v4146 = vsel %vm4145, %v4138, %v4142
        %v4147 = vand.u32 2147483647, %v4136
        %vm4148 = vcmp.eq.f32.partialorder %v4147, 8.507059e+37
        %v4149 = vand.u32 %v4136, 2147483648
        %v4150 = vor.u32 1.1754944e-38, %v4149
        %v4151 = vsel %vm4148, %v4150, %v4146
        %v4152 = vmul.f32 1.0, %v4151
        %v4153 = vrcp.pop %v4137
        %v4154 = vmul.f32 %v4137, %v4153
        %v4155 = vsub.f32 1.0, %v4154
        %v4156 = vmul.f32 %v4153, %v4155
        %v4157 = vadd.f32 %v4153, %v4156
        %vm4158 = vweird.f32 %v4137
        %vm4159 = vweird.f32 %v4153
        %vm4160 = vmor %vm4158, %vm4159
        %v4161 = vsel %vm4160, %v4153, %v4157
        %v4162 = vand.u32 2147483647, %v4137
        %vm4163 = vcmp.eq.f32.partialorder %v4162, 8.507059e+37
        %v4164 = vand.u32 %v4137, 2147483648
        %v4165 = vor.u32 1.1754944e-38, %v4164
        %v4166 = vsel %vm4163, %v4165, %v4161
        %v4167 = vmul.f32 1.0, %v4166
        %v4168 = vmul.f32 %v4112, %v4152
        %v4169 = vmul.f32 %v4114, %v4167
        %v4170 = vmul.f32 %v4168, %v4126
        %v4171 = vmul.f32 %v4169, %v4128
        %v4172 = vpack.c.bf16 %v4171, %v4170
        %v4189 = vunpack.c.l.b16 %v3151
        %v4190 = vunpack.c.l.b16 %v3152
        %v4191 = vunpack.c.l.b16 %v3153
        %v4192 = vunpack.c.l.b16 %v3154
        %v4193 = vunpack.c.l.b16 %v3155
        %v4194 = vunpack.c.l.b16 %v3156
        %v4195 = vunpack.c.l.b16 %v3157
        %v4196 = vunpack.c.l.b16 %v3158
        %v4197 = vunpack.c.l.b16 %v3159
        %v4198 = vunpack.c.l.b16 %v3160
        %v4199 = vunpack.c.l.b16 %v3161
        %v4200 = vunpack.c.l.b16 %v3162
        %v4201 = vunpack.c.l.b16 %v3163
        %v4202 = vunpack.c.l.b16 %v3164
        %v4203 = vunpack.c.l.b16 %v3165
        %v4204 = vunpack.c.l.b16 %v3166
        %v4205 = vpack.c.b16 %v4190, %v4189
        %v4206 = vpack.c.b16 %v4192, %v4191
        %v4207 = vpack.c.b16 %v4194, %v4193
        %v4208 = vpack.c.b16 %v4196, %v4195
        %v4209 = vpack.c.b16 %v4198, %v4197
        %v4210 = vpack.c.b16 %v4200, %v4199
        %v4211 = vpack.c.b16 %v4202, %v4201
        %v4212 = vpack.c.b16 %v4204, %v4203
        %4221 = vmatpush.bf16.msra.mxu0 %v4212
        %4222 = vmatpush.bf16.msra.mxu0 %v4211
        %4223 = vmatpush.bf16.msra.mxu0 %v4210
        %4224 = vmatpush.bf16.msra.mxu0 %v4209
        %4225 = vmatpush.bf16.msra.mxu0 %v4208
        %4226 = vmatpush.bf16.msra.mxu0 %v4207
        %4227 = vmatpush.bf16.msra.mxu0 %v4206
        %4228 = vmatpush.bf16.msra.mxu0 %v4205
        %4229 = vmatmul.bf16.gmra.mxu0 %v4172
        %v4230 = vpop.f32.mrf.mxu0
        %v4231 = vadd.f32 0.0, %v4230
        %v4232 = vpop.f32.mrf.mxu0
        %v4233 = vadd.f32 0.0, %v4232
        %4234 = vdwg.mxu0
        %v4235 = vadd.f32 %v3982, %v4231
        %v4236 = vadd.f32 %v3983, %v4233
        %v4237 = vld [vmem:[#allocation19] sm:$0x1]
        %v4238 = vld [vmem:[#allocation20] sm:$0xff]
        %v4239 = vld [vmem:[#allocation20 + $0x8] sm:$0xff]
        %v4240 = vld [vmem:[#allocation20 + $0x10] sm:$0xff]
        %v4241 = vld [vmem:[#allocation20 + $0x18] sm:$0xff]
        %v4242 = vld [vmem:[#allocation20 + $0x20] sm:$0xff]
        %v4243 = vld [vmem:[#allocation20 + $0x28] sm:$0xff]
        %v4244 = vld [vmem:[#allocation20 + $0x30] sm:$0xff]
        %v4245 = vld [vmem:[#allocation20 + $0x38] sm:$0xff]
        %v4246 = vld [vmem:[#allocation20 + $0x40] sm:$0xff]
        %v4247 = vld [vmem:[#allocation20 + $0x48] sm:$0xff]
        %v4248 = vld [vmem:[#allocation20 + $0x50] sm:$0xff]
        %v4249 = vld [vmem:[#allocation20 + $0x58] sm:$0xff]
        %v4250 = vld [vmem:[#allocation20 + $0x60] sm:$0xff]
        %v4251 = vld [vmem:[#allocation20 + $0x68] sm:$0xff]
        %v4252 = vld [vmem:[#allocation20 + $0x70] sm:$0xff]
        %v4253 = vld [vmem:[#allocation20 + $0x78] sm:$0xff]
        %v4254 = vld [vmem:[#allocation22] sm:$0xf]
        %v4255 = vld [vmem:[#allocation23] sm:$0x1]
        %v4256 = vld [vmem:[#allocation25] sm:$0x1]
        %v4257 = vld [vmem:[#allocation26] sm:$0x1]
        %v4258 = vld [vmem:[#allocation28] sm:$0x1]
        %v4259 = vld [vmem:[#allocation29] sm:$0xf]
        %v4260 = vld [vmem:[#allocation29 + $0x4] sm:$0xf]
        %v4261 = vld [vmem:[#allocation29 + $0x8] sm:$0xf]
        %v4262 = vld [vmem:[#allocation29 + $0xc] sm:$0xf]
        %v4263 = vld [vmem:[#allocation29 + $0x10] sm:$0xf]
        %v4264 = vld [vmem:[#allocation29 + $0x14] sm:$0xf]
        %v4265 = vld [vmem:[#allocation29 + $0x18] sm:$0xf]
        %v4266 = vld [vmem:[#allocation29 + $0x1c] sm:$0xf]
        %v4267 = vld [vmem:[#allocation31] sm:$0x1]
        %v4268 = vld [vmem:[#allocation32] sm:$0xff]
        %v4269 = vld [vmem:[#allocation32 + $0x8] sm:$0xff]
        %v4270 = vld [vmem:[#allocation32 + $0x10] sm:$0xff]
        %v4271 = vld [vmem:[#allocation32 + $0x18] sm:$0xff]
        %v4272 = vld [vmem:[#allocation32 + $0x20] sm:$0xff]
        %v4273 = vld [vmem:[#allocation32 + $0x28] sm:$0xff]
        %v4274 = vld [vmem:[#allocation32 + $0x30] sm:$0xff]
        %v4275 = vld [vmem:[#allocation32 + $0x38] sm:$0xff]
        %v4276 = vld [vmem:[#allocation32 + $0x40] sm:$0xff]
        %v4277 = vld [vmem:[#allocation32 + $0x48] sm:$0xff]
        %v4278 = vld [vmem:[#allocation32 + $0x50] sm:$0xff]
        %v4279 = vld [vmem:[#allocation32 + $0x58] sm:$0xff]
        %v4280 = vld [vmem:[#allocation32 + $0x60] sm:$0xff]
        %v4281 = vld [vmem:[#allocation32 + $0x68] sm:$0xff]
        %v4282 = vld [vmem:[#allocation32 + $0x70] sm:$0xff]
        %v4283 = vld [vmem:[#allocation32 + $0x78] sm:$0xff]
        %v4284 = vld [vmem:[#allocation34] sm:$0xf]
        %v4285 = vld [vmem:[#allocation34 + $0x4] sm:$0xf]
        %v4286 = vld [vmem:[#allocation34 + $0x8] sm:$0xf]
        %v4287 = vld [vmem:[#allocation34 + $0xc] sm:$0xf]
        %v4288 = vld [vmem:[#allocation34 + $0x10] sm:$0xf]
        %v4289 = vld [vmem:[#allocation34 + $0x14] sm:$0xf]
        %v4290 = vld [vmem:[#allocation34 + $0x18] sm:$0xf]
        %v4291 = vld [vmem:[#allocation34 + $0x1c] sm:$0xf]
        %v4292 = vld [vmem:[#allocation34 + $0x20] sm:$0xf]
        %v4293 = vld [vmem:[#allocation34 + $0x24] sm:$0xf]
        %v4294 = vld [vmem:[#allocation34 + $0x28] sm:$0xf]
        %v4295 = vld [vmem:[#allocation34 + $0x2c] sm:$0xf]
        %v4296 = vld [vmem:[#allocation34 + $0x30] sm:$0xf]
        %v4297 = vld [vmem:[#allocation34 + $0x34] sm:$0xf]
        %v4298 = vld [vmem:[#allocation34 + $0x38] sm:$0xf]
        %v4299 = vld [vmem:[#allocation34 + $0x3c] sm:$0xf]
        %v4300 = vmul.f32 %v4235, %v4235
        %v4301 = vmul.f32 %v4236, %v4236
        %4302 = vadd.xlane.f32.xlu0 %v4300
        %v4303 = vpop.xlane.xlu0 %4302
        %4304 = vadd.xlane.f32.xlu0 %v4301
        %v4305 = vpop.xlane.xlu0 %4304
        %v4306 = vmul.f32 %v4303, 0.015625
        %v4307 = vmul.f32 %v4305, 0.015625
        %v4308 = vadd.f32 %v4306, 1e-06
        %v4309 = vadd.f32 %v4307, 1e-06
        %v4310 = vrsqrt.pop %v4308
        %v4311 = vmul.f32 %v4310, %v4308
        %v4312 = vmul.f32 %v4311, %v4310
        %v4313 = vmul.f32 0.5, %v4312
        %v4314 = vsub.f32 1.5, %v4313
        %v4315 = vmul.f32 %v4310, %v4314
        %vm4316 = vweird.f32 %v4308
        %vm4317 = vweird.f32 %v4310
        %vm4318 = vmor %vm4316, %vm4317
        %v4319 = vsel %vm4318, %v4310, %v4315
        %v4320 = vrsqrt.pop %v4309
        %v4321 = vmul.f32 %v4320, %v4309
        %v4322 = vmul.f32 %v4321, %v4320
        %v4323 = vmul.f32 0.5, %v4322
        %v4324 = vsub.f32 1.5, %v4323
        %v4325 = vmul.f32 %v4320, %v4324
        %vm4326 = vweird.f32 %v4309
        %vm4327 = vweird.f32 %v4320
        %vm4328 = vmor %vm4326, %vm4327
        %v4329 = vsel %vm4328, %v4320, %v4325
        %v4330 = vmul.f32 %v4235, %v4319
        %v4331 = vmul.f32 %v4236, %v4329
        %v4333 = vperm.slane %v4237, 0
        %v4335 = vmul.f32 %v4330, %v4333
        %v4336 = vmul.f32 %v4331, %v4333
        %v4337 = vpack.c.bf16 %v4336, %v4335
        %v4354 = vunpack.c.l.b16 %v4238
        %v4355 = vunpack.c.h.b16 %v4238
        %v4356 = vunpack.c.l.b16 %v4239
        %v4357 = vunpack.c.h.b16 %v4239
        %v4358 = vunpack.c.l.b16 %v4240
        %v4359 = vunpack.c.h.b16 %v4240
        %v4360 = vunpack.c.l.b16 %v4241
        %v4361 = vunpack.c.h.b16 %v4241
        %v4362 = vunpack.c.l.b16 %v4242
        %v4363 = vunpack.c.h.b16 %v4242
        %v4364 = vunpack.c.l.b16 %v4243
        %v4365 = vunpack.c.h.b16 %v4243
        %v4366 = vunpack.c.l.b16 %v4244
        %v4367 = vunpack.c.h.b16 %v4244
        %v4368 = vunpack.c.l.b16 %v4245
        %v4369 = vunpack.c.h.b16 %v4245
        %v4370 = vunpack.c.l.b16 %v4246
        %v4371 = vunpack.c.h.b16 %v4246
        %v4372 = vunpack.c.l.b16 %v4247
        %v4373 = vunpack.c.h.b16 %v4247
        %v4374 = vunpack.c.l.b16 %v4248
        %v4375 = vunpack.c.h.b16 %v4248
        %v4376 = vunpack.c.l.b16 %v4249
        %v4377 = vunpack.c.h.b16 %v4249
        %v4378 = vunpack.c.l.b16 %v4250
        %v4379 = vunpack.c.h.b16 %v4250
        %v4380 = vunpack.c.l.b16 %v4251
        %v4381 = vunpack.c.h.b16 %v4251
        %v4382 = vunpack.c.l.b16 %v4252
        %v4383 = vunpack.c.h.b16 %v4252
        %v4384 = vunpack.c.l.b16 %v4253
        %v4385 = vunpack.c.h.b16 %v4253
        %v4386 = vpack.c.b16 %v4356, %v4354
        %v4387 = vpack.c.b16 %v4357, %v4355
        %v4388 = vpack.c.b16 %v4360, %v4358
        %v4389 = vpack.c.b16 %v4361, %v4359
        %v4390 = vpack.c.b16 %v4364, %v4362
        %v4391 = vpack.c.b16 %v4365, %v4363
        %v4392 = vpack.c.b16 %v4368, %v4366
        %v4393 = vpack.c.b16 %v4369, %v4367
        %v4394 = vpack.c.b16 %v4372, %v4370
        %v4395 = vpack.c.b16 %v4373, %v4371
        %v4396 = vpack.c.b16 %v4376, %v4374
        %v4397 = vpack.c.b16 %v4377, %v4375
        %v4398 = vpack.c.b16 %v4380, %v4378
        %v4399 = vpack.c.b16 %v4381, %v4379
        %v4400 = vpack.c.b16 %v4384, %v4382
        %v4401 = vpack.c.b16 %v4385, %v4383
        %4418 = vmatpush.bf16.msra.mxu0 %v4400
        %4419 = vmatpush.bf16.msra.mxu0 %v4398
        %4420 = vmatpush.bf16.msra.mxu0 %v4396
        %4421 = vmatpush.bf16.msra.mxu0 %v4394
        %4422 = vmatpush.bf16.msra.mxu0 %v4392
        %4423 = vmatpush.bf16.msra.mxu0 %v4390
        %4424 = vmatpush.bf16.msra.mxu0 %v4388
        %4425 = vmatpush.bf16.msra.mxu0 %v4386
        %4426 = vmatmul.bf16.gmra.mxu0 %v4337
        %v4427 = vpop.f32.mrf.mxu0
        %v4428 = vadd.f32 0.0, %v4427
        %v4429 = vpop.f32.mrf.mxu0
        %v4430 = vadd.f32 0.0, %v4429
        %4431 = vdwg.mxu0
        %4432 = vmatpush.bf16.msra.mxu0 %v4401
        %4433 = vmatpush.bf16.msra.mxu0 %v4399
        %4434 = vmatpush.bf16.msra.mxu0 %v4397
        %4435 = vmatpush.bf16.msra.mxu0 %v4395
        %4436 = vmatpush.bf16.msra.mxu0 %v4393
        %4437 = vmatpush.bf16.msra.mxu0 %v4391
        %4438 = vmatpush.bf16.msra.mxu0 %v4389
        %4439 = vmatpush.bf16.msra.mxu0 %v4387
        %4440 = vmatmul.bf16.gmra.mxu0 %v4337
        %v4441 = vpop.f32.mrf.mxu0
        %v4442 = vadd.f32 0.0, %v4441
        %v4443 = vpop.f32.mrf.mxu0
        %v4444 = vadd.f32 0.0, %v4443
        %4445 = vdwg.mxu0
        %4446 = vmatpush.msra.mxu0 0.0
        %4447 = vmatpush.msra.mxu0 0.0
        %4448 = vmatpush.msra.mxu0 0.0
        %4449 = vmatpush.msra.mxu0 0.0
        %4450 = vmatpush.msra.mxu0 0.0
        %4451 = vmatpush.msra.mxu0 0.0
        %4452 = vmatpush.msra.mxu0 0.0
        %4453 = vmatpush.msra.mxu0 0.0
        %4454 = vmatpush.msra.mxu0 0.0
        %4455 = vmatpush.msra.mxu0 0.0
        %4456 = vmatpush.msra.mxu0 0.0
        %4457 = vmatpush.msra.mxu0 0.0
        %4458 = vmatpush.msra.mxu0 0.0
        %4459 = vmatpush.msra.mxu0 0.0
        %4460 = vmatpush.msra.mxu0 %v4430
        %4461 = vmatpush.msra.mxu0 %v4428
        %4462 = vmatmul.f32.gmra.mxu0 %v1841
        %v4463 = vpop.f32.mrf.mxu0
        %v4464 = vadd.f32 0.0, %v4463
        %4465 = vmatmul.f32.gmra.mxu0 %v1844
        %v4466 = vpop.f32.mrf.mxu0
        %v4467 = vadd.f32 0.0, %v4466
        %4468 = vdwg.mxu0
        %v4469 = vperm.slane %v4254, 0
        %v4470 = vmul.f32 %v4464, %v4469
        %v4471 = vmul.f32 %v4467, %v4469
        %v4473 = vperm.slane %v4255, 0
        %v4475 = vadd.f32 %v4473, %v4470
        %v4476 = vadd.f32 %v4473, %v4471
        %4477 = vmatpush.msra.mxu0 0.0
        %4478 = vmatpush.msra.mxu0 0.0
        %4479 = vmatpush.msra.mxu0 0.0
        %4480 = vmatpush.msra.mxu0 0.0
        %4481 = vmatpush.msra.mxu0 0.0
        %4482 = vmatpush.msra.mxu0 0.0
        %4483 = vmatpush.msra.mxu0 0.0
        %4484 = vmatpush.msra.mxu0 0.0
        %4485 = vmatpush.msra.mxu0 0.0
        %4486 = vmatpush.msra.mxu0 0.0
        %4487 = vmatpush.msra.mxu0 0.0
        %4488 = vmatpush.msra.mxu0 0.0
        %4489 = vmatpush.msra.mxu0 0.0
        %4490 = vmatpush.msra.mxu0 0.0
        %4491 = vmatpush.msra.mxu0 %v4430
        %4492 = vmatpush.msra.mxu0 %v4428
        %4493 = vmatmul.f32.gmra.mxu0 %v1878
        %v4494 = vpop.f32.mrf.mxu0
        %v4495 = vadd.f32 0.0, %v4494
        %4496 = vmatmul.f32.gmra.mxu0 %v1881
        %v4497 = vpop.f32.mrf.mxu0
        %v4498 = vadd.f32 0.0, %v4497
        %4499 = vdwg.mxu0
        %v4500 = vperm.slane %v4254, 1
        %v4501 = vmul.f32 %v4495, %v4500
        %v4502 = vmul.f32 %v4498, %v4500
        %v4503 = vadd.f32 %v4475, %v4501
        %v4504 = vadd.f32 %v4476, %v4502
        %4505 = vmatpush.msra.mxu0 0.0
        %4506 = vmatpush.msra.mxu0 0.0
        %4507 = vmatpush.msra.mxu0 0.0
        %4508 = vmatpush.msra.mxu0 0.0
        %4509 = vmatpush.msra.mxu0 0.0
        %4510 = vmatpush.msra.mxu0 0.0
        %4511 = vmatpush.msra.mxu0 0.0
        %4512 = vmatpush.msra.mxu0 0.0
        %4513 = vmatpush.msra.mxu0 0.0
        %4514 = vmatpush.msra.mxu0 0.0
        %4515 = vmatpush.msra.mxu0 0.0
        %4516 = vmatpush.msra.mxu0 0.0
        %4517 = vmatpush.msra.mxu0 0.0
        %4518 = vmatpush.msra.mxu0 0.0
        %4519 = vmatpush.msra.mxu0 %v4430
        %4520 = vmatpush.msra.mxu0 %v4428
        %4521 = vmatmul.f32.gmra.mxu0 %v1912
        %v4522 = vpop.f32.mrf.mxu0
        %v4523 = vadd.f32 0.0, %v4522
        %4524 = vmatmul.f32.gmra.mxu0 %v1915
        %v4525 = vpop.f32.mrf.mxu0
        %v4526 = vadd.f32 0.0, %v4525
        %4527 = vdwg.mxu0
        %v4528 = vperm.slane %v4254, 2
        %v4529 = vmul.f32 %v4523, %v4528
        %v4530 = vmul.f32 %v4526, %v4528
        %v4531 = vadd.f32 %v4503, %v4529
        %v4532 = vadd.f32 %v4504, %v4530
        %4533 = vmatpush.msra.mxu0 0.0
        %4534 = vmatpush.msra.mxu0 0.0
        %4535 = vmatpush.msra.mxu0 0.0
        %4536 = vmatpush.msra.mxu0 0.0
        %4537 = vmatpush.msra.mxu0 0.0
        %4538 = vmatpush.msra.mxu0 0.0
        %4539 = vmatpush.msra.mxu0 0.0
        %4540 = vmatpush.msra.mxu0 0.0
        %4541 = vmatpush.msra.mxu0 0.0
        %4542 = vmatpush.msra.mxu0 0.0
        %4543 = vmatpush.msra.mxu0 0.0
        %4544 = vmatpush.msra.mxu0 0.0
        %4545 = vmatpush.msra.mxu0 0.0
        %4546 = vmatpush.msra.mxu0 0.0
        %4547 = vmatpush.msra.mxu0 %v4430
        %4548 = vmatpush.msra.mxu0 %v4428
        %4549 = vmatmul.f32.gmra.mxu0 %v1946
        %v4550 = vpop.f32.mrf.mxu0
        %v4551 = vadd.f32 0.0, %v4550
        %4552 = vmatmul.f32.gmra.mxu0 %v1949
        %v4553 = vpop.f32.mrf.mxu0
        %v4554 = vadd.f32 0.0, %v4553
        %4555 = vdwg.mxu0
        %v4556 = vperm.slane %v4254, 3
        %v4557 = vmul.f32 %v4551, %v4556
        %v4558 = vmul.f32 %v4554, %v4556
        %v4559 = vadd.f32 %v4531, %v4557
        %v4560 = vadd.f32 %v4532, %v4558
        %v4561 = vxor.u32 %v4559, 2147483648
        %v4562 = vxor.u32 %v4560, 2147483648
        %v4563 = vmul.f32 %v4561, 1.442695
        %v4564 = vpow.pop %v4563
        %v4565 = vmul.f32 %v4562, 1.442695
        %v4566 = vpow.pop %v4565
        %v4567 = vadd.f32 %v4564, 1.0
        %v4568 = vadd.f32 %v4566, 1.0
        %v4569 = vrcp.pop %v4567
        %v4570 = vmul.f32 %v4567, %v4569
        %v4571 = vsub.f32 1.0, %v4570
        %v4572 = vmul.f32 %v4569, %v4571
        %v4573 = vadd.f32 %v4569, %v4572
        %vm4574 = vweird.f32 %v4567
        %vm4575 = vweird.f32 %v4569
        %vm4576 = vmor %vm4574, %vm4575
        %v4577 = vsel %vm4576, %v4569, %v4573
        %v4578 = vand.u32 2147483647, %v4567
        %vm4579 = vcmp.eq.f32.partialorder %v4578, 8.507059e+37
        %v4580 = vand.u32 %v4567, 2147483648
        %v4581 = vor.u32 1.1754944e-38, %v4580
        %v4582 = vsel %vm4579, %v4581, %v4577
        %v4583 = vmul.f32 1.0, %v4582
        %v4584 = vrcp.pop %v4568
        %v4585 = vmul.f32 %v4568, %v4584
        %v4586 = vsub.f32 1.0, %v4585
        %v4587 = vmul.f32 %v4584, %v4586
        %v4588 = vadd.f32 %v4584, %v4587
        %vm4589 = vweird.f32 %v4568
        %vm4590 = vweird.f32 %v4584
        %vm4591 = vmor %vm4589, %vm4590
        %v4592 = vsel %vm4591, %v4584, %v4588
        %v4593 = vand.u32 2147483647, %v4568
        %vm4594 = vcmp.eq.f32.partialorder %v4593, 8.507059e+37
        %v4595 = vand.u32 %v4568, 2147483648
        %v4596 = vor.u32 1.1754944e-38, %v4595
        %v4597 = vsel %vm4594, %v4596, %v4592
        %v4598 = vmul.f32 1.0, %v4597
        %v4599 = vmul.f32 %v4559, %v4583
        %v4600 = vmul.f32 %v4560, %v4598
        %v4602 = vperm.slane %v4256, 0
        %4603 = vrot.lane.b32.xlu0 %v4602, 64
        %v4604 = vpop.permute.xlu0 %4603
        %v4606 = vadd.f32 %v4442, %v4604
        %v4607 = vadd.f32 %v4444, %v4604
        %v4608 = vmax.f32 %v4606, 0.0
        %v4609 = vmax.f32 %v4607, 0.0
        %v4610 = vand.u32 2147483647, %v4606
        %v4611 = vand.u32 2147483647, %v4607
        %v4612 = vsub.f32 0.0, %v4610
        %v4613 = vsub.f32 0.0, %v4611
        %v4614 = vmul.f32 %v4612, 1.442695
        %v4615 = vpow.pop %v4614
        %v4616 = vmul.f32 %v4613, 1.442695
        %v4617 = vpow.pop %v4616
        %v4618 = vadd.f32 %v4615, 1.0
        %v4619 = vadd.f32 %v4617, 1.0
        %v4620 = vlog2.pop %v4618
        %v4621 = vmul.f32 %v4620, 0.6931472
        %v4622 = vlog2.pop %v4619
        %v4623 = vmul.f32 %v4622, 0.6931472
        %v4624 = vadd.f32 %v4608, %v4621
        %v4625 = vadd.f32 %v4609, %v4623
        %v4627 = vperm.slane %v4257, 0
        %4628 = vrot.lane.b32.xlu0 %v4627, 64
        %v4629 = vpop.permute.xlu0 %4628
        %v4631 = vmul.f32 %v4624, %v4629
        %v4632 = vmul.f32 %v4625, %v4629
        %4635 = vrot.lane.b32.xlu0 %v4631, 64
        %v4636 = vpop.permute.xlu0 %4635
        %4637 = vrot.lane.b32.xlu0 %v4632, 64
        %v4638 = vpop.permute.xlu0 %4637
        %4641 = vmatpush.msra.mxu0 0.0
        %4642 = vmatpush.msra.mxu0 0.0
        %4643 = vmatpush.msra.mxu0 0.0
        %4644 = vmatpush.msra.mxu0 0.0
        %4645 = vmatpush.msra.mxu0 0.0
        %4646 = vmatpush.msra.mxu0 0.0
        %4647 = vmatpush.msra.mxu0 0.0
        %4648 = vmatpush.msra.mxu0 0.0
        %4649 = vmatpush.msra.mxu0 0.0
        %4650 = vmatpush.msra.mxu0 0.0
        %4651 = vmatpush.msra.mxu0 0.0
        %4652 = vmatpush.msra.mxu0 0.0
        %4653 = vmatpush.msra.mxu0 0.0
        %4654 = vmatpush.msra.mxu0 0.0
        %4655 = vmatpush.msra.mxu0 %v4638
        %4656 = vmatpush.msra.mxu0 %v4636
        %4657 = vmatmul.f32.gmra.mxu0 %v2060
        %v4658 = vpop.f32.mrf.mxu0
        %v4659 = vadd.f32 0.0, %v4658
        %4660 = vmatmul.f32.gmra.mxu0 %v2063
        %v4661 = vpop.f32.mrf.mxu0
        %v4662 = vadd.f32 0.0, %v4661
        %4663 = vdwg.mxu0
        %v4664 = vmul.f32 %v4659, 1.442695
        %v4665 = vpow.pop %v4664
        %v4666 = vmul.f32 %v4662, 1.442695
        %v4667 = vpow.pop %v4666
        %v4668 = vsub.f32 0.0, %v4659
        %v4669 = vsub.f32 0.0, %v4662
        %v4670 = vmul.f32 %v4668, 1.442695
        %v4671 = vpow.pop %v4670
        %v4672 = vmul.f32 %v4669, 1.442695
        %v4673 = vpow.pop %v4672
        %4676 = vrot.lane.b32.xlu0 %v4671, 64
        %v4677 = vpop.permute.xlu0 %4676
        %4678 = vrot.lane.b32.xlu0 %v4673, 64
        %v4679 = vpop.permute.xlu0 %4678
        %v4682 = vmul.f32 %v4624, %v4677
        %v4683 = vmul.f32 %v4625, %v4679
        %4685 = vset.pattern.permute.xlu0 0
        %4686 = vperm.xlu0 %4685, %v4665
        %v4687 = vpop.permute.xlu0 %4686
        %4690 = vset.pattern.permute.xlu0 0
        %4691 = vperm.xlu0 %4690, %v4667
        %v4692 = vpop.permute.xlu0 %4691
        %v4694 = vmul.f32 %v4599, %v4687
        %v4695 = vmul.f32 %v4600, %v4692
        %4697 = vset.pattern.permute.xlu0 64
        %4698 = vperm.xlu0 %4697, %v4682
        %v4699 = vpop.permute.xlu0 %4698
        %4702 = vset.pattern.permute.xlu0 64
        %4703 = vperm.xlu0 %4702, %v4683
        %v4704 = vpop.permute.xlu0 %4703
        %v4706 = vmul.f32 %v4599, %v4699
        %v4707 = vmul.f32 %v4600, %v4704
        %v4709 = vperm.slane %v4258, 0
        %4710 = vset.pattern.permute.xlu0 0
        %4711 = vperm.xlu0 %4710, %v4709
        %v4712 = vpop.permute.xlu0 %4711
        %v4714 = vmul.f32 %v4599, %v4712
        %v4715 = vmul.f32 %v4600, %v4712
        %4716 = vset.pattern.permute.xlu0 1
        %4717 = vperm.xlu0 %4716, %v4665
        %v4718 = vpop.permute.xlu0 %4717
        %4720 = vset.pattern.permute.xlu0 1
        %4721 = vperm.xlu0 %4720, %v4667
        %v4722 = vpop.permute.xlu0 %4721
        %v4724 = vmul.f32 %v4599, %v4718
        %v4725 = vmul.f32 %v4600, %v4722
        %4726 = vset.pattern.permute.xlu0 65
        %4727 = vperm.xlu0 %4726, %v4682
        %v4728 = vpop.permute.xlu0 %4727
        %4730 = vset.pattern.permute.xlu0 65
        %4731 = vperm.xlu0 %4730, %v4683
        %v4732 = vpop.permute.xlu0 %4731
        %v4734 = vmul.f32 %v4599, %v4728
        %v4735 = vmul.f32 %v4600, %v4732
        %4736 = vset.pattern.permute.xlu0 1
        %4737 = vperm.xlu0 %4736, %v4709
        %v4738 = vpop.permute.xlu0 %4737
        %v4740 = vmul.f32 %v4599, %v4738
        %v4741 = vmul.f32 %v4600, %v4738
        %4742 = vset.pattern.permute.xlu0 2
        %4743 = vperm.xlu0 %4742, %v4665
        %v4744 = vpop.permute.xlu0 %4743
        %4746 = vset.pattern.permute.xlu0 2
        %4747 = vperm.xlu0 %4746, %v4667
        %v4748 = vpop.permute.xlu0 %4747
        %v4750 = vmul.f32 %v4599, %v4744
        %v4751 = vmul.f32 %v4600, %v4748
        %4752 = vset.pattern.permute.xlu0 66
        %4753 = vperm.xlu0 %4752, %v4682
        %v4754 = vpop.permute.xlu0 %4753
        %4756 = vset.pattern.permute.xlu0 66
        %4757 = vperm.xlu0 %4756, %v4683
        %v4758 = vpop.permute.xlu0 %4757
        %v4760 = vmul.f32 %v4599, %v4754
        %v4761 = vmul.f32 %v4600, %v4758
        %4762 = vset.pattern.permute.xlu0 2
        %4763 = vperm.xlu0 %4762, %v4709
        %v4764 = vpop.permute.xlu0 %4763
        %v4766 = vmul.f32 %v4599, %v4764
        %v4767 = vmul.f32 %v4600, %v4764
        %4768 = vset.pattern.permute.xlu0 3
        %4769 = vperm.xlu0 %4768, %v4665
        %v4770 = vpop.permute.xlu0 %4769
        %4772 = vset.pattern.permute.xlu0 3
        %4773 = vperm.xlu0 %4772, %v4667
        %v4774 = vpop.permute.xlu0 %4773
        %v4776 = vmul.f32 %v4599, %v4770
        %v4777 = vmul.f32 %v4600, %v4774
        %4778 = vset.pattern.permute.xlu0 67
        %4779 = vperm.xlu0 %4778, %v4682
        %v4780 = vpop.permute.xlu0 %4779
        %4782 = vset.pattern.permute.xlu0 67
        %4783 = vperm.xlu0 %4782, %v4683
        %v4784 = vpop.permute.xlu0 %4783
        %v4786 = vmul.f32 %v4599, %v4780
        %v4787 = vmul.f32 %v4600, %v4784
        %4788 = vset.pattern.permute.xlu0 3
        %4789 = vperm.xlu0 %4788, %v4709
        %v4790 = vpop.permute.xlu0 %4789
        %v4792 = vmul.f32 %v4599, %v4790
        %v4793 = vmul.f32 %v4600, %v4790
        %4796 = vrot.lane.b32.xlu0 %v4724, 112
        %v4797 = vpop.permute.xlu0 %4796
        %4798 = vrot.lane.b32.xlu0 %v4725, 112
        %v4799 = vpop.permute.xlu0 %4798
        %4802 = vrot.lane.b32.xlu0 %v4750, 96
        %v4803 = vpop.permute.xlu0 %4802
        %4804 = vrot.lane.b32.xlu0 %v4751, 96
        %v4805 = vpop.permute.xlu0 %4804
        %4808 = vrot.lane.b32.xlu0 %v4776, 80
        %v4809 = vpop.permute.xlu0 %4808
        %4810 = vrot.lane.b32.xlu0 %v4777, 80
        %v4811 = vpop.permute.xlu0 %4810
        %4814 = vrot.lane.b32.xlu0 %v4599, 112
        %v4815 = vpop.permute.xlu0 %4814
        %4816 = vrot.lane.b32.xlu0 %v4600, 112
        %v4817 = vpop.permute.xlu0 %4816
        %4820 = vrot.lane.b32.xlu0 %v4760, 112
        %v4821 = vpop.permute.xlu0 %4820
        %4822 = vrot.lane.b32.xlu0 %v4761, 112
        %v4823 = vpop.permute.xlu0 %4822
        %4828 = vrot.lane.b32.xlu0 %v4786, 112
        %v4829 = vpop.permute.xlu0 %4828
        %4830 = vrot.lane.b32.xlu0 %v4787, 112
        %v4831 = vpop.permute.xlu0 %4830
        %4836 = vrot.lane.b32.xlu0 %v4766, 112
        %v4837 = vpop.permute.xlu0 %4836
        %4838 = vrot.lane.b32.xlu0 %v4767, 112
        %v4839 = vpop.permute.xlu0 %4838
        %4844 = vrot.lane.b32.xlu0 %v4792, 112
        %v4845 = vpop.permute.xlu0 %4844
        %4846 = vrot.lane.b32.xlu0 %v4793, 112
        %v4847 = vpop.permute.xlu0 %4846
        %4852 = vrot.lane.b32.xlu0 %v4442, 112
        %v4853 = vpop.permute.xlu0 %4852
        %4854 = vrot.lane.b32.xlu0 %v4444, 112
        %v4855 = vpop.permute.xlu0 %4854
        %4858 = vrot.lane.b32.xlu0 %v4442, 96
        %v4859 = vpop.permute.xlu0 %4858
        %4860 = vrot.lane.b32.xlu0 %v4444, 96
        %v4861 = vpop.permute.xlu0 %4860
        %4864 = vrot.lane.b32.xlu0 %v4442, 80
        %v4865 = vpop.permute.xlu0 %4864
        %4866 = vrot.lane.b32.xlu0 %v4444, 80
        %v4867 = vpop.permute.xlu0 %4866
        %4872 = vrot.lane.b32.xlu0 %v4694, 64
        %v4873 = vpop.permute.xlu0 %4872
        %4874 = vrot.lane.b32.xlu0 %v4695, 64
        %v4875 = vpop.permute.xlu0 %4874
        %4876 = vrot.lane.b32.xlu0 %v4599, 96
        %v4877 = vpop.permute.xlu0 %4876
        %4878 = vrot.lane.b32.xlu0 %v4600, 96
        %v4879 = vpop.permute.xlu0 %4878
        %v4880 = vsel %vm1839, %v4873, 0
        %v4882 = vsel %vm1839, %v4875, 0
        %v4884 = vsel %vm1839, %v4877, 0
        %v4886 = vsel %vm1839, %v4879, 0
        %4888 = vmatpush.xpose.msra.mxu0 0.0
        %4889 = vmatpush.xpose.msra.mxu0 0.0
        %4890 = vmatpush.xpose.msra.mxu0 0.0
        %4891 = vmatpush.xpose.msra.mxu0 0.0
        %4892 = vmatpush.xpose.msra.mxu0 0.0
        %4893 = vmatpush.xpose.msra.mxu0 0.0
        %4894 = vmatpush.xpose.msra.mxu0 0.0
        %4895 = vmatpush.xpose.msra.mxu0 0.0
        %4896 = vmatpush.xpose.msra.mxu0 0.0
        %4897 = vmatpush.xpose.msra.mxu0 0.0
        %4898 = vmatpush.xpose.msra.mxu0 0.0
        %4899 = vmatpush.xpose.msra.mxu0 0.0
        %4900 = vmatpush.xpose.msra.mxu0 0.0
        %4901 = vmatpush.xpose.msra.mxu0 0.0
        %4902 = vmatpush.xpose.msra.mxu0 %v4886
        %4903 = vmatpush.xpose.msra.mxu0 %v4884
        %4904 = vmatmul.f32.gmra.mxu0 %v4880
        %v4905 = vpop.f32.mrf.mxu0
        %v4906 = vadd.f32 0.0, %v4905
        %4907 = vmatmul.f32.gmra.mxu0 %v4882
        %v4908 = vpop.f32.mrf.mxu0
        %v4909 = vadd.f32 0.0, %v4908
        %4910 = vdwg.mxu0
        %4911 = vrot.lane.b32.xlu0 %v4797, 64
        %v4912 = vpop.permute.xlu0 %4911
        %4913 = vrot.lane.b32.xlu0 %v4799, 64
        %v4914 = vpop.permute.xlu0 %4913
        %v4915 = vsel %vm1839, %v4912, 0
        %v4917 = vsel %vm1839, %v4914, 0
        %4919 = vmatpush.xpose.msra.mxu0 0.0
        %4920 = vmatpush.xpose.msra.mxu0 0.0
        %4921 = vmatpush.xpose.msra.mxu0 0.0
        %4922 = vmatpush.xpose.msra.mxu0 0.0
        %4923 = vmatpush.xpose.msra.mxu0 0.0
        %4924 = vmatpush.xpose.msra.mxu0 0.0
        %4925 = vmatpush.xpose.msra.mxu0 0.0
        %4926 = vmatpush.xpose.msra.mxu0 0.0
        %4927 = vmatpush.xpose.msra.mxu0 0.0
        %4928 = vmatpush.xpose.msra.mxu0 0.0
        %4929 = vmatpush.xpose.msra.mxu0 0.0
        %4930 = vmatpush.xpose.msra.mxu0 0.0
        %4931 = vmatpush.xpose.msra.mxu0 0.0
        %4932 = vmatpush.xpose.msra.mxu0 0.0
        %4933 = vmatpush.xpose.msra.mxu0 %v4886
        %4934 = vmatpush.xpose.msra.mxu0 %v4884
        %4935 = vmatmul.f32.gmra.mxu0 %v4915
        %v4936 = vpop.f32.mrf.mxu0
        %v4937 = vadd.f32 0.0, %v4936
        %4938 = vmatmul.f32.gmra.mxu0 %v4917
        %v4939 = vpop.f32.mrf.mxu0
        %v4940 = vadd.f32 0.0, %v4939
        %4941 = vdwg.mxu0
        %4942 = vrot.lane.b32.xlu0 %v4803, 64
        %v4943 = vpop.permute.xlu0 %4942
        %4944 = vrot.lane.b32.xlu0 %v4805, 64
        %v4945 = vpop.permute.xlu0 %4944
        %4946 = vrot.lane.b32.xlu0 %v4815, 96
        %v4947 = vpop.permute.xlu0 %4946
        %4948 = vrot.lane.b32.xlu0 %v4817, 96
        %v4949 = vpop.permute.xlu0 %4948
        %v4950 = vsel %vm1839, %v4943, 0
        %v4952 = vsel %vm1839, %v4945, 0
        %v4954 = vsel %vm1839, %v4947, 0
        %v4956 = vsel %vm1839, %v4949, 0
        %4958 = vmatpush.xpose.msra.mxu0 0.0
        %4959 = vmatpush.xpose.msra.mxu0 0.0
        %4960 = vmatpush.xpose.msra.mxu0 0.0
        %4961 = vmatpush.xpose.msra.mxu0 0.0
        %4962 = vmatpush.xpose.msra.mxu0 0.0
        %4963 = vmatpush.xpose.msra.mxu0 0.0
        %4964 = vmatpush.xpose.msra.mxu0 0.0
        %4965 = vmatpush.xpose.msra.mxu0 0.0
        %4966 = vmatpush.xpose.msra.mxu0 0.0
        %4967 = vmatpush.xpose.msra.mxu0 0.0
        %4968 = vmatpush.xpose.msra.mxu0 0.0
        %4969 = vmatpush.xpose.msra.mxu0 0.0
        %4970 = vmatpush.xpose.msra.mxu0 0.0
        %4971 = vmatpush.xpose.msra.mxu0 0.0
        %4972 = vmatpush.xpose.msra.mxu0 %v4956
        %4973 = vmatpush.xpose.msra.mxu0 %v4954
        %4974 = vmatmul.f32.gmra.mxu0 %v4950
        %v4975 = vpop.f32.mrf.mxu0
        %v4976 = vadd.f32 0.0, %v4975
        %4977 = vmatmul.f32.gmra.mxu0 %v4952
        %v4978 = vpop.f32.mrf.mxu0
        %v4979 = vadd.f32 0.0, %v4978
        %4980 = vdwg.mxu0
        %4981 = vrot.lane.b32.xlu0 %v4809, 64
        %v4982 = vpop.permute.xlu0 %4981
        %4983 = vrot.lane.b32.xlu0 %v4811, 64
        %v4984 = vpop.permute.xlu0 %4983
        %v4985 = vsel %vm1839, %v4982, 0
        %v4987 = vsel %vm1839, %v4984, 0
        %4989 = vmatpush.xpose.msra.mxu0 0.0
        %4990 = vmatpush.xpose.msra.mxu0 0.0
        %4991 = vmatpush.xpose.msra.mxu0 0.0
        %4992 = vmatpush.xpose.msra.mxu0 0.0
        %4993 = vmatpush.xpose.msra.mxu0 0.0
        %4994 = vmatpush.xpose.msra.mxu0 0.0
        %4995 = vmatpush.xpose.msra.mxu0 0.0
        %4996 = vmatpush.xpose.msra.mxu0 0.0
        %4997 = vmatpush.xpose.msra.mxu0 0.0
        %4998 = vmatpush.xpose.msra.mxu0 0.0
        %4999 = vmatpush.xpose.msra.mxu0 0.0
        %5000 = vmatpush.xpose.msra.mxu0 0.0
        %5001 = vmatpush.xpose.msra.mxu0 0.0
        %5002 = vmatpush.xpose.msra.mxu0 0.0
        %5003 = vmatpush.xpose.msra.mxu0 %v4956
        %5004 = vmatpush.xpose.msra.mxu0 %v4954
        %5005 = vmatmul.f32.gmra.mxu0 %v4985
        %v5006 = vpop.f32.mrf.mxu0
        %v5007 = vadd.f32 0.0, %v5006
        %5008 = vmatmul.f32.gmra.mxu0 %v4987
        %v5009 = vpop.f32.mrf.mxu0
        %v5010 = vadd.f32 0.0, %v5009
        %5011 = vdwg.mxu0
        %v5012 = vmul.f32 %v4906, %v1600
        %v5013 = vmul.f32 %v4909, %v1601
        %v5014 = vmul.f32 %v4937, %v1600
        %v5015 = vmul.f32 %v4940, %v1601
        %v5016 = vmul.f32 %v4976, %v1600
        %v5017 = vmul.f32 %v4979, %v1601
        %v5018 = vmul.f32 %v5007, %v1600
        %v5019 = vmul.f32 %v5010, %v1601
        %v5021 = vsel %vm1839, %v5012, 0
        %v5024 = vsel %vm1839, %v5013, 0
        %5026 = vmatpush.msra.mxu0 0.0
        %5027 = vmatpush.msra.mxu0 0.0
        %5028 = vmatpush.msra.mxu0 0.0
        %5029 = vmatpush.msra.mxu0 0.0
        %5030 = vmatpush.msra.mxu0 0.0
        %5031 = vmatpush.msra.mxu0 0.0
        %5032 = vmatpush.msra.mxu0 0.0
        %5033 = vmatpush.msra.mxu0 0.0
        %5034 = vmatpush.msra.mxu0 0.0
        %5035 = vmatpush.msra.mxu0 0.0
        %5036 = vmatpush.msra.mxu0 0.0
        %5037 = vmatpush.msra.mxu0 0.0
        %5038 = vmatpush.msra.mxu0 0.0
        %5039 = vmatpush.msra.mxu0 0.0
        %5040 = vmatpush.msra.mxu0 %v4707
        %5041 = vmatpush.msra.mxu0 %v4706
        %5042 = vmatmul.f32.gmra.mxu0 %v5021
        %v5043 = vpop.f32.mrf.mxu0
        %v5044 = vadd.f32 %v4714, %v5043
        %5045 = vmatmul.f32.gmra.mxu0 %v5024
        %v5046 = vpop.f32.mrf.mxu0
        %v5047 = vadd.f32 %v4715, %v5046
        %5048 = vdwg.mxu0
        %v5050 = vsel %vm1839, %v5014, 0
        %v5053 = vsel %vm1839, %v5015, 0
        %5055 = vmatpush.msra.mxu0 0.0
        %5056 = vmatpush.msra.mxu0 0.0
        %5057 = vmatpush.msra.mxu0 0.0
        %5058 = vmatpush.msra.mxu0 0.0
        %5059 = vmatpush.msra.mxu0 0.0
        %5060 = vmatpush.msra.mxu0 0.0
        %5061 = vmatpush.msra.mxu0 0.0
        %5062 = vmatpush.msra.mxu0 0.0
        %5063 = vmatpush.msra.mxu0 0.0
        %5064 = vmatpush.msra.mxu0 0.0
        %5065 = vmatpush.msra.mxu0 0.0
        %5066 = vmatpush.msra.mxu0 0.0
        %5067 = vmatpush.msra.mxu0 0.0
        %5068 = vmatpush.msra.mxu0 0.0
        %5069 = vmatpush.msra.mxu0 %v4735
        %5070 = vmatpush.msra.mxu0 %v4734
        %5071 = vmatmul.f32.gmra.mxu0 %v5050
        %v5072 = vpop.f32.mrf.mxu0
        %v5073 = vadd.f32 %v4740, %v5072
        %5074 = vmatmul.f32.gmra.mxu0 %v5053
        %v5075 = vpop.f32.mrf.mxu0
        %v5076 = vadd.f32 %v4741, %v5075
        %5077 = vdwg.mxu0
        %v5079 = vsel %vm1839, %v5016, 0
        %v5082 = vsel %vm1839, %v5017, 0
        %5084 = vmatpush.msra.mxu0 0.0
        %5085 = vmatpush.msra.mxu0 0.0
        %5086 = vmatpush.msra.mxu0 0.0
        %5087 = vmatpush.msra.mxu0 0.0
        %5088 = vmatpush.msra.mxu0 0.0
        %5089 = vmatpush.msra.mxu0 0.0
        %5090 = vmatpush.msra.mxu0 0.0
        %5091 = vmatpush.msra.mxu0 0.0
        %5092 = vmatpush.msra.mxu0 0.0
        %5093 = vmatpush.msra.mxu0 0.0
        %5094 = vmatpush.msra.mxu0 0.0
        %5095 = vmatpush.msra.mxu0 0.0
        %5096 = vmatpush.msra.mxu0 0.0
        %5097 = vmatpush.msra.mxu0 0.0
        %5098 = vmatpush.msra.mxu0 %v4823
        %5099 = vmatpush.msra.mxu0 %v4821
        %5100 = vmatmul.f32.gmra.mxu0 %v5079
        %v5101 = vpop.f32.mrf.mxu0
        %v5102 = vadd.f32 %v4837, %v5101
        %5103 = vmatmul.f32.gmra.mxu0 %v5082
        %v5104 = vpop.f32.mrf.mxu0
        %v5105 = vadd.f32 %v4839, %v5104
        %5106 = vdwg.mxu0
        %v5108 = vsel %vm1839, %v5018, 0
        %v5111 = vsel %vm1839, %v5019, 0
        %5113 = vmatpush.msra.mxu0 0.0
        %5114 = vmatpush.msra.mxu0 0.0
        %5115 = vmatpush.msra.mxu0 0.0
        %5116 = vmatpush.msra.mxu0 0.0
        %5117 = vmatpush.msra.mxu0 0.0
        %5118 = vmatpush.msra.mxu0 0.0
        %5119 = vmatpush.msra.mxu0 0.0
        %5120 = vmatpush.msra.mxu0 0.0
        %5121 = vmatpush.msra.mxu0 0.0
        %5122 = vmatpush.msra.mxu0 0.0
        %5123 = vmatpush.msra.mxu0 0.0
        %5124 = vmatpush.msra.mxu0 0.0
        %5125 = vmatpush.msra.mxu0 0.0
        %5126 = vmatpush.msra.mxu0 0.0
        %5127 = vmatpush.msra.mxu0 %v4831
        %5128 = vmatpush.msra.mxu0 %v4829
        %5129 = vmatmul.f32.gmra.mxu0 %v5108
        %v5130 = vpop.f32.mrf.mxu0
        %v5131 = vadd.f32 %v4845, %v5130
        %5132 = vmatmul.f32.gmra.mxu0 %v5111
        %v5133 = vpop.f32.mrf.mxu0
        %v5134 = vadd.f32 %v4847, %v5133
        %5135 = vdwg.mxu0
        %v5136 = vxor.u32 %v4442, 2147483648
        %v5137 = vxor.u32 %v4444, 2147483648
        %v5138 = vxor.u32 %v4853, 2147483648
        %v5139 = vxor.u32 %v4855, 2147483648
        %v5140 = vxor.u32 %v4859, 2147483648
        %v5141 = vxor.u32 %v4861, 2147483648
        %v5142 = vxor.u32 %v4865, 2147483648
        %v5143 = vxor.u32 %v4867, 2147483648
        %v5144 = vmul.f32 %v5136, 1.442695
        %v5145 = vpow.pop %v5144
        %v5146 = vmul.f32 %v5137, 1.442695
        %v5147 = vpow.pop %v5146
        %v5148 = vmul.f32 %v5138, 1.442695
        %v5149 = vpow.pop %v5148
        %v5150 = vmul.f32 %v5139, 1.442695
        %v5151 = vpow.pop %v5150
        %v5152 = vmul.f32 %v5140, 1.442695
        %v5153 = vpow.pop %v5152
        %v5154 = vmul.f32 %v5141, 1.442695
        %v5155 = vpow.pop %v5154
        %v5156 = vmul.f32 %v5142, 1.442695
        %v5157 = vpow.pop %v5156
        %v5158 = vmul.f32 %v5143, 1.442695
        %v5159 = vpow.pop %v5158
        %v5160 = vadd.f32 %v5145, 1.0
        %v5161 = vadd.f32 %v5147, 1.0
        %v5162 = vadd.f32 %v5149, 1.0
        %v5163 = vadd.f32 %v5151, 1.0
        %v5164 = vadd.f32 %v5153, 1.0
        %v5165 = vadd.f32 %v5155, 1.0
        %v5166 = vadd.f32 %v5157, 1.0
        %v5167 = vadd.f32 %v5159, 1.0
        %v5168 = vrcp.pop %v5160
        %v5169 = vmul.f32 %v5160, %v5168
        %v5170 = vsub.f32 1.0, %v5169
        %v5171 = vmul.f32 %v5168, %v5170
        %v5172 = vadd.f32 %v5168, %v5171
        %vm5173 = vweird.f32 %v5160
        %vm5174 = vweird.f32 %v5168
        %vm5175 = vmor %vm5173, %vm5174
        %v5176 = vsel %vm5175, %v5168, %v5172
        %v5177 = vand.u32 2147483647, %v5160
        %vm5178 = vcmp.eq.f32.partialorder %v5177, 8.507059e+37
        %v5179 = vand.u32 %v5160, 2147483648
        %v5180 = vor.u32 1.1754944e-38, %v5179
        %v5181 = vsel %vm5178, %v5180, %v5176
        %v5182 = vmul.f32 1.0, %v5181
        %v5183 = vrcp.pop %v5161
        %v5184 = vmul.f32 %v5161, %v5183
        %v5185 = vsub.f32 1.0, %v5184
        %v5186 = vmul.f32 %v5183, %v5185
        %v5187 = vadd.f32 %v5183, %v5186
        %vm5188 = vweird.f32 %v5161
        %vm5189 = vweird.f32 %v5183
        %vm5190 = vmor %vm5188, %vm5189
        %v5191 = vsel %vm5190, %v5183, %v5187
        %v5192 = vand.u32 2147483647, %v5161
        %vm5193 = vcmp.eq.f32.partialorder %v5192, 8.507059e+37
        %v5194 = vand.u32 %v5161, 2147483648
        %v5195 = vor.u32 1.1754944e-38, %v5194
        %v5196 = vsel %vm5193, %v5195, %v5191
        %v5197 = vmul.f32 1.0, %v5196
        %v5198 = vrcp.pop %v5162
        %v5199 = vmul.f32 %v5162, %v5198
        %v5200 = vsub.f32 1.0, %v5199
        %v5201 = vmul.f32 %v5198, %v5200
        %v5202 = vadd.f32 %v5198, %v5201
        %vm5203 = vweird.f32 %v5162
        %vm5204 = vweird.f32 %v5198
        %vm5205 = vmor %vm5203, %vm5204
        %v5206 = vsel %vm5205, %v5198, %v5202
        %v5207 = vand.u32 2147483647, %v5162
        %vm5208 = vcmp.eq.f32.partialorder %v5207, 8.507059e+37
        %v5209 = vand.u32 %v5162, 2147483648
        %v5210 = vor.u32 1.1754944e-38, %v5209
        %v5211 = vsel %vm5208, %v5210, %v5206
        %v5212 = vmul.f32 1.0, %v5211
        %v5213 = vrcp.pop %v5163
        %v5214 = vmul.f32 %v5163, %v5213
        %v5215 = vsub.f32 1.0, %v5214
        %v5216 = vmul.f32 %v5213, %v5215
        %v5217 = vadd.f32 %v5213, %v5216
        %vm5218 = vweird.f32 %v5163
        %vm5219 = vweird.f32 %v5213
        %vm5220 = vmor %vm5218, %vm5219
        %v5221 = vsel %vm5220, %v5213, %v5217
        %v5222 = vand.u32 2147483647, %v5163
        %vm5223 = vcmp.eq.f32.partialorder %v5222, 8.507059e+37
        %v5224 = vand.u32 %v5163, 2147483648
        %v5225 = vor.u32 1.1754944e-38, %v5224
        %v5226 = vsel %vm5223, %v5225, %v5221
        %v5227 = vmul.f32 1.0, %v5226
        %v5228 = vrcp.pop %v5164
        %v5229 = vmul.f32 %v5164, %v5228
        %v5230 = vsub.f32 1.0, %v5229
        %v5231 = vmul.f32 %v5228, %v5230
        %v5232 = vadd.f32 %v5228, %v5231
        %vm5233 = vweird.f32 %v5164
        %vm5234 = vweird.f32 %v5228
        %vm5235 = vmor %vm5233, %vm5234
        %v5236 = vsel %vm5235, %v5228, %v5232
        %v5237 = vand.u32 2147483647, %v5164
        %vm5238 = vcmp.eq.f32.partialorder %v5237, 8.507059e+37
        %v5239 = vand.u32 %v5164, 2147483648
        %v5240 = vor.u32 1.1754944e-38, %v5239
        %v5241 = vsel %vm5238, %v5240, %v5236
        %v5242 = vmul.f32 1.0, %v5241
        %v5243 = vrcp.pop %v5165
        %v5244 = vmul.f32 %v5165, %v5243
        %v5245 = vsub.f32 1.0, %v5244
        %v5246 = vmul.f32 %v5243, %v5245
        %v5247 = vadd.f32 %v5243, %v5246
        %vm5248 = vweird.f32 %v5165
        %vm5249 = vweird.f32 %v5243
        %vm5250 = vmor %vm5248, %vm5249
        %v5251 = vsel %vm5250, %v5243, %v5247
        %v5252 = vand.u32 2147483647, %v5165
        %vm5253 = vcmp.eq.f32.partialorder %v5252, 8.507059e+37
        %v5254 = vand.u32 %v5165, 2147483648
        %v5255 = vor.u32 1.1754944e-38, %v5254
        %v5256 = vsel %vm5253, %v5255, %v5251
        %v5257 = vmul.f32 1.0, %v5256
        %v5258 = vrcp.pop %v5166
        %v5259 = vmul.f32 %v5166, %v5258
        %v5260 = vsub.f32 1.0, %v5259
        %v5261 = vmul.f32 %v5258, %v5260
        %v5262 = vadd.f32 %v5258, %v5261
        %vm5263 = vweird.f32 %v5166
        %vm5264 = vweird.f32 %v5258
        %vm5265 = vmor %vm5263, %vm5264
        %v5266 = vsel %vm5265, %v5258, %v5262
        %v5267 = vand.u32 2147483647, %v5166
        %vm5268 = vcmp.eq.f32.partialorder %v5267, 8.507059e+37
        %v5269 = vand.u32 %v5166, 2147483648
        %v5270 = vor.u32 1.1754944e-38, %v5269
        %v5271 = vsel %vm5268, %v5270, %v5266
        %v5272 = vmul.f32 1.0, %v5271
        %v5273 = vrcp.pop %v5167
        %v5274 = vmul.f32 %v5167, %v5273
        %v5275 = vsub.f32 1.0, %v5274
        %v5276 = vmul.f32 %v5273, %v5275
        %v5277 = vadd.f32 %v5273, %v5276
        %vm5278 = vweird.f32 %v5167
        %vm5279 = vweird.f32 %v5273
        %vm5280 = vmor %vm5278, %vm5279
        %v5281 = vsel %vm5280, %v5273, %v5277
        %v5282 = vand.u32 2147483647, %v5167
        %vm5283 = vcmp.eq.f32.partialorder %v5282, 8.507059e+37
        %v5284 = vand.u32 %v5167, 2147483648
        %v5285 = vor.u32 1.1754944e-38, %v5284
        %v5286 = vsel %vm5283, %v5285, %v5281
        %v5287 = vmul.f32 1.0, %v5286
        %v5288 = vmul.f32 %v4442, %v5182
        %v5289 = vmul.f32 %v4444, %v5197
        %v5290 = vmul.f32 %v4853, %v5212
        %v5291 = vmul.f32 %v4855, %v5227
        %v5292 = vmul.f32 %v4859, %v5242
        %v5293 = vmul.f32 %v4861, %v5257
        %v5294 = vmul.f32 %v4865, %v5272
        %v5295 = vmul.f32 %v4867, %v5287
        %v5296 = vmul.f32 %v5044, %v5288
        %v5297 = vmul.f32 %v5047, %v5289
        %v5298 = vmul.f32 %v5073, %v5290
        %v5299 = vmul.f32 %v5076, %v5291
        %v5300 = vmul.f32 %v5102, %v5292
        %v5301 = vmul.f32 %v5105, %v5293
        %v5302 = vmul.f32 %v5131, %v5294
        %v5303 = vmul.f32 %v5134, %v5295
        %v5304 = vpack.c.bf16 %v5296, %v5296
        %v5305 = vpack.c.bf16 %v5297, %v5297
        %v5306 = vpack.c.bf16 %v5298, %v5298
        %v5307 = vpack.c.bf16 %v5299, %v5299
        %v5308 = vpack.c.bf16 %v5300, %v5300
        %v5309 = vpack.c.bf16 %v5301, %v5301
        %v5310 = vpack.c.bf16 %v5302, %v5302
        %v5311 = vpack.c.bf16 %v5303, %v5303
        %v5314 = vunpack.c.l.b16 %v5304
        %v5315 = vunpack.c.l.b16 %v5305
        %v5316 = vpack.c.b16 %v5315, %v5314
        %v5319 = vunpack.c.l.b16 %v4259
        %v5320 = vunpack.c.l.b16 %v4260
        %v5321 = vpack.c.b16 %v5320, %v5319
        %v5324 = vsel %vm1839, %v5316, 0
        %5326 = vmatpush.bf16.msra.mxu0 0
        %5327 = vmatpush.bf16.msra.mxu0 0
        %5328 = vmatpush.bf16.msra.mxu0 0
        %5329 = vmatpush.bf16.msra.mxu0 0
        %5330 = vmatpush.bf16.msra.mxu0 0
        %5331 = vmatpush.bf16.msra.mxu0 0
        %5332 = vmatpush.bf16.msra.mxu0 0
        %5333 = vmatpush.bf16.msra.mxu0 %v5321
        %5334 = vmatmul.bf16.gmra.mxu0 %v5324
        %v5335 = vpop.f32.mrf.mxu0
        %v5336 = vadd.f32 0.0, %v5335
        %v5337 = vpop.f32.mrf.mxu0
        %v5338 = vadd.f32 0.0, %v5337
        %5339 = vdwg.mxu0
        %v5342 = vunpack.c.l.b16 %v5306
        %v5343 = vunpack.c.l.b16 %v5307
        %v5344 = vpack.c.b16 %v5343, %v5342
        %v5347 = vunpack.c.l.b16 %v4261
        %v5348 = vunpack.c.l.b16 %v4262
        %v5349 = vpack.c.b16 %v5348, %v5347
        %v5352 = vsel %vm1839, %v5344, 0
        %5354 = vmatpush.bf16.msra.mxu0 0
        %5355 = vmatpush.bf16.msra.mxu0 0
        %5356 = vmatpush.bf16.msra.mxu0 0
        %5357 = vmatpush.bf16.msra.mxu0 0
        %5358 = vmatpush.bf16.msra.mxu0 0
        %5359 = vmatpush.bf16.msra.mxu0 0
        %5360 = vmatpush.bf16.msra.mxu0 0
        %5361 = vmatpush.bf16.msra.mxu0 %v5349
        %5362 = vmatmul.bf16.gmra.mxu0 %v5352
        %v5363 = vpop.f32.mrf.mxu0
        %v5364 = vadd.f32 0.0, %v5363
        %v5365 = vpop.f32.mrf.mxu0
        %v5366 = vadd.f32 0.0, %v5365
        %5367 = vdwg.mxu0
        %v5370 = vunpack.c.l.b16 %v5308
        %v5371 = vunpack.c.l.b16 %v5309
        %v5372 = vpack.c.b16 %v5371, %v5370
        %v5375 = vunpack.c.l.b16 %v4263
        %v5376 = vunpack.c.l.b16 %v4264
        %v5377 = vpack.c.b16 %v5376, %v5375
        %v5380 = vsel %vm1839, %v5372, 0
        %5382 = vmatpush.bf16.msra.mxu0 0
        %5383 = vmatpush.bf16.msra.mxu0 0
        %5384 = vmatpush.bf16.msra.mxu0 0
        %5385 = vmatpush.bf16.msra.mxu0 0
        %5386 = vmatpush.bf16.msra.mxu0 0
        %5387 = vmatpush.bf16.msra.mxu0 0
        %5388 = vmatpush.bf16.msra.mxu0 0
        %5389 = vmatpush.bf16.msra.mxu0 %v5377
        %5390 = vmatmul.bf16.gmra.mxu0 %v5380
        %v5391 = vpop.f32.mrf.mxu0
        %v5392 = vadd.f32 0.0, %v5391
        %v5393 = vpop.f32.mrf.mxu0
        %v5394 = vadd.f32 0.0, %v5393
        %5395 = vdwg.mxu0
        %v5398 = vunpack.c.l.b16 %v5310
        %v5399 = vunpack.c.l.b16 %v5311
        %v5400 = vpack.c.b16 %v5399, %v5398
        %v5403 = vunpack.c.l.b16 %v4265
        %v5404 = vunpack.c.l.b16 %v4266
        %v5405 = vpack.c.b16 %v5404, %v5403
        %v5408 = vsel %vm1839, %v5400, 0
        %5410 = vmatpush.bf16.msra.mxu0 0
        %5411 = vmatpush.bf16.msra.mxu0 0
        %5412 = vmatpush.bf16.msra.mxu0 0
        %5413 = vmatpush.bf16.msra.mxu0 0
        %5414 = vmatpush.bf16.msra.mxu0 0
        %5415 = vmatpush.bf16.msra.mxu0 0
        %5416 = vmatpush.bf16.msra.mxu0 0
        %5417 = vmatpush.bf16.msra.mxu0 %v5405
        %5418 = vmatmul.bf16.gmra.mxu0 %v5408
        %v5419 = vpop.f32.mrf.mxu0
        %v5420 = vadd.f32 0.0, %v5419
        %v5421 = vpop.f32.mrf.mxu0
        %v5422 = vadd.f32 0.0, %v5421
        %5423 = vdwg.mxu0
        %v5424 = vadd.f32 %v5336, %v5364
        %v5425 = vadd.f32 %v5424, %v5392
        %v5426 = vadd.f32 %v5425, %v5420
        %v5427 = vadd.f32 %v5338, %v5366
        %v5428 = vadd.f32 %v5427, %v5394
        %v5429 = vadd.f32 %v5428, %v5422
        %v5430 = vadd.f32 %v4235, %v5426
        %v5431 = vadd.f32 %v4236, %v5429
        %v5432 = vmul.f32 %v5430, %v5430
        %v5433 = vmul.f32 %v5431, %v5431
        %5434 = vadd.xlane.f32.xlu0 %v5432
        %v5435 = vpop.xlane.xlu0 %5434
        %5436 = vadd.xlane.f32.xlu0 %v5433
        %v5437 = vpop.xlane.xlu0 %5436
        %v5438 = vmul.f32 %v5435, 0.015625
        %v5439 = vmul.f32 %v5437, 0.015625
        %v5440 = vadd.f32 %v5438, 1e-06
        %v5441 = vadd.f32 %v5439, 1e-06
        %v5442 = vrsqrt.pop %v5440
        %v5443 = vmul.f32 %v5442, %v5440
        %v5444 = vmul.f32 %v5443, %v5442
        %v5445 = vmul.f32 0.5, %v5444
        %v5446 = vsub.f32 1.5, %v5445
        %v5447 = vmul.f32 %v5442, %v5446
        %vm5448 = vweird.f32 %v5440
        %vm5449 = vweird.f32 %v5442
        %vm5450 = vmor %vm5448, %vm5449
        %v5451 = vsel %vm5450, %v5442, %v5447
        %v5452 = vrsqrt.pop %v5441
        %v5453 = vmul.f32 %v5452, %v5441
        %v5454 = vmul.f32 %v5453, %v5452
        %v5455 = vmul.f32 0.5, %v5454
        %v5456 = vsub.f32 1.5, %v5455
        %v5457 = vmul.f32 %v5452, %v5456
        %vm5458 = vweird.f32 %v5441
        %vm5459 = vweird.f32 %v5452
        %vm5460 = vmor %vm5458, %vm5459
        %v5461 = vsel %vm5460, %v5452, %v5457
        %v5462 = vmul.f32 %v5430, %v5451
        %v5463 = vmul.f32 %v5431, %v5461
        %v5465 = vperm.slane %v4267, 0
        %v5467 = vmul.f32 %v5462, %v5465
        %v5468 = vmul.f32 %v5463, %v5465
        %v5469 = vpack.c.bf16 %v5468, %v5467
        %v5486 = vunpack.c.l.b16 %v4268
        %v5487 = vunpack.c.h.b16 %v4268
        %v5488 = vunpack.c.l.b16 %v4269
        %v5489 = vunpack.c.h.b16 %v4269
        %v5490 = vunpack.c.l.b16 %v4270
        %v5491 = vunpack.c.h.b16 %v4270
        %v5492 = vunpack.c.l.b16 %v4271
        %v5493 = vunpack.c.h.b16 %v4271
        %v5494 = vunpack.c.l.b16 %v4272
        %v5495 = vunpack.c.h.b16 %v4272
        %v5496 = vunpack.c.l.b16 %v4273
        %v5497 = vunpack.c.h.b16 %v4273
        %v5498 = vunpack.c.l.b16 %v4274
        %v5499 = vunpack.c.h.b16 %v4274
        %v5500 = vunpack.c.l.b16 %v4275
        %v5501 = vunpack.c.h.b16 %v4275
        %v5502 = vunpack.c.l.b16 %v4276
        %v5503 = vunpack.c.h.b16 %v4276
        %v5504 = vunpack.c.l.b16 %v4277
        %v5505 = vunpack.c.h.b16 %v4277
        %v5506 = vunpack.c.l.b16 %v4278
        %v5507 = vunpack.c.h.b16 %v4278
        %v5508 = vunpack.c.l.b16 %v4279
        %v5509 = vunpack.c.h.b16 %v4279
        %v5510 = vunpack.c.l.b16 %v4280
        %v5511 = vunpack.c.h.b16 %v4280
        %v5512 = vunpack.c.l.b16 %v4281
        %v5513 = vunpack.c.h.b16 %v4281
        %v5514 = vunpack.c.l.b16 %v4282
        %v5515 = vunpack.c.h.b16 %v4282
        %v5516 = vunpack.c.l.b16 %v4283
        %v5517 = vunpack.c.h.b16 %v4283
        %v5518 = vpack.c.b16 %v5488, %v5486
        %v5519 = vpack.c.b16 %v5489, %v5487
        %v5520 = vpack.c.b16 %v5492, %v5490
        %v5521 = vpack.c.b16 %v5493, %v5491
        %v5522 = vpack.c.b16 %v5496, %v5494
        %v5523 = vpack.c.b16 %v5497, %v5495
        %v5524 = vpack.c.b16 %v5500, %v5498
        %v5525 = vpack.c.b16 %v5501, %v5499
        %v5526 = vpack.c.b16 %v5504, %v5502
        %v5527 = vpack.c.b16 %v5505, %v5503
        %v5528 = vpack.c.b16 %v5508, %v5506
        %v5529 = vpack.c.b16 %v5509, %v5507
        %v5530 = vpack.c.b16 %v5512, %v5510
        %v5531 = vpack.c.b16 %v5513, %v5511
        %v5532 = vpack.c.b16 %v5516, %v5514
        %v5533 = vpack.c.b16 %v5517, %v5515
        %5550 = vmatpush.bf16.msra.mxu0 %v5532
        %5551 = vmatpush.bf16.msra.mxu0 %v5530
        %5552 = vmatpush.bf16.msra.mxu0 %v5528
        %5553 = vmatpush.bf16.msra.mxu0 %v5526
        %5554 = vmatpush.bf16.msra.mxu0 %v5524
        %5555 = vmatpush.bf16.msra.mxu0 %v5522
        %5556 = vmatpush.bf16.msra.mxu0 %v5520
        %5557 = vmatpush.bf16.msra.mxu0 %v5518
        %5558 = vmatmul.bf16.gmra.mxu0 %v5469
        %v5559 = vpop.f32.mrf.mxu0
        %v5560 = vadd.f32 0.0, %v5559
        %v5561 = vpop.f32.mrf.mxu0
        %v5562 = vadd.f32 0.0, %v5561
        %5563 = vdwg.mxu0
        %5564 = vmatpush.bf16.msra.mxu0 %v5533
        %5565 = vmatpush.bf16.msra.mxu0 %v5531
        %5566 = vmatpush.bf16.msra.mxu0 %v5529
        %5567 = vmatpush.bf16.msra.mxu0 %v5527
        %5568 = vmatpush.bf16.msra.mxu0 %v5525
        %5569 = vmatpush.bf16.msra.mxu0 %v5523
        %5570 = vmatpush.bf16.msra.mxu0 %v5521
        %5571 = vmatpush.bf16.msra.mxu0 %v5519
        %5572 = vmatmul.bf16.gmra.mxu0 %v5469
        %v5573 = vpop.f32.mrf.mxu0
        %v5574 = vadd.f32 0.0, %v5573
        %v5575 = vpop.f32.mrf.mxu0
        %v5576 = vadd.f32 0.0, %v5575
        %5577 = vdwg.mxu0
        %v5578 = vxor.u32 %v5560, 2147483648
        %v5579 = vxor.u32 %v5562, 2147483648
        %v5580 = vmul.f32 %v5578, 1.442695
        %v5581 = vpow.pop %v5580
        %v5582 = vmul.f32 %v5579, 1.442695
        %v5583 = vpow.pop %v5582
        %v5584 = vadd.f32 %v5581, 1.0
        %v5585 = vadd.f32 %v5583, 1.0
        %v5586 = vrcp.pop %v5584
        %v5587 = vmul.f32 %v5584, %v5586
        %v5588 = vsub.f32 1.0, %v5587
        %v5589 = vmul.f32 %v5586, %v5588
        %v5590 = vadd.f32 %v5586, %v5589
        %vm5591 = vweird.f32 %v5584
        %vm5592 = vweird.f32 %v5586
        %vm5593 = vmor %vm5591, %vm5592
        %v5594 = vsel %vm5593, %v5586, %v5590
        %v5595 = vand.u32 2147483647, %v5584
        %vm5596 = vcmp.eq.f32.partialorder %v5595, 8.507059e+37
        %v5597 = vand.u32 %v5584, 2147483648
        %v5598 = vor.u32 1.1754944e-38, %v5597
        %v5599 = vsel %vm5596, %v5598, %v5594
        %v5600 = vmul.f32 1.0, %v5599
        %v5601 = vrcp.pop %v5585
        %v5602 = vmul.f32 %v5585, %v5601
        %v5603 = vsub.f32 1.0, %v5602
        %v5604 = vmul.f32 %v5601, %v5603
        %v5605 = vadd.f32 %v5601, %v5604
        %vm5606 = vweird.f32 %v5585
        %vm5607 = vweird.f32 %v5601
        %vm5608 = vmor %vm5606, %vm5607
        %v5609 = vsel %vm5608, %v5601, %v5605
        %v5610 = vand.u32 2147483647, %v5585
        %vm5611 = vcmp.eq.f32.partialorder %v5610, 8.507059e+37
        %v5612 = vand.u32 %v5585, 2147483648
        %v5613 = vor.u32 1.1754944e-38, %v5612
        %v5614 = vsel %vm5611, %v5613, %v5609
        %v5615 = vmul.f32 1.0, %v5614
        %v5616 = vmul.f32 %v5560, %v5600
        %v5617 = vmul.f32 %v5562, %v5615
        %v5618 = vmul.f32 %v5616, %v5574
        %v5619 = vmul.f32 %v5617, %v5576
        %v5620 = vpack.c.bf16 %v5619, %v5618
        %v5637 = vunpack.c.l.b16 %v4284
        %v5638 = vunpack.c.l.b16 %v4285
        %v5639 = vunpack.c.l.b16 %v4286
        %v5640 = vunpack.c.l.b16 %v4287
        %v5641 = vunpack.c.l.b16 %v4288
        %v5642 = vunpack.c.l.b16 %v4289
        %v5643 = vunpack.c.l.b16 %v4290
        %v5644 = vunpack.c.l.b16 %v4291
        %v5645 = vunpack.c.l.b16 %v4292
        %v5646 = vunpack.c.l.b16 %v4293
        %v5647 = vunpack.c.l.b16 %v4294
        %v5648 = vunpack.c.l.b16 %v4295
        %v5649 = vunpack.c.l.b16 %v4296
        %v5650 = vunpack.c.l.b16 %v4297
        %v5651 = vunpack.c.l.b16 %v4298
        %v5652 = vunpack.c.l.b16 %v4299
        %v5653 = vpack.c.b16 %v5638, %v5637
        %v5654 = vpack.c.b16 %v5640, %v5639
        %v5655 = vpack.c.b16 %v5642, %v5641
        %v5656 = vpack.c.b16 %v5644, %v5643
        %v5657 = vpack.c.b16 %v5646, %v5645
        %v5658 = vpack.c.b16 %v5648, %v5647
        %v5659 = vpack.c.b16 %v5650, %v5649
        %v5660 = vpack.c.b16 %v5652, %v5651
        %5669 = vmatpush.bf16.msra.mxu0 %v5660
        %5670 = vmatpush.bf16.msra.mxu0 %v5659
        %5671 = vmatpush.bf16.msra.mxu0 %v5658
        %5672 = vmatpush.bf16.msra.mxu0 %v5657
        %5673 = vmatpush.bf16.msra.mxu0 %v5656
        %5674 = vmatpush.bf16.msra.mxu0 %v5655
        %5675 = vmatpush.bf16.msra.mxu0 %v5654
        %5676 = vmatpush.bf16.msra.mxu0 %v5653
        %5677 = vmatmul.bf16.gmra.mxu0 %v5620
        %v5678 = vpop.f32.mrf.mxu0
        %v5679 = vadd.f32 0.0, %v5678
        %v5680 = vpop.f32.mrf.mxu0
        %v5681 = vadd.f32 0.0, %v5680
        %5682 = vdwg.mxu0
        %v5683 = vadd.f32 %v5430, %v5679
        %v5684 = vadd.f32 %v5431, %v5681
        %v5685 = vld [vmem:[#allocation35] sm:$0x1]
        %v5686 = vld [vmem:[#allocation37] sm:$0xf]
        %v5687 = vld [vmem:[#allocation37 + $0x4] sm:$0xf]
        %v5688 = vld [vmem:[#allocation37 + $0x8] sm:$0xf]
        %v5689 = vld [vmem:[#allocation37 + $0xc] sm:$0xf]
        %v5690 = vld [vmem:[#allocation37 + $0x10] sm:$0xf]
        %v5691 = vld [vmem:[#allocation37 + $0x14] sm:$0xf]
        %v5692 = vld [vmem:[#allocation37 + $0x18] sm:$0xf]
        %v5693 = vld [vmem:[#allocation37 + $0x1c] sm:$0xf]
        %v5694 = vld [vmem:[#allocation37 + $0x20] sm:$0xf]
        %v5695 = vld [vmem:[#allocation37 + $0x24] sm:$0xf]
        %v5696 = vld [vmem:[#allocation37 + $0x28] sm:$0xf]
        %v5697 = vld [vmem:[#allocation37 + $0x2c] sm:$0xf]
        %v5698 = vld [vmem:[#allocation37 + $0x30] sm:$0xf]
        %v5699 = vld [vmem:[#allocation37 + $0x34] sm:$0xf]
        %v5700 = vld [vmem:[#allocation37 + $0x38] sm:$0xf]
        %v5701 = vld [vmem:[#allocation37 + $0x3c] sm:$0xf]
        %v5702 = vld [vmem:[%s65] sm:$0xf]
        %v5703 = vld [vmem:[%s65 + $0x4] sm:$0xf]
        %v5704 = vld [vmem:[%s65 + $0x8] sm:$0xf]
        %v5705 = vld [vmem:[%s65 + $0xc] sm:$0xf]
        %v5706 = vld [vmem:[%s65 + $0x10] sm:$0xf]
        %v5707 = vld [vmem:[%s65 + $0x14] sm:$0xf]
        %v5708 = vld [vmem:[%s65 + $0x18] sm:$0xf]
        %v5709 = vld [vmem:[%s65 + $0x1c] sm:$0xf]
        %v5710 = vld [vmem:[#allocation38] sm:$0x1]
        %v5711 = vld [vmem:[#allocation40] sm:$0xff]
        %v5712 = vld [vmem:[#allocation40 + $0x8] sm:$0xff]
        %v5713 = vld [vmem:[#allocation40 + $0x10] sm:$0xff]
        %v5714 = vld [vmem:[#allocation40 + $0x18] sm:$0xff]
        %v5715 = vld [vmem:[#allocation40 + $0x20] sm:$0xff]
        %v5716 = vld [vmem:[#allocation40 + $0x28] sm:$0xff]
        %v5717 = vld [vmem:[#allocation40 + $0x30] sm:$0xff]
        %v5718 = vld [vmem:[#allocation40 + $0x38] sm:$0xff]
        %v5719 = vld [vmem:[#allocation40 + $0x40] sm:$0xff]
        %v5720 = vld [vmem:[#allocation40 + $0x48] sm:$0xff]
        %v5721 = vld [vmem:[#allocation40 + $0x50] sm:$0xff]
        %v5722 = vld [vmem:[#allocation40 + $0x58] sm:$0xff]
        %v5723 = vld [vmem:[#allocation40 + $0x60] sm:$0xff]
        %v5724 = vld [vmem:[#allocation40 + $0x68] sm:$0xff]
        %v5725 = vld [vmem:[#allocation40 + $0x70] sm:$0xff]
        %v5726 = vld [vmem:[#allocation40 + $0x78] sm:$0xff]
        %v5727 = vld [vmem:[#allocation41] sm:$0xf]
        %v5728 = vld [vmem:[#allocation41 + $0x4] sm:$0xf]
        %v5729 = vld [vmem:[#allocation41 + $0x8] sm:$0xf]
        %v5730 = vld [vmem:[#allocation41 + $0xc] sm:$0xf]
        %v5731 = vld [vmem:[#allocation41 + $0x10] sm:$0xf]
        %v5732 = vld [vmem:[#allocation41 + $0x14] sm:$0xf]
        %v5733 = vld [vmem:[#allocation41 + $0x18] sm:$0xf]
        %v5734 = vld [vmem:[#allocation41 + $0x1c] sm:$0xf]
        %v5735 = vld [vmem:[#allocation41 + $0x20] sm:$0xf]
        %v5736 = vld [vmem:[#allocation41 + $0x24] sm:$0xf]
        %v5737 = vld [vmem:[#allocation41 + $0x28] sm:$0xf]
        %v5738 = vld [vmem:[#allocation41 + $0x2c] sm:$0xf]
        %v5739 = vld [vmem:[#allocation41 + $0x30] sm:$0xf]
        %v5740 = vld [vmem:[#allocation41 + $0x34] sm:$0xf]
        %v5741 = vld [vmem:[#allocation41 + $0x38] sm:$0xf]
        %v5742 = vld [vmem:[#allocation41 + $0x3c] sm:$0xf]
        %v5743 = vmul.f32 %v5683, %v5683
        %v5744 = vmul.f32 %v5684, %v5684
        %5745 = vadd.xlane.f32.xlu0 %v5743
        %v5746 = vpop.xlane.xlu0 %5745
        %5747 = vadd.xlane.f32.xlu0 %v5744
        %v5748 = vpop.xlane.xlu0 %5747
        %v5749 = vmul.f32 %v5746, 0.015625
        %v5750 = vmul.f32 %v5748, 0.015625
        %v5751 = vadd.f32 %v5749, 1e-06
        %v5752 = vadd.f32 %v5750, 1e-06
        %v5753 = vrsqrt.pop %v5751
        %v5754 = vmul.f32 %v5753, %v5751
        %v5755 = vmul.f32 %v5754, %v5753
        %v5756 = vmul.f32 0.5, %v5755
        %v5757 = vsub.f32 1.5, %v5756
        %v5758 = vmul.f32 %v5753, %v5757
        %vm5759 = vweird.f32 %v5751
        %vm5760 = vweird.f32 %v5753
        %vm5761 = vmor %vm5759, %vm5760
        %v5762 = vsel %vm5761, %v5753, %v5758
        %v5763 = vrsqrt.pop %v5752
        %v5764 = vmul.f32 %v5763, %v5752
        %v5765 = vmul.f32 %v5764, %v5763
        %v5766 = vmul.f32 0.5, %v5765
        %v5767 = vsub.f32 1.5, %v5766
        %v5768 = vmul.f32 %v5763, %v5767
        %vm5769 = vweird.f32 %v5752
        %vm5770 = vweird.f32 %v5763
        %vm5771 = vmor %vm5769, %vm5770
        %v5772 = vsel %vm5771, %v5763, %v5768
        %v5773 = vmul.f32 %v5683, %v5762
        %v5774 = vmul.f32 %v5684, %v5772
        %v5776 = vperm.slane %v5685, 0
        %v5778 = vmul.f32 %v5773, %v5776
        %v5779 = vmul.f32 %v5774, %v5776
        %v5780 = vpack.c.bf16 %v5779, %v5778
        %v5797 = vunpack.c.l.b16 %v5686
        %v5798 = vunpack.c.l.b16 %v5687
        %v5799 = vunpack.c.l.b16 %v5688
        %v5800 = vunpack.c.l.b16 %v5689
        %v5801 = vunpack.c.l.b16 %v5690
        %v5802 = vunpack.c.l.b16 %v5691
        %v5803 = vunpack.c.l.b16 %v5692
        %v5804 = vunpack.c.l.b16 %v5693
        %v5805 = vunpack.c.l.b16 %v5694
        %v5806 = vunpack.c.l.b16 %v5695
        %v5807 = vunpack.c.l.b16 %v5696
        %v5808 = vunpack.c.l.b16 %v5697
        %v5809 = vunpack.c.l.b16 %v5698
        %v5810 = vunpack.c.l.b16 %v5699
        %v5811 = vunpack.c.l.b16 %v5700
        %v5812 = vunpack.c.l.b16 %v5701
        %v5813 = vpack.c.b16 %v5798, %v5797
        %v5814 = vpack.c.b16 %v5800, %v5799
        %v5815 = vpack.c.b16 %v5802, %v5801
        %v5816 = vpack.c.b16 %v5804, %v5803
        %v5817 = vpack.c.b16 %v5806, %v5805
        %v5818 = vpack.c.b16 %v5808, %v5807
        %v5819 = vpack.c.b16 %v5810, %v5809
        %v5820 = vpack.c.b16 %v5812, %v5811
        %5829 = vmatpush.bf16.msra.mxu0 %v5820
        %5830 = vmatpush.bf16.msra.mxu0 %v5819
        %5831 = vmatpush.bf16.msra.mxu0 %v5818
        %5832 = vmatpush.bf16.msra.mxu0 %v5817
        %5833 = vmatpush.bf16.msra.mxu0 %v5816
        %5834 = vmatpush.bf16.msra.mxu0 %v5815
        %5835 = vmatpush.bf16.msra.mxu0 %v5814
        %5836 = vmatpush.bf16.msra.mxu0 %v5813
        %5837 = vmatmul.bf16.gmra.mxu0 %v5780
        %v5838 = vpop.f32.mrf.mxu0
        %v5839 = vadd.f32 0.0, %v5838
        %v5840 = vpop.f32.mrf.mxu0
        %v5841 = vadd.f32 0.0, %v5840
        %5842 = vdwg.mxu0
        %5845 = vrot.lane.b32.xlu0 %v5839, 112
        %v5846 = vpop.permute.xlu0 %5845
        %5847 = vrot.lane.b32.xlu0 %v5841, 112
        %v5848 = vpop.permute.xlu0 %5847
        %5851 = vrot.lane.b32.xlu0 %v5839, 96
        %v5852 = vpop.permute.xlu0 %5851
        %5853 = vrot.lane.b32.xlu0 %v5841, 96
        %v5854 = vpop.permute.xlu0 %5853
        %5857 = vrot.lane.b32.xlu0 %v5839, 80
        %v5858 = vpop.permute.xlu0 %5857
        %5859 = vrot.lane.b32.xlu0 %v5841, 80
        %v5860 = vpop.permute.xlu0 %5859
        %v5863 = vmul.f32 %v5839, %v1589
        %v5864 = vmul.f32 %v5841, %v1590
        %v5865 = vmul.f32 %v5846, %v1589
        %v5866 = vmul.f32 %v5848, %v1590
        %v5867 = vmul.f32 %v5852, %v1589
        %v5868 = vmul.f32 %v5854, %v1590
        %v5869 = vmul.f32 %v5858, %v1589
        %v5870 = vmul.f32 %v5860, %v1590
        %5879 = vrot.lane.b32.xlu0 %v5863, 120
        %v5880 = vpop.permute.xlu0 %5879
        %5881 = vrot.lane.b32.xlu0 %v5864, 120
        %v5882 = vpop.permute.xlu0 %5881
        %5883 = vrot.lane.b32.xlu0 %v5865, 120
        %v5884 = vpop.permute.xlu0 %5883
        %5885 = vrot.lane.b32.xlu0 %v5866, 120
        %v5886 = vpop.permute.xlu0 %5885
        %5887 = vrot.lane.b32.xlu0 %v5867, 120
        %v5888 = vpop.permute.xlu0 %5887
        %5889 = vrot.lane.b32.xlu0 %v5868, 120
        %v5890 = vpop.permute.xlu0 %5889
        %5891 = vrot.lane.b32.xlu0 %v5869, 120
        %v5892 = vpop.permute.xlu0 %5891
        %5893 = vrot.lane.b32.xlu0 %v5870, 120
        %v5894 = vpop.permute.xlu0 %5893
        %v5903 = vsub.f32 %v5863, %v5880
        %v5904 = vsub.f32 %v5864, %v5882
        %v5905 = vsub.f32 %v5865, %v5884
        %v5906 = vsub.f32 %v5866, %v5886
        %v5907 = vsub.f32 %v5867, %v5888
        %v5908 = vsub.f32 %v5868, %v5890
        %v5909 = vsub.f32 %v5869, %v5892
        %v5910 = vsub.f32 %v5870, %v5894
        %v5911 = vmul.f32 %v5839, %v3338
        %v5912 = vmul.f32 %v5841, %v3340
        %v5913 = vmul.f32 %v5846, %v3338
        %v5914 = vmul.f32 %v5848, %v3340
        %v5915 = vmul.f32 %v5852, %v3338
        %v5916 = vmul.f32 %v5854, %v3340
        %v5917 = vmul.f32 %v5858, %v3338
        %v5918 = vmul.f32 %v5860, %v3340
        %v5919 = vmul.f32 %v5839, %v3352
        %v5920 = vmul.f32 %v5841, %v3354
        %v5921 = vmul.f32 %v5846, %v3352
        %v5922 = vmul.f32 %v5848, %v3354
        %v5923 = vmul.f32 %v5852, %v3352
        %v5924 = vmul.f32 %v5854, %v3354
        %v5925 = vmul.f32 %v5858, %v3352
        %v5926 = vmul.f32 %v5860, %v3354
        %5935 = vrot.lane.b32.xlu0 %v5919, 8
        %v5936 = vpop.permute.xlu0 %5935
        %5937 = vrot.lane.b32.xlu0 %v5920, 8
        %v5938 = vpop.permute.xlu0 %5937
        %5939 = vrot.lane.b32.xlu0 %v5921, 8
        %v5940 = vpop.permute.xlu0 %5939
        %5941 = vrot.lane.b32.xlu0 %v5922, 8
        %v5942 = vpop.permute.xlu0 %5941
        %5943 = vrot.lane.b32.xlu0 %v5923, 8
        %v5944 = vpop.permute.xlu0 %5943
        %5945 = vrot.lane.b32.xlu0 %v5924, 8
        %v5946 = vpop.permute.xlu0 %5945
        %5947 = vrot.lane.b32.xlu0 %v5925, 8
        %v5948 = vpop.permute.xlu0 %5947
        %5949 = vrot.lane.b32.xlu0 %v5926, 8
        %v5950 = vpop.permute.xlu0 %5949
        %v5959 = vadd.f32 %v5911, %v5936
        %v5960 = vadd.f32 %v5912, %v5938
        %v5961 = vadd.f32 %v5913, %v5940
        %v5962 = vadd.f32 %v5914, %v5942
        %v5963 = vadd.f32 %v5915, %v5944
        %v5964 = vadd.f32 %v5916, %v5946
        %v5965 = vadd.f32 %v5917, %v5948
        %v5966 = vadd.f32 %v5918, %v5950
        %v5967 = vsel %vm3405, %v5903, %v5959
        %v5968 = vsel %vm3405, %v5904, %v5960
        %v5969 = vsel %vm3405, %v5905, %v5961
        %v5970 = vsel %vm3405, %v5906, %v5962
        %v5971 = vsel %vm3405, %v5907, %v5963
        %v5972 = vsel %vm3405, %v5908, %v5964
        %v5973 = vsel %vm3405, %v5909, %v5965
        %v5974 = vsel %vm3405, %v5910, %v5966
        %v5975 = vmul.f32 %v5839, %v3415
        %v5976 = vmul.f32 %v5841, %v3417
        %v5977 = vmul.f32 %v5846, %v3415
        %v5978 = vmul.f32 %v5848, %v3417
        %5983 = vrot.lane.b32.xlu0 %v5975, 120
        %v5984 = vpop.permute.xlu0 %5983
        %5985 = vrot.lane.b32.xlu0 %v5976, 120
        %v5986 = vpop.permute.xlu0 %5985
        %5987 = vrot.lane.b32.xlu0 %v5977, 120
        %v5988 = vpop.permute.xlu0 %5987
        %5989 = vrot.lane.b32.xlu0 %v5978, 120
        %v5990 = vpop.permute.xlu0 %5989
        %v5995 = vsub.f32 %v5975, %v5984
        %v5996 = vsub.f32 %v5976, %v5986
        %v5997 = vsub.f32 %v5977, %v5988
        %v5998 = vsub.f32 %v5978, %v5990
        %v5999 = vmul.f32 %v5839, %v3445
        %v6000 = vmul.f32 %v5841, %v3447
        %v6001 = vmul.f32 %v5846, %v3445
        %v6002 = vmul.f32 %v5848, %v3447
        %v6003 = vmul.f32 %v5839, %v3455
        %v6004 = vmul.f32 %v5841, %v3457
        %v6005 = vmul.f32 %v5846, %v3455
        %v6006 = vmul.f32 %v5848, %v3457
        %6011 = vrot.lane.b32.xlu0 %v6003, 8
        %v6012 = vpop.permute.xlu0 %6011
        %6013 = vrot.lane.b32.xlu0 %v6004, 8
        %v6014 = vpop.permute.xlu0 %6013
        %6015 = vrot.lane.b32.xlu0 %v6005, 8
        %v6016 = vpop.permute.xlu0 %6015
        %6017 = vrot.lane.b32.xlu0 %v6006, 8
        %v6018 = vpop.permute.xlu0 %6017
        %v6023 = vadd.f32 %v5999, %v6012
        %v6024 = vadd.f32 %v6000, %v6014
        %v6025 = vadd.f32 %v6001, %v6016
        %v6026 = vadd.f32 %v6002, %v6018
        %6031 = vrot.lane.b32.xlu0 %v5995, 64
        %v6032 = vpop.permute.xlu0 %6031
        %6033 = vrot.lane.b32.xlu0 %v5996, 64
        %v6034 = vpop.permute.xlu0 %6033
        %6035 = vrot.lane.b32.xlu0 %v5997, 64
        %v6036 = vpop.permute.xlu0 %6035
        %6037 = vrot.lane.b32.xlu0 %v5998, 64
        %v6038 = vpop.permute.xlu0 %6037
        %6047 = vrot.lane.b32.xlu0 %v6023, 64
        %v6048 = vpop.permute.xlu0 %6047
        %6049 = vrot.lane.b32.xlu0 %v6024, 64
        %v6050 = vpop.permute.xlu0 %6049
        %6051 = vrot.lane.b32.xlu0 %v6025, 64
        %v6052 = vpop.permute.xlu0 %6051
        %6053 = vrot.lane.b32.xlu0 %v6026, 64
        %v6054 = vpop.permute.xlu0 %6053
        %v6059 = vsel %vm3405, %v6032, %v6048
        %v6060 = vsel %vm3405, %v6034, %v6050
        %v6061 = vsel %vm3405, %v6036, %v6052
        %v6062 = vsel %vm3405, %v6038, %v6054
        %v6063 = vpack.c.bf16 %v5967, %v5967
        %v6064 = vpack.c.bf16 %v5968, %v5968
        %v6065 = vpack.c.bf16 %v5969, %v5969
        %v6066 = vpack.c.bf16 %v5970, %v5970
        %v6067 = vpack.c.bf16 %v5971, %v5971
        %v6068 = vpack.c.bf16 %v5972, %v5972
        %v6069 = vpack.c.bf16 %v5973, %v5973
        %v6070 = vpack.c.bf16 %v5974, %v5974
        %v6071 = vpack.c.bf16 %v6059, %v6059
        %v6072 = vpack.c.bf16 %v6060, %v6060
        %v6073 = vpack.c.bf16 %v6061, %v6061
        %v6074 = vpack.c.bf16 %v6062, %v6062
        %v6077 = vunpack.c.l.b16 %v6063
        %v6078 = vunpack.c.l.b16 %v6064
        %v6079 = vpack.c.b16 %v6078, %v6077
        %v6082 = vunpack.c.l.b16 %v6071
        %v6083 = vunpack.c.l.b16 %v6072
        %v6084 = vpack.c.b16 %v6083, %v6082
        %v6086 = vsel %vm1839, %v6079, 0
        %v6089 = vsel %vm1839, %v6084, 0
        %6091 = vmatpush.bf16.xpose.msra.mxu0 0
        %6092 = vmatpush.bf16.xpose.msra.mxu0 0
        %6093 = vmatpush.bf16.xpose.msra.mxu0 0
        %6094 = vmatpush.bf16.xpose.msra.mxu0 0
        %6095 = vmatpush.bf16.xpose.msra.mxu0 0
        %6096 = vmatpush.bf16.xpose.msra.mxu0 0
        %6097 = vmatpush.bf16.xpose.msra.mxu0 0
        %6098 = vmatpush.bf16.xpose.msra.mxu0 %v6089
        %6099 = vmatmul.bf16.gmra.mxu0 %v6086
        %v6100 = vpop.f32.mrf.mxu0
        %v6101 = vadd.f32 0.0, %v6100
        %v6102 = vpop.f32.mrf.mxu0
        %v6103 = vadd.f32 0.0, %v6102
        %6104 = vdwg.mxu0
        %v6107 = vunpack.c.l.b16 %v6065
        %v6108 = vunpack.c.l.b16 %v6066
        %v6109 = vpack.c.b16 %v6108, %v6107
        %v6111 = vsel %vm1839, %v6109, 0
        %6113 = vmatpush.bf16.xpose.msra.mxu0 0
        %6114 = vmatpush.bf16.xpose.msra.mxu0 0
        %6115 = vmatpush.bf16.xpose.msra.mxu0 0
        %6116 = vmatpush.bf16.xpose.msra.mxu0 0
        %6117 = vmatpush.bf16.xpose.msra.mxu0 0
        %6118 = vmatpush.bf16.xpose.msra.mxu0 0
        %6119 = vmatpush.bf16.xpose.msra.mxu0 0
        %6120 = vmatpush.bf16.xpose.msra.mxu0 %v6089
        %6121 = vmatmul.bf16.gmra.mxu0 %v6111
        %v6122 = vpop.f32.mrf.mxu0
        %v6123 = vadd.f32 0.0, %v6122
        %v6124 = vpop.f32.mrf.mxu0
        %v6125 = vadd.f32 0.0, %v6124
        %6126 = vdwg.mxu0
        %v6129 = vunpack.c.l.b16 %v6067
        %v6130 = vunpack.c.l.b16 %v6068
        %v6131 = vpack.c.b16 %v6130, %v6129
        %v6134 = vunpack.c.l.b16 %v6073
        %v6135 = vunpack.c.l.b16 %v6074
        %v6136 = vpack.c.b16 %v6135, %v6134
        %v6138 = vsel %vm1839, %v6131, 0
        %v6141 = vsel %vm1839, %v6136, 0
        %6143 = vmatpush.bf16.xpose.msra.mxu0 0
        %6144 = vmatpush.bf16.xpose.msra.mxu0 0
        %6145 = vmatpush.bf16.xpose.msra.mxu0 0
        %6146 = vmatpush.bf16.xpose.msra.mxu0 0
        %6147 = vmatpush.bf16.xpose.msra.mxu0 0
        %6148 = vmatpush.bf16.xpose.msra.mxu0 0
        %6149 = vmatpush.bf16.xpose.msra.mxu0 0
        %6150 = vmatpush.bf16.xpose.msra.mxu0 %v6141
        %6151 = vmatmul.bf16.gmra.mxu0 %v6138
        %v6152 = vpop.f32.mrf.mxu0
        %v6153 = vadd.f32 0.0, %v6152
        %v6154 = vpop.f32.mrf.mxu0
        %v6155 = vadd.f32 0.0, %v6154
        %6156 = vdwg.mxu0
        %v6159 = vunpack.c.l.b16 %v6069
        %v6160 = vunpack.c.l.b16 %v6070
        %v6161 = vpack.c.b16 %v6160, %v6159
        %v6163 = vsel %vm1839, %v6161, 0
        %6165 = vmatpush.bf16.xpose.msra.mxu0 0
        %6166 = vmatpush.bf16.xpose.msra.mxu0 0
        %6167 = vmatpush.bf16.xpose.msra.mxu0 0
        %6168 = vmatpush.bf16.xpose.msra.mxu0 0
        %6169 = vmatpush.bf16.xpose.msra.mxu0 0
        %6170 = vmatpush.bf16.xpose.msra.mxu0 0
        %6171 = vmatpush.bf16.xpose.msra.mxu0 0
        %6172 = vmatpush.bf16.xpose.msra.mxu0 %v6141
        %6173 = vmatmul.bf16.gmra.mxu0 %v6163
        %v6174 = vpop.f32.mrf.mxu0
        %v6175 = vadd.f32 0.0, %v6174
        %v6176 = vpop.f32.mrf.mxu0
        %v6177 = vadd.f32 0.0, %v6176
        %6178 = vdwg.mxu0
        %v6179 = vmul.f32 %v6101, 0.25
        %v6180 = vmul.f32 %v6103, 0.25
        %v6181 = vmul.f32 %v6123, 0.25
        %v6182 = vmul.f32 %v6125, 0.25
        %v6183 = vmul.f32 %v6153, 0.25
        %v6184 = vmul.f32 %v6155, 0.25
        %v6185 = vmul.f32 %v6175, 0.25
        %v6186 = vmul.f32 %v6177, 0.25
        %v6187 = vadd.f32 %v6179, %v1602
        %v6188 = vadd.f32 %v6180, %v1603
        %v6189 = vadd.f32 %v6181, %v1602
        %v6190 = vadd.f32 %v6182, %v1603
        %v6191 = vadd.f32 %v6183, %v1602
        %v6192 = vadd.f32 %v6184, %v1603
        %v6193 = vadd.f32 %v6185, %v1602
        %v6194 = vadd.f32 %v6186, %v1603
        %v6195 = vsel %vm1839, %v6187, -inf
        %6196 = vmax.xlane.f32.xlu0 %v6195
        %v6197 = vpop.xlane.xlu0 %6196
        %v6198 = vsel %vm1839, %v6188, -inf
        %6199 = vmax.xlane.f32.xlu0 %v6198
        %v6200 = vpop.xlane.xlu0 %6199
        %v6201 = vsel %vm1839, %v6189, -inf
        %6202 = vmax.xlane.f32.xlu0 %v6201
        %v6203 = vpop.xlane.xlu0 %6202
        %v6204 = vsel %vm1839, %v6190, -inf
        %6205 = vmax.xlane.f32.xlu0 %v6204
        %v6206 = vpop.xlane.xlu0 %6205
        %v6207 = vsel %vm1839, %v6191, -inf
        %6208 = vmax.xlane.f32.xlu0 %v6207
        %v6209 = vpop.xlane.xlu0 %6208
        %v6210 = vsel %vm1839, %v6192, -inf
        %6211 = vmax.xlane.f32.xlu0 %v6210
        %v6212 = vpop.xlane.xlu0 %6211
        %v6213 = vsel %vm1839, %v6193, -inf
        %6214 = vmax.xlane.f32.xlu0 %v6213
        %v6215 = vpop.xlane.xlu0 %6214
        %v6216 = vsel %vm1839, %v6194, -inf
        %6217 = vmax.xlane.f32.xlu0 %v6216
        %v6218 = vpop.xlane.xlu0 %6217
        %v6219 = vsub.f32 %v6187, %v6197
        %v6220 = vsub.f32 %v6188, %v6200
        %v6221 = vsub.f32 %v6189, %v6203
        %v6222 = vsub.f32 %v6190, %v6206
        %v6223 = vsub.f32 %v6191, %v6209
        %v6224 = vsub.f32 %v6192, %v6212
        %v6225 = vsub.f32 %v6193, %v6215
        %v6226 = vsub.f32 %v6194, %v6218
        %v6227 = vmul.f32 %v6219, 1.442695
        %v6228 = vpow.pop %v6227
        %v6229 = vmul.f32 %v6220, 1.442695
        %v6230 = vpow.pop %v6229
        %v6231 = vmul.f32 %v6221, 1.442695
        %v6232 = vpow.pop %v6231
        %v6233 = vmul.f32 %v6222, 1.442695
        %v6234 = vpow.pop %v6233
        %v6235 = vmul.f32 %v6223, 1.442695
        %v6236 = vpow.pop %v6235
        %v6237 = vmul.f32 %v6224, 1.442695
        %v6238 = vpow.pop %v6237
        %v6239 = vmul.f32 %v6225, 1.442695
        %v6240 = vpow.pop %v6239
        %v6241 = vmul.f32 %v6226, 1.442695
        %v6242 = vpow.pop %v6241
        %v6243 = vsel %vm1839, %v6228, 0.0
        %6244 = vadd.xlane.f32.xlu0 %v6243
        %v6245 = vpop.xlane.xlu0 %6244
        %v6246 = vsel %vm1839, %v6230, 0.0
        %6247 = vadd.xlane.f32.xlu0 %v6246
        %v6248 = vpop.xlane.xlu0 %6247
        %v6249 = vsel %vm1839, %v6232, 0.0
        %6250 = vadd.xlane.f32.xlu0 %v6249
        %v6251 = vpop.xlane.xlu0 %6250
        %v6252 = vsel %vm1839, %v6234, 0.0
        %6253 = vadd.xlane.f32.xlu0 %v6252
        %v6254 = vpop.xlane.xlu0 %6253
        %v6255 = vsel %vm1839, %v6236, 0.0
        %6256 = vadd.xlane.f32.xlu0 %v6255
        %v6257 = vpop.xlane.xlu0 %6256
        %v6258 = vsel %vm1839, %v6238, 0.0
        %6259 = vadd.xlane.f32.xlu0 %v6258
        %v6260 = vpop.xlane.xlu0 %6259
        %v6261 = vsel %vm1839, %v6240, 0.0
        %6262 = vadd.xlane.f32.xlu0 %v6261
        %v6263 = vpop.xlane.xlu0 %6262
        %v6264 = vsel %vm1839, %v6242, 0.0
        %6265 = vadd.xlane.f32.xlu0 %v6264
        %v6266 = vpop.xlane.xlu0 %6265
        %v6267 = vrcp.pop %v6245
        %v6268 = vrcp.pop %v6248
        %v6269 = vrcp.pop %v6251
        %v6270 = vrcp.pop %v6254
        %v6271 = vrcp.pop %v6257
        %v6272 = vrcp.pop %v6260
        %v6273 = vrcp.pop %v6263
        %v6274 = vrcp.pop %v6266
        %v6275 = vmul.f32 %v6228, %v6267
        %v6276 = vmul.f32 %v6230, %v6268
        %v6277 = vmul.f32 %v6232, %v6269
        %v6278 = vmul.f32 %v6234, %v6270
        %v6279 = vmul.f32 %v6236, %v6271
        %v6280 = vmul.f32 %v6238, %v6272
        %v6281 = vmul.f32 %v6240, %v6273
        %v6282 = vmul.f32 %v6242, %v6274
        %v6283 = vpack.c.bf16 %v6275, %v6275
        %v6284 = vpack.c.bf16 %v6276, %v6276
        %v6285 = vpack.c.bf16 %v6277, %v6277
        %v6286 = vpack.c.bf16 %v6278, %v6278
        %v6287 = vpack.c.bf16 %v6279, %v6279
        %v6288 = vpack.c.bf16 %v6280, %v6280
        %v6289 = vpack.c.bf16 %v6281, %v6281
        %v6290 = vpack.c.bf16 %v6282, %v6282
        %v6291 = vpack.c.bf16 %v5839, %v5839
        %v6292 = vpack.c.bf16 %v5841, %v5841
        %v6293 = vpack.c.bf16 %v5846, %v5846
        %v6294 = vpack.c.bf16 %v5848, %v5848
        %v6297 = vunpack.c.l.b16 %v6283
        %v6298 = vunpack.c.l.b16 %v6284
        %v6299 = vpack.c.b16 %v6298, %v6297
        %v6302 = vunpack.c.l.b16 %v6291
        %v6303 = vunpack.c.l.b16 %v6292
        %v6304 = vpack.c.b16 %v6303, %v6302
        %6305 = vrot.lane.b32.xlu0 %v6304, 32
        %v6306 = vpop.permute.xlu0 %6305
        %v6309 = vsel %vm1839, %v6299, 0
        %6311 = vmatpush.bf16.msra.mxu0 0
        %6312 = vmatpush.bf16.msra.mxu0 0
        %6313 = vmatpush.bf16.msra.mxu0 0
        %6314 = vmatpush.bf16.msra.mxu0 0
        %6315 = vmatpush.bf16.msra.mxu0 0
        %6316 = vmatpush.bf16.msra.mxu0 0
        %6317 = vmatpush.bf16.msra.mxu0 0
        %6318 = vmatpush.bf16.msra.mxu0 %v6306
        %6319 = vmatmul.bf16.gmra.mxu0 %v6309
        %v6320 = vpop.f32.mrf.mxu0
        %v6321 = vadd.f32 0.0, %v6320
        %v6322 = vpop.f32.mrf.mxu0
        %v6323 = vadd.f32 0.0, %v6322
        %6324 = vdwg.mxu0
        %v6327 = vunpack.c.l.b16 %v6285
        %v6328 = vunpack.c.l.b16 %v6286
        %v6329 = vpack.c.b16 %v6328, %v6327
        %v6331 = vsel %vm1839, %v6329, 0
        %6333 = vmatpush.bf16.msra.mxu0 0
        %6334 = vmatpush.bf16.msra.mxu0 0
        %6335 = vmatpush.bf16.msra.mxu0 0
        %6336 = vmatpush.bf16.msra.mxu0 0
        %6337 = vmatpush.bf16.msra.mxu0 0
        %6338 = vmatpush.bf16.msra.mxu0 0
        %6339 = vmatpush.bf16.msra.mxu0 0
        %6340 = vmatpush.bf16.msra.mxu0 %v6306
        %6341 = vmatmul.bf16.gmra.mxu0 %v6331
        %v6342 = vpop.f32.mrf.mxu0
        %v6343 = vadd.f32 0.0, %v6342
        %v6344 = vpop.f32.mrf.mxu0
        %v6345 = vadd.f32 0.0, %v6344
        %6346 = vdwg.mxu0
        %v6349 = vunpack.c.l.b16 %v6287
        %v6350 = vunpack.c.l.b16 %v6288
        %v6351 = vpack.c.b16 %v6350, %v6349
        %v6354 = vunpack.c.l.b16 %v6293
        %v6355 = vunpack.c.l.b16 %v6294
        %v6356 = vpack.c.b16 %v6355, %v6354
        %6357 = vrot.lane.b32.xlu0 %v6356, 32
        %v6358 = vpop.permute.xlu0 %6357
        %v6361 = vsel %vm1839, %v6351, 0
        %6363 = vmatpush.bf16.msra.mxu0 0
        %6364 = vmatpush.bf16.msra.mxu0 0
        %6365 = vmatpush.bf16.msra.mxu0 0
        %6366 = vmatpush.bf16.msra.mxu0 0
        %6367 = vmatpush.bf16.msra.mxu0 0
        %6368 = vmatpush.bf16.msra.mxu0 0
        %6369 = vmatpush.bf16.msra.mxu0 0
        %6370 = vmatpush.bf16.msra.mxu0 %v6358
        %6371 = vmatmul.bf16.gmra.mxu0 %v6361
        %v6372 = vpop.f32.mrf.mxu0
        %v6373 = vadd.f32 0.0, %v6372
        %v6374 = vpop.f32.mrf.mxu0
        %v6375 = vadd.f32 0.0, %v6374
        %6376 = vdwg.mxu0
        %v6379 = vunpack.c.l.b16 %v6289
        %v6380 = vunpack.c.l.b16 %v6290
        %v6381 = vpack.c.b16 %v6380, %v6379
        %v6383 = vsel %vm1839, %v6381, 0
        %6385 = vmatpush.bf16.msra.mxu0 0
        %6386 = vmatpush.bf16.msra.mxu0 0
        %6387 = vmatpush.bf16.msra.mxu0 0
        %6388 = vmatpush.bf16.msra.mxu0 0
        %6389 = vmatpush.bf16.msra.mxu0 0
        %6390 = vmatpush.bf16.msra.mxu0 0
        %6391 = vmatpush.bf16.msra.mxu0 0
        %6392 = vmatpush.bf16.msra.mxu0 %v6358
        %6393 = vmatmul.bf16.gmra.mxu0 %v6383
        %v6394 = vpop.f32.mrf.mxu0
        %v6395 = vadd.f32 0.0, %v6394
        %v6396 = vpop.f32.mrf.mxu0
        %v6397 = vadd.f32 0.0, %v6396
        %6398 = vdwg.mxu0
        %v6399 = vpack.c.bf16 %v6321, %v6321
        %v6400 = vpack.c.bf16 %v6323, %v6323
        %v6401 = vpack.c.bf16 %v6343, %v6343
        %v6402 = vpack.c.bf16 %v6345, %v6345
        %v6403 = vpack.c.bf16 %v6373, %v6373
        %v6404 = vpack.c.bf16 %v6375, %v6375
        %v6405 = vpack.c.bf16 %v6395, %v6395
        %v6406 = vpack.c.bf16 %v6397, %v6397
        %v6409 = vunpack.c.l.b16 %v6399
        %v6410 = vunpack.c.l.b16 %v6400
        %v6411 = vpack.c.b16 %v6410, %v6409
        %v6414 = vunpack.c.l.b16 %v5702
        %v6415 = vunpack.c.l.b16 %v5703
        %v6416 = vpack.c.b16 %v6415, %v6414
        %v6419 = vsel %vm1839, %v6411, 0
        %6421 = vmatpush.bf16.msra.mxu0 0
        %6422 = vmatpush.bf16.msra.mxu0 0
        %6423 = vmatpush.bf16.msra.mxu0 0
        %6424 = vmatpush.bf16.msra.mxu0 0
        %6425 = vmatpush.bf16.msra.mxu0 0
        %6426 = vmatpush.bf16.msra.mxu0 0
        %6427 = vmatpush.bf16.msra.mxu0 0
        %6428 = vmatpush.bf16.msra.mxu0 %v6416
        %6429 = vmatmul.bf16.gmra.mxu0 %v6419
        %v6430 = vpop.f32.mrf.mxu0
        %v6431 = vadd.f32 0.0, %v6430
        %v6432 = vpop.f32.mrf.mxu0
        %v6433 = vadd.f32 0.0, %v6432
        %6434 = vdwg.mxu0
        %v6437 = vunpack.c.l.b16 %v6401
        %v6438 = vunpack.c.l.b16 %v6402
        %v6439 = vpack.c.b16 %v6438, %v6437
        %v6442 = vunpack.c.l.b16 %v5704
        %v6443 = vunpack.c.l.b16 %v5705
        %v6444 = vpack.c.b16 %v6443, %v6442
        %v6447 = vsel %vm1839, %v6439, 0
        %6449 = vmatpush.bf16.msra.mxu0 0
        %6450 = vmatpush.bf16.msra.mxu0 0
        %6451 = vmatpush.bf16.msra.mxu0 0
        %6452 = vmatpush.bf16.msra.mxu0 0
        %6453 = vmatpush.bf16.msra.mxu0 0
        %6454 = vmatpush.bf16.msra.mxu0 0
        %6455 = vmatpush.bf16.msra.mxu0 0
        %6456 = vmatpush.bf16.msra.mxu0 %v6444
        %6457 = vmatmul.bf16.gmra.mxu0 %v6447
        %v6458 = vpop.f32.mrf.mxu0
        %v6459 = vadd.f32 0.0, %v6458
        %v6460 = vpop.f32.mrf.mxu0
        %v6461 = vadd.f32 0.0, %v6460
        %6462 = vdwg.mxu0
        %v6465 = vunpack.c.l.b16 %v6403
        %v6466 = vunpack.c.l.b16 %v6404
        %v6467 = vpack.c.b16 %v6466, %v6465
        %v6470 = vunpack.c.l.b16 %v5706
        %v6471 = vunpack.c.l.b16 %v5707
        %v6472 = vpack.c.b16 %v6471, %v6470
        %v6475 = vsel %vm1839, %v6467, 0
        %6477 = vmatpush.bf16.msra.mxu0 0
        %6478 = vmatpush.bf16.msra.mxu0 0
        %6479 = vmatpush.bf16.msra.mxu0 0
        %6480 = vmatpush.bf16.msra.mxu0 0
        %6481 = vmatpush.bf16.msra.mxu0 0
        %6482 = vmatpush.bf16.msra.mxu0 0
        %6483 = vmatpush.bf16.msra.mxu0 0
        %6484 = vmatpush.bf16.msra.mxu0 %v6472
        %6485 = vmatmul.bf16.gmra.mxu0 %v6475
        %v6486 = vpop.f32.mrf.mxu0
        %v6487 = vadd.f32 0.0, %v6486
        %v6488 = vpop.f32.mrf.mxu0
        %v6489 = vadd.f32 0.0, %v6488
        %6490 = vdwg.mxu0
        %v6493 = vunpack.c.l.b16 %v6405
        %v6494 = vunpack.c.l.b16 %v6406
        %v6495 = vpack.c.b16 %v6494, %v6493
        %v6498 = vunpack.c.l.b16 %v5708
        %v6499 = vunpack.c.l.b16 %v5709
        %v6500 = vpack.c.b16 %v6499, %v6498
        %v6503 = vsel %vm1839, %v6495, 0
        %6505 = vmatpush.bf16.msra.mxu0 0
        %6506 = vmatpush.bf16.msra.mxu0 0
        %6507 = vmatpush.bf16.msra.mxu0 0
        %6508 = vmatpush.bf16.msra.mxu0 0
        %6509 = vmatpush.bf16.msra.mxu0 0
        %6510 = vmatpush.bf16.msra.mxu0 0
        %6511 = vmatpush.bf16.msra.mxu0 0
        %6512 = vmatpush.bf16.msra.mxu0 %v6500
        %6513 = vmatmul.bf16.gmra.mxu0 %v6503
        %v6514 = vpop.f32.mrf.mxu0
        %v6515 = vadd.f32 0.0, %v6514
        %v6516 = vpop.f32.mrf.mxu0
        %v6517 = vadd.f32 0.0, %v6516
        %6518 = vdwg.mxu0
        %v6519 = vadd.f32 %v6431, %v6459
        %v6520 = vadd.f32 %v6519, %v6487
        %v6521 = vadd.f32 %v6520, %v6515
        %v6522 = vadd.f32 %v6433, %v6461
        %v6523 = vadd.f32 %v6522, %v6489
        %v6524 = vadd.f32 %v6523, %v6517
        %v6525 = vadd.f32 %v5683, %v6521
        %v6526 = vadd.f32 %v5684, %v6524
        %v6527 = vmul.f32 %v6525, %v6525
        %v6528 = vmul.f32 %v6526, %v6526
        %6529 = vadd.xlane.f32.xlu0 %v6527
        %v6530 = vpop.xlane.xlu0 %6529
        %6531 = vadd.xlane.f32.xlu0 %v6528
        %v6532 = vpop.xlane.xlu0 %6531
        %v6533 = vmul.f32 %v6530, 0.015625
        %v6534 = vmul.f32 %v6532, 0.015625
        %v6535 = vadd.f32 %v6533, 1e-06
        %v6536 = vadd.f32 %v6534, 1e-06
        %v6537 = vrsqrt.pop %v6535
        %v6538 = vmul.f32 %v6537, %v6535
        %v6539 = vmul.f32 %v6538, %v6537
        %v6540 = vmul.f32 0.5, %v6539
        %v6541 = vsub.f32 1.5, %v6540
        %v6542 = vmul.f32 %v6537, %v6541
        %vm6543 = vweird.f32 %v6535
        %vm6544 = vweird.f32 %v6537
        %vm6545 = vmor %vm6543, %vm6544
        %v6546 = vsel %vm6545, %v6537, %v6542
        %v6547 = vrsqrt.pop %v6536
        %v6548 = vmul.f32 %v6547, %v6536
        %v6549 = vmul.f32 %v6548, %v6547
        %v6550 = vmul.f32 0.5, %v6549
        %v6551 = vsub.f32 1.5, %v6550
        %v6552 = vmul.f32 %v6547, %v6551
        %vm6553 = vweird.f32 %v6536
        %vm6554 = vweird.f32 %v6547
        %vm6555 = vmor %vm6553, %vm6554
        %v6556 = vsel %vm6555, %v6547, %v6552
        %v6557 = vmul.f32 %v6525, %v6546
        %v6558 = vmul.f32 %v6526, %v6556
        %v6560 = vperm.slane %v5710, 0
        %v6562 = vmul.f32 %v6557, %v6560
        %v6563 = vmul.f32 %v6558, %v6560
        %v6564 = vpack.c.bf16 %v6563, %v6562
        %v6581 = vunpack.c.l.b16 %v5711
        %v6582 = vunpack.c.h.b16 %v5711
        %v6583 = vunpack.c.l.b16 %v5712
        %v6584 = vunpack.c.h.b16 %v5712
        %v6585 = vunpack.c.l.b16 %v5713
        %v6586 = vunpack.c.h.b16 %v5713
        %v6587 = vunpack.c.l.b16 %v5714
        %v6588 = vunpack.c.h.b16 %v5714
        %v6589 = vunpack.c.l.b16 %v5715
        %v6590 = vunpack.c.h.b16 %v5715
        %v6591 = vunpack.c.l.b16 %v5716
        %v6592 = vunpack.c.h.b16 %v5716
        %v6593 = vunpack.c.l.b16 %v5717
        %v6594 = vunpack.c.h.b16 %v5717
        %v6595 = vunpack.c.l.b16 %v5718
        %v6596 = vunpack.c.h.b16 %v5718
        %v6597 = vunpack.c.l.b16 %v5719
        %v6598 = vunpack.c.h.b16 %v5719
        %v6599 = vunpack.c.l.b16 %v5720
        %v6600 = vunpack.c.h.b16 %v5720
        %v6601 = vunpack.c.l.b16 %v5721
        %v6602 = vunpack.c.h.b16 %v5721
        %v6603 = vunpack.c.l.b16 %v5722
        %v6604 = vunpack.c.h.b16 %v5722
        %v6605 = vunpack.c.l.b16 %v5723
        %v6606 = vunpack.c.h.b16 %v5723
        %v6607 = vunpack.c.l.b16 %v5724
        %v6608 = vunpack.c.h.b16 %v5724
        %v6609 = vunpack.c.l.b16 %v5725
        %v6610 = vunpack.c.h.b16 %v5725
        %v6611 = vunpack.c.l.b16 %v5726
        %v6612 = vunpack.c.h.b16 %v5726
        %v6613 = vpack.c.b16 %v6583, %v6581
        %v6614 = vpack.c.b16 %v6584, %v6582
        %v6615 = vpack.c.b16 %v6587, %v6585
        %v6616 = vpack.c.b16 %v6588, %v6586
        %v6617 = vpack.c.b16 %v6591, %v6589
        %v6618 = vpack.c.b16 %v6592, %v6590
        %v6619 = vpack.c.b16 %v6595, %v6593
        %v6620 = vpack.c.b16 %v6596, %v6594
        %v6621 = vpack.c.b16 %v6599, %v6597
        %v6622 = vpack.c.b16 %v6600, %v6598
        %v6623 = vpack.c.b16 %v6603, %v6601
        %v6624 = vpack.c.b16 %v6604, %v6602
        %v6625 = vpack.c.b16 %v6607, %v6605
        %v6626 = vpack.c.b16 %v6608, %v6606
        %v6627 = vpack.c.b16 %v6611, %v6609
        %v6628 = vpack.c.b16 %v6612, %v6610
        %6645 = vmatpush.bf16.msra.mxu0 %v6627
        %6646 = vmatpush.bf16.msra.mxu0 %v6625
        %6647 = vmatpush.bf16.msra.mxu0 %v6623
        %6648 = vmatpush.bf16.msra.mxu0 %v6621
        %6649 = vmatpush.bf16.msra.mxu0 %v6619
        %6650 = vmatpush.bf16.msra.mxu0 %v6617
        %6651 = vmatpush.bf16.msra.mxu0 %v6615
        %6652 = vmatpush.bf16.msra.mxu0 %v6613
        %6653 = vmatmul.bf16.gmra.mxu0 %v6564
        %v6654 = vpop.f32.mrf.mxu0
        %v6655 = vadd.f32 0.0, %v6654
        %v6656 = vpop.f32.mrf.mxu0
        %v6657 = vadd.f32 0.0, %v6656
        %6658 = vdwg.mxu0
        %6659 = vmatpush.bf16.msra.mxu0 %v6628
        %6660 = vmatpush.bf16.msra.mxu0 %v6626
        %6661 = vmatpush.bf16.msra.mxu0 %v6624
        %6662 = vmatpush.bf16.msra.mxu0 %v6622
        %6663 = vmatpush.bf16.msra.mxu0 %v6620
        %6664 = vmatpush.bf16.msra.mxu0 %v6618
        %6665 = vmatpush.bf16.msra.mxu0 %v6616
        %6666 = vmatpush.bf16.msra.mxu0 %v6614
        %6667 = vmatmul.bf16.gmra.mxu0 %v6564
        %v6668 = vpop.f32.mrf.mxu0
        %v6669 = vadd.f32 0.0, %v6668
        %v6670 = vpop.f32.mrf.mxu0
        %v6671 = vadd.f32 0.0, %v6670
        %6672 = vdwg.mxu0
        %v6673 = vxor.u32 %v6655, 2147483648
        %v6674 = vxor.u32 %v6657, 2147483648
        %v6675 = vmul.f32 %v6673, 1.442695
        %v6676 = vpow.pop %v6675
        %v6677 = vmul.f32 %v6674, 1.442695
        %v6678 = vpow.pop %v6677
        %v6679 = vadd.f32 %v6676, 1.0
        %v6680 = vadd.f32 %v6678, 1.0
        %v6681 = vrcp.pop %v6679
        %v6682 = vmul.f32 %v6679, %v6681
        %v6683 = vsub.f32 1.0, %v6682
        %v6684 = vmul.f32 %v6681, %v6683
        %v6685 = vadd.f32 %v6681, %v6684
        %vm6686 = vweird.f32 %v6679
        %vm6687 = vweird.f32 %v6681
        %vm6688 = vmor %vm6686, %vm6687
        %v6689 = vsel %vm6688, %v6681, %v6685
        %v6690 = vand.u32 2147483647, %v6679
        %vm6691 = vcmp.eq.f32.partialorder %v6690, 8.507059e+37
        %v6692 = vand.u32 %v6679, 2147483648
        %v6693 = vor.u32 1.1754944e-38, %v6692
        %v6694 = vsel %vm6691, %v6693, %v6689
        %v6695 = vmul.f32 1.0, %v6694
        %v6696 = vrcp.pop %v6680
        %v6697 = vmul.f32 %v6680, %v6696
        %v6698 = vsub.f32 1.0, %v6697
        %v6699 = vmul.f32 %v6696, %v6698
        %v6700 = vadd.f32 %v6696, %v6699
        %vm6701 = vweird.f32 %v6680
        %vm6702 = vweird.f32 %v6696
        %vm6703 = vmor %vm6701, %vm6702
        %v6704 = vsel %vm6703, %v6696, %v6700
        %v6705 = vand.u32 2147483647, %v6680
        %vm6706 = vcmp.eq.f32.partialorder %v6705, 8.507059e+37
        %v6707 = vand.u32 %v6680, 2147483648
        %v6708 = vor.u32 1.1754944e-38, %v6707
        %v6709 = vsel %vm6706, %v6708, %v6704
        %v6710 = vmul.f32 1.0, %v6709
        %v6711 = vmul.f32 %v6655, %v6695
        %v6712 = vmul.f32 %v6657, %v6710
        %v6713 = vmul.f32 %v6711, %v6669
        %v6714 = vmul.f32 %v6712, %v6671
        %v6715 = vpack.c.bf16 %v6714, %v6713
        %v6732 = vunpack.c.l.b16 %v5727
        %v6733 = vunpack.c.l.b16 %v5728
        %v6734 = vunpack.c.l.b16 %v5729
        %v6735 = vunpack.c.l.b16 %v5730
        %v6736 = vunpack.c.l.b16 %v5731
        %v6737 = vunpack.c.l.b16 %v5732
        %v6738 = vunpack.c.l.b16 %v5733
        %v6739 = vunpack.c.l.b16 %v5734
        %v6740 = vunpack.c.l.b16 %v5735
        %v6741 = vunpack.c.l.b16 %v5736
        %v6742 = vunpack.c.l.b16 %v5737
        %v6743 = vunpack.c.l.b16 %v5738
        %v6744 = vunpack.c.l.b16 %v5739
        %v6745 = vunpack.c.l.b16 %v5740
        %v6746 = vunpack.c.l.b16 %v5741
        %v6747 = vunpack.c.l.b16 %v5742
        %v6748 = vpack.c.b16 %v6733, %v6732
        %v6749 = vpack.c.b16 %v6735, %v6734
        %v6750 = vpack.c.b16 %v6737, %v6736
        %v6751 = vpack.c.b16 %v6739, %v6738
        %v6752 = vpack.c.b16 %v6741, %v6740
        %v6753 = vpack.c.b16 %v6743, %v6742
        %v6754 = vpack.c.b16 %v6745, %v6744
        %v6755 = vpack.c.b16 %v6747, %v6746
        %6764 = vmatpush.bf16.msra.mxu0 %v6755
        %6765 = vmatpush.bf16.msra.mxu0 %v6754
        %6766 = vmatpush.bf16.msra.mxu0 %v6753
        %6767 = vmatpush.bf16.msra.mxu0 %v6752
        %6768 = vmatpush.bf16.msra.mxu0 %v6751
        %6769 = vmatpush.bf16.msra.mxu0 %v6750
        %6770 = vmatpush.bf16.msra.mxu0 %v6749
        %6771 = vmatpush.bf16.msra.mxu0 %v6748
        %6772 = vmatmul.bf16.gmra.mxu0 %v6715
        %v6773 = vpop.f32.mrf.mxu0
        %v6774 = vadd.f32 0.0, %v6773
        %v6775 = vpop.f32.mrf.mxu0
        %v6776 = vadd.f32 0.0, %v6775
        %6777 = vdwg.mxu0
        %v6778 = vadd.f32 %v6525, %v6774
        %v6779 = vadd.f32 %v6526, %v6776
        %v6780 = vld [vmem:[#allocation43] sm:$0x1]
        %v6781 = vld [vmem:[#allocation44] sm:$0xff]
        %v6782 = vld [vmem:[#allocation44 + $0x8] sm:$0xff]
        %v6783 = vld [vmem:[#allocation44 + $0x10] sm:$0xff]
        %v6784 = vld [vmem:[#allocation44 + $0x18] sm:$0xff]
        %v6785 = vld [vmem:[#allocation44 + $0x20] sm:$0xff]
        %v6786 = vld [vmem:[#allocation44 + $0x28] sm:$0xff]
        %v6787 = vld [vmem:[#allocation44 + $0x30] sm:$0xff]
        %v6788 = vld [vmem:[#allocation44 + $0x38] sm:$0xff]
        %v6789 = vld [vmem:[#allocation44 + $0x40] sm:$0xff]
        %v6790 = vld [vmem:[#allocation44 + $0x48] sm:$0xff]
        %v6791 = vld [vmem:[#allocation44 + $0x50] sm:$0xff]
        %v6792 = vld [vmem:[#allocation44 + $0x58] sm:$0xff]
        %v6793 = vld [vmem:[#allocation44 + $0x60] sm:$0xff]
        %v6794 = vld [vmem:[#allocation44 + $0x68] sm:$0xff]
        %v6795 = vld [vmem:[#allocation44 + $0x70] sm:$0xff]
        %v6796 = vld [vmem:[#allocation44 + $0x78] sm:$0xff]
        %v6797 = vmul.f32 %v6778, %v6778
        %v6798 = vmul.f32 %v6779, %v6779
        %6799 = vadd.xlane.f32.xlu0 %v6797
        %v6800 = vpop.xlane.xlu0 %6799
        %6801 = vadd.xlane.f32.xlu0 %v6798
        %v6802 = vpop.xlane.xlu0 %6801
        %v6803 = vmul.f32 %v6800, 0.015625
        %v6804 = vmul.f32 %v6802, 0.015625
        %v6805 = vadd.f32 %v6803, 1e-06
        %v6806 = vadd.f32 %v6804, 1e-06
        %v6807 = vrsqrt.pop %v6805
        %v6808 = vmul.f32 %v6807, %v6805
        %v6809 = vmul.f32 %v6808, %v6807
        %v6810 = vmul.f32 0.5, %v6809
        %v6811 = vsub.f32 1.5, %v6810
        %v6812 = vmul.f32 %v6807, %v6811
        %vm6813 = vweird.f32 %v6805
        %vm6814 = vweird.f32 %v6807
        %vm6815 = vmor %vm6813, %vm6814
        %v6816 = vsel %vm6815, %v6807, %v6812
        %v6817 = vrsqrt.pop %v6806
        %v6818 = vmul.f32 %v6817, %v6806
        %v6819 = vmul.f32 %v6818, %v6817
        %v6820 = vmul.f32 0.5, %v6819
        %v6821 = vsub.f32 1.5, %v6820
        %v6822 = vmul.f32 %v6817, %v6821
        %vm6823 = vweird.f32 %v6806
        %vm6824 = vweird.f32 %v6817
        %vm6825 = vmor %vm6823, %vm6824
        %v6826 = vsel %vm6825, %v6817, %v6822
        %v6827 = vmul.f32 %v6778, %v6816
        %v6828 = vmul.f32 %v6779, %v6826
        %v6830 = vperm.slane %v6780, 0
        %v6832 = vmul.f32 %v6827, %v6830
        %v6833 = vmul.f32 %v6828, %v6830
        %v6834 = vpack.c.bf16 %v6833, %v6832
        %v6851 = vunpack.c.l.b16 %v6781
        %v6852 = vunpack.c.h.b16 %v6781
        %v6853 = vunpack.c.l.b16 %v6782
        %v6854 = vunpack.c.h.b16 %v6782
        %v6855 = vunpack.c.l.b16 %v6783
        %v6856 = vunpack.c.h.b16 %v6783
        %v6857 = vunpack.c.l.b16 %v6784
        %v6858 = vunpack.c.h.b16 %v6784
        %v6859 = vunpack.c.l.b16 %v6785
        %v6860 = vunpack.c.h.b16 %v6785
        %v6861 = vunpack.c.l.b16 %v6786
        %v6862 = vunpack.c.h.b16 %v6786
        %v6863 = vunpack.c.l.b16 %v6787
        %v6864 = vunpack.c.h.b16 %v6787
        %v6865 = vunpack.c.l.b16 %v6788
        %v6866 = vunpack.c.h.b16 %v6788
        %v6867 = vunpack.c.l.b16 %v6789
        %v6868 = vunpack.c.h.b16 %v6789
        %v6869 = vunpack.c.l.b16 %v6790
        %v6870 = vunpack.c.h.b16 %v6790
        %v6871 = vunpack.c.l.b16 %v6791
        %v6872 = vunpack.c.h.b16 %v6791
        %v6873 = vunpack.c.l.b16 %v6792
        %v6874 = vunpack.c.h.b16 %v6792
        %v6875 = vunpack.c.l.b16 %v6793
        %v6876 = vunpack.c.h.b16 %v6793
        %v6877 = vunpack.c.l.b16 %v6794
        %v6878 = vunpack.c.h.b16 %v6794
        %v6879 = vunpack.c.l.b16 %v6795
        %v6880 = vunpack.c.h.b16 %v6795
        %v6881 = vunpack.c.l.b16 %v6796
        %v6882 = vunpack.c.h.b16 %v6796
        %v6883 = vpack.c.b16 %v6853, %v6851
        %v6884 = vpack.c.b16 %v6854, %v6852
        %v6885 = vpack.c.b16 %v6857, %v6855
        %v6886 = vpack.c.b16 %v6858, %v6856
        %v6887 = vpack.c.b16 %v6861, %v6859
        %v6888 = vpack.c.b16 %v6862, %v6860
        %v6889 = vpack.c.b16 %v6865, %v6863
        %v6890 = vpack.c.b16 %v6866, %v6864
        %v6891 = vpack.c.b16 %v6869, %v6867
        %v6892 = vpack.c.b16 %v6870, %v6868
        %v6893 = vpack.c.b16 %v6873, %v6871
        %v6894 = vpack.c.b16 %v6874, %v6872
        %v6895 = vpack.c.b16 %v6877, %v6875
        %v6896 = vpack.c.b16 %v6878, %v6876
        %v6897 = vpack.c.b16 %v6881, %v6879
        %v6898 = vpack.c.b16 %v6882, %v6880
        %6915 = vmatpush.bf16.msra.mxu0 %v6897
        %6916 = vmatpush.bf16.msra.mxu0 %v6895
        %6917 = vmatpush.bf16.msra.mxu0 %v6893
        %6918 = vmatpush.bf16.msra.mxu0 %v6891
        %6919 = vmatpush.bf16.msra.mxu0 %v6889
        %6920 = vmatpush.bf16.msra.mxu0 %v6887
        %6921 = vmatpush.bf16.msra.mxu0 %v6885
        %6922 = vmatpush.bf16.msra.mxu0 %v6883
        %6923 = vmatmul.bf16.gmra.mxu0 %v6834
        %v6924 = vpop.f32.mrf.mxu0
        %v6925 = vadd.f32 0.0, %v6924
        %v6926 = vpop.f32.mrf.mxu0
        %v6927 = vadd.f32 0.0, %v6926
        %6928 = vdwg.mxu0
        %6929 = vmatpush.bf16.msra.mxu0 %v6898
        %6930 = vmatpush.bf16.msra.mxu0 %v6896
        %6931 = vmatpush.bf16.msra.mxu0 %v6894
        %6932 = vmatpush.bf16.msra.mxu0 %v6892
        %6933 = vmatpush.bf16.msra.mxu0 %v6890
        %6934 = vmatpush.bf16.msra.mxu0 %v6888
        %6935 = vmatpush.bf16.msra.mxu0 %v6886
        %6936 = vmatpush.bf16.msra.mxu0 %v6884
        %6937 = vmatmul.bf16.gmra.mxu0 %v6834
        %v6938 = vpop.f32.mrf.mxu0
        %v6939 = vadd.f32 0.0, %v6938
        %v6940 = vpop.f32.mrf.mxu0
        %v6941 = vadd.f32 0.0, %v6940
        %6942 = vdwg.mxu0
        %6943 = vst [vmem:[%s1580] sm:$0xff] %v6925
        %6944 = vst [vmem:[%s1580 + $0x8] sm:$0xff] %v6939
        %6945 = vst [vmem:[%s1580 + $0x10] sm:$0xff] %v6927
        %6946 = vst [vmem:[%s1580 + $0x18] sm:$0xff] %v6941
        %s6947 = sand.u32 %s917, 1
        %s6948 = scalar_lea.sflag [#allocation4], %s6947
        %s6949 = sand.u32 %s917, 1
        %s6950 = smul.addr %s6949, 32
        %s6951 = scalar_lea.vmem [#allocation46], %s6950
        // Predicated region
        $region285: #{hybrid_forward.1} parent=171 // pred_check
          %p6952 = pneg %p927
        $region286: #{hybrid_forward.1} parent=171 // pred_check_branch
          %6954 = sbr.rel (%p6952) target = $region288
        $region287: #{hybrid_forward.1} parent=171 // pred_region
          %6956 = vsyncadd %s6948, 0
          %s6957 = smul.addr %s106, 4
          %s6958 = smul.addr %s6957, 8
          %s6959 = scalar_lea.hbm %s77, %s6958
          %s6960 = sshll.u32 %s6951, 4
          %s6961 = int_to_ptr.vmem [resolvable:$true] %s6960
          %s6962 = sshll.u32 %s6959, 4
          %s6963 = int_to_ptr.hbm [resolvable:$true] %s6962
          %6968 = dma.vmem_to_hbm [thread:$0]  %s6961, 512, %s6963, %s6948, 256, 256, 16
        $region288: #{hybrid_forward.1} parent=171 // pred_fallthru
          _
      $region172: #{hybrid_forward.1} parent=5 // pred_fallthru
        _
      %p6969 = scmp.le.s32.totalorder 2, %s101
      // Predicated region
      $region289: #{hybrid_forward.1} parent=5 // pred_check
        %p6970 = pneg %p6969
      $region290: #{hybrid_forward.1} parent=5 // pred_check_branch
        %6972 = sbr.rel (%p6970) target = $region292
      $region291: #{hybrid_forward.1} parent=5 // pred_region
        %s6973 = ssub.s32 %s101, 2
        // Predicated region
        $region293: #{hybrid_forward.1} parent=291 // pred_check
          %p6974 = pneg %p933
        $region294: #{hybrid_forward.1} parent=291 // pred_check_branch
          %6976 = sbr.rel (%p6974) target = $region296
        $region295: #{hybrid_forward.1} parent=291 // pred_region
          %s6977 = sand.u32 %s918, 1
          %s6978 = scalar_lea.sflag [#allocation4], %s6977
          %s6979 = sand.u32 %s918, 1
          %s6980 = smul.addr %s6979, 32
          %s6981 = scalar_lea.vmem [#allocation46], %s6980
          %6983 = dma.done %s6978, 512
        $region296: #{hybrid_forward.1} parent=291 // pred_fallthru
          _
      $region292: #{hybrid_forward.1} parent=5 // pred_fallthru
        _
    $region6: #{hybrid_forward.1} parent=1 // loop_footer
      %s105 = sadd.s32 1, %s101
    $region7: #{hybrid_forward.1} parent=1 // loop_footer_branch
      %100 = sbr.rel target = $region3
    $region8: #{hybrid_forward.1} parent=1 // loop_exit
      _
    %6984 = vsyncpa [#allocation3], 1
    %s6985 = scalar_lea.sflag [#allocation3], 1
    %6986 = vsyncpa %s6985, 1
    %6987 = vsyncpa [#allocation6], 1
    %6988 = vsyncpa [#allocation9], 1
    %6989 = vsyncpa [#allocation12], 1
    %6990 = vsyncpa [#allocation15], 1
    %6991 = vsyncpa [#allocation18], 1
    %6992 = vsyncpa [#allocation21], 1
    %6993 = vsyncpa [#allocation24], 1
    %6994 = vsyncpa [#allocation27], 1
    %6995 = vsyncpa [#allocation30], 1
    %6996 = vsyncpa [#allocation33], 1
    %6997 = vsyncpa [#allocation36], 1
    %6998 = vsyncpa [#allocation39], 1
    %6999 = vsyncpa [#allocation42], 1
    %7000 = vsyncpa [#allocation45], 1
    %7001 = vsyncpa [#allocation4], 1
    %s7002 = scalar_lea.sflag [#allocation4], 1
    %7003 = vsyncpa %s7002, 1

</llo_original>
